<compile_context>
chip_gen: v6e
topology: v6e:2x2x1
jax: 0.10.0
libtpu: 0.0.40
codegen_flags: <defaults>
</compile_context>

<pallas_src>
import functools

import jax
import jax.numpy as jnp
from jax.experimental import pallas as pl
from jax.experimental.pallas import tpu as pltpu


LANE = 128  # TPU lane width; small hidden dims are zero-padded up to this.


def _round_up(x, m):
    return ((x + m - 1) // m) * m


def autoencoder_kernel(ids_ref,
                       temb_ref, vemb_ref,
                       w_et_ref, b_et_ref,
                       w_ev_ref, b_ev_ref,
                       w_ct_ref, w_cv_ref, b_c_ref,
                       w_d1_ref, b_d1_ref,
                       w_dt2_ref, b_dt2_ref,
                       w_dv2_ref, b_dv2_ref,
                       v3_ref, sse_ref,
                       v1t_buf, v1i_buf, sem,
                       *, batch_size, tile_b, ht_p):
    """One batch tile: fused gather + encoder/decoder + masked SSE partials."""
    f32 = jnp.float32
    bf16 = jnp.bfloat16
    sig = jax.nn.sigmoid

    b = pl.program_id(0)
    base = b * tile_b

    # ---- Fused gather: per-row DMA from the HBM embedding tables into VMEM.
    # Padded batch rows use id 0 (always valid); they are masked out of the
    # SSE below and their v3 rows are sliced away in the wrapper.
    @pl.loop(0, tile_b)
    def _fetch(r):
        eid = ids_ref[base + r]
        pltpu.make_async_copy(temb_ref.at[pl.ds(eid, 1), :],
                              v1t_buf.at[pl.ds(r, 1), :], sem.at[0]).start()
        pltpu.make_async_copy(vemb_ref.at[pl.ds(eid, 1), :],
                              v1i_buf.at[pl.ds(r, 1), :], sem.at[1]).start()

    @pl.loop(0, tile_b)
    def _drain(r):
        # One wait per issued row copy (same shapes -> matching amounts).
        pltpu.make_async_copy(temb_ref.at[pl.ds(0, 1), :],
                              v1t_buf.at[pl.ds(0, 1), :], sem.at[0]).wait()
        pltpu.make_async_copy(vemb_ref.at[pl.ds(0, 1), :],
                              v1i_buf.at[pl.ds(0, 1), :], sem.at[1]).wait()

    v1t = v1t_buf[...]                                        # [TB, Dt] f32
    v1i = v1i_buf[...]                                        # [TB, Dv] f32

    def layer(x_bf16, w_ref, b_ref):
        # bf16 matmul on the MXU, f32 accumulation; bias + sigmoid in f32.
        acc = jnp.dot(x_bf16, w_ref[...], preferred_element_type=f32)
        return sig(acc + b_ref[...])

    def wide_layer(x_bf16, w_ref, b_ref):
        # Wide outputs (Dt/Dv lanes): bf16 sigmoid keeps the EUP off the
        # critical path on v6e/v7x; upcast for the squared-error reduction.
        acc = jnp.dot(x_bf16, w_ref[...], preferred_element_type=f32)
        return sig((acc + b_ref[...]).astype(bf16)).astype(f32)

    # Encoder.
    v2t = layer(v1t.astype(bf16), w_et_ref, b_et_ref).astype(bf16)   # [TB, Ht_p]
    v2i = layer(v1i.astype(bf16), w_ev_ref, b_ev_ref).astype(bf16)   # [TB, Hv_p]

    # cat(v2_t, v2_i) @ W_c^T  ==  v2_t @ W_c_text + v2_i @ W_c_visual
    v3 = sig(jnp.dot(v2t, w_ct_ref[...], preferred_element_type=f32)
             + jnp.dot(v2i, w_cv_ref[...], preferred_element_type=f32)
             + b_c_ref[...])                                          # [TB, H_p] f32

    # Decoder: first-layer weights are packed [H_p, Ht_p+Hv_p] (shared LHS).
    v4 = layer(v3.astype(bf16), w_d1_ref, b_d1_ref).astype(bf16)      # [TB, Ht_p+Hv_p]
    v4t = v4[:, :ht_p]
    v4i = v4[:, ht_p:]
    v5t = wide_layer(v4t, w_dt2_ref, b_dt2_ref)                       # [TB, Dt] f32
    v5i = wide_layer(v4i, w_dv2_ref, b_dv2_ref)                       # [TB, Dv] f32

    v3_ref[...] = v3                                                  # lane-dense

    # Masked SSE partials: reduce along lanes first, then apply the [TB,1]
    # batch-validity mask; 1/(B*D) normalization happens once in the wrapper.
    row = jax.lax.broadcasted_iota(jnp.int32, (tile_b, 1), 0) + base
    valid = (row < batch_size).astype(f32)
    dte = v1t - v5t
    die = v1i - v5i
    sse_t = jnp.sum(jnp.sum(dte * dte, axis=1, keepdims=True) * valid)
    sse_i = jnp.sum(jnp.sum(die * die, axis=1, keepdims=True) * valid)

    lane = jax.lax.broadcasted_iota(jnp.int32, (1, LANE), 1)
    sse_ref[0] = jnp.where(lane == 0, sse_t, jnp.where(lane == 1, sse_i, 0.0))


def init_params(key, entity_count, dt, dv, ht, hv, h):
    """Deterministic synthetic parameters (shapes follow the module's __init__).

    Weights are stored already transposed as [in_features, out_features]; the
    combined-encoder weight is stored pre-split into its text / visual halves.
    """
    ks = jax.random.split(key, 18)
    f32 = jnp.float32

    def linear(kw, kb, fan_in, fan_out):
        bound = 1.0 / jnp.sqrt(float(fan_in))
        w = jax.random.uniform(kw, (fan_in, fan_out), f32, -bound, bound)
        b = jax.random.uniform(kb, (1, fan_out), f32, -bound, bound)
        return w, b

    params = {}
    params["text_emb"] = jax.random.normal(ks[0], (entity_count, dt), f32)
    params["visual_emb"] = jax.random.normal(ks[1], (entity_count, dv), f32)
    params["w_et"], params["b_et"] = linear(ks[2], ks[3], dt, ht)
    params["w_ev"], params["b_ev"] = linear(ks[4], ks[5], dv, hv)
    w_c, params["b_c"] = linear(ks[6], ks[7], ht + hv, h)
    params["w_ct"] = w_c[:ht, :]     # text half of combined encoder weight
    params["w_cv"] = w_c[ht:, :]     # visual half of combined encoder weight
    params["w_dt1"], params["b_dt1"] = linear(ks[8], ks[9], h, ht)
    params["w_dv1"], params["b_dv1"] = linear(ks[10], ks[11], h, hv)
    params["w_dt2"], params["b_dt2"] = linear(ks[12], ks[13], ht, dt)
    params["w_dv2"], params["b_dv2"] = linear(ks[14], ks[15], hv, dv)
    return params


def prepare_kernel_params(params):
    """Lane-pad hidden dims to 128, pack decoder-first-layer weights, cast bf16.

    Zero column-padding + zero downstream row-padding guarantees the pad lanes
    (which become sigmoid(0)=0.5 after each activation) contribute exactly
    nothing to any downstream result, so semantics are unchanged.
    """
    bf16 = jnp.bfloat16

    def pad2(x, rows, cols):
        r, c = x.shape
        return jnp.pad(x, ((0, rows - r), (0, cols - c)))

    dt, ht = params["w_et"].shape
    dv, hv = params["w_ev"].shape
    h = params["w_ct"].shape[1]
    ht_p, hv_p, h_p = (_round_up(d, LANE) for d in (ht, hv, h))

    kp = dict(
        # Embedding tables stay f32 in HBM; the kernel gathers rows by DMA.
        text_emb=params["text_emb"].astype(jnp.float32),
        visual_emb=params["visual_emb"].astype(jnp.float32),
        w_et=pad2(params["w_et"], dt, ht_p).astype(bf16),
        b_et=pad2(params["b_et"], 1, ht_p),
        w_ev=pad2(params["w_ev"], dv, hv_p).astype(bf16),
        b_ev=pad2(params["b_ev"], 1, hv_p),
        w_ct=pad2(params["w_ct"], ht_p, h_p).astype(bf16),
        w_cv=pad2(params["w_cv"], hv_p, h_p).astype(bf16),
        b_c=pad2(params["b_c"], 1, h_p),
        # Decoder first layers share v3 as LHS -> pack into one weight/bias.
        w_d1=jnp.concatenate(
            [pad2(params["w_dt1"], h_p, ht_p),
             pad2(params["w_dv1"], h_p, hv_p)], axis=1).astype(bf16),
        b_d1=jnp.concatenate(
            [pad2(params["b_dt1"], 1, ht_p),
             pad2(params["b_dv1"], 1, hv_p)], axis=1),
        w_dt2=pad2(params["w_dt2"], ht_p, dt).astype(bf16),
        b_dt2=params["b_dt2"],
        w_dv2=pad2(params["w_dv2"], hv_p, dv).astype(bf16),
        b_dv2=params["b_dv2"],
    )

    # Padding invariant (review): pad lanes become sigmoid(0)=0.5 after each
    # activation, so every downstream weight ROW for a pad index must be zero,
    # and the pad lanes of the corresponding biases must be zero.
    assert not bool(jnp.any(kp["w_ct"][ht:, :] != 0))
    assert not bool(jnp.any(kp["w_cv"][hv:, :] != 0))
    assert not bool(jnp.any(kp["w_d1"][h:, :] != 0))
    assert not bool(jnp.any(kp["w_dt2"][ht:, :] != 0))
    assert not bool(jnp.any(kp["w_dv2"][hv:, :] != 0))
    assert not bool(jnp.any(kp["b_et"][:, ht:] != 0))
    assert not bool(jnp.any(kp["b_ev"][:, hv:] != 0))
    assert not bool(jnp.any(kp["b_c"][:, h:] != 0))
    assert not bool(jnp.any(kp["b_d1"][:, ht:ht_p] != 0))
    assert not bool(jnp.any(kp["b_d1"][:, ht_p + hv:] != 0))
    return kp


def _const_spec(shape, single_buffer):
    """Spec for a grid-invariant operand (DMA'd once, VMEM-resident)."""
    index_map = lambda b, ids: (0,) * len(shape)
    if single_buffer:
        # One buffer is enough for an invariant operand; halves resident-weight
        # VMEM (matters on v7x's 64 MiB budget).
        return pl.BlockSpec(shape, index_map, pipeline_mode=pl.Buffered(1))
    return pl.BlockSpec(shape, index_map)


@functools.partial(jax.jit,
                   static_argnames=("hidden", "tile_b", "single_buffer_weights"))
def autoencoder_forward(entity_ids, kparams, *, hidden, tile_b=256,
                        single_buffer_weights=True):
    temb = kparams["text_emb"]
    vemb = kparams["visual_emb"]
    dt = temb.shape[1]
    dv = vemb.shape[1]
    ht_p = kparams["w_et"].shape[1]
    hv_p = kparams["w_ev"].shape[1]
    h_p = kparams["w_ct"].shape[1]

    b_real = entity_ids.shape[0]
    nb = pl.cdiv(b_real, tile_b)
    b_pad = nb * tile_b
    ids = jnp.pad(entity_ids.astype(jnp.int32), (0, b_pad - b_real))  # pad: id 0

    weights = (
        kparams["w_et"], kparams["b_et"],
        kparams["w_ev"], kparams["b_ev"],
        kparams["w_ct"], kparams["w_cv"], kparams["b_c"],
        kparams["w_d1"], kparams["b_d1"],
        kparams["w_dt2"], kparams["b_dt2"],
        kparams["w_dv2"], kparams["b_dv2"],
    )

    in_specs = (
        [pl.BlockSpec(memory_space=pl.ANY),    # text embedding table (HBM)
         pl.BlockSpec(memory_space=pl.ANY)]    # visual embedding table (HBM)
        + [_const_spec(w.shape, single_buffer_weights) for w in weights]
    )

    out_shape = (
        jax.ShapeDtypeStruct((b_pad, h_p), jnp.float32),    # v3 (lane-dense)
        jax.ShapeDtypeStruct((nb, 1, LANE), jnp.float32),   # per-tile SSE
    )
    out_specs = [
        pl.BlockSpec((tile_b, h_p), lambda b, ids: (b, 0)),
        pl.BlockSpec((1, 1, LANE), lambda b, ids: (b, 0, 0)),
    ]

    scratch_shapes = [
        pltpu.VMEM((tile_b, dt), jnp.float32),   # gathered v1_t tile
        pltpu.VMEM((tile_b, dv), jnp.float32),   # gathered v1_i tile
        pltpu.SemaphoreType.DMA((2,)),           # text / visual gather sems
    ]

    flops = 2 * b_pad * (dt * ht_p + dv * hv_p + ht_p * h_p + hv_p * h_p
                         + h_p * (ht_p + hv_p) + ht_p * dt + hv_p * dv)
    transcendentals = b_pad * (2 * ht_p + 2 * hv_p + h_p + dt + dv)
    bytes_accessed = int(b_pad * (dt + dv) * 4
                         + sum(w.size * w.dtype.itemsize for w in weights)
                         + b_pad * h_p * 4 + nb * LANE * 4 + b_pad * 4)

    kernel = functools.partial(autoencoder_kernel, batch_size=b_real,
                               tile_b=tile_b, ht_p=ht_p)

    v3_pad, sse = pl.pallas_call(
        kernel,
        out_shape=out_shape,
        grid_spec=pltpu.PrefetchScalarGridSpec(
            num_scalar_prefetch=1,
            grid=(nb,),
            in_specs=in_specs,
            out_specs=out_specs,
            scratch_shapes=scratch_shapes,
        ),
        compiler_params=pltpu.CompilerParams(
            dimension_semantics=("parallel",),   # batch tiles are independent
            vmem_limit_bytes=48 * 1024 * 1024,
        ),
        cost_estimate=pl.CostEstimate(
            flops=flops,
            transcendentals=transcendentals,
            bytes_accessed=bytes_accessed),
    )(ids, temb, vemb, *weights)

    v3 = v3_pad[:b_real, :hidden]
    recon_error = (jnp.sum(sse[:, 0, 0]) / (b_real * dt)
                   + jnp.sum(sse[:, 0, 1]) / (b_real * dv))
    return v3, recon_error


def pick_tile_b():
    """256-row tiles feed the 256-deep MXU (v6e/v7x); 128 on older chips."""
    try:
        kind = jax.devices()[0].device_kind.lower()
    except Exception:
        kind = ""
    return 128 if any(s in kind for s in ("v2", "v3", "v4", "v5")) else 256


def reference_forward(entity_ids, params):
    """Pure-JAX reference.  Mirrors the kernel's precision policy (bf16 matmul
    inputs, f32 accumulation, bf16 sigmoid on the two wide decoder outputs) so
    the comparison stays tight; structurally identical to the PyTorch forward."""
    f32, bf16 = jnp.float32, jnp.bfloat16
    sig = jax.nn.sigmoid

    def lin(x_b, w, b):
        y = jnp.dot(x_b, w.astype(bf16), preferred_element_type=f32)
        return sig(y + b)

    def lin_wide(x_b, w, b):
        y = jnp.dot(x_b, w.astype(bf16), preferred_element_type=f32) + b
        return sig(y.astype(bf16)).astype(f32)

    v1_t = params["text_emb"][entity_ids].astype(f32)
    v1_i = params["visual_emb"][entity_ids].astype(f32)
    v2_t = lin(v1_t.astype(bf16), params["w_et"], params["b_et"])
    v2_i = lin(v1_i.astype(bf16), params["w_ev"], params["b_ev"])
    v3 = sig(jnp.dot(v2_t.astype(bf16), params["w_ct"].astype(bf16),
                     preferred_element_type=f32)
             + jnp.dot(v2_i.astype(bf16), params["w_cv"].astype(bf16),
                       preferred_element_type=f32)
             + params["b_c"])
    v4_t = lin(v3.astype(bf16), params["w_dt1"], params["b_dt1"])
    v4_i = lin(v3.astype(bf16), params["w_dv1"], params["b_dv1"])
    v5_t = lin_wide(v4_t.astype(bf16), params["w_dt2"], params["b_dt2"])
    v5_i = lin_wide(v4_i.astype(bf16), params["w_dv2"], params["b_dv2"])
    err = jnp.mean((v1_t - v5_t) ** 2) + jnp.mean((v1_i - v5_i) ** 2)
    return v3, err


if __name__ == "__main__":
    # Small shapes consistent with the module (text/visual dims shrunk).
    ENTITY_COUNT = 64
    TEXT_DIM = 128        # stands in for 768
    VISUAL_DIM = 256      # stands in for 4096
    HIDDEN_TEXT = 16      # stands in for 50  (lane-padded to 128 in the kernel)
    HIDDEN_VISUAL = 64    # stands in for 512 (lane-padded to 128 in the kernel)
    HIDDEN = 32           # stands in for 50  (lane-padded to 128 in the kernel)
    BATCH = 200           # not a tile multiple -> exercises batch masking

    key = jax.random.PRNGKey(0)
    k_param, k_ids = jax.random.split(key)
    params = init_params(k_param, ENTITY_COUNT, TEXT_DIM, VISUAL_DIM,
                         HIDDEN_TEXT, HIDDEN_VISUAL, HIDDEN)
    kparams = prepare_kernel_params(params)
    entity_ids = jax.random.randint(k_ids, (BATCH,), 0, ENTITY_COUNT,
                                    dtype=jnp.int32)

    tile_b = pick_tile_b()

    try:
        v3, recon_error = autoencoder_forward(
            entity_ids, kparams, hidden=HIDDEN, tile_b=tile_b,
            single_buffer_weights=True)
        jax.block_until_ready((v3, recon_error))
    except Exception:
        # Fallback: some builds may reject single-buffered (Buffered(1)) specs.
        v3, recon_error = autoencoder_forward(
            entity_ids, kparams, hidden=HIDDEN, tile_b=tile_b,
            single_buffer_weights=False)
        jax.block_until_ready((v3, recon_error))

    v3_ref, err_ref = reference_forward(entity_ids, params)
    assert v3.shape == (BATCH, HIDDEN)
    assert recon_error.shape == ()
    assert jnp.allclose(v3, v3_ref, atol=2e-3, rtol=2e-3), \
        float(jnp.max(jnp.abs(v3 - v3_ref)))
    assert jnp.allclose(recon_error, err_ref, atol=2e-3, rtol=2e-3), \
        (float(recon_error), float(err_ref))

    print("KERNEL_OK")
</pallas_src>

<mosaic_0001>
module attributes {stable_mosaic.version = 11 : i64} {
  func.func @autoencoder_kernel(%arg0: i32, %arg1: memref<256xi32, #tpu.memory_space<smem>>, %arg2: memref<64x128xf32, #tpu.memory_space<any>>, %arg3: memref<64x256xf32, #tpu.memory_space<any>>, %arg4: memref<128x128xbf16, #tpu.memory_space<vmem>>, %arg5: memref<1x128xf32, #tpu.memory_space<vmem>>, %arg6: memref<256x128xbf16, #tpu.memory_space<vmem>>, %arg7: memref<1x128xf32, #tpu.memory_space<vmem>>, %arg8: memref<128x128xbf16, #tpu.memory_space<vmem>>, %arg9: memref<128x128xbf16, #tpu.memory_space<vmem>>, %arg10: memref<1x128xf32, #tpu.memory_space<vmem>>, %arg11: memref<128x256xbf16, #tpu.memory_space<vmem>>, %arg12: memref<1x256xf32, #tpu.memory_space<vmem>>, %arg13: memref<128x128xbf16, #tpu.memory_space<vmem>>, %arg14: memref<1x128xf32, #tpu.memory_space<vmem>>, %arg15: memref<128x256xbf16, #tpu.memory_space<vmem>>, %arg16: memref<1x256xf32, #tpu.memory_space<vmem>>, %arg17: memref<256x128xf32, #tpu.memory_space<vmem>>, %arg18: memref<1x1x128xf32, #tpu.memory_space<vmem>>, %arg19: memref<256x128xf32, #tpu.memory_space<vmem>>, %arg20: memref<256x256xf32, #tpu.memory_space<vmem>>, %arg21: memref<2x!tpu.dma_semaphore, #tpu.memory_space<semaphore_mem>>) attributes {dimension_semantics = [#tpu.dimension_semantics<parallel>], iteration_bounds = array<i64: 1>, scalar_prefetch = 1 : i64, scratch_operands = 3 : i64, tpu.core_type = #tpu.core_type<tc>, window_params = [{}, {}, {pipeline_mode = #tpu.pipeline_mode<synchronous>, transform_indices = @transform_2, window_bounds = array<i64: 128, 128>}, {pipeline_mode = #tpu.pipeline_mode<synchronous>, transform_indices = @transform_3, window_bounds = array<i64: 1, 128>}, {pipeline_mode = #tpu.pipeline_mode<synchronous>, transform_indices = @transform_4, window_bounds = array<i64: 256, 128>}, {pipeline_mode = #tpu.pipeline_mode<synchronous>, transform_indices = @transform_5, window_bounds = array<i64: 1, 128>}, {pipeline_mode = #tpu.pipeline_mode<synchronous>, transform_indices = @transform_6, window_bounds = array<i64: 128, 128>}, {pipeline_mode = #tpu.pipeline_mode<synchronous>, transform_indices = @transform_7, window_bounds = array<i64: 128, 128>}, {pipeline_mode = #tpu.pipeline_mode<synchronous>, transform_indices = @transform_8, window_bounds = array<i64: 1, 128>}, {pipeline_mode = #tpu.pipeline_mode<synchronous>, transform_indices = @transform_9, window_bounds = array<i64: 128, 256>}, {pipeline_mode = #tpu.pipeline_mode<synchronous>, transform_indices = @transform_10, window_bounds = array<i64: 1, 256>}, {pipeline_mode = #tpu.pipeline_mode<synchronous>, transform_indices = @transform_11, window_bounds = array<i64: 128, 128>}, {pipeline_mode = #tpu.pipeline_mode<synchronous>, transform_indices = @transform_12, window_bounds = array<i64: 1, 128>}, {pipeline_mode = #tpu.pipeline_mode<synchronous>, transform_indices = @transform_13, window_bounds = array<i64: 128, 256>}, {pipeline_mode = #tpu.pipeline_mode<synchronous>, transform_indices = @transform_14, window_bounds = array<i64: 1, 256>}, {transform_indices = @transform_15, window_bounds = array<i64: 256, 128>}, {transform_indices = @transform_16, window_bounds = array<i64: 1, 1, 128>}]} {
    %c256_i32 = arith.constant 256 : i32
    %0 = arith.muli %arg0, %c256_i32 : i32
    %c0_i32 = arith.constant 0 : i32
    %c256_i32_0 = arith.constant 256 : i32
    %1 = arith.addi %c0_i32, %c256_i32_0 : i32
    %c1_i32 = arith.constant 1 : i32
    scf.for %arg22 = %c0_i32 to %1 step %c1_i32  : i32 {
      %c1_i32_58 = arith.constant 1 : i32
      %119 = arith.muli %arg22, %c1_i32_58 : i32
      %c0_i32_59 = arith.constant 0 : i32
      %120 = arith.addi %c0_i32_59, %119 : i32
      %121 = arith.addi %0, %120 : i32
      %122 = arith.index_cast %121 : i32 to index
      %123 = memref.load %arg1[%122] : memref<256xi32, #tpu.memory_space<smem>>
      %c0_i32_60 = arith.constant 0 : i32
      %c0_i32_61 = arith.constant 0 : i32
      %124 = tpu.memref_slice %arg2[%123, %c0_i32_61] : memref<64x128xf32, #tpu.memory_space<any>> -> memref<1x128xf32, #tpu.memory_space<any>>
      %c0_i32_62 = arith.constant 0 : i32
      %125 = tpu.memref_slice %arg19[%120, %c0_i32_62] : memref<256x128xf32, #tpu.memory_space<vmem>> -> memref<1x128xf32, #tpu.memory_space<vmem>>
      %126 = tpu.memref_slice %arg21[%c0_i32_60] : memref<2x!tpu.dma_semaphore, #tpu.memory_space<semaphore_mem>> -> memref<1x!tpu.dma_semaphore, #tpu.memory_space<semaphore_mem>>
      %127 = tpu.memref_squeeze %126 : memref<1x!tpu.dma_semaphore, #tpu.memory_space<semaphore_mem>> -> memref<!tpu.dma_semaphore, #tpu.memory_space<semaphore_mem>>
      tpu.enqueue_dma source(%124 : memref<1x128xf32, #tpu.memory_space<any>>) target(%125 : memref<1x128xf32, #tpu.memory_space<vmem>>) target_semaphore(%127 : memref<!tpu.dma_semaphore, #tpu.memory_space<semaphore_mem>>)
      %c1_i32_63 = arith.constant 1 : i32
      %c0_i32_64 = arith.constant 0 : i32
      %128 = tpu.memref_slice %arg3[%123, %c0_i32_64] : memref<64x256xf32, #tpu.memory_space<any>> -> memref<1x256xf32, #tpu.memory_space<any>>
      %c0_i32_65 = arith.constant 0 : i32
      %129 = tpu.memref_slice %arg20[%120, %c0_i32_65] : memref<256x256xf32, #tpu.memory_space<vmem>> -> memref<1x256xf32, #tpu.memory_space<vmem>>
      %130 = tpu.memref_slice %arg21[%c1_i32_63] : memref<2x!tpu.dma_semaphore, #tpu.memory_space<semaphore_mem>> -> memref<1x!tpu.dma_semaphore, #tpu.memory_space<semaphore_mem>>
      %131 = tpu.memref_squeeze %130 : memref<1x!tpu.dma_semaphore, #tpu.memory_space<semaphore_mem>> -> memref<!tpu.dma_semaphore, #tpu.memory_space<semaphore_mem>>
      tpu.enqueue_dma source(%128 : memref<1x256xf32, #tpu.memory_space<any>>) target(%129 : memref<1x256xf32, #tpu.memory_space<vmem>>) target_semaphore(%131 : memref<!tpu.dma_semaphore, #tpu.memory_space<semaphore_mem>>)
    }
    %c256_i32_1 = arith.constant 256 : i32
    %c0_i32_2 = arith.constant 0 : i32
    %c256_i32_3 = arith.constant 256 : i32
    %2 = arith.addi %c0_i32_2, %c256_i32_3 : i32
    %c1_i32_4 = arith.constant 1 : i32
    scf.for %arg22 = %c0_i32_2 to %2 step %c1_i32_4  : i32 {
      %c0_i32_58 = arith.constant 0 : i32
      %c0_i32_59 = arith.constant 0 : i32
      %c0_i32_60 = arith.constant 0 : i32
      %119 = tpu.memref_slice %arg2[%c0_i32_59, %c0_i32_60] : memref<64x128xf32, #tpu.memory_space<any>> -> memref<1x128xf32, #tpu.memory_space<any>>
      %c0_i32_61 = arith.constant 0 : i32
      %c0_i32_62 = arith.constant 0 : i32
      %120 = tpu.memref_slice %arg19[%c0_i32_61, %c0_i32_62] : memref<256x128xf32, #tpu.memory_space<vmem>> -> memref<1x128xf32, #tpu.memory_space<vmem>>
      %121 = tpu.memref_slice %arg21[%c0_i32_58] : memref<2x!tpu.dma_semaphore, #tpu.memory_space<semaphore_mem>> -> memref<1x!tpu.dma_semaphore, #tpu.memory_space<semaphore_mem>>
      %122 = tpu.memref_squeeze %121 : memref<1x!tpu.dma_semaphore, #tpu.memory_space<semaphore_mem>> -> memref<!tpu.dma_semaphore, #tpu.memory_space<semaphore_mem>>
      tpu.wait_dma2 semaphore(%122 : memref<!tpu.dma_semaphore, #tpu.memory_space<semaphore_mem>>) src(%119 : memref<1x128xf32, #tpu.memory_space<any>>) dst(%120 : memref<1x128xf32, #tpu.memory_space<vmem>>)
      %c1_i32_63 = arith.constant 1 : i32
      %c0_i32_64 = arith.constant 0 : i32
      %c0_i32_65 = arith.constant 0 : i32
      %123 = tpu.memref_slice %arg3[%c0_i32_64, %c0_i32_65] : memref<64x256xf32, #tpu.memory_space<any>> -> memref<1x256xf32, #tpu.memory_space<any>>
      %c0_i32_66 = arith.constant 0 : i32
      %c0_i32_67 = arith.constant 0 : i32
      %124 = tpu.memref_slice %arg20[%c0_i32_66, %c0_i32_67] : memref<256x256xf32, #tpu.memory_space<vmem>> -> memref<1x256xf32, #tpu.memory_space<vmem>>
      %125 = tpu.memref_slice %arg21[%c1_i32_63] : memref<2x!tpu.dma_semaphore, #tpu.memory_space<semaphore_mem>> -> memref<1x!tpu.dma_semaphore, #tpu.memory_space<semaphore_mem>>
      %126 = tpu.memref_squeeze %125 : memref<1x!tpu.dma_semaphore, #tpu.memory_space<semaphore_mem>> -> memref<!tpu.dma_semaphore, #tpu.memory_space<semaphore_mem>>
      tpu.wait_dma2 semaphore(%126 : memref<!tpu.dma_semaphore, #tpu.memory_space<semaphore_mem>>) src(%123 : memref<1x256xf32, #tpu.memory_space<any>>) dst(%124 : memref<1x256xf32, #tpu.memory_space<vmem>>)
    }
    %c0 = arith.constant 0 : index
    %c0_5 = arith.constant 0 : index
    %3 = vector.load %arg19[%c0, %c0_5] : memref<256x128xf32, #tpu.memory_space<vmem>>, vector<256x128xf32>
    %c0_6 = arith.constant 0 : index
    %c0_7 = arith.constant 0 : index
    %4 = vector.load %arg20[%c0_6, %c0_7] : memref<256x256xf32, #tpu.memory_space<vmem>>, vector<256x256xf32>
    %5 = arith.truncf %3 : vector<256x128xf32> to vector<256x128xbf16>
    %c0_8 = arith.constant 0 : index
    %c0_9 = arith.constant 0 : index
    %6 = vector.load %arg4[%c0_8, %c0_9] : memref<128x128xbf16, #tpu.memory_space<vmem>>, vector<128x128xbf16>
    %cst = arith.constant dense<0.000000e+00> : vector<256x128xf32>
    %7 = tpu.matmul %5, %6, %cst {dimension_numbers = #tpu.dot_dimension_numbers<[1], [0], [0], [1], [0, 0, 1, 1], [], []>} : vector<256x128xbf16>, vector<128x128xbf16>, vector<256x128xf32> -> vector<256x128xf32>
    %c0_10 = arith.constant 0 : index
    %c0_11 = arith.constant 0 : index
    %8 = vector.load %arg5[%c0_10, %c0_11] : memref<1x128xf32, #tpu.memory_space<vmem>>, vector<1x128xf32>
    %9 = vector.broadcast %8 : vector<1x128xf32> to vector<256x128xf32>
    %10 = arith.addf %7, %9 : vector<256x128xf32>
    %11 = arith.negf %10 : vector<256x128xf32>
    %12 = math.exp %11 : vector<256x128xf32>
    %cst_12 = arith.constant 1.000000e+00 : f32
    %13 = vector.broadcast %cst_12 : f32 to vector<256x128xf32>
    %14 = arith.addf %13, %12 : vector<256x128xf32>
    %15 = arith.divf %13, %14 : vector<256x128xf32>
    %16 = arith.truncf %15 : vector<256x128xf32> to vector<256x128xbf16>
    %17 = arith.truncf %4 : vector<256x256xf32> to vector<256x256xbf16>
    %c0_13 = arith.constant 0 : index
    %c0_14 = arith.constant 0 : index
    %18 = vector.load %arg6[%c0_13, %c0_14] : memref<256x128xbf16, #tpu.memory_space<vmem>>, vector<256x128xbf16>
    %cst_15 = arith.constant dense<0.000000e+00> : vector<256x128xf32>
    %19 = tpu.matmul %17, %18, %cst_15 {dimension_numbers = #tpu.dot_dimension_numbers<[1], [0], [0], [1], [0, 0, 1, 1], [], []>} : vector<256x256xbf16>, vector<256x128xbf16>, vector<256x128xf32> -> vector<256x128xf32>
    %c0_16 = arith.constant 0 : index
    %c0_17 = arith.constant 0 : index
    %20 = vector.load %arg7[%c0_16, %c0_17] : memref<1x128xf32, #tpu.memory_space<vmem>>, vector<1x128xf32>
    %21 = vector.broadcast %20 : vector<1x128xf32> to vector<256x128xf32>
    %22 = arith.addf %19, %21 : vector<256x128xf32>
    %23 = arith.negf %22 : vector<256x128xf32>
    %24 = math.exp %23 : vector<256x128xf32>
    %cst_18 = arith.constant 1.000000e+00 : f32
    %25 = vector.broadcast %cst_18 : f32 to vector<256x128xf32>
    %26 = arith.addf %25, %24 : vector<256x128xf32>
    %27 = arith.divf %25, %26 : vector<256x128xf32>
    %28 = arith.truncf %27 : vector<256x128xf32> to vector<256x128xbf16>
    %c0_19 = arith.constant 0 : index
    %c0_20 = arith.constant 0 : index
    %29 = vector.load %arg8[%c0_19, %c0_20] : memref<128x128xbf16, #tpu.memory_space<vmem>>, vector<128x128xbf16>
    %cst_21 = arith.constant dense<0.000000e+00> : vector<256x128xf32>
    %30 = tpu.matmul %16, %29, %cst_21 {dimension_numbers = #tpu.dot_dimension_numbers<[1], [0], [0], [1], [0, 0, 1, 1], [], []>} : vector<256x128xbf16>, vector<128x128xbf16>, vector<256x128xf32> -> vector<256x128xf32>
    %c0_22 = arith.constant 0 : index
    %c0_23 = arith.constant 0 : index
    %31 = vector.load %arg9[%c0_22, %c0_23] : memref<128x128xbf16, #tpu.memory_space<vmem>>, vector<128x128xbf16>
    %cst_24 = arith.constant dense<0.000000e+00> : vector<256x128xf32>
    %32 = tpu.matmul %28, %31, %cst_24 {dimension_numbers = #tpu.dot_dimension_numbers<[1], [0], [0], [1], [0, 0, 1, 1], [], []>} : vector<256x128xbf16>, vector<128x128xbf16>, vector<256x128xf32> -> vector<256x128xf32>
    %33 = arith.addf %30, %32 : vector<256x128xf32>
    %c0_25 = arith.constant 0 : index
    %c0_26 = arith.constant 0 : index
    %34 = vector.load %arg10[%c0_25, %c0_26] : memref<1x128xf32, #tpu.memory_space<vmem>>, vector<1x128xf32>
    %35 = vector.broadcast %34 : vector<1x128xf32> to vector<256x128xf32>
    %36 = arith.addf %33, %35 : vector<256x128xf32>
    %37 = arith.negf %36 : vector<256x128xf32>
    %38 = math.exp %37 : vector<256x128xf32>
    %cst_27 = arith.constant 1.000000e+00 : f32
    %39 = vector.broadcast %cst_27 : f32 to vector<256x128xf32>
    %40 = arith.addf %39, %38 : vector<256x128xf32>
    %41 = arith.divf %39, %40 : vector<256x128xf32>
    %42 = arith.truncf %41 : vector<256x128xf32> to vector<256x128xbf16>
    %c0_28 = arith.constant 0 : index
    %c0_29 = arith.constant 0 : index
    %43 = vector.load %arg11[%c0_28, %c0_29] : memref<128x256xbf16, #tpu.memory_space<vmem>>, vector<128x256xbf16>
    %cst_30 = arith.constant dense<0.000000e+00> : vector<256x256xf32>
    %44 = tpu.matmul %42, %43, %cst_30 {dimension_numbers = #tpu.dot_dimension_numbers<[1], [0], [0], [1], [0, 0, 1, 1], [], []>} : vector<256x128xbf16>, vector<128x256xbf16>, vector<256x256xf32> -> vector<256x256xf32>
    %c0_31 = arith.constant 0 : index
    %c0_32 = arith.constant 0 : index
    %45 = vector.load %arg12[%c0_31, %c0_32] : memref<1x256xf32, #tpu.memory_space<vmem>>, vector<1x256xf32>
    %46 = vector.broadcast %45 : vector<1x256xf32> to vector<256x256xf32>
    %47 = arith.addf %44, %46 : vector<256x256xf32>
    %48 = arith.negf %47 : vector<256x256xf32>
    %49 = math.exp %48 : vector<256x256xf32>
    %cst_33 = arith.constant 1.000000e+00 : f32
    %50 = vector.broadcast %cst_33 : f32 to vector<256x256xf32>
    %51 = arith.addf %50, %49 : vector<256x256xf32>
    %52 = arith.divf %50, %51 : vector<256x256xf32>
    %53 = arith.truncf %52 : vector<256x256xf32> to vector<256x256xbf16>
    %54 = vector.extract_strided_slice %53 {offsets = [0, 0], sizes = [256, 128], strides = [1, 1]} : vector<256x256xbf16> to vector<256x128xbf16>
    %55 = vector.extract_strided_slice %53 {offsets = [0, 128], sizes = [256, 128], strides = [1, 1]} : vector<256x256xbf16> to vector<256x128xbf16>
    %c0_34 = arith.constant 0 : index
    %c0_35 = arith.constant 0 : index
    %56 = vector.load %arg13[%c0_34, %c0_35] : memref<128x128xbf16, #tpu.memory_space<vmem>>, vector<128x128xbf16>
    %cst_36 = arith.constant dense<0.000000e+00> : vector<256x128xf32>
    %57 = tpu.matmul %54, %56, %cst_36 {dimension_numbers = #tpu.dot_dimension_numbers<[1], [0], [0], [1], [0, 0, 1, 1], [], []>} : vector<256x128xbf16>, vector<128x128xbf16>, vector<256x128xf32> -> vector<256x128xf32>
    %c0_37 = arith.constant 0 : index
    %c0_38 = arith.constant 0 : index
    %58 = vector.load %arg14[%c0_37, %c0_38] : memref<1x128xf32, #tpu.memory_space<vmem>>, vector<1x128xf32>
    %59 = vector.broadcast %58 : vector<1x128xf32> to vector<256x128xf32>
    %60 = arith.addf %57, %59 : vector<256x128xf32>
    %61 = arith.truncf %60 : vector<256x128xf32> to vector<256x128xbf16>
    %62 = arith.negf %61 : vector<256x128xbf16>
    %63 = math.exp %62 : vector<256x128xbf16>
    %cst_39 = arith.constant 1.000000e+00 : bf16
    %64 = vector.broadcast %cst_39 : bf16 to vector<256x128xbf16>
    %65 = arith.addf %64, %63 : vector<256x128xbf16>
    %66 = arith.divf %64, %65 : vector<256x128xbf16>
    %67 = arith.extf %66 : vector<256x128xbf16> to vector<256x128xf32>
    %c0_40 = arith.constant 0 : index
    %c0_41 = arith.constant 0 : index
    %68 = vector.load %arg15[%c0_40, %c0_41] : memref<128x256xbf16, #tpu.memory_space<vmem>>, vector<128x256xbf16>
    %cst_42 = arith.constant dense<0.000000e+00> : vector<256x256xf32>
    %69 = tpu.matmul %55, %68, %cst_42 {dimension_numbers = #tpu.dot_dimension_numbers<[1], [0], [0], [1], [0, 0, 1, 1], [], []>} : vector<256x128xbf16>, vector<128x256xbf16>, vector<256x256xf32> -> vector<256x256xf32>
    %c0_43 = arith.constant 0 : index
    %c0_44 = arith.constant 0 : index
    %70 = vector.load %arg16[%c0_43, %c0_44] : memref<1x256xf32, #tpu.memory_space<vmem>>, vector<1x256xf32>
    %71 = vector.broadcast %70 : vector<1x256xf32> to vector<256x256xf32>
    %72 = arith.addf %69, %71 : vector<256x256xf32>
    %73 = arith.truncf %72 : vector<256x256xf32> to vector<256x256xbf16>
    %74 = arith.negf %73 : vector<256x256xbf16>
    %75 = math.exp %74 : vector<256x256xbf16>
    %cst_45 = arith.constant 1.000000e+00 : bf16
    %76 = vector.broadcast %cst_45 : bf16 to vector<256x256xbf16>
    %77 = arith.addf %76, %75 : vector<256x256xbf16>
    %78 = arith.divf %76, %77 : vector<256x256xbf16>
    %79 = arith.extf %78 : vector<256x256xbf16> to vector<256x256xf32>
    %c0_46 = arith.constant 0 : index
    %c0_47 = arith.constant 0 : index
    %80 = vector.load %arg17[%c0_46, %c0_47] : memref<256x128xf32, #tpu.memory_space<vmem>>, vector<256x128xf32>
    tpu.vector_store %arg17[%c0_46, %c0_47], %41 {strides = array<i32>} : memref<256x128xf32, #tpu.memory_space<vmem>>, vector<256x128xf32>,
    %81 = tpu.iota {dimensions = array<i32: 0>} : vector<256x1xi32>
    %82 = vector.broadcast %0 : i32 to vector<256x1xi32>
    %83 = arith.addi %81, %82 : vector<256x1xi32>
    %c200_i32 = arith.constant 200 : i32
    %84 = vector.broadcast %c200_i32 : i32 to vector<256x1xi32>
    %85 = arith.cmpi slt, %83, %84 : vector<256x1xi32>
    %86 = arith.extui %85 : vector<256x1xi1> to vector<256x1xi32>
    %87 = arith.sitofp %86 : vector<256x1xi32> to vector<256x1xf32>
    %88 = arith.subf %3, %67 : vector<256x128xf32>
    %89 = arith.subf %4, %79 : vector<256x256xf32>
    %90 = arith.mulf %88, %88 : vector<256x128xf32>
    %cst_48 = arith.constant dense<0.000000e+00> : vector<256xf32>
    %91 = vector.multi_reduction <add>, %90, %cst_48 [1] : vector<256x128xf32> to vector<256xf32>
    %92 = vector.shape_cast %91 : vector<256xf32> to vector<256x1xf32>
    %93 = arith.mulf %92, %87 : vector<256x1xf32>
    %94 = vector.shape_cast %93 : vector<256x1xf32> to vector<1x256x1xf32>
    %cst_49 = arith.constant dense<0.000000e+00> : vector<1xf32>
    %95 = vector.multi_reduction <add>, %94, %cst_49 [1, 2] : vector<1x256x1xf32> to vector<1xf32>
    %96 = vector.shape_cast %95 : vector<1xf32> to vector<1x1x1xf32>
    %97 = vector.extract %96[0, 0, 0] : f32 from vector<1x1x1xf32>
    %98 = arith.mulf %89, %89 : vector<256x256xf32>
    %cst_50 = arith.constant dense<0.000000e+00> : vector<256xf32>
    %99 = vector.multi_reduction <add>, %98, %cst_50 [1] : vector<256x256xf32> to vector<256xf32>
    %100 = vector.shape_cast %99 : vector<256xf32> to vector<256x1xf32>
    %101 = arith.mulf %100, %87 : vector<256x1xf32>
    %102 = vector.shape_cast %101 : vector<256x1xf32> to vector<1x256x1xf32>
    %cst_51 = arith.constant dense<0.000000e+00> : vector<1xf32>
    %103 = vector.multi_reduction <add>, %102, %cst_51 [1, 2] : vector<1x256x1xf32> to vector<1xf32>
    %104 = vector.shape_cast %103 : vector<1xf32> to vector<1x1x1xf32>
    %105 = vector.extract %104[0, 0, 0] : f32 from vector<1x1x1xf32>
    %106 = tpu.iota {dimensions = array<i32: 1>} : vector<1x128xi32>
    %c0_i32_52 = arith.constant 0 : i32
    %107 = vector.broadcast %c0_i32_52 : i32 to vector<1x128xi32>
    %108 = arith.cmpi eq, %106, %107 : vector<1x128xi32>
    %c1_i32_53 = arith.constant 1 : i32
    %109 = vector.broadcast %c1_i32_53 : i32 to vector<1x128xi32>
    %110 = arith.cmpi eq, %106, %109 : vector<1x128xi32>
    %cst_54 = arith.constant 0.000000e+00 : f32
    %111 = vector.broadcast %105 : f32 to vector<1x128xf32>
    %112 = vector.broadcast %cst_54 : f32 to vector<1x128xf32>
    %113 = arith.select %110, %111, %112 : vector<1x128xi1>, vector<1x128xf32>
    %114 = vector.broadcast %97 : f32 to vector<1x128xf32>
    %115 = arith.select %108, %114, %113 : vector<1x128xi1>, vector<1x128xf32>
    %c0_55 = arith.constant 0 : index
    %c0_56 = arith.constant 0 : index
    %c0_57 = arith.constant 0 : index
    %116 = vector.load %arg18[%c0_55, %c0_56, %c0_57] : memref<1x1x128xf32, #tpu.memory_space<vmem>>, vector<1x1x128xf32>
    %117 = vector.shape_cast %116 : vector<1x1x128xf32> to vector<1x128xf32>
    %118 = vector.shape_cast %115 : vector<1x128xf32> to vector<1x1x128xf32>
    tpu.vector_store %arg18[%c0_55, %c0_56, %c0_57], %118 {strides = array<i32>} : memref<1x1x128xf32, #tpu.memory_space<vmem>>, vector<1x1x128xf32>,
    return
  }
  func.func @transform_2(%arg0: i32, %arg1: memref<256xi32, #tpu.memory_space<smem>>) -> (i32, i32) {
    %c0_i32 = arith.constant 0 : i32
    %c0_i32_0 = arith.constant 0 : i32
    %c0_i32_1 = arith.constant 0 : i32
    return %c0_i32, %c0_i32_0 : i32, i32
  }
  func.func @transform_3(%arg0: i32, %arg1: memref<256xi32, #tpu.memory_space<smem>>) -> (i32, i32) {
    %c0_i32 = arith.constant 0 : i32
    %c0_i32_0 = arith.constant 0 : i32
    %c0_i32_1 = arith.constant 0 : i32
    return %c0_i32, %c0_i32_0 : i32, i32
  }
  func.func @transform_4(%arg0: i32, %arg1: memref<256xi32, #tpu.memory_space<smem>>) -> (i32, i32) {
    %c0_i32 = arith.constant 0 : i32
    %c0_i32_0 = arith.constant 0 : i32
    %c0_i32_1 = arith.constant 0 : i32
    return %c0_i32, %c0_i32_0 : i32, i32
  }
  func.func @transform_5(%arg0: i32, %arg1: memref<256xi32, #tpu.memory_space<smem>>) -> (i32, i32) {
    %c0_i32 = arith.constant 0 : i32
    %c0_i32_0 = arith.constant 0 : i32
    %c0_i32_1 = arith.constant 0 : i32
    return %c0_i32, %c0_i32_0 : i32, i32
  }
  func.func @transform_6(%arg0: i32, %arg1: memref<256xi32, #tpu.memory_space<smem>>) -> (i32, i32) {
    %c0_i32 = arith.constant 0 : i32
    %c0_i32_0 = arith.constant 0 : i32
    %c0_i32_1 = arith.constant 0 : i32
    return %c0_i32, %c0_i32_0 : i32, i32
  }
  func.func @transform_7(%arg0: i32, %arg1: memref<256xi32, #tpu.memory_space<smem>>) -> (i32, i32) {
    %c0_i32 = arith.constant 0 : i32
    %c0_i32_0 = arith.constant 0 : i32
    %c0_i32_1 = arith.constant 0 : i32
    return %c0_i32, %c0_i32_0 : i32, i32
  }
  func.func @transform_8(%arg0: i32, %arg1: memref<256xi32, #tpu.memory_space<smem>>) -> (i32, i32) {
    %c0_i32 = arith.constant 0 : i32
    %c0_i32_0 = arith.constant 0 : i32
    %c0_i32_1 = arith.constant 0 : i32
    return %c0_i32, %c0_i32_0 : i32, i32
  }
  func.func @transform_9(%arg0: i32, %arg1: memref<256xi32, #tpu.memory_space<smem>>) -> (i32, i32) {
    %c0_i32 = arith.constant 0 : i32
    %c0_i32_0 = arith.constant 0 : i32
    %c0_i32_1 = arith.constant 0 : i32
    return %c0_i32, %c0_i32_0 : i32, i32
  }
  func.func @transform_10(%arg0: i32, %arg1: memref<256xi32, #tpu.memory_space<smem>>) -> (i32, i32) {
    %c0_i32 = arith.constant 0 : i32
    %c0_i32_0 = arith.constant 0 : i32
    %c0_i32_1 = arith.constant 0 : i32
    return %c0_i32, %c0_i32_0 : i32, i32
  }
  func.func @transform_11(%arg0: i32, %arg1: memref<256xi32, #tpu.memory_space<smem>>) -> (i32, i32) {
    %c0_i32 = arith.constant 0 : i32
    %c0_i32_0 = arith.constant 0 : i32
    %c0_i32_1 = arith.constant 0 : i32
    return %c0_i32, %c0_i32_0 : i32, i32
  }
  func.func @transform_12(%arg0: i32, %arg1: memref<256xi32, #tpu.memory_space<smem>>) -> (i32, i32) {
    %c0_i32 = arith.constant 0 : i32
    %c0_i32_0 = arith.constant 0 : i32
    %c0_i32_1 = arith.constant 0 : i32
    return %c0_i32, %c0_i32_0 : i32, i32
  }
  func.func @transform_13(%arg0: i32, %arg1: memref<256xi32, #tpu.memory_space<smem>>) -> (i32, i32) {
    %c0_i32 = arith.constant 0 : i32
    %c0_i32_0 = arith.constant 0 : i32
    %c0_i32_1 = arith.constant 0 : i32
    return %c0_i32, %c0_i32_0 : i32, i32
  }
  func.func @transform_14(%arg0: i32, %arg1: memref<256xi32, #tpu.memory_space<smem>>) -> (i32, i32) {
    %c0_i32 = arith.constant 0 : i32
    %c0_i32_0 = arith.constant 0 : i32
    %c0_i32_1 = arith.constant 0 : i32
    return %c0_i32, %c0_i32_0 : i32, i32
  }
  func.func @transform_15(%arg0: i32, %arg1: memref<256xi32, #tpu.memory_space<smem>>) -> (i32, i32) {
    %c0_i32 = arith.constant 0 : i32
    %c0_i32_0 = arith.constant 0 : i32
    return %arg0, %c0_i32 : i32, i32
  }
  func.func @transform_16(%arg0: i32, %arg1: memref<256xi32, #tpu.memory_space<smem>>) -> (i32, i32, i32) {
    %c0_i32 = arith.constant 0 : i32
    %c0_i32_0 = arith.constant 0 : i32
    %c0_i32_1 = arith.constant 0 : i32
    return %arg0, %c0_i32, %c0_i32_0 : i32, i32, i32
  }
}

module attributes {stable_mosaic.version = 11 : i64} {
  func.func @autoencoder_kernel(%arg0: i32, %arg1: memref<256xi32, #tpu.memory_space<smem>>, %arg2: memref<64x128xf32, #tpu.memory_space<any>>, %arg3: memref<64x256xf32, #tpu.memory_space<any>>, %arg4: memref<128x128xbf16, #tpu.memory_space<vmem>>, %arg5: memref<1x128xf32, #tpu.memory_space<vmem>>, %arg6: memref<256x128xbf16, #tpu.memory_space<vmem>>, %arg7: memref<1x128xf32, #tpu.memory_space<vmem>>, %arg8: memref<128x128xbf16, #tpu.memory_space<vmem>>, %arg9: memref<128x128xbf16, #tpu.memory_space<vmem>>, %arg10: memref<1x128xf32, #tpu.memory_space<vmem>>, %arg11: memref<128x256xbf16, #tpu.memory_space<vmem>>, %arg12: memref<1x256xf32, #tpu.memory_space<vmem>>, %arg13: memref<128x128xbf16, #tpu.memory_space<vmem>>, %arg14: memref<1x128xf32, #tpu.memory_space<vmem>>, %arg15: memref<128x256xbf16, #tpu.memory_space<vmem>>, %arg16: memref<1x256xf32, #tpu.memory_space<vmem>>, %arg17: memref<256x128xf32, #tpu.memory_space<vmem>>, %arg18: memref<1x1x128xf32, #tpu.memory_space<vmem>>, %arg19: memref<256x128xf32, #tpu.memory_space<vmem>>, %arg20: memref<256x256xf32, #tpu.memory_space<vmem>>, %arg21: memref<2x!tpu.dma_semaphore, #tpu.memory_space<semaphore_mem>>) attributes {dimension_semantics = [#tpu.dimension_semantics<parallel>], iteration_bounds = array<i64: 1>, scalar_prefetch = 1 : i64, scratch_operands = 3 : i64, tpu.core_type = #tpu.core_type<tc>, window_params = [{}, {}, {pipeline_mode = #tpu.pipeline_mode<synchronous>, transform_indices = @transform_2, window_bounds = array<i64: 128, 128>}, {pipeline_mode = #tpu.pipeline_mode<synchronous>, transform_indices = @transform_3, window_bounds = array<i64: 1, 128>}, {pipeline_mode = #tpu.pipeline_mode<synchronous>, transform_indices = @transform_4, window_bounds = array<i64: 256, 128>}, {pipeline_mode = #tpu.pipeline_mode<synchronous>, transform_indices = @transform_5, window_bounds = array<i64: 1, 128>}, {pipeline_mode = #tpu.pipeline_mode<synchronous>, transform_indices = @transform_6, window_bounds = array<i64: 128, 128>}, {pipeline_mode = #tpu.pipeline_mode<synchronous>, transform_indices = @transform_7, window_bounds = array<i64: 128, 128>}, {pipeline_mode = #tpu.pipeline_mode<synchronous>, transform_indices = @transform_8, window_bounds = array<i64: 1, 128>}, {pipeline_mode = #tpu.pipeline_mode<synchronous>, transform_indices = @transform_9, window_bounds = array<i64: 128, 256>}, {pipeline_mode = #tpu.pipeline_mode<synchronous>, transform_indices = @transform_10, window_bounds = array<i64: 1, 256>}, {pipeline_mode = #tpu.pipeline_mode<synchronous>, transform_indices = @transform_11, window_bounds = array<i64: 128, 128>}, {pipeline_mode = #tpu.pipeline_mode<synchronous>, transform_indices = @transform_12, window_bounds = array<i64: 1, 128>}, {pipeline_mode = #tpu.pipeline_mode<synchronous>, transform_indices = @transform_13, window_bounds = array<i64: 128, 256>}, {pipeline_mode = #tpu.pipeline_mode<synchronous>, transform_indices = @transform_14, window_bounds = array<i64: 1, 256>}, {transform_indices = @transform_15, window_bounds = array<i64: 256, 128>}, {transform_indices = @transform_16, window_bounds = array<i64: 1, 1, 128>}]} {
    %c256_i32 = arith.constant 256 : i32
    %0 = arith.muli %arg0, %c256_i32 : i32
    %c0_i32 = arith.constant 0 : i32
    %c256_i32_0 = arith.constant 256 : i32
    %1 = arith.addi %c0_i32, %c256_i32_0 : i32
    %c1_i32 = arith.constant 1 : i32
    scf.for %arg22 = %c0_i32 to %1 step %c1_i32  : i32 {
      %c1_i32_58 = arith.constant 1 : i32
      %119 = arith.muli %arg22, %c1_i32_58 : i32
      %c0_i32_59 = arith.constant 0 : i32
      %120 = arith.addi %c0_i32_59, %119 : i32
      %121 = arith.addi %0, %120 : i32
      %122 = arith.index_cast %121 : i32 to index
      %123 = memref.load %arg1[%122] : memref<256xi32, #tpu.memory_space<smem>>
      %c0_i32_60 = arith.constant 0 : i32
      %c0_i32_61 = arith.constant 0 : i32
      %124 = tpu.memref_slice %arg2[%123, %c0_i32_61] : memref<64x128xf32, #tpu.memory_space<any>> -> memref<1x128xf32, #tpu.memory_space<any>>
      %c0_i32_62 = arith.constant 0 : i32
      %125 = tpu.memref_slice %arg19[%120, %c0_i32_62] : memref<256x128xf32, #tpu.memory_space<vmem>> -> memref<1x128xf32, #tpu.memory_space<vmem>>
      %126 = tpu.memref_slice %arg21[%c0_i32_60] : memref<2x!tpu.dma_semaphore, #tpu.memory_space<semaphore_mem>> -> memref<1x!tpu.dma_semaphore, #tpu.memory_space<semaphore_mem>>
      %127 = tpu.memref_squeeze %126 : memref<1x!tpu.dma_semaphore, #tpu.memory_space<semaphore_mem>> -> memref<!tpu.dma_semaphore, #tpu.memory_space<semaphore_mem>>
      tpu.enqueue_dma source(%124 : memref<1x128xf32, #tpu.memory_space<any>>) target(%125 : memref<1x128xf32, #tpu.memory_space<vmem>>) target_semaphore(%127 : memref<!tpu.dma_semaphore, #tpu.memory_space<semaphore_mem>>)
      %c1_i32_63 = arith.constant 1 : i32
      %c0_i32_64 = arith.constant 0 : i32
      %128 = tpu.memref_slice %arg3[%123, %c0_i32_64] : memref<64x256xf32, #tpu.memory_space<any>> -> memref<1x256xf32, #tpu.memory_space<any>>
      %c0_i32_65 = arith.constant 0 : i32
      %129 = tpu.memref_slice %arg20[%120, %c0_i32_65] : memref<256x256xf32, #tpu.memory_space<vmem>> -> memref<1x256xf32, #tpu.memory_space<vmem>>
      %130 = tpu.memref_slice %arg21[%c1_i32_63] : memref<2x!tpu.dma_semaphore, #tpu.memory_space<semaphore_mem>> -> memref<1x!tpu.dma_semaphore, #tpu.memory_space<semaphore_mem>>
      %131 = tpu.memref_squeeze %130 : memref<1x!tpu.dma_semaphore, #tpu.memory_space<semaphore_mem>> -> memref<!tpu.dma_semaphore, #tpu.memory_space<semaphore_mem>>
      tpu.enqueue_dma source(%128 : memref<1x256xf32, #tpu.memory_space<any>>) target(%129 : memref<1x256xf32, #tpu.memory_space<vmem>>) target_semaphore(%131 : memref<!tpu.dma_semaphore, #tpu.memory_space<semaphore_mem>>)
    }
    %c256_i32_1 = arith.constant 256 : i32
    %c0_i32_2 = arith.constant 0 : i32
    %c256_i32_3 = arith.constant 256 : i32
    %2 = arith.addi %c0_i32_2, %c256_i32_3 : i32
    %c1_i32_4 = arith.constant 1 : i32
    scf.for %arg22 = %c0_i32_2 to %2 step %c1_i32_4  : i32 {
      %c0_i32_58 = arith.constant 0 : i32
      %c0_i32_59 = arith.constant 0 : i32
      %c0_i32_60 = arith.constant 0 : i32
      %119 = tpu.memref_slice %arg2[%c0_i32_59, %c0_i32_60] : memref<64x128xf32, #tpu.memory_space<any>> -> memref<1x128xf32, #tpu.memory_space<any>>
      %c0_i32_61 = arith.constant 0 : i32
      %c0_i32_62 = arith.constant 0 : i32
      %120 = tpu.memref_slice %arg19[%c0_i32_61, %c0_i32_62] : memref<256x128xf32, #tpu.memory_space<vmem>> -> memref<1x128xf32, #tpu.memory_space<vmem>>
      %121 = tpu.memref_slice %arg21[%c0_i32_58] : memref<2x!tpu.dma_semaphore, #tpu.memory_space<semaphore_mem>> -> memref<1x!tpu.dma_semaphore, #tpu.memory_space<semaphore_mem>>
      %122 = tpu.memref_squeeze %121 : memref<1x!tpu.dma_semaphore, #tpu.memory_space<semaphore_mem>> -> memref<!tpu.dma_semaphore, #tpu.memory_space<semaphore_mem>>
      tpu.wait_dma2 semaphore(%122 : memref<!tpu.dma_semaphore, #tpu.memory_space<semaphore_mem>>) src(%119 : memref<1x128xf32, #tpu.memory_space<any>>) dst(%120 : memref<1x128xf32, #tpu.memory_space<vmem>>)
      %c1_i32_63 = arith.constant 1 : i32
      %c0_i32_64 = arith.constant 0 : i32
      %c0_i32_65 = arith.constant 0 : i32
      %123 = tpu.memref_slice %arg3[%c0_i32_64, %c0_i32_65] : memref<64x256xf32, #tpu.memory_space<any>> -> memref<1x256xf32, #tpu.memory_space<any>>
      %c0_i32_66 = arith.constant 0 : i32
      %c0_i32_67 = arith.constant 0 : i32
      %124 = tpu.memref_slice %arg20[%c0_i32_66, %c0_i32_67] : memref<256x256xf32, #tpu.memory_space<vmem>> -> memref<1x256xf32, #tpu.memory_space<vmem>>
      %125 = tpu.memref_slice %arg21[%c1_i32_63] : memref<2x!tpu.dma_semaphore, #tpu.memory_space<semaphore_mem>> -> memref<1x!tpu.dma_semaphore, #tpu.memory_space<semaphore_mem>>
      %126 = tpu.memref_squeeze %125 : memref<1x!tpu.dma_semaphore, #tpu.memory_space<semaphore_mem>> -> memref<!tpu.dma_semaphore, #tpu.memory_space<semaphore_mem>>
      tpu.wait_dma2 semaphore(%126 : memref<!tpu.dma_semaphore, #tpu.memory_space<semaphore_mem>>) src(%123 : memref<1x256xf32, #tpu.memory_space<any>>) dst(%124 : memref<1x256xf32, #tpu.memory_space<vmem>>)
    }
    %c0 = arith.constant 0 : index
    %c0_5 = arith.constant 0 : index
    %3 = vector.load %arg19[%c0, %c0_5] : memref<256x128xf32, #tpu.memory_space<vmem>>, vector<256x128xf32>
    %c0_6 = arith.constant 0 : index
    %c0_7 = arith.constant 0 : index
    %4 = vector.load %arg20[%c0_6, %c0_7] : memref<256x256xf32, #tpu.memory_space<vmem>>, vector<256x256xf32>
    %5 = arith.truncf %3 : vector<256x128xf32> to vector<256x128xbf16>
    %c0_8 = arith.constant 0 : index
    %c0_9 = arith.constant 0 : index
    %6 = vector.load %arg4[%c0_8, %c0_9] : memref<128x128xbf16, #tpu.memory_space<vmem>>, vector<128x128xbf16>
    %cst = arith.constant dense<0.000000e+00> : vector<256x128xf32>
    %7 = tpu.matmul %5, %6, %cst {dimension_numbers = #tpu.dot_dimension_numbers<[1], [0], [0], [1], [0, 0, 1, 1], [], []>} : vector<256x128xbf16>, vector<128x128xbf16>, vector<256x128xf32> -> vector<256x128xf32>
    %c0_10 = arith.constant 0 : index
    %c0_11 = arith.constant 0 : index
    %8 = vector.load %arg5[%c0_10, %c0_11] : memref<1x128xf32, #tpu.memory_space<vmem>>, vector<1x128xf32>
    %9 = vector.broadcast %8 : vector<1x128xf32> to vector<256x128xf32>
    %10 = arith.addf %7, %9 : vector<256x128xf32>
    %11 = arith.negf %10 : vector<256x128xf32>
    %12 = math.exp %11 : vector<256x128xf32>
    %cst_12 = arith.constant 1.000000e+00 : f32
    %13 = vector.broadcast %cst_12 : f32 to vector<256x128xf32>
    %14 = arith.addf %13, %12 : vector<256x128xf32>
    %15 = arith.divf %13, %14 : vector<256x128xf32>
    %16 = arith.truncf %15 : vector<256x128xf32> to vector<256x128xbf16>
    %17 = arith.truncf %4 : vector<256x256xf32> to vector<256x256xbf16>
    %c0_13 = arith.constant 0 : index
    %c0_14 = arith.constant 0 : index
    %18 = vector.load %arg6[%c0_13, %c0_14] : memref<256x128xbf16, #tpu.memory_space<vmem>>, vector<256x128xbf16>
    %cst_15 = arith.constant dense<0.000000e+00> : vector<256x128xf32>
    %19 = tpu.matmul %17, %18, %cst_15 {dimension_numbers = #tpu.dot_dimension_numbers<[1], [0], [0], [1], [0, 0, 1, 1], [], []>} : vector<256x256xbf16>, vector<256x128xbf16>, vector<256x128xf32> -> vector<256x128xf32>
    %c0_16 = arith.constant 0 : index
    %c0_17 = arith.constant 0 : index
    %20 = vector.load %arg7[%c0_16, %c0_17] : memref<1x128xf32, #tpu.memory_space<vmem>>, vector<1x128xf32>
    %21 = vector.broadcast %20 : vector<1x128xf32> to vector<256x128xf32>
    %22 = arith.addf %19, %21 : vector<256x128xf32>
    %23 = arith.negf %22 : vector<256x128xf32>
    %24 = math.exp %23 : vector<256x128xf32>
    %cst_18 = arith.constant 1.000000e+00 : f32
    %25 = vector.broadcast %cst_18 : f32 to vector<256x128xf32>
    %26 = arith.addf %25, %24 : vector<256x128xf32>
    %27 = arith.divf %25, %26 : vector<256x128xf32>
    %28 = arith.truncf %27 : vector<256x128xf32> to vector<256x128xbf16>
    %c0_19 = arith.constant 0 : index
    %c0_20 = arith.constant 0 : index
    %29 = vector.load %arg8[%c0_19, %c0_20] : memref<128x128xbf16, #tpu.memory_space<vmem>>, vector<128x128xbf16>
    %cst_21 = arith.constant dense<0.000000e+00> : vector<256x128xf32>
    %30 = tpu.matmul %16, %29, %cst_21 {dimension_numbers = #tpu.dot_dimension_numbers<[1], [0], [0], [1], [0, 0, 1, 1], [], []>} : vector<256x128xbf16>, vector<128x128xbf16>, vector<256x128xf32> -> vector<256x128xf32>
    %c0_22 = arith.constant 0 : index
    %c0_23 = arith.constant 0 : index
    %31 = vector.load %arg9[%c0_22, %c0_23] : memref<128x128xbf16, #tpu.memory_space<vmem>>, vector<128x128xbf16>
    %cst_24 = arith.constant dense<0.000000e+00> : vector<256x128xf32>
    %32 = tpu.matmul %28, %31, %cst_24 {dimension_numbers = #tpu.dot_dimension_numbers<[1], [0], [0], [1], [0, 0, 1, 1], [], []>} : vector<256x128xbf16>, vector<128x128xbf16>, vector<256x128xf32> -> vector<256x128xf32>
    %33 = arith.addf %30, %32 : vector<256x128xf32>
    %c0_25 = arith.constant 0 : index
    %c0_26 = arith.constant 0 : index
    %34 = vector.load %arg10[%c0_25, %c0_26] : memref<1x128xf32, #tpu.memory_space<vmem>>, vector<1x128xf32>
    %35 = vector.broadcast %34 : vector<1x128xf32> to vector<256x128xf32>
    %36 = arith.addf %33, %35 : vector<256x128xf32>
    %37 = arith.negf %36 : vector<256x128xf32>
    %38 = math.exp %37 : vector<256x128xf32>
    %cst_27 = arith.constant 1.000000e+00 : f32
    %39 = vector.broadcast %cst_27 : f32 to vector<256x128xf32>
    %40 = arith.addf %39, %38 : vector<256x128xf32>
    %41 = arith.divf %39, %40 : vector<256x128xf32>
    %42 = arith.truncf %41 : vector<256x128xf32> to vector<256x128xbf16>
    %c0_28 = arith.constant 0 : index
    %c0_29 = arith.constant 0 : index
    %43 = vector.load %arg11[%c0_28, %c0_29] : memref<128x256xbf16, #tpu.memory_space<vmem>>, vector<128x256xbf16>
    %cst_30 = arith.constant dense<0.000000e+00> : vector<256x256xf32>
    %44 = tpu.matmul %42, %43, %cst_30 {dimension_numbers = #tpu.dot_dimension_numbers<[1], [0], [0], [1], [0, 0, 1, 1], [], []>} : vector<256x128xbf16>, vector<128x256xbf16>, vector<256x256xf32> -> vector<256x256xf32>
    %c0_31 = arith.constant 0 : index
    %c0_32 = arith.constant 0 : index
    %45 = vector.load %arg12[%c0_31, %c0_32] : memref<1x256xf32, #tpu.memory_space<vmem>>, vector<1x256xf32>
    %46 = vector.broadcast %45 : vector<1x256xf32> to vector<256x256xf32>
    %47 = arith.addf %44, %46 : vector<256x256xf32>
    %48 = arith.negf %47 : vector<256x256xf32>
    %49 = math.exp %48 : vector<256x256xf32>
    %cst_33 = arith.constant 1.000000e+00 : f32
    %50 = vector.broadcast %cst_33 : f32 to vector<256x256xf32>
    %51 = arith.addf %50, %49 : vector<256x256xf32>
    %52 = arith.divf %50, %51 : vector<256x256xf32>
    %53 = arith.truncf %52 : vector<256x256xf32> to vector<256x256xbf16>
    %54 = vector.extract_strided_slice %53 {offsets = [0, 0], sizes = [256, 128], strides = [1, 1]} : vector<256x256xbf16> to vector<256x128xbf16>
    %55 = vector.extract_strided_slice %53 {offsets = [0, 128], sizes = [256, 128], strides = [1, 1]} : vector<256x256xbf16> to vector<256x128xbf16>
    %c0_34 = arith.constant 0 : index
    %c0_35 = arith.constant 0 : index
    %56 = vector.load %arg13[%c0_34, %c0_35] : memref<128x128xbf16, #tpu.memory_space<vmem>>, vector<128x128xbf16>
    %cst_36 = arith.constant dense<0.000000e+00> : vector<256x128xf32>
    %57 = tpu.matmul %54, %56, %cst_36 {dimension_numbers = #tpu.dot_dimension_numbers<[1], [0], [0], [1], [0, 0, 1, 1], [], []>} : vector<256x128xbf16>, vector<128x128xbf16>, vector<256x128xf32> -> vector<256x128xf32>
    %c0_37 = arith.constant 0 : index
    %c0_38 = arith.constant 0 : index
    %58 = vector.load %arg14[%c0_37, %c0_38] : memref<1x128xf32, #tpu.memory_space<vmem>>, vector<1x128xf32>
    %59 = vector.broadcast %58 : vector<1x128xf32> to vector<256x128xf32>
    %60 = arith.addf %57, %59 : vector<256x128xf32>
    %61 = arith.truncf %60 : vector<256x128xf32> to vector<256x128xbf16>
    %62 = arith.negf %61 : vector<256x128xbf16>
    %63 = math.exp %62 : vector<256x128xbf16>
    %cst_39 = arith.constant 1.000000e+00 : bf16
    %64 = vector.broadcast %cst_39 : bf16 to vector<256x128xbf16>
    %65 = arith.addf %64, %63 : vector<256x128xbf16>
    %66 = arith.divf %64, %65 : vector<256x128xbf16>
    %67 = arith.extf %66 : vector<256x128xbf16> to vector<256x128xf32>
    %c0_40 = arith.constant 0 : index
    %c0_41 = arith.constant 0 : index
    %68 = vector.load %arg15[%c0_40, %c0_41] : memref<128x256xbf16, #tpu.memory_space<vmem>>, vector<128x256xbf16>
    %cst_42 = arith.constant dense<0.000000e+00> : vector<256x256xf32>
    %69 = tpu.matmul %55, %68, %cst_42 {dimension_numbers = #tpu.dot_dimension_numbers<[1], [0], [0], [1], [0, 0, 1, 1], [], []>} : vector<256x128xbf16>, vector<128x256xbf16>, vector<256x256xf32> -> vector<256x256xf32>
    %c0_43 = arith.constant 0 : index
    %c0_44 = arith.constant 0 : index
    %70 = vector.load %arg16[%c0_43, %c0_44] : memref<1x256xf32, #tpu.memory_space<vmem>>, vector<1x256xf32>
    %71 = vector.broadcast %70 : vector<1x256xf32> to vector<256x256xf32>
    %72 = arith.addf %69, %71 : vector<256x256xf32>
    %73 = arith.truncf %72 : vector<256x256xf32> to vector<256x256xbf16>
    %74 = arith.negf %73 : vector<256x256xbf16>
    %75 = math.exp %74 : vector<256x256xbf16>
    %cst_45 = arith.constant 1.000000e+00 : bf16
    %76 = vector.broadcast %cst_45 : bf16 to vector<256x256xbf16>
    %77 = arith.addf %76, %75 : vector<256x256xbf16>
    %78 = arith.divf %76, %77 : vector<256x256xbf16>
    %79 = arith.extf %78 : vector<256x256xbf16> to vector<256x256xf32>
    %c0_46 = arith.constant 0 : index
    %c0_47 = arith.constant 0 : index
    %80 = vector.load %arg17[%c0_46, %c0_47] : memref<256x128xf32, #tpu.memory_space<vmem>>, vector<256x128xf32>
    tpu.vector_store %arg17[%c0_46, %c0_47], %41 {strides = array<i32>} : memref<256x128xf32, #tpu.memory_space<vmem>>, vector<256x128xf32>,
    %81 = tpu.iota {dimensions = array<i32: 0>} : vector<256x1xi32>
    %82 = vector.broadcast %0 : i32 to vector<256x1xi32>
    %83 = arith.addi %81, %82 : vector<256x1xi32>
    %c200_i32 = arith.constant 200 : i32
    %84 = vector.broadcast %c200_i32 : i32 to vector<256x1xi32>
    %85 = arith.cmpi slt, %83, %84 : vector<256x1xi32>
    %86 = arith.extui %85 : vector<256x1xi1> to vector<256x1xi32>
    %87 = arith.sitofp %86 : vector<256x1xi32> to vector<256x1xf32>
    %88 = arith.subf %3, %67 : vector<256x128xf32>
    %89 = arith.subf %4, %79 : vector<256x256xf32>
    %90 = arith.mulf %88, %88 : vector<256x128xf32>
    %cst_48 = arith.constant dense<0.000000e+00> : vector<256xf32>
    %91 = vector.multi_reduction <add>, %90, %cst_48 [1] : vector<256x128xf32> to vector<256xf32>
    %92 = vector.shape_cast %91 : vector<256xf32> to vector<256x1xf32>
    %93 = arith.mulf %92, %87 : vector<256x1xf32>
    %94 = vector.shape_cast %93 : vector<256x1xf32> to vector<1x256x1xf32>
    %cst_49 = arith.constant dense<0.000000e+00> : vector<1xf32>
    %95 = vector.multi_reduction <add>, %94, %cst_49 [1, 2] : vector<1x256x1xf32> to vector<1xf32>
    %96 = vector.shape_cast %95 : vector<1xf32> to vector<1x1x1xf32>
    %97 = vector.extract %96[0, 0, 0] : f32 from vector<1x1x1xf32>
    %98 = arith.mulf %89, %89 : vector<256x256xf32>
    %cst_50 = arith.constant dense<0.000000e+00> : vector<256xf32>
    %99 = vector.multi_reduction <add>, %98, %cst_50 [1] : vector<256x256xf32> to vector<256xf32>
    %100 = vector.shape_cast %99 : vector<256xf32> to vector<256x1xf32>
    %101 = arith.mulf %100, %87 : vector<256x1xf32>
    %102 = vector.shape_cast %101 : vector<256x1xf32> to vector<1x256x1xf32>
    %cst_51 = arith.constant dense<0.000000e+00> : vector<1xf32>
    %103 = vector.multi_reduction <add>, %102, %cst_51 [1, 2] : vector<1x256x1xf32> to vector<1xf32>
    %104 = vector.shape_cast %103 : vector<1xf32> to vector<1x1x1xf32>
    %105 = vector.extract %104[0, 0, 0] : f32 from vector<1x1x1xf32>
    %106 = tpu.iota {dimensions = array<i32: 1>} : vector<1x128xi32>
    %c0_i32_52 = arith.constant 0 : i32
    %107 = vector.broadcast %c0_i32_52 : i32 to vector<1x128xi32>
    %108 = arith.cmpi eq, %106, %107 : vector<1x128xi32>
    %c1_i32_53 = arith.constant 1 : i32
    %109 = vector.broadcast %c1_i32_53 : i32 to vector<1x128xi32>
    %110 = arith.cmpi eq, %106, %109 : vector<1x128xi32>
    %cst_54 = arith.constant 0.000000e+00 : f32
    %111 = vector.broadcast %105 : f32 to vector<1x128xf32>
    %112 = vector.broadcast %cst_54 : f32 to vector<1x128xf32>
    %113 = arith.select %110, %111, %112 : vector<1x128xi1>, vector<1x128xf32>
    %114 = vector.broadcast %97 : f32 to vector<1x128xf32>
    %115 = arith.select %108, %114, %113 : vector<1x128xi1>, vector<1x128xf32>
    %c0_55 = arith.constant 0 : index
    %c0_56 = arith.constant 0 : index
    %c0_57 = arith.constant 0 : index
    %116 = vector.load %arg18[%c0_55, %c0_56, %c0_57] : memref<1x1x128xf32, #tpu.memory_space<vmem>>, vector<1x1x128xf32>
    %117 = vector.shape_cast %116 : vector<1x1x128xf32> to vector<1x128xf32>
    %118 = vector.shape_cast %115 : vector<1x128xf32> to vector<1x1x128xf32>
    tpu.vector_store %arg18[%c0_55, %c0_56, %c0_57], %118 {strides = array<i32>} : memref<1x1x128xf32, #tpu.memory_space<vmem>>, vector<1x1x128xf32>,
    return
  }
  func.func @transform_2(%arg0: i32, %arg1: memref<256xi32, #tpu.memory_space<smem>>) -> (i32, i32) {
    %c0_i32 = arith.constant 0 : i32
    %c0_i32_0 = arith.constant 0 : i32
    %c0_i32_1 = arith.constant 0 : i32
    return %c0_i32, %c0_i32_0 : i32, i32
  }
  func.func @transform_3(%arg0: i32, %arg1: memref<256xi32, #tpu.memory_space<smem>>) -> (i32, i32) {
    %c0_i32 = arith.constant 0 : i32
    %c0_i32_0 = arith.constant 0 : i32
    %c0_i32_1 = arith.constant 0 : i32
    return %c0_i32, %c0_i32_0 : i32, i32
  }
  func.func @transform_4(%arg0: i32, %arg1: memref<256xi32, #tpu.memory_space<smem>>) -> (i32, i32) {
    %c0_i32 = arith.constant 0 : i32
    %c0_i32_0 = arith.constant 0 : i32
    %c0_i32_1 = arith.constant 0 : i32
    return %c0_i32, %c0_i32_0 : i32, i32
  }
  func.func @transform_5(%arg0: i32, %arg1: memref<256xi32, #tpu.memory_space<smem>>) -> (i32, i32) {
    %c0_i32 = arith.constant 0 : i32
    %c0_i32_0 = arith.constant 0 : i32
    %c0_i32_1 = arith.constant 0 : i32
    return %c0_i32, %c0_i32_0 : i32, i32
  }
  func.func @transform_6(%arg0: i32, %arg1: memref<256xi32, #tpu.memory_space<smem>>) -> (i32, i32) {
    %c0_i32 = arith.constant 0 : i32
    %c0_i32_0 = arith.constant 0 : i32
    %c0_i32_1 = arith.constant 0 : i32
    return %c0_i32, %c0_i32_0 : i32, i32
  }
  func.func @transform_7(%arg0: i32, %arg1: memref<256xi32, #tpu.memory_space<smem>>) -> (i32, i32) {
    %c0_i32 = arith.constant 0 : i32
    %c0_i32_0 = arith.constant 0 : i32
    %c0_i32_1 = arith.constant 0 : i32
    return %c0_i32, %c0_i32_0 : i32, i32
  }
  func.func @transform_8(%arg0: i32, %arg1: memref<256xi32, #tpu.memory_space<smem>>) -> (i32, i32) {
    %c0_i32 = arith.constant 0 : i32
    %c0_i32_0 = arith.constant 0 : i32
    %c0_i32_1 = arith.constant 0 : i32
    return %c0_i32, %c0_i32_0 : i32, i32
  }
  func.func @transform_9(%arg0: i32, %arg1: memref<256xi32, #tpu.memory_space<smem>>) -> (i32, i32) {
    %c0_i32 = arith.constant 0 : i32
    %c0_i32_0 = arith.constant 0 : i32
    %c0_i32_1 = arith.constant 0 : i32
    return %c0_i32, %c0_i32_0 : i32, i32
  }
  func.func @transform_10(%arg0: i32, %arg1: memref<256xi32, #tpu.memory_space<smem>>) -> (i32, i32) {
    %c0_i32 = arith.constant 0 : i32
    %c0_i32_0 = arith.constant 0 : i32
    %c0_i32_1 = arith.constant 0 : i32
    return %c0_i32, %c0_i32_0 : i32, i32
  }
  func.func @transform_11(%arg0: i32, %arg1: memref<256xi32, #tpu.memory_space<smem>>) -> (i32, i32) {
    %c0_i32 = arith.constant 0 : i32
    %c0_i32_0 = arith.constant 0 : i32
    %c0_i32_1 = arith.constant 0 : i32
    return %c0_i32, %c0_i32_0 : i32, i32
  }
  func.func @transform_12(%arg0: i32, %arg1: memref<256xi32, #tpu.memory_space<smem>>) -> (i32, i32) {
    %c0_i32 = arith.constant 0 : i32
    %c0_i32_0 = arith.constant 0 : i32
    %c0_i32_1 = arith.constant 0 : i32
    return %c0_i32, %c0_i32_0 : i32, i32
  }
  func.func @transform_13(%arg0: i32, %arg1: memref<256xi32, #tpu.memory_space<smem>>) -> (i32, i32) {
    %c0_i32 = arith.constant 0 : i32
    %c0_i32_0 = arith.constant 0 : i32
    %c0_i32_1 = arith.constant 0 : i32
    return %c0_i32, %c0_i32_0 : i32, i32
  }
  func.func @transform_14(%arg0: i32, %arg1: memref<256xi32, #tpu.memory_space<smem>>) -> (i32, i32) {
    %c0_i32 = arith.constant 0 : i32
    %c0_i32_0 = arith.constant 0 : i32
    %c0_i32_1 = arith.constant 0 : i32
    return %c0_i32, %c0_i32_0 : i32, i32
  }
  func.func @transform_15(%arg0: i32, %arg1: memref<256xi32, #tpu.memory_space<smem>>) -> (i32, i32) {
    %c0_i32 = arith.constant 0 : i32
    %c0_i32_0 = arith.constant 0 : i32
    return %arg0, %c0_i32 : i32, i32
  }
  func.func @transform_16(%arg0: i32, %arg1: memref<256xi32, #tpu.memory_space<smem>>) -> (i32, i32, i32) {
    %c0_i32 = arith.constant 0 : i32
    %c0_i32_0 = arith.constant 0 : i32
    %c0_i32_1 = arith.constant 0 : i32
    return %arg0, %c0_i32, %c0_i32_0 : i32, i32, i32
  }
}

</mosaic_0001>

<llo_original>
// kernel: autoencoder_forward.1
$region0: #{autoencoder_forward.1}
  #allocation0 [shape = 'u32[]', space=smem, size = 0x4, offset = 0x4, fixed_abs, tag = 'smem constant byte address 0x4 - core index']
  #allocation1 [shape = 'u32[144,128]{1,0:T(1,128)}', space=vmem, size = 0x12000, scoped, tag = 'internal scratch']
  #allocation2 [shape = 'f32[256,128]{1,0:T(8,128)}', space=vmem, size = 0x20000, scoped, tag = 'scratch operand']
  #allocation3 [shape = 'f32[256,256]{1,0:T(8,128)}', space=vmem, size = 0x40000, scoped, tag = 'scratch operand']
  #allocation4 [shape = 's32[2]{0}', space=sflag, size = 0x8, scoped, tag = 'scratch operand']
  #allocation5 [shape = 's32[1]{0}', space=sflag, size = 0x4, scoped, tag = 'scoped memory for autoencoder_forward.1']
  #allocation6 [shape = 'u8[1024]{0}', space=smem, size = 0x400, scoped, tag = 'prefetched SMEM operand 0']
  #allocation20 [shape = 's32[]', space=sflag, size = 0x4, offset = 0, fixed_abs, tag = 'sflag constant byte address 0x0 - dummy sync flag']
  #allocation21 [shape = 's32[]', space=sflag, size = 0x4, offset = 0, fixed_abs, tag = 'sflag constant byte address 0x0 - dummy sync flag']
  #allocation22 [shape = 'u32[]', space=smem, size = 0x4, offset = 0x44, fixed_abs, tag = 'smem constant byte address 0x44 - assertion arg 0']
  #allocation23 [shape = 'u32[]', space=smem, size = 0x4, offset = 0x48, fixed_abs, tag = 'smem constant byte address 0x48 - assertion arg 1']
  #allocation24 [shape = 's32[]', space=sflag, size = 0x4, offset = 0, fixed_abs, tag = 'sflag constant byte address 0x0 - dummy sync flag']
  %s0 = inlined_call_operand.vmem [shape: s32[256], index: 0, kind: input, shape index: {}]
  %s1 = inlined_call_operand.hbm [shape: f32[64,128], index: 1, kind: input, shape index: {}]
  %s2 = inlined_call_operand.hbm [shape: f32[64,256], index: 2, kind: input, shape index: {}]
  %s3 = inlined_call_operand.hbm [shape: bf16[128,128], index: 3, kind: input, shape index: {}]
  %s4 = inlined_call_operand.vmem [shape: f32[1,128], index: 4, kind: input, shape index: {}]
  %s5 = inlined_call_operand.hbm [shape: bf16[256,128], index: 5, kind: input, shape index: {}]
  %s6 = inlined_call_operand.vmem [shape: f32[1,128], index: 6, kind: input, shape index: {}]
  %s7 = inlined_call_operand.hbm [shape: bf16[128,128], index: 7, kind: input, shape index: {}]
  %s8 = inlined_call_operand.hbm [shape: bf16[128,128], index: 8, kind: input, shape index: {}]
  %s9 = inlined_call_operand.hbm [shape: f32[1,128], index: 9, kind: input, shape index: {}]
  %s10 = inlined_call_operand.hbm [shape: bf16[128,256], index: 10, kind: input, shape index: {}]
  %s11 = inlined_call_operand.vmem [shape: f32[1,256], index: 11, kind: input, shape index: {}]
  %s12 = inlined_call_operand.hbm [shape: bf16[128,128], index: 12, kind: input, shape index: {}]
  %s13 = inlined_call_operand.vmem [shape: f32[1,128], index: 13, kind: input, shape index: {}]
  %s14 = inlined_call_operand.hbm [shape: bf16[128,256], index: 14, kind: input, shape index: {}]
  %s15 = inlined_call_operand.vmem [shape: f32[1,256], index: 15, kind: input, shape index: {}]
  %s16 = inlined_call_operand.vmem [shape: f32[256,128], index: 16, kind: output, shape index: {0}]
  %s17 = inlined_call_operand.vmem [shape: f32[1,1,128], index: 17, kind: output, shape index: {1}]
  %18 = xla_tuple %s16, %s17
  %s19 = sld [smem:[#allocation0]]
  $region120: #{autoencoder_forward.1} parent=0
    _
  %s21 = ssub.s32 1, %s19
  %s22 = scalar_select 0, %s21, %s19
  %s23 = sshll.u32 %s0, 4
  %s24 = int_to_ptr.vmem [resolvable:$true] %s23
  %26 = dma.vmem_to_smem %s24, 32, [#allocation6], [#allocation5]
  %27 = dma.done [#allocation5], 32
  %28 = sfence
  $region1: #{autoencoder_forward.1} parent=0
    #allocation7 [shape = 'u8[32768]{0}', space=vmem, size = 0x8000, scoped, tag = 'input window, operand 3, single buffered']
    #allocation8 [shape = 's32[1]{0}', space=sflag, size = 0x4, scoped, tag = 'scoped memory for autoencoder_forward.1']
    #allocation9 [shape = 'u8[65536]{0}', space=vmem, size = 0x10000, scoped, tag = 'input window, operand 5, single buffered']
    #allocation10 [shape = 's32[1]{0}', space=sflag, size = 0x4, scoped, tag = 'scoped memory for autoencoder_forward.1']
    #allocation11 [shape = 'u8[32768]{0}', space=vmem, size = 0x8000, scoped, tag = 'input window, operand 7, single buffered']
    #allocation12 [shape = 'u8[32768]{0}', space=vmem, size = 0x8000, scoped, tag = 'input window, operand 8, single buffered']
    #allocation13 [shape = 's32[1]{0}', space=sflag, size = 0x4, scoped, tag = 'scoped memory for autoencoder_forward.1']
    #allocation14 [shape = 'u8[512]{0}', space=vmem, size = 0x400, scoped, tag = 'input window, operand 9, single buffered']
    #allocation15 [shape = 'u8[65536]{0}', space=vmem, size = 0x10000, scoped, tag = 'input window, operand 10, single buffered']
    #allocation16 [shape = 's32[1]{0}', space=sflag, size = 0x4, scoped, tag = 'scoped memory for autoencoder_forward.1']
    #allocation17 [shape = 'u8[32768]{0}', space=vmem, size = 0x8000, scoped, tag = 'input window, operand 12, single buffered']
    #allocation18 [shape = 'u8[65536]{0}', space=vmem, size = 0x10000, scoped, tag = 'input window, operand 14, single buffered']
    #allocation19 [shape = 's32[1]{0}', space=sflag, size = 0x4, scoped, tag = 'scoped memory for autoencoder_forward.1']
    %29 = vsyncpa [#allocation8], 0
    %30 = vsyncpa [#allocation10], 0
    %31 = vsyncpa [#allocation13], 0
    %32 = vsyncpa [#allocation16], 0
    %33 = vsyncpa [#allocation19], 0
    // Predicated region
    $region2: #{autoencoder_forward.1} parent=1 // pred_check
      _
    $region3: #{autoencoder_forward.1} parent=1 // pred_check_branch
      %35 = sbr.rel (0) target = $region5
    $region4: #{autoencoder_forward.1} parent=1 // pred_region
      %s37 = ssub.s32 1024, 1024
      %38 = vsyncadd [#allocation8], %s37
      %s39 = sshll.u32 [#allocation7], 4
      %s40 = int_to_ptr.vmem [resolvable:$true] %s39
      %45 = dma.hbm_to_vmem [thread:$0]  %s3, 1024, %s40, [#allocation8], 64, 64, 4
    $region5: #{autoencoder_forward.1} parent=1 // pred_fallthru
      _
    // Predicated region
    $region6: #{autoencoder_forward.1} parent=1 // pred_check
      _
    $region7: #{autoencoder_forward.1} parent=1 // pred_check_branch
      %47 = sbr.rel (0) target = $region9
    $region8: #{autoencoder_forward.1} parent=1 // pred_region
      _
    $region9: #{autoencoder_forward.1} parent=1 // pred_fallthru
      _
    // Predicated region
    $region10: #{autoencoder_forward.1} parent=1 // pred_check
      _
    $region11: #{autoencoder_forward.1} parent=1 // pred_check_branch
      %49 = sbr.rel (0) target = $region13
    $region12: #{autoencoder_forward.1} parent=1 // pred_region
      %s51 = ssub.s32 2048, 2048
      %52 = vsyncadd [#allocation10], %s51
      %s53 = sshll.u32 [#allocation9], 4
      %s54 = int_to_ptr.vmem [resolvable:$true] %s53
      %59 = dma.hbm_to_vmem [thread:$0]  %s5, 2048, %s54, [#allocation10], 64, 64, 4
    $region13: #{autoencoder_forward.1} parent=1 // pred_fallthru
      _
    // Predicated region
    $region14: #{autoencoder_forward.1} parent=1 // pred_check
      _
    $region15: #{autoencoder_forward.1} parent=1 // pred_check_branch
      %61 = sbr.rel (0) target = $region17
    $region16: #{autoencoder_forward.1} parent=1 // pred_region
      _
    $region17: #{autoencoder_forward.1} parent=1 // pred_fallthru
      _
    // Predicated region
    $region18: #{autoencoder_forward.1} parent=1 // pred_check
      _
    $region19: #{autoencoder_forward.1} parent=1 // pred_check_branch
      %63 = sbr.rel (0) target = $region21
    $region20: #{autoencoder_forward.1} parent=1 // pred_region
      %s65 = ssub.s32 1024, 1024
      %66 = vsyncadd [#allocation10], %s65
      %s67 = sshll.u32 [#allocation11], 4
      %s68 = int_to_ptr.vmem [resolvable:$true] %s67
      %73 = dma.hbm_to_vmem [thread:$0]  %s7, 1024, %s68, [#allocation10], 64, 64, 4
    $region21: #{autoencoder_forward.1} parent=1 // pred_fallthru
      _
    // Predicated region
    $region22: #{autoencoder_forward.1} parent=1 // pred_check
      _
    $region23: #{autoencoder_forward.1} parent=1 // pred_check_branch
      %75 = sbr.rel (0) target = $region25
    $region24: #{autoencoder_forward.1} parent=1 // pred_region
      %s77 = ssub.s32 1024, 1024
      %78 = vsyncadd [#allocation13], %s77
      %s79 = sshll.u32 [#allocation12], 4
      %s80 = int_to_ptr.vmem [resolvable:$true] %s79
      %85 = dma.hbm_to_vmem [thread:$0]  %s8, 1024, %s80, [#allocation13], 64, 64, 4
    $region25: #{autoencoder_forward.1} parent=1 // pred_fallthru
      _
    // Predicated region
    $region26: #{autoencoder_forward.1} parent=1 // pred_check
      _
    $region27: #{autoencoder_forward.1} parent=1 // pred_check_branch
      %87 = sbr.rel (0) target = $region29
    $region28: #{autoencoder_forward.1} parent=1 // pred_region
      %s89 = ssub.s32 16, 16
      %90 = vsyncadd [#allocation13], %s89
      %s92 = sshll.u32 [#allocation14], 4
      %s93 = int_to_ptr.vmem [resolvable:$true] %s92
      %95 = dma.hbm_to_vmem [thread:$0]  %s9, 16, %s93, [#allocation13]
    $region29: #{autoencoder_forward.1} parent=1 // pred_fallthru
      _
    // Predicated region
    $region30: #{autoencoder_forward.1} parent=1 // pred_check
      _
    $region31: #{autoencoder_forward.1} parent=1 // pred_check_branch
      %97 = sbr.rel (0) target = $region33
    $region32: #{autoencoder_forward.1} parent=1 // pred_region
      %s99 = ssub.s32 2048, 2048
      %100 = vsyncadd [#allocation16], %s99
      %s101 = sshll.u32 [#allocation15], 4
      %s102 = int_to_ptr.vmem [resolvable:$true] %s101
      %107 = dma.hbm_to_vmem [thread:$0]  %s10, 2048, %s102, [#allocation16], 128, 128, 8
    $region33: #{autoencoder_forward.1} parent=1 // pred_fallthru
      _
    // Predicated region
    $region34: #{autoencoder_forward.1} parent=1 // pred_check
      _
    $region35: #{autoencoder_forward.1} parent=1 // pred_check_branch
      %109 = sbr.rel (0) target = $region37
    $region36: #{autoencoder_forward.1} parent=1 // pred_region
      _
    $region37: #{autoencoder_forward.1} parent=1 // pred_fallthru
      _
    // Predicated region
    $region38: #{autoencoder_forward.1} parent=1 // pred_check
      _
    $region39: #{autoencoder_forward.1} parent=1 // pred_check_branch
      %111 = sbr.rel (0) target = $region41
    $region40: #{autoencoder_forward.1} parent=1 // pred_region
      %s113 = ssub.s32 1024, 1024
      %114 = vsyncadd [#allocation16], %s113
      %s115 = sshll.u32 [#allocation17], 4
      %s116 = int_to_ptr.vmem [resolvable:$true] %s115
      %121 = dma.hbm_to_vmem [thread:$0]  %s12, 1024, %s116, [#allocation16], 64, 64, 4
    $region41: #{autoencoder_forward.1} parent=1 // pred_fallthru
      _
    // Predicated region
    $region42: #{autoencoder_forward.1} parent=1 // pred_check
      _
    $region43: #{autoencoder_forward.1} parent=1 // pred_check_branch
      %123 = sbr.rel (0) target = $region45
    $region44: #{autoencoder_forward.1} parent=1 // pred_region
      _
    $region45: #{autoencoder_forward.1} parent=1 // pred_fallthru
      _
    // Predicated region
    $region46: #{autoencoder_forward.1} parent=1 // pred_check
      _
    $region47: #{autoencoder_forward.1} parent=1 // pred_check_branch
      %125 = sbr.rel (0) target = $region49
    $region48: #{autoencoder_forward.1} parent=1 // pred_region
      %s127 = ssub.s32 2048, 2048
      %128 = vsyncadd [#allocation19], %s127
      %s129 = sshll.u32 [#allocation18], 4
      %s130 = int_to_ptr.vmem [resolvable:$true] %s129
      %135 = dma.hbm_to_vmem [thread:$0]  %s14, 2048, %s130, [#allocation19], 128, 128, 8
    $region49: #{autoencoder_forward.1} parent=1 // pred_fallthru
      _
    // Predicated region
    $region50: #{autoencoder_forward.1} parent=1 // pred_check
      _
    $region51: #{autoencoder_forward.1} parent=1 // pred_check_branch
      %137 = sbr.rel (0) target = $region53
    $region52: #{autoencoder_forward.1} parent=1 // pred_region
      _
    $region53: #{autoencoder_forward.1} parent=1 // pred_fallthru
      _
    // Predicated region
    $region54: #{autoencoder_forward.1} parent=1 // pred_check
      _
    $region55: #{autoencoder_forward.1} parent=1 // pred_check_branch
      %139 = sbr.rel (0) target = $region57
    $region56: #{autoencoder_forward.1} parent=1 // pred_region
      %140 = dma.done [#allocation8], 1024
    $region57: #{autoencoder_forward.1} parent=1 // pred_fallthru
      _
    // Predicated region
    $region58: #{autoencoder_forward.1} parent=1 // pred_check
      _
    $region59: #{autoencoder_forward.1} parent=1 // pred_check_branch
      %142 = sbr.rel (0) target = $region61
    $region60: #{autoencoder_forward.1} parent=1 // pred_region
      %143 = dma.done [#allocation10], 2048
    $region61: #{autoencoder_forward.1} parent=1 // pred_fallthru
      _
    // Predicated region
    $region62: #{autoencoder_forward.1} parent=1 // pred_check
      _
    $region63: #{autoencoder_forward.1} parent=1 // pred_check_branch
      %145 = sbr.rel (0) target = $region65
    $region64: #{autoencoder_forward.1} parent=1 // pred_region
      %146 = dma.done [#allocation10], 1024
    $region65: #{autoencoder_forward.1} parent=1 // pred_fallthru
      _
    // Predicated region
    $region66: #{autoencoder_forward.1} parent=1 // pred_check
      _
    $region67: #{autoencoder_forward.1} parent=1 // pred_check_branch
      %148 = sbr.rel (0) target = $region69
    $region68: #{autoencoder_forward.1} parent=1 // pred_region
      %149 = dma.done [#allocation13], 1024
    $region69: #{autoencoder_forward.1} parent=1 // pred_fallthru
      _
    // Predicated region
    $region70: #{autoencoder_forward.1} parent=1 // pred_check
      _
    $region71: #{autoencoder_forward.1} parent=1 // pred_check_branch
      %151 = sbr.rel (0) target = $region73
    $region72: #{autoencoder_forward.1} parent=1 // pred_region
      %152 = dma.done [#allocation13], 16
    $region73: #{autoencoder_forward.1} parent=1 // pred_fallthru
      _
    // Predicated region
    $region74: #{autoencoder_forward.1} parent=1 // pred_check
      _
    $region75: #{autoencoder_forward.1} parent=1 // pred_check_branch
      %154 = sbr.rel (0) target = $region77
    $region76: #{autoencoder_forward.1} parent=1 // pred_region
      %155 = dma.done [#allocation16], 2048
    $region77: #{autoencoder_forward.1} parent=1 // pred_fallthru
      _
    // Predicated region
    $region78: #{autoencoder_forward.1} parent=1 // pred_check
      _
    $region79: #{autoencoder_forward.1} parent=1 // pred_check_branch
      %157 = sbr.rel (0) target = $region81
    $region80: #{autoencoder_forward.1} parent=1 // pred_region
      %158 = dma.done [#allocation16], 1024
    $region81: #{autoencoder_forward.1} parent=1 // pred_fallthru
      _
    // Predicated region
    $region82: #{autoencoder_forward.1} parent=1 // pred_check
      _
    $region83: #{autoencoder_forward.1} parent=1 // pred_check_branch
      %160 = sbr.rel (0) target = $region85
    $region84: #{autoencoder_forward.1} parent=1 // pred_region
      %161 = dma.done [#allocation19], 2048
    $region85: #{autoencoder_forward.1} parent=1 // pred_fallthru
      _
    %s164 = smul.u32 0, 256
    loop: start=0, step=1, limit=256
    $region86: #{autoencoder_forward.1} parent=1 // loop_pre_header
      _
    $region87: #{autoencoder_forward.1} parent=1 // loop_header
      %s166 = sphi 0, %s170
      %p167 = scmp.ge.s32.totalorder %s166, 256
    $region88: #{autoencoder_forward.1} parent=1 // loop_header_branch
      %169 = sbr.rel (%p167) target = $region92
    $region89: #{autoencoder_forward.1} parent=1 // loop_body
      %s171 = sadd.s32 %s164, %s166
      %s172 = sld [smem:[#allocation6 + %s171]]
      %s173 = smul.addr %s172, 16
      %s174 = scalar_lea.hbm %s1, %s173
      %s175 = scalar_lea.vmem [#allocation2], %s166
      // Predicated region
      $region93: #{autoencoder_forward.1} parent=89 // pred_check
        _
      $region94: #{autoencoder_forward.1} parent=89 // pred_check_branch
        %177 = sbr.rel target = $region96
      $region95: #{autoencoder_forward.1} parent=89 // pred_region
        %178 = sst [smem:[#allocation22]] [#allocation21]
        %179 = sst [smem:[#allocation23]] [#allocation20]
      $region96: #{autoencoder_forward.1} parent=89 // pred_fallthru
        _
      %181 = shalt.err (0)
      %s183 = sshll.u32 %s175, 4
      %s184 = int_to_ptr.vmem [resolvable:$true] %s183
      %186 = dma.hbm_to_vmem [thread:$0]  %s174, 16, %s184, [#allocation4]
      %s187 = sshrl.u32 %s172, 3
      %s188 = sand.u32 %s172, 7
      %s189 = smul.u32 %s187, 16
      %s190 = sadd.s32 %s188, %s189
      %s191 = smul.addr %s190, 16
      %s192 = scalar_lea.hbm %s2, %s191
      %s193 = sshrl.u32 %s166, 3
      %s194 = sand.u32 %s166, 7
      %s195 = smul.u32 %s193, 16
      %s196 = sadd.s32 %s194, %s195
      %s197 = scalar_lea.vmem [#allocation3], %s196
      %s198 = scalar_lea.sflag [#allocation4], 1
      %s200 = sshll.u32 %s197, 4
      %s201 = int_to_ptr.vmem [resolvable:$true] %s200
      %203 = dma.hbm_to_vmem [thread:$0]  %s192, 32, %s201, %s198, 128, 128, 1
    $region90: #{autoencoder_forward.1} parent=1 // loop_footer
      %s170 = sadd.s32 1, %s166
    $region91: #{autoencoder_forward.1} parent=1 // loop_footer_branch
      %165 = sbr.rel target = $region87
    $region92: #{autoencoder_forward.1} parent=1 // loop_exit
      _
    loop: start=0, step=1, limit=256
    $region97: #{autoencoder_forward.1} parent=1 // loop_pre_header
      _
    $region98: #{autoencoder_forward.1} parent=1 // loop_header
      %s205 = sphi 0, %s209
      %p206 = scmp.ge.s32.totalorder %s205, 256
    $region99: #{autoencoder_forward.1} parent=1 // loop_header_branch
      %208 = sbr.rel (%p206) target = $region103
    $region100: #{autoencoder_forward.1} parent=1 // loop_body
      %s210 = smul.u32 1, 1
      %s211 = sshll.u32 %s210, 4
      %212 = dma.done [#allocation4], %s211
      %s213 = scalar_lea.sflag [#allocation4], 1
      %s214 = smul.u32 1, 2
      %s215 = sshll.u32 %s214, 4
      %216 = dma.done %s213, %s215
    $region101: #{autoencoder_forward.1} parent=1 // loop_footer
      %s209 = sadd.s32 1, %s205
    $region102: #{autoencoder_forward.1} parent=1 // loop_footer_branch
      %204 = sbr.rel target = $region98
    $region103: #{autoencoder_forward.1} parent=1 // loop_exit
      _
    %v217 = vld [vmem:[#allocation2] sm:$0xff]
    %v218 = vld [vmem:[#allocation2 + $0x8] sm:$0xff]
    %v219 = vld [vmem:[#allocation2 + $0x10] sm:$0xff]
    %v220 = vld [vmem:[#allocation2 + $0x18] sm:$0xff]
    %v221 = vld [vmem:[#allocation2 + $0x20] sm:$0xff]
    %v222 = vld [vmem:[#allocation2 + $0x28] sm:$0xff]
    %v223 = vld [vmem:[#allocation2 + $0x30] sm:$0xff]
    %v224 = vld [vmem:[#allocation2 + $0x38] sm:$0xff]
    %v225 = vld [vmem:[#allocation2 + $0x40] sm:$0xff]
    %v226 = vld [vmem:[#allocation2 + $0x48] sm:$0xff]
    %v227 = vld [vmem:[#allocation2 + $0x50] sm:$0xff]
    %v228 = vld [vmem:[#allocation2 + $0x58] sm:$0xff]
    %v229 = vld [vmem:[#allocation2 + $0x60] sm:$0xff]
    %v230 = vld [vmem:[#allocation2 + $0x68] sm:$0xff]
    %v231 = vld [vmem:[#allocation2 + $0x70] sm:$0xff]
    %v232 = vld [vmem:[#allocation2 + $0x78] sm:$0xff]
    %v233 = vld [vmem:[#allocation2 + $0x80] sm:$0xff]
    %v234 = vld [vmem:[#allocation2 + $0x88] sm:$0xff]
    %v235 = vld [vmem:[#allocation2 + $0x90] sm:$0xff]
    %v236 = vld [vmem:[#allocation2 + $0x98] sm:$0xff]
    %v237 = vld [vmem:[#allocation2 + $0xa0] sm:$0xff]
    %v238 = vld [vmem:[#allocation2 + $0xa8] sm:$0xff]
    %v239 = vld [vmem:[#allocation2 + $0xb0] sm:$0xff]
    %v240 = vld [vmem:[#allocation2 + $0xb8] sm:$0xff]
    %v241 = vld [vmem:[#allocation2 + $0xc0] sm:$0xff]
    %v242 = vld [vmem:[#allocation2 + $0xc8] sm:$0xff]
    %v243 = vld [vmem:[#allocation2 + $0xd0] sm:$0xff]
    %v244 = vld [vmem:[#allocation2 + $0xd8] sm:$0xff]
    %v245 = vld [vmem:[#allocation2 + $0xe0] sm:$0xff]
    %v246 = vld [vmem:[#allocation2 + $0xe8] sm:$0xff]
    %v247 = vld [vmem:[#allocation2 + $0xf0] sm:$0xff]
    %v248 = vld [vmem:[#allocation2 + $0xf8] sm:$0xff]
    %v249 = vld [vmem:[#allocation3] sm:$0xff]
    %v250 = vld [vmem:[#allocation3 + $0x8] sm:$0xff]
    %v251 = vld [vmem:[#allocation3 + $0x10] sm:$0xff]
    %v252 = vld [vmem:[#allocation3 + $0x18] sm:$0xff]
    %v253 = vld [vmem:[#allocation3 + $0x20] sm:$0xff]
    %v254 = vld [vmem:[#allocation3 + $0x28] sm:$0xff]
    %v255 = vld [vmem:[#allocation3 + $0x30] sm:$0xff]
    %v256 = vld [vmem:[#allocation3 + $0x38] sm:$0xff]
    %v257 = vld [vmem:[#allocation3 + $0x40] sm:$0xff]
    %v258 = vld [vmem:[#allocation3 + $0x48] sm:$0xff]
    %v259 = vld [vmem:[#allocation3 + $0x50] sm:$0xff]
    %v260 = vld [vmem:[#allocation3 + $0x58] sm:$0xff]
    %v261 = vld [vmem:[#allocation3 + $0x60] sm:$0xff]
    %v262 = vld [vmem:[#allocation3 + $0x68] sm:$0xff]
    %v263 = vld [vmem:[#allocation3 + $0x70] sm:$0xff]
    %v264 = vld [vmem:[#allocation3 + $0x78] sm:$0xff]
    %v265 = vld [vmem:[#allocation3 + $0x80] sm:$0xff]
    %v266 = vld [vmem:[#allocation3 + $0x88] sm:$0xff]
    %v267 = vld [vmem:[#allocation3 + $0x90] sm:$0xff]
    %v268 = vld [vmem:[#allocation3 + $0x98] sm:$0xff]
    %v269 = vld [vmem:[#allocation3 + $0xa0] sm:$0xff]
    %v270 = vld [vmem:[#allocation3 + $0xa8] sm:$0xff]
    %v271 = vld [vmem:[#allocation3 + $0xb0] sm:$0xff]
    %v272 = vld [vmem:[#allocation3 + $0xb8] sm:$0xff]
    %v273 = vld [vmem:[#allocation3 + $0xc0] sm:$0xff]
    %v274 = vld [vmem:[#allocation3 + $0xc8] sm:$0xff]
    %v275 = vld [vmem:[#allocation3 + $0xd0] sm:$0xff]
    %v276 = vld [vmem:[#allocation3 + $0xd8] sm:$0xff]
    %v277 = vld [vmem:[#allocation3 + $0xe0] sm:$0xff]
    %v278 = vld [vmem:[#allocation3 + $0xe8] sm:$0xff]
    %v279 = vld [vmem:[#allocation3 + $0xf0] sm:$0xff]
    %v280 = vld [vmem:[#allocation3 + $0xf8] sm:$0xff]
    %v281 = vld [vmem:[#allocation3 + $0x100] sm:$0xff]
    %v282 = vld [vmem:[#allocation3 + $0x108] sm:$0xff]
    %v283 = vld [vmem:[#allocation3 + $0x110] sm:$0xff]
    %v284 = vld [vmem:[#allocation3 + $0x118] sm:$0xff]
    %v285 = vld [vmem:[#allocation3 + $0x120] sm:$0xff]
    %v286 = vld [vmem:[#allocation3 + $0x128] sm:$0xff]
    %v287 = vld [vmem:[#allocation3 + $0x130] sm:$0xff]
    %v288 = vld [vmem:[#allocation3 + $0x138] sm:$0xff]
    %v289 = vld [vmem:[#allocation3 + $0x140] sm:$0xff]
    %v290 = vld [vmem:[#allocation3 + $0x148] sm:$0xff]
    %v291 = vld [vmem:[#allocation3 + $0x150] sm:$0xff]
    %v292 = vld [vmem:[#allocation3 + $0x158] sm:$0xff]
    %v293 = vld [vmem:[#allocation3 + $0x160] sm:$0xff]
    %v294 = vld [vmem:[#allocation3 + $0x168] sm:$0xff]
    %v295 = vld [vmem:[#allocation3 + $0x170] sm:$0xff]
    %v296 = vld [vmem:[#allocation3 + $0x178] sm:$0xff]
    %v297 = vld [vmem:[#allocation3 + $0x180] sm:$0xff]
    %v298 = vld [vmem:[#allocation3 + $0x188] sm:$0xff]
    %v299 = vld [vmem:[#allocation3 + $0x190] sm:$0xff]
    %v300 = vld [vmem:[#allocation3 + $0x198] sm:$0xff]
    %v301 = vld [vmem:[#allocation3 + $0x1a0] sm:$0xff]
    %v302 = vld [vmem:[#allocation3 + $0x1a8] sm:$0xff]
    %v303 = vld [vmem:[#allocation3 + $0x1b0] sm:$0xff]
    %v304 = vld [vmem:[#allocation3 + $0x1b8] sm:$0xff]
    %v305 = vld [vmem:[#allocation3 + $0x1c0] sm:$0xff]
    %v306 = vld [vmem:[#allocation3 + $0x1c8] sm:$0xff]
    %v307 = vld [vmem:[#allocation3 + $0x1d0] sm:$0xff]
    %v308 = vld [vmem:[#allocation3 + $0x1d8] sm:$0xff]
    %v309 = vld [vmem:[#allocation3 + $0x1e0] sm:$0xff]
    %v310 = vld [vmem:[#allocation3 + $0x1e8] sm:$0xff]
    %v311 = vld [vmem:[#allocation3 + $0x1f0] sm:$0xff]
    %v312 = vld [vmem:[#allocation3 + $0x1f8] sm:$0xff]
    %v313 = vpack.c.bf16 %v218, %v217
    %v314 = vpack.c.bf16 %v220, %v219
    %v315 = vpack.c.bf16 %v222, %v221
    %v316 = vpack.c.bf16 %v224, %v223
    %v317 = vpack.c.bf16 %v226, %v225
    %v318 = vpack.c.bf16 %v228, %v227
    %v319 = vpack.c.bf16 %v230, %v229
    %v320 = vpack.c.bf16 %v232, %v231
    %v321 = vpack.c.bf16 %v234, %v233
    %v322 = vpack.c.bf16 %v236, %v235
    %v323 = vpack.c.bf16 %v238, %v237
    %v324 = vpack.c.bf16 %v240, %v239
    %v325 = vpack.c.bf16 %v242, %v241
    %v326 = vpack.c.bf16 %v244, %v243
    %v327 = vpack.c.bf16 %v246, %v245
    %v328 = vpack.c.bf16 %v248, %v247
    %v329 = vld [vmem:[#allocation7] sm:$0xf]
    %v330 = vld [vmem:[#allocation7 + $0x4] sm:$0xf]
    %v331 = vld [vmem:[#allocation7 + $0x8] sm:$0xf]
    %v332 = vld [vmem:[#allocation7 + $0xc] sm:$0xf]
    %v333 = vld [vmem:[#allocation7 + $0x10] sm:$0xf]
    %v334 = vld [vmem:[#allocation7 + $0x14] sm:$0xf]
    %v335 = vld [vmem:[#allocation7 + $0x18] sm:$0xf]
    %v336 = vld [vmem:[#allocation7 + $0x1c] sm:$0xf]
    %v337 = vld [vmem:[#allocation7 + $0x20] sm:$0xf]
    %v338 = vld [vmem:[#allocation7 + $0x24] sm:$0xf]
    %v339 = vld [vmem:[#allocation7 + $0x28] sm:$0xf]
    %v340 = vld [vmem:[#allocation7 + $0x2c] sm:$0xf]
    %v341 = vld [vmem:[#allocation7 + $0x30] sm:$0xf]
    %v342 = vld [vmem:[#allocation7 + $0x34] sm:$0xf]
    %v343 = vld [vmem:[#allocation7 + $0x38] sm:$0xf]
    %v344 = vld [vmem:[#allocation7 + $0x3c] sm:$0xf]
    %v345 = vld [vmem:[%s4] sm:$0x1]
    %v347 = vlaneseq
    %v348 = vshrl.u32 %v347, 7
    %v349 = vsub.s32 0, %v348
    %v350 = vrot.slane %v345, %v349
    %v368 = vunpack.c.l.b16 %v329
    %v369 = vunpack.c.l.b16 %v330
    %v370 = vunpack.c.l.b16 %v331
    %v371 = vunpack.c.l.b16 %v332
    %v372 = vunpack.c.l.b16 %v333
    %v373 = vunpack.c.l.b16 %v334
    %v374 = vunpack.c.l.b16 %v335
    %v375 = vunpack.c.l.b16 %v336
    %v376 = vunpack.c.l.b16 %v337
    %v377 = vunpack.c.l.b16 %v338
    %v378 = vunpack.c.l.b16 %v339
    %v379 = vunpack.c.l.b16 %v340
    %v380 = vunpack.c.l.b16 %v341
    %v381 = vunpack.c.l.b16 %v342
    %v382 = vunpack.c.l.b16 %v343
    %v383 = vunpack.c.l.b16 %v344
    %v384 = vpack.c.b16 %v369, %v368
    %v385 = vpack.c.b16 %v371, %v370
    %v386 = vpack.c.b16 %v373, %v372
    %v387 = vpack.c.b16 %v375, %v374
    %v388 = vpack.c.b16 %v377, %v376
    %v389 = vpack.c.b16 %v379, %v378
    %v390 = vpack.c.b16 %v381, %v380
    %v391 = vpack.c.b16 %v383, %v382
    %400 = vmatprep.subr.bf16.mxu0 0
    %401 = vmatpush1.bf16.msra.mxu0 %v391
    %402 = vmatprep.subr.bf16.mxu0 0
    %403 = vmatpush1.bf16.msra.mxu0 %v390
    %404 = vmatprep.subr.bf16.mxu0 0
    %405 = vmatpush1.bf16.msra.mxu0 %v389
    %406 = vmatprep.subr.bf16.mxu0 0
    %407 = vmatpush1.bf16.msra.mxu0 %v388
    %408 = vmatprep.subr.bf16.mxu0 0
    %409 = vmatpush1.bf16.msra.mxu0 %v387
    %410 = vmatprep.subr.bf16.mxu0 0
    %411 = vmatpush1.bf16.msra.mxu0 %v386
    %412 = vmatprep.subr.bf16.mxu0 0
    %413 = vmatpush1.bf16.msra.mxu0 %v385
    %414 = vmatprep.subr.bf16.mxu0 0
    %415 = vmatpush1.bf16.msra.mxu0 %v384
    %416 = vmatprep.subr.bf16.mxu0 0
    %417 = vmatpush2.bf16.msra.mxu0 0
    %418 = vmatprep.subr.bf16.mxu0 0
    %419 = vmatpush2.bf16.msra.mxu0 0
    %420 = vmatprep.subr.bf16.mxu0 0
    %421 = vmatpush2.bf16.msra.mxu0 0
    %422 = vmatprep.subr.bf16.mxu0 0
    %423 = vmatpush2.bf16.msra.mxu0 0
    %424 = vmatprep.subr.bf16.mxu0 0
    %425 = vmatpush2.bf16.msra.mxu0 0
    %426 = vmatprep.subr.bf16.mxu0 0
    %427 = vmatpush2.bf16.msra.mxu0 0
    %428 = vmatprep.subr.bf16.mxu0 0
    %429 = vmatpush2.bf16.msra.mxu0 0
    %430 = vmatprep.subr.bf16.mxu0 0
    %431 = vmatpush2.bf16.msra.mxu0 0
    %432 = vmatprep.mubr.bf16.mxu0 0
    %433 = vmatmul.mubr.bf16.gmra.mxu0 %v313
    %v434 = vpop.f32.mrf.mxu0
    %v435 = vadd.f32 %v350, %v434
    %v436 = vpop.f32.mrf.mxu0
    %v437 = vpop.f32.mrf.mxu0
    %v438 = vadd.f32 %v350, %v437
    %v439 = vpop.f32.mrf.mxu0
    %440 = vmatprep.mubr.bf16.mxu0 0
    %441 = vmatmul.mubr.bf16.gmra.mxu0 %v314
    %v442 = vpop.f32.mrf.mxu0
    %v443 = vadd.f32 %v350, %v442
    %v444 = vpop.f32.mrf.mxu0
    %v445 = vpop.f32.mrf.mxu0
    %v446 = vadd.f32 %v350, %v445
    %v447 = vpop.f32.mrf.mxu0
    %448 = vmatprep.mubr.bf16.mxu0 0
    %449 = vmatmul.mubr.bf16.gmra.mxu0 %v315
    %v450 = vpop.f32.mrf.mxu0
    %v451 = vadd.f32 %v350, %v450
    %v452 = vpop.f32.mrf.mxu0
    %v453 = vpop.f32.mrf.mxu0
    %v454 = vadd.f32 %v350, %v453
    %v455 = vpop.f32.mrf.mxu0
    %456 = vmatprep.mubr.bf16.mxu0 0
    %457 = vmatmul.mubr.bf16.gmra.mxu0 %v316
    %v458 = vpop.f32.mrf.mxu0
    %v459 = vadd.f32 %v350, %v458
    %v460 = vpop.f32.mrf.mxu0
    %v461 = vpop.f32.mrf.mxu0
    %v462 = vadd.f32 %v350, %v461
    %v463 = vpop.f32.mrf.mxu0
    %464 = vmatprep.mubr.bf16.mxu0 0
    %465 = vmatmul.mubr.bf16.gmra.mxu0 %v317
    %v466 = vpop.f32.mrf.mxu0
    %v467 = vadd.f32 %v350, %v466
    %v468 = vpop.f32.mrf.mxu0
    %v469 = vpop.f32.mrf.mxu0
    %v470 = vadd.f32 %v350, %v469
    %v471 = vpop.f32.mrf.mxu0
    %472 = vmatprep.mubr.bf16.mxu0 0
    %473 = vmatmul.mubr.bf16.gmra.mxu0 %v318
    %v474 = vpop.f32.mrf.mxu0
    %v475 = vadd.f32 %v350, %v474
    %v476 = vpop.f32.mrf.mxu0
    %v477 = vpop.f32.mrf.mxu0
    %v478 = vadd.f32 %v350, %v477
    %v479 = vpop.f32.mrf.mxu0
    %480 = vmatprep.mubr.bf16.mxu0 0
    %481 = vmatmul.mubr.bf16.gmra.mxu0 %v319
    %v482 = vpop.f32.mrf.mxu0
    %v483 = vadd.f32 %v350, %v482
    %v484 = vpop.f32.mrf.mxu0
    %v485 = vpop.f32.mrf.mxu0
    %v486 = vadd.f32 %v350, %v485
    %v487 = vpop.f32.mrf.mxu0
    %488 = vmatprep.mubr.bf16.mxu0 0
    %489 = vmatmul.mubr.bf16.gmra.mxu0 %v320
    %v490 = vpop.f32.mrf.mxu0
    %v491 = vadd.f32 %v350, %v490
    %v492 = vpop.f32.mrf.mxu0
    %v493 = vpop.f32.mrf.mxu0
    %v494 = vadd.f32 %v350, %v493
    %v495 = vpop.f32.mrf.mxu0
    %496 = vmatprep.mubr.bf16.mxu0 0
    %497 = vmatmul.mubr.bf16.gmra.mxu0 %v321
    %v498 = vpop.f32.mrf.mxu0
    %v499 = vadd.f32 %v350, %v498
    %v500 = vpop.f32.mrf.mxu0
    %v501 = vpop.f32.mrf.mxu0
    %v502 = vadd.f32 %v350, %v501
    %v503 = vpop.f32.mrf.mxu0
    %504 = vmatprep.mubr.bf16.mxu0 0
    %505 = vmatmul.mubr.bf16.gmra.mxu0 %v322
    %v506 = vpop.f32.mrf.mxu0
    %v507 = vadd.f32 %v350, %v506
    %v508 = vpop.f32.mrf.mxu0
    %v509 = vpop.f32.mrf.mxu0
    %v510 = vadd.f32 %v350, %v509
    %v511 = vpop.f32.mrf.mxu0
    %512 = vmatprep.mubr.bf16.mxu0 0
    %513 = vmatmul.mubr.bf16.gmra.mxu0 %v323
    %v514 = vpop.f32.mrf.mxu0
    %v515 = vadd.f32 %v350, %v514
    %v516 = vpop.f32.mrf.mxu0
    %v517 = vpop.f32.mrf.mxu0
    %v518 = vadd.f32 %v350, %v517
    %v519 = vpop.f32.mrf.mxu0
    %520 = vmatprep.mubr.bf16.mxu0 0
    %521 = vmatmul.mubr.bf16.gmra.mxu0 %v324
    %v522 = vpop.f32.mrf.mxu0
    %v523 = vadd.f32 %v350, %v522
    %v524 = vpop.f32.mrf.mxu0
    %v525 = vpop.f32.mrf.mxu0
    %v526 = vadd.f32 %v350, %v525
    %v527 = vpop.f32.mrf.mxu0
    %528 = vmatprep.mubr.bf16.mxu0 0
    %529 = vmatmul.mubr.bf16.gmra.mxu0 %v325
    %v530 = vpop.f32.mrf.mxu0
    %v531 = vadd.f32 %v350, %v530
    %v532 = vpop.f32.mrf.mxu0
    %v533 = vpop.f32.mrf.mxu0
    %v534 = vadd.f32 %v350, %v533
    %v535 = vpop.f32.mrf.mxu0
    %536 = vmatprep.mubr.bf16.mxu0 0
    %537 = vmatmul.mubr.bf16.gmra.mxu0 %v326
    %v538 = vpop.f32.mrf.mxu0
    %v539 = vadd.f32 %v350, %v538
    %v540 = vpop.f32.mrf.mxu0
    %v541 = vpop.f32.mrf.mxu0
    %v542 = vadd.f32 %v350, %v541
    %v543 = vpop.f32.mrf.mxu0
    %544 = vmatprep.mubr.bf16.mxu0 0
    %545 = vmatmul.mubr.bf16.gmra.mxu0 %v327
    %v546 = vpop.f32.mrf.mxu0
    %v547 = vadd.f32 %v350, %v546
    %v548 = vpop.f32.mrf.mxu0
    %v549 = vpop.f32.mrf.mxu0
    %v550 = vadd.f32 %v350, %v549
    %v551 = vpop.f32.mrf.mxu0
    %552 = vmatprep.mubr.bf16.mxu0 0
    %553 = vmatmul.mubr.bf16.gmra.mxu0 %v328
    %v554 = vpop.f32.mrf.mxu0
    %v555 = vadd.f32 %v350, %v554
    %v556 = vpop.f32.mrf.mxu0
    %v557 = vpop.f32.mrf.mxu0
    %v558 = vadd.f32 %v350, %v557
    %v559 = vpop.f32.mrf.mxu0
    %560 = vdwg.mxu0
    %v561 = vxor.u32 %v435, 2147483648
    %v562 = vxor.u32 %v438, 2147483648
    %v563 = vxor.u32 %v443, 2147483648
    %v564 = vxor.u32 %v446, 2147483648
    %v565 = vxor.u32 %v451, 2147483648
    %v566 = vxor.u32 %v454, 2147483648
    %v567 = vxor.u32 %v459, 2147483648
    %v568 = vxor.u32 %v462, 2147483648
    %v569 = vxor.u32 %v467, 2147483648
    %v570 = vxor.u32 %v470, 2147483648
    %v571 = vxor.u32 %v475, 2147483648
    %v572 = vxor.u32 %v478, 2147483648
    %v573 = vxor.u32 %v483, 2147483648
    %v574 = vxor.u32 %v486, 2147483648
    %v575 = vxor.u32 %v491, 2147483648
    %v576 = vxor.u32 %v494, 2147483648
    %v577 = vxor.u32 %v499, 2147483648
    %v578 = vxor.u32 %v502, 2147483648
    %v579 = vxor.u32 %v507, 2147483648
    %v580 = vxor.u32 %v510, 2147483648
    %v581 = vxor.u32 %v515, 2147483648
    %v582 = vxor.u32 %v518, 2147483648
    %v583 = vxor.u32 %v523, 2147483648
    %v584 = vxor.u32 %v526, 2147483648
    %v585 = vxor.u32 %v531, 2147483648
    %v586 = vxor.u32 %v534, 2147483648
    %v587 = vxor.u32 %v539, 2147483648
    %v588 = vxor.u32 %v542, 2147483648
    %v589 = vxor.u32 %v547, 2147483648
    %v590 = vxor.u32 %v550, 2147483648
    %v591 = vxor.u32 %v555, 2147483648
    %v592 = vxor.u32 %v558, 2147483648
    %v593 = vmul.f32 %v561, 1.442695
    %v594 = vpow.pop %v593
    %v595 = vmul.f32 %v562, 1.442695
    %v596 = vpow.pop %v595
    %v597 = vmul.f32 %v563, 1.442695
    %v598 = vpow.pop %v597
    %v599 = vmul.f32 %v564, 1.442695
    %v600 = vpow.pop %v599
    %v601 = vmul.f32 %v565, 1.442695
    %v602 = vpow.pop %v601
    %v603 = vmul.f32 %v566, 1.442695
    %v604 = vpow.pop %v603
    %v605 = vmul.f32 %v567, 1.442695
    %v606 = vpow.pop %v605
    %v607 = vmul.f32 %v568, 1.442695
    %v608 = vpow.pop %v607
    %v609 = vmul.f32 %v569, 1.442695
    %v610 = vpow.pop %v609
    %v611 = vmul.f32 %v570, 1.442695
    %v612 = vpow.pop %v611
    %v613 = vmul.f32 %v571, 1.442695
    %v614 = vpow.pop %v613
    %v615 = vmul.f32 %v572, 1.442695
    %v616 = vpow.pop %v615
    %v617 = vmul.f32 %v573, 1.442695
    %v618 = vpow.pop %v617
    %v619 = vmul.f32 %v574, 1.442695
    %v620 = vpow.pop %v619
    %v621 = vmul.f32 %v575, 1.442695
    %v622 = vpow.pop %v621
    %v623 = vmul.f32 %v576, 1.442695
    %v624 = vpow.pop %v623
    %v625 = vmul.f32 %v577, 1.442695
    %v626 = vpow.pop %v625
    %v627 = vmul.f32 %v578, 1.442695
    %v628 = vpow.pop %v627
    %v629 = vmul.f32 %v579, 1.442695
    %v630 = vpow.pop %v629
    %v631 = vmul.f32 %v580, 1.442695
    %v632 = vpow.pop %v631
    %v633 = vmul.f32 %v581, 1.442695
    %v634 = vpow.pop %v633
    %v635 = vmul.f32 %v582, 1.442695
    %v636 = vpow.pop %v635
    %v637 = vmul.f32 %v583, 1.442695
    %v638 = vpow.pop %v637
    %v639 = vmul.f32 %v584, 1.442695
    %v640 = vpow.pop %v639
    %v641 = vmul.f32 %v585, 1.442695
    %v642 = vpow.pop %v641
    %v643 = vmul.f32 %v586, 1.442695
    %v644 = vpow.pop %v643
    %v645 = vmul.f32 %v587, 1.442695
    %v646 = vpow.pop %v645
    %v647 = vmul.f32 %v588, 1.442695
    %v648 = vpow.pop %v647
    %v649 = vmul.f32 %v589, 1.442695
    %v650 = vpow.pop %v649
    %v651 = vmul.f32 %v590, 1.442695
    %v652 = vpow.pop %v651
    %v653 = vmul.f32 %v591, 1.442695
    %v654 = vpow.pop %v653
    %v655 = vmul.f32 %v592, 1.442695
    %v656 = vpow.pop %v655
    %v657 = vadd.f32 %v594, 1.0
    %v658 = vadd.f32 %v596, 1.0
    %v659 = vadd.f32 %v598, 1.0
    %v660 = vadd.f32 %v600, 1.0
    %v661 = vadd.f32 %v602, 1.0
    %v662 = vadd.f32 %v604, 1.0
    %v663 = vadd.f32 %v606, 1.0
    %v664 = vadd.f32 %v608, 1.0
    %v665 = vadd.f32 %v610, 1.0
    %v666 = vadd.f32 %v612, 1.0
    %v667 = vadd.f32 %v614, 1.0
    %v668 = vadd.f32 %v616, 1.0
    %v669 = vadd.f32 %v618, 1.0
    %v670 = vadd.f32 %v620, 1.0
    %v671 = vadd.f32 %v622, 1.0
    %v672 = vadd.f32 %v624, 1.0
    %v673 = vadd.f32 %v626, 1.0
    %v674 = vadd.f32 %v628, 1.0
    %v675 = vadd.f32 %v630, 1.0
    %v676 = vadd.f32 %v632, 1.0
    %v677 = vadd.f32 %v634, 1.0
    %v678 = vadd.f32 %v636, 1.0
    %v679 = vadd.f32 %v638, 1.0
    %v680 = vadd.f32 %v640, 1.0
    %v681 = vadd.f32 %v642, 1.0
    %v682 = vadd.f32 %v644, 1.0
    %v683 = vadd.f32 %v646, 1.0
    %v684 = vadd.f32 %v648, 1.0
    %v685 = vadd.f32 %v650, 1.0
    %v686 = vadd.f32 %v652, 1.0
    %v687 = vadd.f32 %v654, 1.0
    %v688 = vadd.f32 %v656, 1.0
    %v689 = vrcp.pop %v657
    %v690 = vmul.f32 1.0, %v689
    %v691 = vrcp.pop %v658
    %v692 = vmul.f32 1.0, %v691
    %v693 = vrcp.pop %v659
    %v694 = vmul.f32 1.0, %v693
    %v695 = vrcp.pop %v660
    %v696 = vmul.f32 1.0, %v695
    %v697 = vrcp.pop %v661
    %v698 = vmul.f32 1.0, %v697
    %v699 = vrcp.pop %v662
    %v700 = vmul.f32 1.0, %v699
    %v701 = vrcp.pop %v663
    %v702 = vmul.f32 1.0, %v701
    %v703 = vrcp.pop %v664
    %v704 = vmul.f32 1.0, %v703
    %v705 = vrcp.pop %v665
    %v706 = vmul.f32 1.0, %v705
    %v707 = vrcp.pop %v666
    %v708 = vmul.f32 1.0, %v707
    %v709 = vrcp.pop %v667
    %v710 = vmul.f32 1.0, %v709
    %v711 = vrcp.pop %v668
    %v712 = vmul.f32 1.0, %v711
    %v713 = vrcp.pop %v669
    %v714 = vmul.f32 1.0, %v713
    %v715 = vrcp.pop %v670
    %v716 = vmul.f32 1.0, %v715
    %v717 = vrcp.pop %v671
    %v718 = vmul.f32 1.0, %v717
    %v719 = vrcp.pop %v672
    %v720 = vmul.f32 1.0, %v719
    %v721 = vrcp.pop %v673
    %v722 = vmul.f32 1.0, %v721
    %v723 = vrcp.pop %v674
    %v724 = vmul.f32 1.0, %v723
    %v725 = vrcp.pop %v675
    %v726 = vmul.f32 1.0, %v725
    %v727 = vrcp.pop %v676
    %v728 = vmul.f32 1.0, %v727
    %v729 = vrcp.pop %v677
    %v730 = vmul.f32 1.0, %v729
    %v731 = vrcp.pop %v678
    %v732 = vmul.f32 1.0, %v731
    %v733 = vrcp.pop %v679
    %v734 = vmul.f32 1.0, %v733
    %v735 = vrcp.pop %v680
    %v736 = vmul.f32 1.0, %v735
    %v737 = vrcp.pop %v681
    %v738 = vmul.f32 1.0, %v737
    %v739 = vrcp.pop %v682
    %v740 = vmul.f32 1.0, %v739
    %v741 = vrcp.pop %v683
    %v742 = vmul.f32 1.0, %v741
    %v743 = vrcp.pop %v684
    %v744 = vmul.f32 1.0, %v743
    %v745 = vrcp.pop %v685
    %v746 = vmul.f32 1.0, %v745
    %v747 = vrcp.pop %v686
    %v748 = vmul.f32 1.0, %v747
    %v749 = vrcp.pop %v687
    %v750 = vmul.f32 1.0, %v749
    %v751 = vrcp.pop %v688
    %v752 = vmul.f32 1.0, %v751
    %v753 = vpack.c.bf16 %v692, %v690
    %v754 = vpack.c.bf16 %v696, %v694
    %v755 = vpack.c.bf16 %v700, %v698
    %v756 = vpack.c.bf16 %v704, %v702
    %v757 = vpack.c.bf16 %v708, %v706
    %v758 = vpack.c.bf16 %v712, %v710
    %v759 = vpack.c.bf16 %v716, %v714
    %v760 = vpack.c.bf16 %v720, %v718
    %v761 = vpack.c.bf16 %v724, %v722
    %v762 = vpack.c.bf16 %v728, %v726
    %v763 = vpack.c.bf16 %v732, %v730
    %v764 = vpack.c.bf16 %v736, %v734
    %v765 = vpack.c.bf16 %v740, %v738
    %v766 = vpack.c.bf16 %v744, %v742
    %v767 = vpack.c.bf16 %v748, %v746
    %v768 = vpack.c.bf16 %v752, %v750
    %v769 = vpack.c.bf16 %v251, %v249
    %v770 = vpack.c.bf16 %v252, %v250
    %v771 = vpack.c.bf16 %v255, %v253
    %v772 = vpack.c.bf16 %v256, %v254
    %v773 = vpack.c.bf16 %v259, %v257
    %v774 = vpack.c.bf16 %v260, %v258
    %v775 = vpack.c.bf16 %v263, %v261
    %v776 = vpack.c.bf16 %v264, %v262
    %v777 = vpack.c.bf16 %v267, %v265
    %v778 = vpack.c.bf16 %v268, %v266
    %v779 = vpack.c.bf16 %v271, %v269
    %v780 = vpack.c.bf16 %v272, %v270
    %v781 = vpack.c.bf16 %v275, %v273
    %v782 = vpack.c.bf16 %v276, %v274
    %v783 = vpack.c.bf16 %v279, %v277
    %v784 = vpack.c.bf16 %v280, %v278
    %v785 = vpack.c.bf16 %v283, %v281
    %v786 = vpack.c.bf16 %v284, %v282
    %v787 = vpack.c.bf16 %v287, %v285
    %v788 = vpack.c.bf16 %v288, %v286
    %v789 = vpack.c.bf16 %v291, %v289
    %v790 = vpack.c.bf16 %v292, %v290
    %v791 = vpack.c.bf16 %v295, %v293
    %v792 = vpack.c.bf16 %v296, %v294
    %v793 = vpack.c.bf16 %v299, %v297
    %v794 = vpack.c.bf16 %v300, %v298
    %v795 = vpack.c.bf16 %v303, %v301
    %v796 = vpack.c.bf16 %v304, %v302
    %v797 = vpack.c.bf16 %v307, %v305
    %v798 = vpack.c.bf16 %v308, %v306
    %v799 = vpack.c.bf16 %v311, %v309
    %v800 = vpack.c.bf16 %v312, %v310
    %v801 = vld [vmem:[#allocation9] sm:$0xf]
    %v802 = vld [vmem:[#allocation9 + $0x4] sm:$0xf]
    %v803 = vld [vmem:[#allocation9 + $0x8] sm:$0xf]
    %v804 = vld [vmem:[#allocation9 + $0xc] sm:$0xf]
    %v805 = vld [vmem:[#allocation9 + $0x10] sm:$0xf]
    %v806 = vld [vmem:[#allocation9 + $0x14] sm:$0xf]
    %v807 = vld [vmem:[#allocation9 + $0x18] sm:$0xf]
    %v808 = vld [vmem:[#allocation9 + $0x1c] sm:$0xf]
    %v809 = vld [vmem:[#allocation9 + $0x20] sm:$0xf]
    %v810 = vld [vmem:[#allocation9 + $0x24] sm:$0xf]
    %v811 = vld [vmem:[#allocation9 + $0x28] sm:$0xf]
    %v812 = vld [vmem:[#allocation9 + $0x2c] sm:$0xf]
    %v813 = vld [vmem:[#allocation9 + $0x30] sm:$0xf]
    %v814 = vld [vmem:[#allocation9 + $0x34] sm:$0xf]
    %v815 = vld [vmem:[#allocation9 + $0x38] sm:$0xf]
    %v816 = vld [vmem:[#allocation9 + $0x3c] sm:$0xf]
    %v817 = vld [vmem:[#allocation9 + $0x40] sm:$0xf]
    %v818 = vld [vmem:[#allocation9 + $0x44] sm:$0xf]
    %v819 = vld [vmem:[#allocation9 + $0x48] sm:$0xf]
    %v820 = vld [vmem:[#allocation9 + $0x4c] sm:$0xf]
    %v821 = vld [vmem:[#allocation9 + $0x50] sm:$0xf]
    %v822 = vld [vmem:[#allocation9 + $0x54] sm:$0xf]
    %v823 = vld [vmem:[#allocation9 + $0x58] sm:$0xf]
    %v824 = vld [vmem:[#allocation9 + $0x5c] sm:$0xf]
    %v825 = vld [vmem:[#allocation9 + $0x60] sm:$0xf]
    %v826 = vld [vmem:[#allocation9 + $0x64] sm:$0xf]
    %v827 = vld [vmem:[#allocation9 + $0x68] sm:$0xf]
    %v828 = vld [vmem:[#allocation9 + $0x6c] sm:$0xf]
    %v829 = vld [vmem:[#allocation9 + $0x70] sm:$0xf]
    %v830 = vld [vmem:[#allocation9 + $0x74] sm:$0xf]
    %v831 = vld [vmem:[#allocation9 + $0x78] sm:$0xf]
    %v832 = vld [vmem:[#allocation9 + $0x7c] sm:$0xf]
    %v833 = vld [vmem:[%s6] sm:$0x1]
    %v835 = vlaneseq
    %v836 = vshrl.u32 %v835, 7
    %v837 = vsub.s32 0, %v836
    %v838 = vrot.slane %v833, %v837
    %v872 = vunpack.c.l.b16 %v801
    %v873 = vunpack.c.l.b16 %v802
    %v874 = vunpack.c.l.b16 %v803
    %v875 = vunpack.c.l.b16 %v804
    %v876 = vunpack.c.l.b16 %v805
    %v877 = vunpack.c.l.b16 %v806
    %v878 = vunpack.c.l.b16 %v807
    %v879 = vunpack.c.l.b16 %v808
    %v880 = vunpack.c.l.b16 %v809
    %v881 = vunpack.c.l.b16 %v810
    %v882 = vunpack.c.l.b16 %v811
    %v883 = vunpack.c.l.b16 %v812
    %v884 = vunpack.c.l.b16 %v813
    %v885 = vunpack.c.l.b16 %v814
    %v886 = vunpack.c.l.b16 %v815
    %v887 = vunpack.c.l.b16 %v816
    %v888 = vunpack.c.l.b16 %v817
    %v889 = vunpack.c.l.b16 %v818
    %v890 = vunpack.c.l.b16 %v819
    %v891 = vunpack.c.l.b16 %v820
    %v892 = vunpack.c.l.b16 %v821
    %v893 = vunpack.c.l.b16 %v822
    %v894 = vunpack.c.l.b16 %v823
    %v895 = vunpack.c.l.b16 %v824
    %v896 = vunpack.c.l.b16 %v825
    %v897 = vunpack.c.l.b16 %v826
    %v898 = vunpack.c.l.b16 %v827
    %v899 = vunpack.c.l.b16 %v828
    %v900 = vunpack.c.l.b16 %v829
    %v901 = vunpack.c.l.b16 %v830
    %v902 = vunpack.c.l.b16 %v831
    %v903 = vunpack.c.l.b16 %v832
    %v904 = vpack.c.b16 %v873, %v872
    %v905 = vpack.c.b16 %v875, %v874
    %v906 = vpack.c.b16 %v877, %v876
    %v907 = vpack.c.b16 %v879, %v878
    %v908 = vpack.c.b16 %v881, %v880
    %v909 = vpack.c.b16 %v883, %v882
    %v910 = vpack.c.b16 %v885, %v884
    %v911 = vpack.c.b16 %v887, %v886
    %v912 = vpack.c.b16 %v889, %v888
    %v913 = vpack.c.b16 %v891, %v890
    %v914 = vpack.c.b16 %v893, %v892
    %v915 = vpack.c.b16 %v895, %v894
    %v916 = vpack.c.b16 %v897, %v896
    %v917 = vpack.c.b16 %v899, %v898
    %v918 = vpack.c.b16 %v901, %v900
    %v919 = vpack.c.b16 %v903, %v902
    %936 = vmatprep.subr.bf16.mxu0 0
    %937 = vmatpush1.bf16.msra.mxu0 %v911
    %938 = vmatprep.subr.bf16.mxu0 0
    %939 = vmatpush1.bf16.msra.mxu0 %v910
    %940 = vmatprep.subr.bf16.mxu0 0
    %941 = vmatpush1.bf16.msra.mxu0 %v909
    %942 = vmatprep.subr.bf16.mxu0 0
    %943 = vmatpush1.bf16.msra.mxu0 %v908
    %944 = vmatprep.subr.bf16.mxu0 0
    %945 = vmatpush1.bf16.msra.mxu0 %v907
    %946 = vmatprep.subr.bf16.mxu0 0
    %947 = vmatpush1.bf16.msra.mxu0 %v906
    %948 = vmatprep.subr.bf16.mxu0 0
    %949 = vmatpush1.bf16.msra.mxu0 %v905
    %950 = vmatprep.subr.bf16.mxu0 0
    %951 = vmatpush1.bf16.msra.mxu0 %v904
    %952 = vmatprep.subr.bf16.mxu0 0
    %953 = vmatpush2.bf16.msra.mxu0 %v919
    %954 = vmatprep.subr.bf16.mxu0 0
    %955 = vmatpush2.bf16.msra.mxu0 %v918
    %956 = vmatprep.subr.bf16.mxu0 0
    %957 = vmatpush2.bf16.msra.mxu0 %v917
    %958 = vmatprep.subr.bf16.mxu0 0
    %959 = vmatpush2.bf16.msra.mxu0 %v916
    %960 = vmatprep.subr.bf16.mxu0 0
    %961 = vmatpush2.bf16.msra.mxu0 %v915
    %962 = vmatprep.subr.bf16.mxu0 0
    %963 = vmatpush2.bf16.msra.mxu0 %v914
    %964 = vmatprep.subr.bf16.mxu0 0
    %965 = vmatpush2.bf16.msra.mxu0 %v913
    %966 = vmatprep.subr.bf16.mxu0 0
    %967 = vmatpush2.bf16.msra.mxu0 %v912
    %968 = vmatprep.mubr.bf16.mxu0 %v770
    %969 = vmatmul.mubr.bf16.gmra.mxu0 %v769
    %v970 = vpop.f32.mrf.mxu0
    %v971 = vadd.f32 %v838, %v970
    %v972 = vpop.f32.mrf.mxu0
    %v973 = vpop.f32.mrf.mxu0
    %v974 = vadd.f32 %v838, %v973
    %v975 = vpop.f32.mrf.mxu0
    %976 = vmatprep.mubr.bf16.mxu0 %v772
    %977 = vmatmul.mubr.bf16.gmra.mxu0 %v771
    %v978 = vpop.f32.mrf.mxu0
    %v979 = vadd.f32 %v838, %v978
    %v980 = vpop.f32.mrf.mxu0
    %v981 = vpop.f32.mrf.mxu0
    %v982 = vadd.f32 %v838, %v981
    %v983 = vpop.f32.mrf.mxu0
    %984 = vmatprep.mubr.bf16.mxu0 %v774
    %985 = vmatmul.mubr.bf16.gmra.mxu0 %v773
    %v986 = vpop.f32.mrf.mxu0
    %v987 = vadd.f32 %v838, %v986
    %v988 = vpop.f32.mrf.mxu0
    %v989 = vpop.f32.mrf.mxu0
    %v990 = vadd.f32 %v838, %v989
    %v991 = vpop.f32.mrf.mxu0
    %992 = vmatprep.mubr.bf16.mxu0 %v776
    %993 = vmatmul.mubr.bf16.gmra.mxu0 %v775
    %v994 = vpop.f32.mrf.mxu0
    %v995 = vadd.f32 %v838, %v994
    %v996 = vpop.f32.mrf.mxu0
    %v997 = vpop.f32.mrf.mxu0
    %v998 = vadd.f32 %v838, %v997
    %v999 = vpop.f32.mrf.mxu0
    %1000 = vmatprep.mubr.bf16.mxu0 %v778
    %1001 = vmatmul.mubr.bf16.gmra.mxu0 %v777
    %v1002 = vpop.f32.mrf.mxu0
    %v1003 = vadd.f32 %v838, %v1002
    %v1004 = vpop.f32.mrf.mxu0
    %v1005 = vpop.f32.mrf.mxu0
    %v1006 = vadd.f32 %v838, %v1005
    %v1007 = vpop.f32.mrf.mxu0
    %1008 = vmatprep.mubr.bf16.mxu0 %v780
    %1009 = vmatmul.mubr.bf16.gmra.mxu0 %v779
    %v1010 = vpop.f32.mrf.mxu0
    %v1011 = vadd.f32 %v838, %v1010
    %v1012 = vpop.f32.mrf.mxu0
    %v1013 = vpop.f32.mrf.mxu0
    %v1014 = vadd.f32 %v838, %v1013
    %v1015 = vpop.f32.mrf.mxu0
    %1016 = vmatprep.mubr.bf16.mxu0 %v782
    %1017 = vmatmul.mubr.bf16.gmra.mxu0 %v781
    %v1018 = vpop.f32.mrf.mxu0
    %v1019 = vadd.f32 %v838, %v1018
    %v1020 = vpop.f32.mrf.mxu0
    %v1021 = vpop.f32.mrf.mxu0
    %v1022 = vadd.f32 %v838, %v1021
    %v1023 = vpop.f32.mrf.mxu0
    %1024 = vmatprep.mubr.bf16.mxu0 %v784
    %1025 = vmatmul.mubr.bf16.gmra.mxu0 %v783
    %v1026 = vpop.f32.mrf.mxu0
    %v1027 = vadd.f32 %v838, %v1026
    %v1028 = vpop.f32.mrf.mxu0
    %v1029 = vpop.f32.mrf.mxu0
    %v1030 = vadd.f32 %v838, %v1029
    %v1031 = vpop.f32.mrf.mxu0
    %1032 = vmatprep.mubr.bf16.mxu0 %v786
    %1033 = vmatmul.mubr.bf16.gmra.mxu0 %v785
    %v1034 = vpop.f32.mrf.mxu0
    %v1035 = vadd.f32 %v838, %v1034
    %v1036 = vpop.f32.mrf.mxu0
    %v1037 = vpop.f32.mrf.mxu0
    %v1038 = vadd.f32 %v838, %v1037
    %v1039 = vpop.f32.mrf.mxu0
    %1040 = vmatprep.mubr.bf16.mxu0 %v788
    %1041 = vmatmul.mubr.bf16.gmra.mxu0 %v787
    %v1042 = vpop.f32.mrf.mxu0
    %v1043 = vadd.f32 %v838, %v1042
    %v1044 = vpop.f32.mrf.mxu0
    %v1045 = vpop.f32.mrf.mxu0
    %v1046 = vadd.f32 %v838, %v1045
    %v1047 = vpop.f32.mrf.mxu0
    %1048 = vmatprep.mubr.bf16.mxu0 %v790
    %1049 = vmatmul.mubr.bf16.gmra.mxu0 %v789
    %v1050 = vpop.f32.mrf.mxu0
    %v1051 = vadd.f32 %v838, %v1050
    %v1052 = vpop.f32.mrf.mxu0
    %v1053 = vpop.f32.mrf.mxu0
    %v1054 = vadd.f32 %v838, %v1053
    %v1055 = vpop.f32.mrf.mxu0
    %1056 = vmatprep.mubr.bf16.mxu0 %v792
    %1057 = vmatmul.mubr.bf16.gmra.mxu0 %v791
    %v1058 = vpop.f32.mrf.mxu0
    %v1059 = vadd.f32 %v838, %v1058
    %v1060 = vpop.f32.mrf.mxu0
    %v1061 = vpop.f32.mrf.mxu0
    %v1062 = vadd.f32 %v838, %v1061
    %v1063 = vpop.f32.mrf.mxu0
    %1064 = vmatprep.mubr.bf16.mxu0 %v794
    %1065 = vmatmul.mubr.bf16.gmra.mxu0 %v793
    %v1066 = vpop.f32.mrf.mxu0
    %v1067 = vadd.f32 %v838, %v1066
    %v1068 = vpop.f32.mrf.mxu0
    %v1069 = vpop.f32.mrf.mxu0
    %v1070 = vadd.f32 %v838, %v1069
    %v1071 = vpop.f32.mrf.mxu0
    %1072 = vmatprep.mubr.bf16.mxu0 %v796
    %1073 = vmatmul.mubr.bf16.gmra.mxu0 %v795
    %v1074 = vpop.f32.mrf.mxu0
    %v1075 = vadd.f32 %v838, %v1074
    %v1076 = vpop.f32.mrf.mxu0
    %v1077 = vpop.f32.mrf.mxu0
    %v1078 = vadd.f32 %v838, %v1077
    %v1079 = vpop.f32.mrf.mxu0
    %1080 = vmatprep.mubr.bf16.mxu0 %v798
    %1081 = vmatmul.mubr.bf16.gmra.mxu0 %v797
    %v1082 = vpop.f32.mrf.mxu0
    %v1083 = vadd.f32 %v838, %v1082
    %v1084 = vpop.f32.mrf.mxu0
    %v1085 = vpop.f32.mrf.mxu0
    %v1086 = vadd.f32 %v838, %v1085
    %v1087 = vpop.f32.mrf.mxu0
    %1088 = vmatprep.mubr.bf16.mxu0 %v800
    %1089 = vmatmul.mubr.bf16.gmra.mxu0 %v799
    %v1090 = vpop.f32.mrf.mxu0
    %v1091 = vadd.f32 %v838, %v1090
    %v1092 = vpop.f32.mrf.mxu0
    %v1093 = vpop.f32.mrf.mxu0
    %v1094 = vadd.f32 %v838, %v1093
    %v1095 = vpop.f32.mrf.mxu0
    %1096 = vdwg.mxu0
    %v1097 = vxor.u32 %v971, 2147483648
    %v1098 = vxor.u32 %v974, 2147483648
    %v1099 = vxor.u32 %v979, 2147483648
    %v1100 = vxor.u32 %v982, 2147483648
    %v1101 = vxor.u32 %v987, 2147483648
    %v1102 = vxor.u32 %v990, 2147483648
    %v1103 = vxor.u32 %v995, 2147483648
    %v1104 = vxor.u32 %v998, 2147483648
    %v1105 = vxor.u32 %v1003, 2147483648
    %v1106 = vxor.u32 %v1006, 2147483648
    %v1107 = vxor.u32 %v1011, 2147483648
    %v1108 = vxor.u32 %v1014, 2147483648
    %v1109 = vxor.u32 %v1019, 2147483648
    %v1110 = vxor.u32 %v1022, 2147483648
    %v1111 = vxor.u32 %v1027, 2147483648
    %v1112 = vxor.u32 %v1030, 2147483648
    %v1113 = vxor.u32 %v1035, 2147483648
    %v1114 = vxor.u32 %v1038, 2147483648
    %v1115 = vxor.u32 %v1043, 2147483648
    %v1116 = vxor.u32 %v1046, 2147483648
    %v1117 = vxor.u32 %v1051, 2147483648
    %v1118 = vxor.u32 %v1054, 2147483648
    %v1119 = vxor.u32 %v1059, 2147483648
    %v1120 = vxor.u32 %v1062, 2147483648
    %v1121 = vxor.u32 %v1067, 2147483648
    %v1122 = vxor.u32 %v1070, 2147483648
    %v1123 = vxor.u32 %v1075, 2147483648
    %v1124 = vxor.u32 %v1078, 2147483648
    %v1125 = vxor.u32 %v1083, 2147483648
    %v1126 = vxor.u32 %v1086, 2147483648
    %v1127 = vxor.u32 %v1091, 2147483648
    %v1128 = vxor.u32 %v1094, 2147483648
    %v1129 = vmul.f32 %v1097, 1.442695
    %v1130 = vpow.pop %v1129
    %v1131 = vmul.f32 %v1098, 1.442695
    %v1132 = vpow.pop %v1131
    %v1133 = vmul.f32 %v1099, 1.442695
    %v1134 = vpow.pop %v1133
    %v1135 = vmul.f32 %v1100, 1.442695
    %v1136 = vpow.pop %v1135
    %v1137 = vmul.f32 %v1101, 1.442695
    %v1138 = vpow.pop %v1137
    %v1139 = vmul.f32 %v1102, 1.442695
    %v1140 = vpow.pop %v1139
    %v1141 = vmul.f32 %v1103, 1.442695
    %v1142 = vpow.pop %v1141
    %v1143 = vmul.f32 %v1104, 1.442695
    %v1144 = vpow.pop %v1143
    %v1145 = vmul.f32 %v1105, 1.442695
    %v1146 = vpow.pop %v1145
    %v1147 = vmul.f32 %v1106, 1.442695
    %v1148 = vpow.pop %v1147
    %v1149 = vmul.f32 %v1107, 1.442695
    %v1150 = vpow.pop %v1149
    %v1151 = vmul.f32 %v1108, 1.442695
    %v1152 = vpow.pop %v1151
    %v1153 = vmul.f32 %v1109, 1.442695
    %v1154 = vpow.pop %v1153
    %v1155 = vmul.f32 %v1110, 1.442695
    %v1156 = vpow.pop %v1155
    %v1157 = vmul.f32 %v1111, 1.442695
    %v1158 = vpow.pop %v1157
    %v1159 = vmul.f32 %v1112, 1.442695
    %v1160 = vpow.pop %v1159
    %v1161 = vmul.f32 %v1113, 1.442695
    %v1162 = vpow.pop %v1161
    %v1163 = vmul.f32 %v1114, 1.442695
    %v1164 = vpow.pop %v1163
    %v1165 = vmul.f32 %v1115, 1.442695
    %v1166 = vpow.pop %v1165
    %v1167 = vmul.f32 %v1116, 1.442695
    %v1168 = vpow.pop %v1167
    %v1169 = vmul.f32 %v1117, 1.442695
    %v1170 = vpow.pop %v1169
    %v1171 = vmul.f32 %v1118, 1.442695
    %v1172 = vpow.pop %v1171
    %v1173 = vmul.f32 %v1119, 1.442695
    %v1174 = vpow.pop %v1173
    %v1175 = vmul.f32 %v1120, 1.442695
    %v1176 = vpow.pop %v1175
    %v1177 = vmul.f32 %v1121, 1.442695
    %v1178 = vpow.pop %v1177
    %v1179 = vmul.f32 %v1122, 1.442695
    %v1180 = vpow.pop %v1179
    %v1181 = vmul.f32 %v1123, 1.442695
    %v1182 = vpow.pop %v1181
    %v1183 = vmul.f32 %v1124, 1.442695
    %v1184 = vpow.pop %v1183
    %v1185 = vmul.f32 %v1125, 1.442695
    %v1186 = vpow.pop %v1185
    %v1187 = vmul.f32 %v1126, 1.442695
    %v1188 = vpow.pop %v1187
    %v1189 = vmul.f32 %v1127, 1.442695
    %v1190 = vpow.pop %v1189
    %v1191 = vmul.f32 %v1128, 1.442695
    %v1192 = vpow.pop %v1191
    %v1193 = vadd.f32 %v1130, 1.0
    %v1194 = vadd.f32 %v1132, 1.0
    %v1195 = vadd.f32 %v1134, 1.0
    %v1196 = vadd.f32 %v1136, 1.0
    %v1197 = vadd.f32 %v1138, 1.0
    %v1198 = vadd.f32 %v1140, 1.0
    %v1199 = vadd.f32 %v1142, 1.0
    %v1200 = vadd.f32 %v1144, 1.0
    %v1201 = vadd.f32 %v1146, 1.0
    %v1202 = vadd.f32 %v1148, 1.0
    %v1203 = vadd.f32 %v1150, 1.0
    %v1204 = vadd.f32 %v1152, 1.0
    %v1205 = vadd.f32 %v1154, 1.0
    %v1206 = vadd.f32 %v1156, 1.0
    %v1207 = vadd.f32 %v1158, 1.0
    %v1208 = vadd.f32 %v1160, 1.0
    %v1209 = vadd.f32 %v1162, 1.0
    %v1210 = vadd.f32 %v1164, 1.0
    %v1211 = vadd.f32 %v1166, 1.0
    %v1212 = vadd.f32 %v1168, 1.0
    %v1213 = vadd.f32 %v1170, 1.0
    %v1214 = vadd.f32 %v1172, 1.0
    %v1215 = vadd.f32 %v1174, 1.0
    %v1216 = vadd.f32 %v1176, 1.0
    %v1217 = vadd.f32 %v1178, 1.0
    %v1218 = vadd.f32 %v1180, 1.0
    %v1219 = vadd.f32 %v1182, 1.0
    %v1220 = vadd.f32 %v1184, 1.0
    %v1221 = vadd.f32 %v1186, 1.0
    %v1222 = vadd.f32 %v1188, 1.0
    %v1223 = vadd.f32 %v1190, 1.0
    %v1224 = vadd.f32 %v1192, 1.0
    %v1225 = vrcp.pop %v1193
    %v1226 = vmul.f32 1.0, %v1225
    %v1227 = vrcp.pop %v1194
    %v1228 = vmul.f32 1.0, %v1227
    %v1229 = vrcp.pop %v1195
    %v1230 = vmul.f32 1.0, %v1229
    %v1231 = vrcp.pop %v1196
    %v1232 = vmul.f32 1.0, %v1231
    %v1233 = vrcp.pop %v1197
    %v1234 = vmul.f32 1.0, %v1233
    %v1235 = vrcp.pop %v1198
    %v1236 = vmul.f32 1.0, %v1235
    %v1237 = vrcp.pop %v1199
    %v1238 = vmul.f32 1.0, %v1237
    %v1239 = vrcp.pop %v1200
    %v1240 = vmul.f32 1.0, %v1239
    %v1241 = vrcp.pop %v1201
    %v1242 = vmul.f32 1.0, %v1241
    %v1243 = vrcp.pop %v1202
    %v1244 = vmul.f32 1.0, %v1243
    %v1245 = vrcp.pop %v1203
    %v1246 = vmul.f32 1.0, %v1245
    %v1247 = vrcp.pop %v1204
    %v1248 = vmul.f32 1.0, %v1247
    %v1249 = vrcp.pop %v1205
    %v1250 = vmul.f32 1.0, %v1249
    %v1251 = vrcp.pop %v1206
    %v1252 = vmul.f32 1.0, %v1251
    %v1253 = vrcp.pop %v1207
    %v1254 = vmul.f32 1.0, %v1253
    %v1255 = vrcp.pop %v1208
    %v1256 = vmul.f32 1.0, %v1255
    %v1257 = vrcp.pop %v1209
    %v1258 = vmul.f32 1.0, %v1257
    %v1259 = vrcp.pop %v1210
    %v1260 = vmul.f32 1.0, %v1259
    %v1261 = vrcp.pop %v1211
    %v1262 = vmul.f32 1.0, %v1261
    %v1263 = vrcp.pop %v1212
    %v1264 = vmul.f32 1.0, %v1263
    %v1265 = vrcp.pop %v1213
    %v1266 = vmul.f32 1.0, %v1265
    %v1267 = vrcp.pop %v1214
    %v1268 = vmul.f32 1.0, %v1267
    %v1269 = vrcp.pop %v1215
    %v1270 = vmul.f32 1.0, %v1269
    %v1271 = vrcp.pop %v1216
    %v1272 = vmul.f32 1.0, %v1271
    %v1273 = vrcp.pop %v1217
    %v1274 = vmul.f32 1.0, %v1273
    %v1275 = vrcp.pop %v1218
    %v1276 = vmul.f32 1.0, %v1275
    %v1277 = vrcp.pop %v1219
    %v1278 = vmul.f32 1.0, %v1277
    %v1279 = vrcp.pop %v1220
    %v1280 = vmul.f32 1.0, %v1279
    %v1281 = vrcp.pop %v1221
    %v1282 = vmul.f32 1.0, %v1281
    %v1283 = vrcp.pop %v1222
    %v1284 = vmul.f32 1.0, %v1283
    %v1285 = vrcp.pop %v1223
    %v1286 = vmul.f32 1.0, %v1285
    %v1287 = vrcp.pop %v1224
    %v1288 = vmul.f32 1.0, %v1287
    %v1289 = vpack.c.bf16 %v1228, %v1226
    %v1290 = vpack.c.bf16 %v1232, %v1230
    %v1291 = vpack.c.bf16 %v1236, %v1234
    %v1292 = vpack.c.bf16 %v1240, %v1238
    %v1293 = vpack.c.bf16 %v1244, %v1242
    %v1294 = vpack.c.bf16 %v1248, %v1246
    %v1295 = vpack.c.bf16 %v1252, %v1250
    %v1296 = vpack.c.bf16 %v1256, %v1254
    %v1297 = vpack.c.bf16 %v1260, %v1258
    %v1298 = vpack.c.bf16 %v1264, %v1262
    %v1299 = vpack.c.bf16 %v1268, %v1266
    %v1300 = vpack.c.bf16 %v1272, %v1270
    %v1301 = vpack.c.bf16 %v1276, %v1274
    %v1302 = vpack.c.bf16 %v1280, %v1278
    %v1303 = vpack.c.bf16 %v1284, %v1282
    %v1304 = vpack.c.bf16 %v1288, %v1286
    %v1305 = vld [vmem:[#allocation11] sm:$0xf]
    %v1306 = vld [vmem:[#allocation11 + $0x4] sm:$0xf]
    %v1307 = vld [vmem:[#allocation11 + $0x8] sm:$0xf]
    %v1308 = vld [vmem:[#allocation11 + $0xc] sm:$0xf]
    %v1309 = vld [vmem:[#allocation11 + $0x10] sm:$0xf]
    %v1310 = vld [vmem:[#allocation11 + $0x14] sm:$0xf]
    %v1311 = vld [vmem:[#allocation11 + $0x18] sm:$0xf]
    %v1312 = vld [vmem:[#allocation11 + $0x1c] sm:$0xf]
    %v1313 = vld [vmem:[#allocation11 + $0x20] sm:$0xf]
    %v1314 = vld [vmem:[#allocation11 + $0x24] sm:$0xf]
    %v1315 = vld [vmem:[#allocation11 + $0x28] sm:$0xf]
    %v1316 = vld [vmem:[#allocation11 + $0x2c] sm:$0xf]
    %v1317 = vld [vmem:[#allocation11 + $0x30] sm:$0xf]
    %v1318 = vld [vmem:[#allocation11 + $0x34] sm:$0xf]
    %v1319 = vld [vmem:[#allocation11 + $0x38] sm:$0xf]
    %v1320 = vld [vmem:[#allocation11 + $0x3c] sm:$0xf]
    %v1321 = vld [vmem:[#allocation12] sm:$0xf]
    %v1322 = vld [vmem:[#allocation12 + $0x4] sm:$0xf]
    %v1323 = vld [vmem:[#allocation12 + $0x8] sm:$0xf]
    %v1324 = vld [vmem:[#allocation12 + $0xc] sm:$0xf]
    %v1325 = vld [vmem:[#allocation12 + $0x10] sm:$0xf]
    %v1326 = vld [vmem:[#allocation12 + $0x14] sm:$0xf]
    %v1327 = vld [vmem:[#allocation12 + $0x18] sm:$0xf]
    %v1328 = vld [vmem:[#allocation12 + $0x1c] sm:$0xf]
    %v1329 = vld [vmem:[#allocation12 + $0x20] sm:$0xf]
    %v1330 = vld [vmem:[#allocation12 + $0x24] sm:$0xf]
    %v1331 = vld [vmem:[#allocation12 + $0x28] sm:$0xf]
    %v1332 = vld [vmem:[#allocation12 + $0x2c] sm:$0xf]
    %v1333 = vld [vmem:[#allocation12 + $0x30] sm:$0xf]
    %v1334 = vld [vmem:[#allocation12 + $0x34] sm:$0xf]
    %v1335 = vld [vmem:[#allocation12 + $0x38] sm:$0xf]
    %v1336 = vld [vmem:[#allocation12 + $0x3c] sm:$0xf]
    %v1353 = vunpack.c.l.b16 %v1321
    %v1354 = vunpack.c.l.b16 %v1322
    %v1355 = vunpack.c.l.b16 %v1323
    %v1356 = vunpack.c.l.b16 %v1324
    %v1357 = vunpack.c.l.b16 %v1325
    %v1358 = vunpack.c.l.b16 %v1326
    %v1359 = vunpack.c.l.b16 %v1327
    %v1360 = vunpack.c.l.b16 %v1328
    %v1361 = vunpack.c.l.b16 %v1329
    %v1362 = vunpack.c.l.b16 %v1330
    %v1363 = vunpack.c.l.b16 %v1331
    %v1364 = vunpack.c.l.b16 %v1332
    %v1365 = vunpack.c.l.b16 %v1333
    %v1366 = vunpack.c.l.b16 %v1334
    %v1367 = vunpack.c.l.b16 %v1335
    %v1368 = vunpack.c.l.b16 %v1336
    %v1369 = vpack.c.b16 %v1354, %v1353
    %v1370 = vpack.c.b16 %v1356, %v1355
    %v1371 = vpack.c.b16 %v1358, %v1357
    %v1372 = vpack.c.b16 %v1360, %v1359
    %v1373 = vpack.c.b16 %v1362, %v1361
    %v1374 = vpack.c.b16 %v1364, %v1363
    %v1375 = vpack.c.b16 %v1366, %v1365
    %v1376 = vpack.c.b16 %v1368, %v1367
    %1385 = vmatprep.subr.bf16.mxu0 0
    %1386 = vmatpush1.bf16.msra.mxu0 %v1376
    %1387 = vmatprep.subr.bf16.mxu0 0
    %1388 = vmatpush1.bf16.msra.mxu0 %v1375
    %1389 = vmatprep.subr.bf16.mxu0 0
    %1390 = vmatpush1.bf16.msra.mxu0 %v1374
    %1391 = vmatprep.subr.bf16.mxu0 0
    %1392 = vmatpush1.bf16.msra.mxu0 %v1373
    %1393 = vmatprep.subr.bf16.mxu0 0
    %1394 = vmatpush1.bf16.msra.mxu0 %v1372
    %1395 = vmatprep.subr.bf16.mxu0 0
    %1396 = vmatpush1.bf16.msra.mxu0 %v1371
    %1397 = vmatprep.subr.bf16.mxu0 0
    %1398 = vmatpush1.bf16.msra.mxu0 %v1370
    %1399 = vmatprep.subr.bf16.mxu0 0
    %1400 = vmatpush1.bf16.msra.mxu0 %v1369
    %1401 = vmatprep.subr.bf16.mxu0 0
    %1402 = vmatpush2.bf16.msra.mxu0 0
    %1403 = vmatprep.subr.bf16.mxu0 0
    %1404 = vmatpush2.bf16.msra.mxu0 0
    %1405 = vmatprep.subr.bf16.mxu0 0
    %1406 = vmatpush2.bf16.msra.mxu0 0
    %1407 = vmatprep.subr.bf16.mxu0 0
    %1408 = vmatpush2.bf16.msra.mxu0 0
    %1409 = vmatprep.subr.bf16.mxu0 0
    %1410 = vmatpush2.bf16.msra.mxu0 0
    %1411 = vmatprep.subr.bf16.mxu0 0
    %1412 = vmatpush2.bf16.msra.mxu0 0
    %1413 = vmatprep.subr.bf16.mxu0 0
    %1414 = vmatpush2.bf16.msra.mxu0 0
    %1415 = vmatprep.subr.bf16.mxu0 0
    %1416 = vmatpush2.bf16.msra.mxu0 0
    %1417 = vmatprep.mubr.bf16.mxu0 0
    %1418 = vmatmul.mubr.bf16.gmra.mxu0 %v1289
    %v1419 = vpop.f32.mrf.mxu0
    %v1420 = vadd.f32 0.0, %v1419
    %v1421 = vpop.f32.mrf.mxu0
    %v1422 = vpop.f32.mrf.mxu0
    %v1423 = vadd.f32 0.0, %v1422
    %v1424 = vpop.f32.mrf.mxu0
    %1425 = vmatprep.mubr.bf16.mxu0 0
    %1426 = vmatmul.mubr.bf16.gmra.mxu0 %v1290
    %v1427 = vpop.f32.mrf.mxu0
    %v1428 = vadd.f32 0.0, %v1427
    %v1429 = vpop.f32.mrf.mxu0
    %v1430 = vpop.f32.mrf.mxu0
    %v1431 = vadd.f32 0.0, %v1430
    %v1432 = vpop.f32.mrf.mxu0
    %1433 = vmatprep.mubr.bf16.mxu0 0
    %1434 = vmatmul.mubr.bf16.gmra.mxu0 %v1291
    %v1435 = vpop.f32.mrf.mxu0
    %v1436 = vadd.f32 0.0, %v1435
    %v1437 = vpop.f32.mrf.mxu0
    %v1438 = vpop.f32.mrf.mxu0
    %v1439 = vadd.f32 0.0, %v1438
    %v1440 = vpop.f32.mrf.mxu0
    %1441 = vmatprep.mubr.bf16.mxu0 0
    %1442 = vmatmul.mubr.bf16.gmra.mxu0 %v1292
    %v1443 = vpop.f32.mrf.mxu0
    %v1444 = vadd.f32 0.0, %v1443
    %v1445 = vpop.f32.mrf.mxu0
    %v1446 = vpop.f32.mrf.mxu0
    %v1447 = vadd.f32 0.0, %v1446
    %v1448 = vpop.f32.mrf.mxu0
    %1449 = vmatprep.mubr.bf16.mxu0 0
    %1450 = vmatmul.mubr.bf16.gmra.mxu0 %v1293
    %v1451 = vpop.f32.mrf.mxu0
    %v1452 = vadd.f32 0.0, %v1451
    %v1453 = vpop.f32.mrf.mxu0
    %v1454 = vpop.f32.mrf.mxu0
    %v1455 = vadd.f32 0.0, %v1454
    %v1456 = vpop.f32.mrf.mxu0
    %1457 = vmatprep.mubr.bf16.mxu0 0
    %1458 = vmatmul.mubr.bf16.gmra.mxu0 %v1294
    %v1459 = vpop.f32.mrf.mxu0
    %v1460 = vadd.f32 0.0, %v1459
    %v1461 = vpop.f32.mrf.mxu0
    %v1462 = vpop.f32.mrf.mxu0
    %v1463 = vadd.f32 0.0, %v1462
    %v1464 = vpop.f32.mrf.mxu0
    %1465 = vmatprep.mubr.bf16.mxu0 0
    %1466 = vmatmul.mubr.bf16.gmra.mxu0 %v1295
    %v1467 = vpop.f32.mrf.mxu0
    %v1468 = vadd.f32 0.0, %v1467
    %v1469 = vpop.f32.mrf.mxu0
    %v1470 = vpop.f32.mrf.mxu0
    %v1471 = vadd.f32 0.0, %v1470
    %v1472 = vpop.f32.mrf.mxu0
    %1473 = vmatprep.mubr.bf16.mxu0 0
    %1474 = vmatmul.mubr.bf16.gmra.mxu0 %v1296
    %v1475 = vpop.f32.mrf.mxu0
    %v1476 = vadd.f32 0.0, %v1475
    %v1477 = vpop.f32.mrf.mxu0
    %v1478 = vpop.f32.mrf.mxu0
    %v1479 = vadd.f32 0.0, %v1478
    %v1480 = vpop.f32.mrf.mxu0
    %1481 = vmatprep.mubr.bf16.mxu0 0
    %1482 = vmatmul.mubr.bf16.gmra.mxu0 %v1297
    %v1483 = vpop.f32.mrf.mxu0
    %v1484 = vadd.f32 0.0, %v1483
    %v1485 = vpop.f32.mrf.mxu0
    %v1486 = vpop.f32.mrf.mxu0
    %v1487 = vadd.f32 0.0, %v1486
    %v1488 = vpop.f32.mrf.mxu0
    %1489 = vmatprep.mubr.bf16.mxu0 0
    %1490 = vmatmul.mubr.bf16.gmra.mxu0 %v1298
    %v1491 = vpop.f32.mrf.mxu0
    %v1492 = vadd.f32 0.0, %v1491
    %v1493 = vpop.f32.mrf.mxu0
    %v1494 = vpop.f32.mrf.mxu0
    %v1495 = vadd.f32 0.0, %v1494
    %v1496 = vpop.f32.mrf.mxu0
    %1497 = vmatprep.mubr.bf16.mxu0 0
    %1498 = vmatmul.mubr.bf16.gmra.mxu0 %v1299
    %v1499 = vpop.f32.mrf.mxu0
    %v1500 = vadd.f32 0.0, %v1499
    %v1501 = vpop.f32.mrf.mxu0
    %v1502 = vpop.f32.mrf.mxu0
    %v1503 = vadd.f32 0.0, %v1502
    %v1504 = vpop.f32.mrf.mxu0
    %1505 = vmatprep.mubr.bf16.mxu0 0
    %1506 = vmatmul.mubr.bf16.gmra.mxu0 %v1300
    %v1507 = vpop.f32.mrf.mxu0
    %v1508 = vadd.f32 0.0, %v1507
    %v1509 = vpop.f32.mrf.mxu0
    %v1510 = vpop.f32.mrf.mxu0
    %v1511 = vadd.f32 0.0, %v1510
    %v1512 = vpop.f32.mrf.mxu0
    %1513 = vmatprep.mubr.bf16.mxu0 0
    %1514 = vmatmul.mubr.bf16.gmra.mxu0 %v1301
    %v1515 = vpop.f32.mrf.mxu0
    %v1516 = vadd.f32 0.0, %v1515
    %v1517 = vpop.f32.mrf.mxu0
    %v1518 = vpop.f32.mrf.mxu0
    %v1519 = vadd.f32 0.0, %v1518
    %v1520 = vpop.f32.mrf.mxu0
    %1521 = vmatprep.mubr.bf16.mxu0 0
    %1522 = vmatmul.mubr.bf16.gmra.mxu0 %v1302
    %v1523 = vpop.f32.mrf.mxu0
    %v1524 = vadd.f32 0.0, %v1523
    %v1525 = vpop.f32.mrf.mxu0
    %v1526 = vpop.f32.mrf.mxu0
    %v1527 = vadd.f32 0.0, %v1526
    %v1528 = vpop.f32.mrf.mxu0
    %1529 = vmatprep.mubr.bf16.mxu0 0
    %1530 = vmatmul.mubr.bf16.gmra.mxu0 %v1303
    %v1531 = vpop.f32.mrf.mxu0
    %v1532 = vadd.f32 0.0, %v1531
    %v1533 = vpop.f32.mrf.mxu0
    %v1534 = vpop.f32.mrf.mxu0
    %v1535 = vadd.f32 0.0, %v1534
    %v1536 = vpop.f32.mrf.mxu0
    %1537 = vmatprep.mubr.bf16.mxu0 0
    %1538 = vmatmul.mubr.bf16.gmra.mxu0 %v1304
    %v1539 = vpop.f32.mrf.mxu0
    %v1540 = vadd.f32 0.0, %v1539
    %v1541 = vpop.f32.mrf.mxu0
    %v1542 = vpop.f32.mrf.mxu0
    %v1543 = vadd.f32 0.0, %v1542
    %v1544 = vpop.f32.mrf.mxu0
    %1545 = vdwg.mxu0
    %v1562 = vunpack.c.l.b16 %v1305
    %v1563 = vunpack.c.l.b16 %v1306
    %v1564 = vunpack.c.l.b16 %v1307
    %v1565 = vunpack.c.l.b16 %v1308
    %v1566 = vunpack.c.l.b16 %v1309
    %v1567 = vunpack.c.l.b16 %v1310
    %v1568 = vunpack.c.l.b16 %v1311
    %v1569 = vunpack.c.l.b16 %v1312
    %v1570 = vunpack.c.l.b16 %v1313
    %v1571 = vunpack.c.l.b16 %v1314
    %v1572 = vunpack.c.l.b16 %v1315
    %v1573 = vunpack.c.l.b16 %v1316
    %v1574 = vunpack.c.l.b16 %v1317
    %v1575 = vunpack.c.l.b16 %v1318
    %v1576 = vunpack.c.l.b16 %v1319
    %v1577 = vunpack.c.l.b16 %v1320
    %v1578 = vpack.c.b16 %v1563, %v1562
    %v1579 = vpack.c.b16 %v1565, %v1564
    %v1580 = vpack.c.b16 %v1567, %v1566
    %v1581 = vpack.c.b16 %v1569, %v1568
    %v1582 = vpack.c.b16 %v1571, %v1570
    %v1583 = vpack.c.b16 %v1573, %v1572
    %v1584 = vpack.c.b16 %v1575, %v1574
    %v1585 = vpack.c.b16 %v1577, %v1576
    %1594 = vmatprep.subr.bf16.mxu0 0
    %1595 = vmatpush1.bf16.msra.mxu0 %v1585
    %1596 = vmatprep.subr.bf16.mxu0 0
    %1597 = vmatpush1.bf16.msra.mxu0 %v1584
    %1598 = vmatprep.subr.bf16.mxu0 0
    %1599 = vmatpush1.bf16.msra.mxu0 %v1583
    %1600 = vmatprep.subr.bf16.mxu0 0
    %1601 = vmatpush1.bf16.msra.mxu0 %v1582
    %1602 = vmatprep.subr.bf16.mxu0 0
    %1603 = vmatpush1.bf16.msra.mxu0 %v1581
    %1604 = vmatprep.subr.bf16.mxu0 0
    %1605 = vmatpush1.bf16.msra.mxu0 %v1580
    %1606 = vmatprep.subr.bf16.mxu0 0
    %1607 = vmatpush1.bf16.msra.mxu0 %v1579
    %1608 = vmatprep.subr.bf16.mxu0 0
    %1609 = vmatpush1.bf16.msra.mxu0 %v1578
    %1610 = vmatprep.subr.bf16.mxu0 0
    %1611 = vmatpush2.bf16.msra.mxu0 0
    %1612 = vmatprep.subr.bf16.mxu0 0
    %1613 = vmatpush2.bf16.msra.mxu0 0
    %1614 = vmatprep.subr.bf16.mxu0 0
    %1615 = vmatpush2.bf16.msra.mxu0 0
    %1616 = vmatprep.subr.bf16.mxu0 0
    %1617 = vmatpush2.bf16.msra.mxu0 0
    %1618 = vmatprep.subr.bf16.mxu0 0
    %1619 = vmatpush2.bf16.msra.mxu0 0
    %1620 = vmatprep.subr.bf16.mxu0 0
    %1621 = vmatpush2.bf16.msra.mxu0 0
    %1622 = vmatprep.subr.bf16.mxu0 0
    %1623 = vmatpush2.bf16.msra.mxu0 0
    %1624 = vmatprep.subr.bf16.mxu0 0
    %1625 = vmatpush2.bf16.msra.mxu0 0
    %1626 = vmatprep.mubr.bf16.mxu0 0
    %1627 = vmatmul.mubr.bf16.gmra.mxu0 %v753
    %v1628 = vpop.f32.mrf.mxu0
    %v1629 = vadd.f32 %v1420, %v1628
    %v1630 = vpop.f32.mrf.mxu0
    %v1631 = vpop.f32.mrf.mxu0
    %v1632 = vadd.f32 %v1423, %v1631
    %v1633 = vpop.f32.mrf.mxu0
    %1634 = vmatprep.mubr.bf16.mxu0 0
    %1635 = vmatmul.mubr.bf16.gmra.mxu0 %v754
    %v1636 = vpop.f32.mrf.mxu0
    %v1637 = vadd.f32 %v1428, %v1636
    %v1638 = vpop.f32.mrf.mxu0
    %v1639 = vpop.f32.mrf.mxu0
    %v1640 = vadd.f32 %v1431, %v1639
    %v1641 = vpop.f32.mrf.mxu0
    %1642 = vmatprep.mubr.bf16.mxu0 0
    %1643 = vmatmul.mubr.bf16.gmra.mxu0 %v755
    %v1644 = vpop.f32.mrf.mxu0
    %v1645 = vadd.f32 %v1436, %v1644
    %v1646 = vpop.f32.mrf.mxu0
    %v1647 = vpop.f32.mrf.mxu0
    %v1648 = vadd.f32 %v1439, %v1647
    %v1649 = vpop.f32.mrf.mxu0
    %1650 = vmatprep.mubr.bf16.mxu0 0
    %1651 = vmatmul.mubr.bf16.gmra.mxu0 %v756
    %v1652 = vpop.f32.mrf.mxu0
    %v1653 = vadd.f32 %v1444, %v1652
    %v1654 = vpop.f32.mrf.mxu0
    %v1655 = vpop.f32.mrf.mxu0
    %v1656 = vadd.f32 %v1447, %v1655
    %v1657 = vpop.f32.mrf.mxu0
    %1658 = vmatprep.mubr.bf16.mxu0 0
    %1659 = vmatmul.mubr.bf16.gmra.mxu0 %v757
    %v1660 = vpop.f32.mrf.mxu0
    %v1661 = vadd.f32 %v1452, %v1660
    %v1662 = vpop.f32.mrf.mxu0
    %v1663 = vpop.f32.mrf.mxu0
    %v1664 = vadd.f32 %v1455, %v1663
    %v1665 = vpop.f32.mrf.mxu0
    %1666 = vmatprep.mubr.bf16.mxu0 0
    %1667 = vmatmul.mubr.bf16.gmra.mxu0 %v758
    %v1668 = vpop.f32.mrf.mxu0
    %v1669 = vadd.f32 %v1460, %v1668
    %v1670 = vpop.f32.mrf.mxu0
    %v1671 = vpop.f32.mrf.mxu0
    %v1672 = vadd.f32 %v1463, %v1671
    %v1673 = vpop.f32.mrf.mxu0
    %1674 = vmatprep.mubr.bf16.mxu0 0
    %1675 = vmatmul.mubr.bf16.gmra.mxu0 %v759
    %v1676 = vpop.f32.mrf.mxu0
    %v1677 = vadd.f32 %v1468, %v1676
    %v1678 = vpop.f32.mrf.mxu0
    %v1679 = vpop.f32.mrf.mxu0
    %v1680 = vadd.f32 %v1471, %v1679
    %v1681 = vpop.f32.mrf.mxu0
    %1682 = vmatprep.mubr.bf16.mxu0 0
    %1683 = vmatmul.mubr.bf16.gmra.mxu0 %v760
    %v1684 = vpop.f32.mrf.mxu0
    %v1685 = vadd.f32 %v1476, %v1684
    %v1686 = vpop.f32.mrf.mxu0
    %v1687 = vpop.f32.mrf.mxu0
    %v1688 = vadd.f32 %v1479, %v1687
    %v1689 = vpop.f32.mrf.mxu0
    %1690 = vmatprep.mubr.bf16.mxu0 0
    %1691 = vmatmul.mubr.bf16.gmra.mxu0 %v761
    %v1692 = vpop.f32.mrf.mxu0
    %v1693 = vadd.f32 %v1484, %v1692
    %v1694 = vpop.f32.mrf.mxu0
    %v1695 = vpop.f32.mrf.mxu0
    %v1696 = vadd.f32 %v1487, %v1695
    %v1697 = vpop.f32.mrf.mxu0
    %1698 = vmatprep.mubr.bf16.mxu0 0
    %1699 = vmatmul.mubr.bf16.gmra.mxu0 %v762
    %v1700 = vpop.f32.mrf.mxu0
    %v1701 = vadd.f32 %v1492, %v1700
    %v1702 = vpop.f32.mrf.mxu0
    %v1703 = vpop.f32.mrf.mxu0
    %v1704 = vadd.f32 %v1495, %v1703
    %v1705 = vpop.f32.mrf.mxu0
    %1706 = vmatprep.mubr.bf16.mxu0 0
    %1707 = vmatmul.mubr.bf16.gmra.mxu0 %v763
    %v1708 = vpop.f32.mrf.mxu0
    %v1709 = vadd.f32 %v1500, %v1708
    %v1710 = vpop.f32.mrf.mxu0
    %v1711 = vpop.f32.mrf.mxu0
    %v1712 = vadd.f32 %v1503, %v1711
    %v1713 = vpop.f32.mrf.mxu0
    %1714 = vmatprep.mubr.bf16.mxu0 0
    %1715 = vmatmul.mubr.bf16.gmra.mxu0 %v764
    %v1716 = vpop.f32.mrf.mxu0
    %v1717 = vadd.f32 %v1508, %v1716
    %v1718 = vpop.f32.mrf.mxu0
    %v1719 = vpop.f32.mrf.mxu0
    %v1720 = vadd.f32 %v1511, %v1719
    %v1721 = vpop.f32.mrf.mxu0
    %1722 = vmatprep.mubr.bf16.mxu0 0
    %1723 = vmatmul.mubr.bf16.gmra.mxu0 %v765
    %v1724 = vpop.f32.mrf.mxu0
    %v1725 = vadd.f32 %v1516, %v1724
    %v1726 = vpop.f32.mrf.mxu0
    %v1727 = vpop.f32.mrf.mxu0
    %v1728 = vadd.f32 %v1519, %v1727
    %v1729 = vpop.f32.mrf.mxu0
    %1730 = vmatprep.mubr.bf16.mxu0 0
    %1731 = vmatmul.mubr.bf16.gmra.mxu0 %v766
    %v1732 = vpop.f32.mrf.mxu0
    %v1733 = vadd.f32 %v1524, %v1732
    %v1734 = vpop.f32.mrf.mxu0
    %v1735 = vpop.f32.mrf.mxu0
    %v1736 = vadd.f32 %v1527, %v1735
    %v1737 = vpop.f32.mrf.mxu0
    %1738 = vmatprep.mubr.bf16.mxu0 0
    %1739 = vmatmul.mubr.bf16.gmra.mxu0 %v767
    %v1740 = vpop.f32.mrf.mxu0
    %v1741 = vadd.f32 %v1532, %v1740
    %v1742 = vpop.f32.mrf.mxu0
    %v1743 = vpop.f32.mrf.mxu0
    %v1744 = vadd.f32 %v1535, %v1743
    %v1745 = vpop.f32.mrf.mxu0
    %1746 = vmatprep.mubr.bf16.mxu0 0
    %1747 = vmatmul.mubr.bf16.gmra.mxu0 %v768
    %v1748 = vpop.f32.mrf.mxu0
    %v1749 = vadd.f32 %v1540, %v1748
    %v1750 = vpop.f32.mrf.mxu0
    %v1751 = vpop.f32.mrf.mxu0
    %v1752 = vadd.f32 %v1543, %v1751
    %v1753 = vpop.f32.mrf.mxu0
    %1754 = vdwg.mxu0
    %v1755 = vld [vmem:[#allocation14] sm:$0x1]
    %v1757 = vlaneseq
    %v1758 = vshrl.u32 %v1757, 7
    %v1759 = vsub.s32 0, %v1758
    %v1760 = vrot.slane %v1755, %v1759
    %v1762 = vadd.f32 %v1629, %v1760
    %v1763 = vadd.f32 %v1632, %v1760
    %v1764 = vadd.f32 %v1637, %v1760
    %v1765 = vadd.f32 %v1640, %v1760
    %v1766 = vadd.f32 %v1645, %v1760
    %v1767 = vadd.f32 %v1648, %v1760
    %v1768 = vadd.f32 %v1653, %v1760
    %v1769 = vadd.f32 %v1656, %v1760
    %v1770 = vadd.f32 %v1661, %v1760
    %v1771 = vadd.f32 %v1664, %v1760
    %v1772 = vadd.f32 %v1669, %v1760
    %v1773 = vadd.f32 %v1672, %v1760
    %v1774 = vadd.f32 %v1677, %v1760
    %v1775 = vadd.f32 %v1680, %v1760
    %v1776 = vadd.f32 %v1685, %v1760
    %v1777 = vadd.f32 %v1688, %v1760
    %v1778 = vadd.f32 %v1693, %v1760
    %v1779 = vadd.f32 %v1696, %v1760
    %v1780 = vadd.f32 %v1701, %v1760
    %v1781 = vadd.f32 %v1704, %v1760
    %v1782 = vadd.f32 %v1709, %v1760
    %v1783 = vadd.f32 %v1712, %v1760
    %v1784 = vadd.f32 %v1717, %v1760
    %v1785 = vadd.f32 %v1720, %v1760
    %v1786 = vadd.f32 %v1725, %v1760
    %v1787 = vadd.f32 %v1728, %v1760
    %v1788 = vadd.f32 %v1733, %v1760
    %v1789 = vadd.f32 %v1736, %v1760
    %v1790 = vadd.f32 %v1741, %v1760
    %v1791 = vadd.f32 %v1744, %v1760
    %v1792 = vadd.f32 %v1749, %v1760
    %v1793 = vadd.f32 %v1752, %v1760
    %v1794 = vxor.u32 %v1762, 2147483648
    %v1795 = vxor.u32 %v1763, 2147483648
    %v1796 = vxor.u32 %v1764, 2147483648
    %v1797 = vxor.u32 %v1765, 2147483648
    %v1798 = vxor.u32 %v1766, 2147483648
    %v1799 = vxor.u32 %v1767, 2147483648
    %v1800 = vxor.u32 %v1768, 2147483648
    %v1801 = vxor.u32 %v1769, 2147483648
    %v1802 = vxor.u32 %v1770, 2147483648
    %v1803 = vxor.u32 %v1771, 2147483648
    %v1804 = vxor.u32 %v1772, 2147483648
    %v1805 = vxor.u32 %v1773, 2147483648
    %v1806 = vxor.u32 %v1774, 2147483648
    %v1807 = vxor.u32 %v1775, 2147483648
    %v1808 = vxor.u32 %v1776, 2147483648
    %v1809 = vxor.u32 %v1777, 2147483648
    %v1810 = vxor.u32 %v1778, 2147483648
    %v1811 = vxor.u32 %v1779, 2147483648
    %v1812 = vxor.u32 %v1780, 2147483648
    %v1813 = vxor.u32 %v1781, 2147483648
    %v1814 = vxor.u32 %v1782, 2147483648
    %v1815 = vxor.u32 %v1783, 2147483648
    %v1816 = vxor.u32 %v1784, 2147483648
    %v1817 = vxor.u32 %v1785, 2147483648
    %v1818 = vxor.u32 %v1786, 2147483648
    %v1819 = vxor.u32 %v1787, 2147483648
    %v1820 = vxor.u32 %v1788, 2147483648
    %v1821 = vxor.u32 %v1789, 2147483648
    %v1822 = vxor.u32 %v1790, 2147483648
    %v1823 = vxor.u32 %v1791, 2147483648
    %v1824 = vxor.u32 %v1792, 2147483648
    %v1825 = vxor.u32 %v1793, 2147483648
    %v1826 = vmul.f32 %v1794, 1.442695
    %v1827 = vpow.pop %v1826
    %v1828 = vmul.f32 %v1795, 1.442695
    %v1829 = vpow.pop %v1828
    %v1830 = vmul.f32 %v1796, 1.442695
    %v1831 = vpow.pop %v1830
    %v1832 = vmul.f32 %v1797, 1.442695
    %v1833 = vpow.pop %v1832
    %v1834 = vmul.f32 %v1798, 1.442695
    %v1835 = vpow.pop %v1834
    %v1836 = vmul.f32 %v1799, 1.442695
    %v1837 = vpow.pop %v1836
    %v1838 = vmul.f32 %v1800, 1.442695
    %v1839 = vpow.pop %v1838
    %v1840 = vmul.f32 %v1801, 1.442695
    %v1841 = vpow.pop %v1840
    %v1842 = vmul.f32 %v1802, 1.442695
    %v1843 = vpow.pop %v1842
    %v1844 = vmul.f32 %v1803, 1.442695
    %v1845 = vpow.pop %v1844
    %v1846 = vmul.f32 %v1804, 1.442695
    %v1847 = vpow.pop %v1846
    %v1848 = vmul.f32 %v1805, 1.442695
    %v1849 = vpow.pop %v1848
    %v1850 = vmul.f32 %v1806, 1.442695
    %v1851 = vpow.pop %v1850
    %v1852 = vmul.f32 %v1807, 1.442695
    %v1853 = vpow.pop %v1852
    %v1854 = vmul.f32 %v1808, 1.442695
    %v1855 = vpow.pop %v1854
    %v1856 = vmul.f32 %v1809, 1.442695
    %v1857 = vpow.pop %v1856
    %v1858 = vmul.f32 %v1810, 1.442695
    %v1859 = vpow.pop %v1858
    %v1860 = vmul.f32 %v1811, 1.442695
    %v1861 = vpow.pop %v1860
    %v1862 = vmul.f32 %v1812, 1.442695
    %v1863 = vpow.pop %v1862
    %v1864 = vmul.f32 %v1813, 1.442695
    %v1865 = vpow.pop %v1864
    %v1866 = vmul.f32 %v1814, 1.442695
    %v1867 = vpow.pop %v1866
    %v1868 = vmul.f32 %v1815, 1.442695
    %v1869 = vpow.pop %v1868
    %v1870 = vmul.f32 %v1816, 1.442695
    %v1871 = vpow.pop %v1870
    %v1872 = vmul.f32 %v1817, 1.442695
    %v1873 = vpow.pop %v1872
    %v1874 = vmul.f32 %v1818, 1.442695
    %v1875 = vpow.pop %v1874
    %v1876 = vmul.f32 %v1819, 1.442695
    %v1877 = vpow.pop %v1876
    %v1878 = vmul.f32 %v1820, 1.442695
    %v1879 = vpow.pop %v1878
    %v1880 = vmul.f32 %v1821, 1.442695
    %v1881 = vpow.pop %v1880
    %v1882 = vmul.f32 %v1822, 1.442695
    %v1883 = vpow.pop %v1882
    %v1884 = vmul.f32 %v1823, 1.442695
    %v1885 = vpow.pop %v1884
    %v1886 = vmul.f32 %v1824, 1.442695
    %v1887 = vpow.pop %v1886
    %v1888 = vmul.f32 %v1825, 1.442695
    %v1889 = vpow.pop %v1888
    %v1890 = vadd.f32 %v1827, 1.0
    %v1891 = vadd.f32 %v1829, 1.0
    %v1892 = vadd.f32 %v1831, 1.0
    %v1893 = vadd.f32 %v1833, 1.0
    %v1894 = vadd.f32 %v1835, 1.0
    %v1895 = vadd.f32 %v1837, 1.0
    %v1896 = vadd.f32 %v1839, 1.0
    %v1897 = vadd.f32 %v1841, 1.0
    %v1898 = vadd.f32 %v1843, 1.0
    %v1899 = vadd.f32 %v1845, 1.0
    %v1900 = vadd.f32 %v1847, 1.0
    %v1901 = vadd.f32 %v1849, 1.0
    %v1902 = vadd.f32 %v1851, 1.0
    %v1903 = vadd.f32 %v1853, 1.0
    %v1904 = vadd.f32 %v1855, 1.0
    %v1905 = vadd.f32 %v1857, 1.0
    %v1906 = vadd.f32 %v1859, 1.0
    %v1907 = vadd.f32 %v1861, 1.0
    %v1908 = vadd.f32 %v1863, 1.0
    %v1909 = vadd.f32 %v1865, 1.0
    %v1910 = vadd.f32 %v1867, 1.0
    %v1911 = vadd.f32 %v1869, 1.0
    %v1912 = vadd.f32 %v1871, 1.0
    %v1913 = vadd.f32 %v1873, 1.0
    %v1914 = vadd.f32 %v1875, 1.0
    %v1915 = vadd.f32 %v1877, 1.0
    %v1916 = vadd.f32 %v1879, 1.0
    %v1917 = vadd.f32 %v1881, 1.0
    %v1918 = vadd.f32 %v1883, 1.0
    %v1919 = vadd.f32 %v1885, 1.0
    %v1920 = vadd.f32 %v1887, 1.0
    %v1921 = vadd.f32 %v1889, 1.0
    %v1922 = vrcp.pop %v1890
    %v1923 = vmul.f32 1.0, %v1922
    %v1924 = vrcp.pop %v1891
    %v1925 = vmul.f32 1.0, %v1924
    %v1926 = vrcp.pop %v1892
    %v1927 = vmul.f32 1.0, %v1926
    %v1928 = vrcp.pop %v1893
    %v1929 = vmul.f32 1.0, %v1928
    %v1930 = vrcp.pop %v1894
    %v1931 = vmul.f32 1.0, %v1930
    %v1932 = vrcp.pop %v1895
    %v1933 = vmul.f32 1.0, %v1932
    %v1934 = vrcp.pop %v1896
    %v1935 = vmul.f32 1.0, %v1934
    %v1936 = vrcp.pop %v1897
    %v1937 = vmul.f32 1.0, %v1936
    %v1938 = vrcp.pop %v1898
    %v1939 = vmul.f32 1.0, %v1938
    %v1940 = vrcp.pop %v1899
    %v1941 = vmul.f32 1.0, %v1940
    %v1942 = vrcp.pop %v1900
    %v1943 = vmul.f32 1.0, %v1942
    %v1944 = vrcp.pop %v1901
    %v1945 = vmul.f32 1.0, %v1944
    %v1946 = vrcp.pop %v1902
    %v1947 = vmul.f32 1.0, %v1946
    %v1948 = vrcp.pop %v1903
    %v1949 = vmul.f32 1.0, %v1948
    %v1950 = vrcp.pop %v1904
    %v1951 = vmul.f32 1.0, %v1950
    %v1952 = vrcp.pop %v1905
    %v1953 = vmul.f32 1.0, %v1952
    %v1954 = vrcp.pop %v1906
    %v1955 = vmul.f32 1.0, %v1954
    %v1956 = vrcp.pop %v1907
    %v1957 = vmul.f32 1.0, %v1956
    %v1958 = vrcp.pop %v1908
    %v1959 = vmul.f32 1.0, %v1958
    %v1960 = vrcp.pop %v1909
    %v1961 = vmul.f32 1.0, %v1960
    %v1962 = vrcp.pop %v1910
    %v1963 = vmul.f32 1.0, %v1962
    %v1964 = vrcp.pop %v1911
    %v1965 = vmul.f32 1.0, %v1964
    %v1966 = vrcp.pop %v1912
    %v1967 = vmul.f32 1.0, %v1966
    %v1968 = vrcp.pop %v1913
    %v1969 = vmul.f32 1.0, %v1968
    %v1970 = vrcp.pop %v1914
    %v1971 = vmul.f32 1.0, %v1970
    %v1972 = vrcp.pop %v1915
    %v1973 = vmul.f32 1.0, %v1972
    %v1974 = vrcp.pop %v1916
    %v1975 = vmul.f32 1.0, %v1974
    %v1976 = vrcp.pop %v1917
    %v1977 = vmul.f32 1.0, %v1976
    %v1978 = vrcp.pop %v1918
    %v1979 = vmul.f32 1.0, %v1978
    %v1980 = vrcp.pop %v1919
    %v1981 = vmul.f32 1.0, %v1980
    %v1982 = vrcp.pop %v1920
    %v1983 = vmul.f32 1.0, %v1982
    %v1984 = vrcp.pop %v1921
    %v1985 = vmul.f32 1.0, %v1984
    %v1986 = vpack.c.bf16 %v1925, %v1923
    %v1987 = vpack.c.bf16 %v1929, %v1927
    %v1988 = vpack.c.bf16 %v1933, %v1931
    %v1989 = vpack.c.bf16 %v1937, %v1935
    %v1990 = vpack.c.bf16 %v1941, %v1939
    %v1991 = vpack.c.bf16 %v1945, %v1943
    %v1992 = vpack.c.bf16 %v1949, %v1947
    %v1993 = vpack.c.bf16 %v1953, %v1951
    %v1994 = vpack.c.bf16 %v1957, %v1955
    %v1995 = vpack.c.bf16 %v1961, %v1959
    %v1996 = vpack.c.bf16 %v1965, %v1963
    %v1997 = vpack.c.bf16 %v1969, %v1967
    %v1998 = vpack.c.bf16 %v1973, %v1971
    %v1999 = vpack.c.bf16 %v1977, %v1975
    %v2000 = vpack.c.bf16 %v1981, %v1979
    %v2001 = vpack.c.bf16 %v1985, %v1983
    %v2002 = vld [vmem:[#allocation15] sm:$0xff]
    %v2003 = vld [vmem:[#allocation15 + $0x8] sm:$0xff]
    %v2004 = vld [vmem:[#allocation15 + $0x10] sm:$0xff]
    %v2005 = vld [vmem:[#allocation15 + $0x18] sm:$0xff]
    %v2006 = vld [vmem:[#allocation15 + $0x20] sm:$0xff]
    %v2007 = vld [vmem:[#allocation15 + $0x28] sm:$0xff]
    %v2008 = vld [vmem:[#allocation15 + $0x30] sm:$0xff]
    %v2009 = vld [vmem:[#allocation15 + $0x38] sm:$0xff]
    %v2010 = vld [vmem:[#allocation15 + $0x40] sm:$0xff]
    %v2011 = vld [vmem:[#allocation15 + $0x48] sm:$0xff]
    %v2012 = vld [vmem:[#allocation15 + $0x50] sm:$0xff]
    %v2013 = vld [vmem:[#allocation15 + $0x58] sm:$0xff]
    %v2014 = vld [vmem:[#allocation15 + $0x60] sm:$0xff]
    %v2015 = vld [vmem:[#allocation15 + $0x68] sm:$0xff]
    %v2016 = vld [vmem:[#allocation15 + $0x70] sm:$0xff]
    %v2017 = vld [vmem:[#allocation15 + $0x78] sm:$0xff]
    %v2018 = vld [vmem:[%s11] sm:$0x3]
    %v2020 = vlaneseq
    %v2021 = vshrl.u32 %v2020, 7
    %v2022 = vsub.s32 0, %v2021
    %v2023 = vrot.slane %v2018, %v2022
    %v2024 = vlaneseq
    %v2025 = vshrl.u32 %v2024, 7
    %v2026 = vsub.s32 1, %v2025
    %v2027 = vrot.slane %v2018, %v2026
    %v2046 = vunpack.c.l.b16 %v2002
    %v2047 = vunpack.c.h.b16 %v2002
    %v2048 = vunpack.c.l.b16 %v2003
    %v2049 = vunpack.c.h.b16 %v2003
    %v2050 = vunpack.c.l.b16 %v2004
    %v2051 = vunpack.c.h.b16 %v2004
    %v2052 = vunpack.c.l.b16 %v2005
    %v2053 = vunpack.c.h.b16 %v2005
    %v2054 = vunpack.c.l.b16 %v2006
    %v2055 = vunpack.c.h.b16 %v2006
    %v2056 = vunpack.c.l.b16 %v2007
    %v2057 = vunpack.c.h.b16 %v2007
    %v2058 = vunpack.c.l.b16 %v2008
    %v2059 = vunpack.c.h.b16 %v2008
    %v2060 = vunpack.c.l.b16 %v2009
    %v2061 = vunpack.c.h.b16 %v2009
    %v2062 = vunpack.c.l.b16 %v2010
    %v2063 = vunpack.c.h.b16 %v2010
    %v2064 = vunpack.c.l.b16 %v2011
    %v2065 = vunpack.c.h.b16 %v2011
    %v2066 = vunpack.c.l.b16 %v2012
    %v2067 = vunpack.c.h.b16 %v2012
    %v2068 = vunpack.c.l.b16 %v2013
    %v2069 = vunpack.c.h.b16 %v2013
    %v2070 = vunpack.c.l.b16 %v2014
    %v2071 = vunpack.c.h.b16 %v2014
    %v2072 = vunpack.c.l.b16 %v2015
    %v2073 = vunpack.c.h.b16 %v2015
    %v2074 = vunpack.c.l.b16 %v2016
    %v2075 = vunpack.c.h.b16 %v2016
    %v2076 = vunpack.c.l.b16 %v2017
    %v2077 = vunpack.c.h.b16 %v2017
    %v2078 = vpack.c.b16 %v2048, %v2046
    %v2079 = vpack.c.b16 %v2049, %v2047
    %v2080 = vpack.c.b16 %v2052, %v2050
    %v2081 = vpack.c.b16 %v2053, %v2051
    %v2082 = vpack.c.b16 %v2056, %v2054
    %v2083 = vpack.c.b16 %v2057, %v2055
    %v2084 = vpack.c.b16 %v2060, %v2058
    %v2085 = vpack.c.b16 %v2061, %v2059
    %v2086 = vpack.c.b16 %v2064, %v2062
    %v2087 = vpack.c.b16 %v2065, %v2063
    %v2088 = vpack.c.b16 %v2068, %v2066
    %v2089 = vpack.c.b16 %v2069, %v2067
    %v2090 = vpack.c.b16 %v2072, %v2070
    %v2091 = vpack.c.b16 %v2073, %v2071
    %v2092 = vpack.c.b16 %v2076, %v2074
    %v2093 = vpack.c.b16 %v2077, %v2075
    %2110 = vmatprep.subr.bf16.mxu0 %v2093
    %2111 = vmatpush1.bf16.msra.mxu0 %v2092
    %2112 = vmatprep.subr.bf16.mxu0 %v2091
    %2113 = vmatpush1.bf16.msra.mxu0 %v2090
    %2114 = vmatprep.subr.bf16.mxu0 %v2089
    %2115 = vmatpush1.bf16.msra.mxu0 %v2088
    %2116 = vmatprep.subr.bf16.mxu0 %v2087
    %2117 = vmatpush1.bf16.msra.mxu0 %v2086
    %2118 = vmatprep.subr.bf16.mxu0 %v2085
    %2119 = vmatpush1.bf16.msra.mxu0 %v2084
    %2120 = vmatprep.subr.bf16.mxu0 %v2083
    %2121 = vmatpush1.bf16.msra.mxu0 %v2082
    %2122 = vmatprep.subr.bf16.mxu0 %v2081
    %2123 = vmatpush1.bf16.msra.mxu0 %v2080
    %2124 = vmatprep.subr.bf16.mxu0 %v2079
    %2125 = vmatpush1.bf16.msra.mxu0 %v2078
    %2126 = vmatprep.subr.bf16.mxu0 0
    %2127 = vmatpush2.bf16.msra.mxu0 0
    %2128 = vmatprep.subr.bf16.mxu0 0
    %2129 = vmatpush2.bf16.msra.mxu0 0
    %2130 = vmatprep.subr.bf16.mxu0 0
    %2131 = vmatpush2.bf16.msra.mxu0 0
    %2132 = vmatprep.subr.bf16.mxu0 0
    %2133 = vmatpush2.bf16.msra.mxu0 0
    %2134 = vmatprep.subr.bf16.mxu0 0
    %2135 = vmatpush2.bf16.msra.mxu0 0
    %2136 = vmatprep.subr.bf16.mxu0 0
    %2137 = vmatpush2.bf16.msra.mxu0 0
    %2138 = vmatprep.subr.bf16.mxu0 0
    %2139 = vmatpush2.bf16.msra.mxu0 0
    %2140 = vmatprep.subr.bf16.mxu0 0
    %2141 = vmatpush2.bf16.msra.mxu0 0
    %2142 = vmatprep.mubr.bf16.mxu0 0
    %2143 = vmatmul.mubr.bf16.gmra.mxu0 %v1986
    %v2144 = vpop.f32.mrf.mxu0
    %v2145 = vadd.f32 %v2023, %v2144
    %v2146 = vpop.f32.mrf.mxu0
    %v2147 = vadd.f32 %v2027, %v2146
    %v2148 = vpop.f32.mrf.mxu0
    %v2149 = vadd.f32 %v2023, %v2148
    %v2150 = vpop.f32.mrf.mxu0
    %v2151 = vadd.f32 %v2027, %v2150
    %2152 = vmatprep.mubr.bf16.mxu0 0
    %2153 = vmatmul.mubr.bf16.gmra.mxu0 %v1987
    %v2154 = vpop.f32.mrf.mxu0
    %v2155 = vadd.f32 %v2023, %v2154
    %v2156 = vpop.f32.mrf.mxu0
    %v2157 = vadd.f32 %v2027, %v2156
    %v2158 = vpop.f32.mrf.mxu0
    %v2159 = vadd.f32 %v2023, %v2158
    %v2160 = vpop.f32.mrf.mxu0
    %v2161 = vadd.f32 %v2027, %v2160
    %2162 = vmatprep.mubr.bf16.mxu0 0
    %2163 = vmatmul.mubr.bf16.gmra.mxu0 %v1988
    %v2164 = vpop.f32.mrf.mxu0
    %v2165 = vadd.f32 %v2023, %v2164
    %v2166 = vpop.f32.mrf.mxu0
    %v2167 = vadd.f32 %v2027, %v2166
    %v2168 = vpop.f32.mrf.mxu0
    %v2169 = vadd.f32 %v2023, %v2168
    %v2170 = vpop.f32.mrf.mxu0
    %v2171 = vadd.f32 %v2027, %v2170
    %2172 = vmatprep.mubr.bf16.mxu0 0
    %2173 = vmatmul.mubr.bf16.gmra.mxu0 %v1989
    %v2174 = vpop.f32.mrf.mxu0
    %v2175 = vadd.f32 %v2023, %v2174
    %v2176 = vpop.f32.mrf.mxu0
    %v2177 = vadd.f32 %v2027, %v2176
    %v2178 = vpop.f32.mrf.mxu0
    %v2179 = vadd.f32 %v2023, %v2178
    %v2180 = vpop.f32.mrf.mxu0
    %v2181 = vadd.f32 %v2027, %v2180
    %2182 = vmatprep.mubr.bf16.mxu0 0
    %2183 = vmatmul.mubr.bf16.gmra.mxu0 %v1990
    %v2184 = vpop.f32.mrf.mxu0
    %v2185 = vadd.f32 %v2023, %v2184
    %v2186 = vpop.f32.mrf.mxu0
    %v2187 = vadd.f32 %v2027, %v2186
    %v2188 = vpop.f32.mrf.mxu0
    %v2189 = vadd.f32 %v2023, %v2188
    %v2190 = vpop.f32.mrf.mxu0
    %v2191 = vadd.f32 %v2027, %v2190
    %2192 = vmatprep.mubr.bf16.mxu0 0
    %2193 = vmatmul.mubr.bf16.gmra.mxu0 %v1991
    %v2194 = vpop.f32.mrf.mxu0
    %v2195 = vadd.f32 %v2023, %v2194
    %v2196 = vpop.f32.mrf.mxu0
    %v2197 = vadd.f32 %v2027, %v2196
    %v2198 = vpop.f32.mrf.mxu0
    %v2199 = vadd.f32 %v2023, %v2198
    %v2200 = vpop.f32.mrf.mxu0
    %v2201 = vadd.f32 %v2027, %v2200
    %2202 = vmatprep.mubr.bf16.mxu0 0
    %2203 = vmatmul.mubr.bf16.gmra.mxu0 %v1992
    %v2204 = vpop.f32.mrf.mxu0
    %v2205 = vadd.f32 %v2023, %v2204
    %v2206 = vpop.f32.mrf.mxu0
    %v2207 = vadd.f32 %v2027, %v2206
    %v2208 = vpop.f32.mrf.mxu0
    %v2209 = vadd.f32 %v2023, %v2208
    %v2210 = vpop.f32.mrf.mxu0
    %v2211 = vadd.f32 %v2027, %v2210
    %2212 = vmatprep.mubr.bf16.mxu0 0
    %2213 = vmatmul.mubr.bf16.gmra.mxu0 %v1993
    %v2214 = vpop.f32.mrf.mxu0
    %v2215 = vadd.f32 %v2023, %v2214
    %v2216 = vpop.f32.mrf.mxu0
    %v2217 = vadd.f32 %v2027, %v2216
    %v2218 = vpop.f32.mrf.mxu0
    %v2219 = vadd.f32 %v2023, %v2218
    %v2220 = vpop.f32.mrf.mxu0
    %v2221 = vadd.f32 %v2027, %v2220
    %2222 = vmatprep.mubr.bf16.mxu0 0
    %2223 = vmatmul.mubr.bf16.gmra.mxu0 %v1994
    %v2224 = vpop.f32.mrf.mxu0
    %v2225 = vadd.f32 %v2023, %v2224
    %v2226 = vpop.f32.mrf.mxu0
    %v2227 = vadd.f32 %v2027, %v2226
    %v2228 = vpop.f32.mrf.mxu0
    %v2229 = vadd.f32 %v2023, %v2228
    %v2230 = vpop.f32.mrf.mxu0
    %v2231 = vadd.f32 %v2027, %v2230
    %2232 = vmatprep.mubr.bf16.mxu0 0
    %2233 = vmatmul.mubr.bf16.gmra.mxu0 %v1995
    %v2234 = vpop.f32.mrf.mxu0
    %v2235 = vadd.f32 %v2023, %v2234
    %v2236 = vpop.f32.mrf.mxu0
    %v2237 = vadd.f32 %v2027, %v2236
    %v2238 = vpop.f32.mrf.mxu0
    %v2239 = vadd.f32 %v2023, %v2238
    %v2240 = vpop.f32.mrf.mxu0
    %v2241 = vadd.f32 %v2027, %v2240
    %2242 = vmatprep.mubr.bf16.mxu0 0
    %2243 = vmatmul.mubr.bf16.gmra.mxu0 %v1996
    %v2244 = vpop.f32.mrf.mxu0
    %v2245 = vadd.f32 %v2023, %v2244
    %v2246 = vpop.f32.mrf.mxu0
    %v2247 = vadd.f32 %v2027, %v2246
    %v2248 = vpop.f32.mrf.mxu0
    %v2249 = vadd.f32 %v2023, %v2248
    %v2250 = vpop.f32.mrf.mxu0
    %v2251 = vadd.f32 %v2027, %v2250
    %2252 = vmatprep.mubr.bf16.mxu0 0
    %2253 = vmatmul.mubr.bf16.gmra.mxu0 %v1997
    %v2254 = vpop.f32.mrf.mxu0
    %v2255 = vadd.f32 %v2023, %v2254
    %v2256 = vpop.f32.mrf.mxu0
    %v2257 = vadd.f32 %v2027, %v2256
    %v2258 = vpop.f32.mrf.mxu0
    %v2259 = vadd.f32 %v2023, %v2258
    %v2260 = vpop.f32.mrf.mxu0
    %v2261 = vadd.f32 %v2027, %v2260
    %2262 = vmatprep.mubr.bf16.mxu0 0
    %2263 = vmatmul.mubr.bf16.gmra.mxu0 %v1998
    %v2264 = vpop.f32.mrf.mxu0
    %v2265 = vadd.f32 %v2023, %v2264
    %v2266 = vpop.f32.mrf.mxu0
    %v2267 = vadd.f32 %v2027, %v2266
    %v2268 = vpop.f32.mrf.mxu0
    %v2269 = vadd.f32 %v2023, %v2268
    %v2270 = vpop.f32.mrf.mxu0
    %v2271 = vadd.f32 %v2027, %v2270
    %2272 = vmatprep.mubr.bf16.mxu0 0
    %2273 = vmatmul.mubr.bf16.gmra.mxu0 %v1999
    %v2274 = vpop.f32.mrf.mxu0
    %v2275 = vadd.f32 %v2023, %v2274
    %v2276 = vpop.f32.mrf.mxu0
    %v2277 = vadd.f32 %v2027, %v2276
    %v2278 = vpop.f32.mrf.mxu0
    %v2279 = vadd.f32 %v2023, %v2278
    %v2280 = vpop.f32.mrf.mxu0
    %v2281 = vadd.f32 %v2027, %v2280
    %2282 = vmatprep.mubr.bf16.mxu0 0
    %2283 = vmatmul.mubr.bf16.gmra.mxu0 %v2000
    %v2284 = vpop.f32.mrf.mxu0
    %v2285 = vadd.f32 %v2023, %v2284
    %v2286 = vpop.f32.mrf.mxu0
    %v2287 = vadd.f32 %v2027, %v2286
    %v2288 = vpop.f32.mrf.mxu0
    %v2289 = vadd.f32 %v2023, %v2288
    %v2290 = vpop.f32.mrf.mxu0
    %v2291 = vadd.f32 %v2027, %v2290
    %2292 = vmatprep.mubr.bf16.mxu0 0
    %2293 = vmatmul.mubr.bf16.gmra.mxu0 %v2001
    %v2294 = vpop.f32.mrf.mxu0
    %v2295 = vadd.f32 %v2023, %v2294
    %v2296 = vpop.f32.mrf.mxu0
    %v2297 = vadd.f32 %v2027, %v2296
    %v2298 = vpop.f32.mrf.mxu0
    %v2299 = vadd.f32 %v2023, %v2298
    %v2300 = vpop.f32.mrf.mxu0
    %v2301 = vadd.f32 %v2027, %v2300
    %2302 = vdwg.mxu0
    %v2303 = vxor.u32 %v2145, 2147483648
    %v2304 = vxor.u32 %v2147, 2147483648
    %v2305 = vxor.u32 %v2149, 2147483648
    %v2306 = vxor.u32 %v2151, 2147483648
    %v2307 = vxor.u32 %v2155, 2147483648
    %v2308 = vxor.u32 %v2157, 2147483648
    %v2309 = vxor.u32 %v2159, 2147483648
    %v2310 = vxor.u32 %v2161, 2147483648
    %v2311 = vxor.u32 %v2165, 2147483648
    %v2312 = vxor.u32 %v2167, 2147483648
    %v2313 = vxor.u32 %v2169, 2147483648
    %v2314 = vxor.u32 %v2171, 2147483648
    %v2315 = vxor.u32 %v2175, 2147483648
    %v2316 = vxor.u32 %v2177, 2147483648
    %v2317 = vxor.u32 %v2179, 2147483648
    %v2318 = vxor.u32 %v2181, 2147483648
    %v2319 = vxor.u32 %v2185, 2147483648
    %v2320 = vxor.u32 %v2187, 2147483648
    %v2321 = vxor.u32 %v2189, 2147483648
    %v2322 = vxor.u32 %v2191, 2147483648
    %v2323 = vxor.u32 %v2195, 2147483648
    %v2324 = vxor.u32 %v2197, 2147483648
    %v2325 = vxor.u32 %v2199, 2147483648
    %v2326 = vxor.u32 %v2201, 2147483648
    %v2327 = vxor.u32 %v2205, 2147483648
    %v2328 = vxor.u32 %v2207, 2147483648
    %v2329 = vxor.u32 %v2209, 2147483648
    %v2330 = vxor.u32 %v2211, 2147483648
    %v2331 = vxor.u32 %v2215, 2147483648
    %v2332 = vxor.u32 %v2217, 2147483648
    %v2333 = vxor.u32 %v2219, 2147483648
    %v2334 = vxor.u32 %v2221, 2147483648
    %v2335 = vxor.u32 %v2225, 2147483648
    %v2336 = vxor.u32 %v2227, 2147483648
    %v2337 = vxor.u32 %v2229, 2147483648
    %v2338 = vxor.u32 %v2231, 2147483648
    %v2339 = vxor.u32 %v2235, 2147483648
    %v2340 = vxor.u32 %v2237, 2147483648
    %v2341 = vxor.u32 %v2239, 2147483648
    %v2342 = vxor.u32 %v2241, 2147483648
    %v2343 = vxor.u32 %v2245, 2147483648
    %v2344 = vxor.u32 %v2247, 2147483648
    %v2345 = vxor.u32 %v2249, 2147483648
    %v2346 = vxor.u32 %v2251, 2147483648
    %v2347 = vxor.u32 %v2255, 2147483648
    %v2348 = vxor.u32 %v2257, 2147483648
    %v2349 = vxor.u32 %v2259, 2147483648
    %v2350 = vxor.u32 %v2261, 2147483648
    %v2351 = vxor.u32 %v2265, 2147483648
    %v2352 = vxor.u32 %v2267, 2147483648
    %v2353 = vxor.u32 %v2269, 2147483648
    %v2354 = vxor.u32 %v2271, 2147483648
    %v2355 = vxor.u32 %v2275, 2147483648
    %v2356 = vxor.u32 %v2277, 2147483648
    %v2357 = vxor.u32 %v2279, 2147483648
    %v2358 = vxor.u32 %v2281, 2147483648
    %v2359 = vxor.u32 %v2285, 2147483648
    %v2360 = vxor.u32 %v2287, 2147483648
    %v2361 = vxor.u32 %v2289, 2147483648
    %v2362 = vxor.u32 %v2291, 2147483648
    %v2363 = vxor.u32 %v2295, 2147483648
    %v2364 = vxor.u32 %v2297, 2147483648
    %v2365 = vxor.u32 %v2299, 2147483648
    %v2366 = vxor.u32 %v2301, 2147483648
    %v2367 = vmul.f32 %v2303, 1.442695
    %v2368 = vpow.pop %v2367
    %v2369 = vmul.f32 %v2304, 1.442695
    %v2370 = vpow.pop %v2369
    %v2371 = vmul.f32 %v2305, 1.442695
    %v2372 = vpow.pop %v2371
    %v2373 = vmul.f32 %v2306, 1.442695
    %v2374 = vpow.pop %v2373
    %v2375 = vmul.f32 %v2307, 1.442695
    %v2376 = vpow.pop %v2375
    %v2377 = vmul.f32 %v2308, 1.442695
    %v2378 = vpow.pop %v2377
    %v2379 = vmul.f32 %v2309, 1.442695
    %v2380 = vpow.pop %v2379
    %v2381 = vmul.f32 %v2310, 1.442695
    %v2382 = vpow.pop %v2381
    %v2383 = vmul.f32 %v2311, 1.442695
    %v2384 = vpow.pop %v2383
    %v2385 = vmul.f32 %v2312, 1.442695
    %v2386 = vpow.pop %v2385
    %v2387 = vmul.f32 %v2313, 1.442695
    %v2388 = vpow.pop %v2387
    %v2389 = vmul.f32 %v2314, 1.442695
    %v2390 = vpow.pop %v2389
    %v2391 = vmul.f32 %v2315, 1.442695
    %v2392 = vpow.pop %v2391
    %v2393 = vmul.f32 %v2316, 1.442695
    %v2394 = vpow.pop %v2393
    %v2395 = vmul.f32 %v2317, 1.442695
    %v2396 = vpow.pop %v2395
    %v2397 = vmul.f32 %v2318, 1.442695
    %v2398 = vpow.pop %v2397
    %v2399 = vmul.f32 %v2319, 1.442695
    %v2400 = vpow.pop %v2399
    %v2401 = vmul.f32 %v2320, 1.442695
    %v2402 = vpow.pop %v2401
    %v2403 = vmul.f32 %v2321, 1.442695
    %v2404 = vpow.pop %v2403
    %v2405 = vmul.f32 %v2322, 1.442695
    %v2406 = vpow.pop %v2405
    %v2407 = vmul.f32 %v2323, 1.442695
    %v2408 = vpow.pop %v2407
    %v2409 = vmul.f32 %v2324, 1.442695
    %v2410 = vpow.pop %v2409
    %v2411 = vmul.f32 %v2325, 1.442695
    %v2412 = vpow.pop %v2411
    %v2413 = vmul.f32 %v2326, 1.442695
    %v2414 = vpow.pop %v2413
    %v2415 = vmul.f32 %v2327, 1.442695
    %v2416 = vpow.pop %v2415
    %v2417 = vmul.f32 %v2328, 1.442695
    %v2418 = vpow.pop %v2417
    %v2419 = vmul.f32 %v2329, 1.442695
    %v2420 = vpow.pop %v2419
    %v2421 = vmul.f32 %v2330, 1.442695
    %v2422 = vpow.pop %v2421
    %v2423 = vmul.f32 %v2331, 1.442695
    %v2424 = vpow.pop %v2423
    %v2425 = vmul.f32 %v2332, 1.442695
    %v2426 = vpow.pop %v2425
    %v2427 = vmul.f32 %v2333, 1.442695
    %v2428 = vpow.pop %v2427
    %v2429 = vmul.f32 %v2334, 1.442695
    %v2430 = vpow.pop %v2429
    %v2431 = vmul.f32 %v2335, 1.442695
    %v2432 = vpow.pop %v2431
    %v2433 = vmul.f32 %v2336, 1.442695
    %v2434 = vpow.pop %v2433
    %v2435 = vmul.f32 %v2337, 1.442695
    %v2436 = vpow.pop %v2435
    %v2437 = vmul.f32 %v2338, 1.442695
    %v2438 = vpow.pop %v2437
    %v2439 = vmul.f32 %v2339, 1.442695
    %v2440 = vpow.pop %v2439
    %v2441 = vmul.f32 %v2340, 1.442695
    %v2442 = vpow.pop %v2441
    %v2443 = vmul.f32 %v2341, 1.442695
    %v2444 = vpow.pop %v2443
    %v2445 = vmul.f32 %v2342, 1.442695
    %v2446 = vpow.pop %v2445
    %v2447 = vmul.f32 %v2343, 1.442695
    %v2448 = vpow.pop %v2447
    %v2449 = vmul.f32 %v2344, 1.442695
    %v2450 = vpow.pop %v2449
    %v2451 = vmul.f32 %v2345, 1.442695
    %v2452 = vpow.pop %v2451
    %v2453 = vmul.f32 %v2346, 1.442695
    %v2454 = vpow.pop %v2453
    %v2455 = vmul.f32 %v2347, 1.442695
    %v2456 = vpow.pop %v2455
    %v2457 = vmul.f32 %v2348, 1.442695
    %v2458 = vpow.pop %v2457
    %v2459 = vmul.f32 %v2349, 1.442695
    %v2460 = vpow.pop %v2459
    %v2461 = vmul.f32 %v2350, 1.442695
    %v2462 = vpow.pop %v2461
    %v2463 = vmul.f32 %v2351, 1.442695
    %v2464 = vpow.pop %v2463
    %v2465 = vmul.f32 %v2352, 1.442695
    %v2466 = vpow.pop %v2465
    %v2467 = vmul.f32 %v2353, 1.442695
    %v2468 = vpow.pop %v2467
    %v2469 = vmul.f32 %v2354, 1.442695
    %v2470 = vpow.pop %v2469
    %v2471 = vmul.f32 %v2355, 1.442695
    %v2472 = vpow.pop %v2471
    %v2473 = vmul.f32 %v2356, 1.442695
    %v2474 = vpow.pop %v2473
    %v2475 = vmul.f32 %v2357, 1.442695
    %v2476 = vpow.pop %v2475
    %v2477 = vmul.f32 %v2358, 1.442695
    %v2478 = vpow.pop %v2477
    %v2479 = vmul.f32 %v2359, 1.442695
    %v2480 = vpow.pop %v2479
    %v2481 = vmul.f32 %v2360, 1.442695
    %v2482 = vpow.pop %v2481
    %v2483 = vmul.f32 %v2361, 1.442695
    %v2484 = vpow.pop %v2483
    %v2485 = vmul.f32 %v2362, 1.442695
    %v2486 = vpow.pop %v2485
    %v2487 = vmul.f32 %v2363, 1.442695
    %v2488 = vpow.pop %v2487
    %v2489 = vmul.f32 %v2364, 1.442695
    %v2490 = vpow.pop %v2489
    %v2491 = vmul.f32 %v2365, 1.442695
    %v2492 = vpow.pop %v2491
    %v2493 = vmul.f32 %v2366, 1.442695
    %v2494 = vpow.pop %v2493
    %v2495 = vadd.f32 %v2368, 1.0
    %v2496 = vadd.f32 %v2370, 1.0
    %v2497 = vadd.f32 %v2372, 1.0
    %v2498 = vadd.f32 %v2374, 1.0
    %v2499 = vadd.f32 %v2376, 1.0
    %v2500 = vadd.f32 %v2378, 1.0
    %v2501 = vadd.f32 %v2380, 1.0
    %v2502 = vadd.f32 %v2382, 1.0
    %v2503 = vadd.f32 %v2384, 1.0
    %v2504 = vadd.f32 %v2386, 1.0
    %v2505 = vadd.f32 %v2388, 1.0
    %v2506 = vadd.f32 %v2390, 1.0
    %v2507 = vadd.f32 %v2392, 1.0
    %v2508 = vadd.f32 %v2394, 1.0
    %v2509 = vadd.f32 %v2396, 1.0
    %v2510 = vadd.f32 %v2398, 1.0
    %v2511 = vadd.f32 %v2400, 1.0
    %v2512 = vadd.f32 %v2402, 1.0
    %v2513 = vadd.f32 %v2404, 1.0
    %v2514 = vadd.f32 %v2406, 1.0
    %v2515 = vadd.f32 %v2408, 1.0
    %v2516 = vadd.f32 %v2410, 1.0
    %v2517 = vadd.f32 %v2412, 1.0
    %v2518 = vadd.f32 %v2414, 1.0
    %v2519 = vadd.f32 %v2416, 1.0
    %v2520 = vadd.f32 %v2418, 1.0
    %v2521 = vadd.f32 %v2420, 1.0
    %v2522 = vadd.f32 %v2422, 1.0
    %v2523 = vadd.f32 %v2424, 1.0
    %v2524 = vadd.f32 %v2426, 1.0
    %v2525 = vadd.f32 %v2428, 1.0
    %v2526 = vadd.f32 %v2430, 1.0
    %v2527 = vadd.f32 %v2432, 1.0
    %v2528 = vadd.f32 %v2434, 1.0
    %v2529 = vadd.f32 %v2436, 1.0
    %v2530 = vadd.f32 %v2438, 1.0
    %v2531 = vadd.f32 %v2440, 1.0
    %v2532 = vadd.f32 %v2442, 1.0
    %v2533 = vadd.f32 %v2444, 1.0
    %v2534 = vadd.f32 %v2446, 1.0
    %v2535 = vadd.f32 %v2448, 1.0
    %v2536 = vadd.f32 %v2450, 1.0
    %v2537 = vadd.f32 %v2452, 1.0
    %v2538 = vadd.f32 %v2454, 1.0
    %v2539 = vadd.f32 %v2456, 1.0
    %v2540 = vadd.f32 %v2458, 1.0
    %v2541 = vadd.f32 %v2460, 1.0
    %v2542 = vadd.f32 %v2462, 1.0
    %v2543 = vadd.f32 %v2464, 1.0
    %v2544 = vadd.f32 %v2466, 1.0
    %v2545 = vadd.f32 %v2468, 1.0
    %v2546 = vadd.f32 %v2470, 1.0
    %v2547 = vadd.f32 %v2472, 1.0
    %v2548 = vadd.f32 %v2474, 1.0
    %v2549 = vadd.f32 %v2476, 1.0
    %v2550 = vadd.f32 %v2478, 1.0
    %v2551 = vadd.f32 %v2480, 1.0
    %v2552 = vadd.f32 %v2482, 1.0
    %v2553 = vadd.f32 %v2484, 1.0
    %v2554 = vadd.f32 %v2486, 1.0
    %v2555 = vadd.f32 %v2488, 1.0
    %v2556 = vadd.f32 %v2490, 1.0
    %v2557 = vadd.f32 %v2492, 1.0
    %v2558 = vadd.f32 %v2494, 1.0
    %v2559 = vrcp.pop %v2495
    %v2560 = vmul.f32 1.0, %v2559
    %v2561 = vrcp.pop %v2496
    %v2562 = vmul.f32 1.0, %v2561
    %v2563 = vrcp.pop %v2497
    %v2564 = vmul.f32 1.0, %v2563
    %v2565 = vrcp.pop %v2498
    %v2566 = vmul.f32 1.0, %v2565
    %v2567 = vrcp.pop %v2499
    %v2568 = vmul.f32 1.0, %v2567
    %v2569 = vrcp.pop %v2500
    %v2570 = vmul.f32 1.0, %v2569
    %v2571 = vrcp.pop %v2501
    %v2572 = vmul.f32 1.0, %v2571
    %v2573 = vrcp.pop %v2502
    %v2574 = vmul.f32 1.0, %v2573
    %v2575 = vrcp.pop %v2503
    %v2576 = vmul.f32 1.0, %v2575
    %v2577 = vrcp.pop %v2504
    %v2578 = vmul.f32 1.0, %v2577
    %v2579 = vrcp.pop %v2505
    %v2580 = vmul.f32 1.0, %v2579
    %v2581 = vrcp.pop %v2506
    %v2582 = vmul.f32 1.0, %v2581
    %v2583 = vrcp.pop %v2507
    %v2584 = vmul.f32 1.0, %v2583
    %v2585 = vrcp.pop %v2508
    %v2586 = vmul.f32 1.0, %v2585
    %v2587 = vrcp.pop %v2509
    %v2588 = vmul.f32 1.0, %v2587
    %v2589 = vrcp.pop %v2510
    %v2590 = vmul.f32 1.0, %v2589
    %v2591 = vrcp.pop %v2511
    %v2592 = vmul.f32 1.0, %v2591
    %v2593 = vrcp.pop %v2512
    %v2594 = vmul.f32 1.0, %v2593
    %v2595 = vrcp.pop %v2513
    %v2596 = vmul.f32 1.0, %v2595
    %v2597 = vrcp.pop %v2514
    %v2598 = vmul.f32 1.0, %v2597
    %v2599 = vrcp.pop %v2515
    %v2600 = vmul.f32 1.0, %v2599
    %v2601 = vrcp.pop %v2516
    %v2602 = vmul.f32 1.0, %v2601
    %v2603 = vrcp.pop %v2517
    %v2604 = vmul.f32 1.0, %v2603
    %v2605 = vrcp.pop %v2518
    %v2606 = vmul.f32 1.0, %v2605
    %v2607 = vrcp.pop %v2519
    %v2608 = vmul.f32 1.0, %v2607
    %v2609 = vrcp.pop %v2520
    %v2610 = vmul.f32 1.0, %v2609
    %v2611 = vrcp.pop %v2521
    %v2612 = vmul.f32 1.0, %v2611
    %v2613 = vrcp.pop %v2522
    %v2614 = vmul.f32 1.0, %v2613
    %v2615 = vrcp.pop %v2523
    %v2616 = vmul.f32 1.0, %v2615
    %v2617 = vrcp.pop %v2524
    %v2618 = vmul.f32 1.0, %v2617
    %v2619 = vrcp.pop %v2525
    %v2620 = vmul.f32 1.0, %v2619
    %v2621 = vrcp.pop %v2526
    %v2622 = vmul.f32 1.0, %v2621
    %v2623 = vrcp.pop %v2527
    %v2624 = vmul.f32 1.0, %v2623
    %v2625 = vrcp.pop %v2528
    %v2626 = vmul.f32 1.0, %v2625
    %v2627 = vrcp.pop %v2529
    %v2628 = vmul.f32 1.0, %v2627
    %v2629 = vrcp.pop %v2530
    %v2630 = vmul.f32 1.0, %v2629
    %v2631 = vrcp.pop %v2531
    %v2632 = vmul.f32 1.0, %v2631
    %v2633 = vrcp.pop %v2532
    %v2634 = vmul.f32 1.0, %v2633
    %v2635 = vrcp.pop %v2533
    %v2636 = vmul.f32 1.0, %v2635
    %v2637 = vrcp.pop %v2534
    %v2638 = vmul.f32 1.0, %v2637
    %v2639 = vrcp.pop %v2535
    %v2640 = vmul.f32 1.0, %v2639
    %v2641 = vrcp.pop %v2536
    %v2642 = vmul.f32 1.0, %v2641
    %v2643 = vrcp.pop %v2537
    %v2644 = vmul.f32 1.0, %v2643
    %v2645 = vrcp.pop %v2538
    %v2646 = vmul.f32 1.0, %v2645
    %v2647 = vrcp.pop %v2539
    %v2648 = vmul.f32 1.0, %v2647
    %v2649 = vrcp.pop %v2540
    %v2650 = vmul.f32 1.0, %v2649
    %v2651 = vrcp.pop %v2541
    %v2652 = vmul.f32 1.0, %v2651
    %v2653 = vrcp.pop %v2542
    %v2654 = vmul.f32 1.0, %v2653
    %v2655 = vrcp.pop %v2543
    %v2656 = vmul.f32 1.0, %v2655
    %v2657 = vrcp.pop %v2544
    %v2658 = vmul.f32 1.0, %v2657
    %v2659 = vrcp.pop %v2545
    %v2660 = vmul.f32 1.0, %v2659
    %v2661 = vrcp.pop %v2546
    %v2662 = vmul.f32 1.0, %v2661
    %v2663 = vrcp.pop %v2547
    %v2664 = vmul.f32 1.0, %v2663
    %v2665 = vrcp.pop %v2548
    %v2666 = vmul.f32 1.0, %v2665
    %v2667 = vrcp.pop %v2549
    %v2668 = vmul.f32 1.0, %v2667
    %v2669 = vrcp.pop %v2550
    %v2670 = vmul.f32 1.0, %v2669
    %v2671 = vrcp.pop %v2551
    %v2672 = vmul.f32 1.0, %v2671
    %v2673 = vrcp.pop %v2552
    %v2674 = vmul.f32 1.0, %v2673
    %v2675 = vrcp.pop %v2553
    %v2676 = vmul.f32 1.0, %v2675
    %v2677 = vrcp.pop %v2554
    %v2678 = vmul.f32 1.0, %v2677
    %v2679 = vrcp.pop %v2555
    %v2680 = vmul.f32 1.0, %v2679
    %v2681 = vrcp.pop %v2556
    %v2682 = vmul.f32 1.0, %v2681
    %v2683 = vrcp.pop %v2557
    %v2684 = vmul.f32 1.0, %v2683
    %v2685 = vrcp.pop %v2558
    %v2686 = vmul.f32 1.0, %v2685
    %v2687 = vpack.c.bf16 %v2564, %v2560
    %v2688 = vpack.c.bf16 %v2566, %v2562
    %v2689 = vpack.c.bf16 %v2572, %v2568
    %v2690 = vpack.c.bf16 %v2574, %v2570
    %v2691 = vpack.c.bf16 %v2580, %v2576
    %v2692 = vpack.c.bf16 %v2582, %v2578
    %v2693 = vpack.c.bf16 %v2588, %v2584
    %v2694 = vpack.c.bf16 %v2590, %v2586
    %v2695 = vpack.c.bf16 %v2596, %v2592
    %v2696 = vpack.c.bf16 %v2598, %v2594
    %v2697 = vpack.c.bf16 %v2604, %v2600
    %v2698 = vpack.c.bf16 %v2606, %v2602
    %v2699 = vpack.c.bf16 %v2612, %v2608
    %v2700 = vpack.c.bf16 %v2614, %v2610
    %v2701 = vpack.c.bf16 %v2620, %v2616
    %v2702 = vpack.c.bf16 %v2622, %v2618
    %v2703 = vpack.c.bf16 %v2628, %v2624
    %v2704 = vpack.c.bf16 %v2630, %v2626
    %v2705 = vpack.c.bf16 %v2636, %v2632
    %v2706 = vpack.c.bf16 %v2638, %v2634
    %v2707 = vpack.c.bf16 %v2644, %v2640
    %v2708 = vpack.c.bf16 %v2646, %v2642
    %v2709 = vpack.c.bf16 %v2652, %v2648
    %v2710 = vpack.c.bf16 %v2654, %v2650
    %v2711 = vpack.c.bf16 %v2660, %v2656
    %v2712 = vpack.c.bf16 %v2662, %v2658
    %v2713 = vpack.c.bf16 %v2668, %v2664
    %v2714 = vpack.c.bf16 %v2670, %v2666
    %v2715 = vpack.c.bf16 %v2676, %v2672
    %v2716 = vpack.c.bf16 %v2678, %v2674
    %v2717 = vpack.c.bf16 %v2684, %v2680
    %v2718 = vpack.c.bf16 %v2686, %v2682
    %v2719 = vld [vmem:[#allocation17] sm:$0xf]
    %v2720 = vld [vmem:[#allocation17 + $0x4] sm:$0xf]
    %v2721 = vld [vmem:[#allocation17 + $0x8] sm:$0xf]
    %v2722 = vld [vmem:[#allocation17 + $0xc] sm:$0xf]
    %v2723 = vld [vmem:[#allocation17 + $0x10] sm:$0xf]
    %v2724 = vld [vmem:[#allocation17 + $0x14] sm:$0xf]
    %v2725 = vld [vmem:[#allocation17 + $0x18] sm:$0xf]
    %v2726 = vld [vmem:[#allocation17 + $0x1c] sm:$0xf]
    %v2727 = vld [vmem:[#allocation17 + $0x20] sm:$0xf]
    %v2728 = vld [vmem:[#allocation17 + $0x24] sm:$0xf]
    %v2729 = vld [vmem:[#allocation17 + $0x28] sm:$0xf]
    %v2730 = vld [vmem:[#allocation17 + $0x2c] sm:$0xf]
    %v2731 = vld [vmem:[#allocation17 + $0x30] sm:$0xf]
    %v2732 = vld [vmem:[#allocation17 + $0x34] sm:$0xf]
    %v2733 = vld [vmem:[#allocation17 + $0x38] sm:$0xf]
    %v2734 = vld [vmem:[#allocation17 + $0x3c] sm:$0xf]
    %v2735 = vld [vmem:[%s13] sm:$0x1]
    %v2737 = vlaneseq
    %v2738 = vshrl.u32 %v2737, 7
    %v2739 = vsub.s32 0, %v2738
    %v2740 = vrot.slane %v2735, %v2739
    %v2758 = vunpack.c.l.b16 %v2719
    %v2759 = vunpack.c.l.b16 %v2720
    %v2760 = vunpack.c.l.b16 %v2721
    %v2761 = vunpack.c.l.b16 %v2722
    %v2762 = vunpack.c.l.b16 %v2723
    %v2763 = vunpack.c.l.b16 %v2724
    %v2764 = vunpack.c.l.b16 %v2725
    %v2765 = vunpack.c.l.b16 %v2726
    %v2766 = vunpack.c.l.b16 %v2727
    %v2767 = vunpack.c.l.b16 %v2728
    %v2768 = vunpack.c.l.b16 %v2729
    %v2769 = vunpack.c.l.b16 %v2730
    %v2770 = vunpack.c.l.b16 %v2731
    %v2771 = vunpack.c.l.b16 %v2732
    %v2772 = vunpack.c.l.b16 %v2733
    %v2773 = vunpack.c.l.b16 %v2734
    %v2774 = vpack.c.b16 %v2759, %v2758
    %v2775 = vpack.c.b16 %v2761, %v2760
    %v2776 = vpack.c.b16 %v2763, %v2762
    %v2777 = vpack.c.b16 %v2765, %v2764
    %v2778 = vpack.c.b16 %v2767, %v2766
    %v2779 = vpack.c.b16 %v2769, %v2768
    %v2780 = vpack.c.b16 %v2771, %v2770
    %v2781 = vpack.c.b16 %v2773, %v2772
    %2790 = vmatprep.subr.bf16.mxu0 0
    %2791 = vmatpush1.bf16.msra.mxu0 %v2781
    %2792 = vmatprep.subr.bf16.mxu0 0
    %2793 = vmatpush1.bf16.msra.mxu0 %v2780
    %2794 = vmatprep.subr.bf16.mxu0 0
    %2795 = vmatpush1.bf16.msra.mxu0 %v2779
    %2796 = vmatprep.subr.bf16.mxu0 0
    %2797 = vmatpush1.bf16.msra.mxu0 %v2778
    %2798 = vmatprep.subr.bf16.mxu0 0
    %2799 = vmatpush1.bf16.msra.mxu0 %v2777
    %2800 = vmatprep.subr.bf16.mxu0 0
    %2801 = vmatpush1.bf16.msra.mxu0 %v2776
    %2802 = vmatprep.subr.bf16.mxu0 0
    %2803 = vmatpush1.bf16.msra.mxu0 %v2775
    %2804 = vmatprep.subr.bf16.mxu0 0
    %2805 = vmatpush1.bf16.msra.mxu0 %v2774
    %2806 = vmatprep.subr.bf16.mxu0 0
    %2807 = vmatpush2.bf16.msra.mxu0 0
    %2808 = vmatprep.subr.bf16.mxu0 0
    %2809 = vmatpush2.bf16.msra.mxu0 0
    %2810 = vmatprep.subr.bf16.mxu0 0
    %2811 = vmatpush2.bf16.msra.mxu0 0
    %2812 = vmatprep.subr.bf16.mxu0 0
    %2813 = vmatpush2.bf16.msra.mxu0 0
    %2814 = vmatprep.subr.bf16.mxu0 0
    %2815 = vmatpush2.bf16.msra.mxu0 0
    %2816 = vmatprep.subr.bf16.mxu0 0
    %2817 = vmatpush2.bf16.msra.mxu0 0
    %2818 = vmatprep.subr.bf16.mxu0 0
    %2819 = vmatpush2.bf16.msra.mxu0 0
    %2820 = vmatprep.subr.bf16.mxu0 0
    %2821 = vmatpush2.bf16.msra.mxu0 0
    %2822 = vmatprep.mubr.bf16.mxu0 0
    %2823 = vmatmul.mubr.bf16.gmra.mxu0 %v2687
    %v2824 = vpop.f32.mrf.mxu0
    %v2825 = vadd.f32 %v2740, %v2824
    %v2826 = vpop.f32.mrf.mxu0
    %v2827 = vpop.f32.mrf.mxu0
    %v2828 = vadd.f32 %v2740, %v2827
    %v2829 = vpop.f32.mrf.mxu0
    %2830 = vmatprep.mubr.bf16.mxu0 0
    %2831 = vmatmul.mubr.bf16.gmra.mxu0 %v2689
    %v2832 = vpop.f32.mrf.mxu0
    %v2833 = vadd.f32 %v2740, %v2832
    %v2834 = vpop.f32.mrf.mxu0
    %v2835 = vpop.f32.mrf.mxu0
    %v2836 = vadd.f32 %v2740, %v2835
    %v2837 = vpop.f32.mrf.mxu0
    %2838 = vmatprep.mubr.bf16.mxu0 0
    %2839 = vmatmul.mubr.bf16.gmra.mxu0 %v2691
    %v2840 = vpop.f32.mrf.mxu0
    %v2841 = vadd.f32 %v2740, %v2840
    %v2842 = vpop.f32.mrf.mxu0
    %v2843 = vpop.f32.mrf.mxu0
    %v2844 = vadd.f32 %v2740, %v2843
    %v2845 = vpop.f32.mrf.mxu0
    %2846 = vmatprep.mubr.bf16.mxu0 0
    %2847 = vmatmul.mubr.bf16.gmra.mxu0 %v2693
    %v2848 = vpop.f32.mrf.mxu0
    %v2849 = vadd.f32 %v2740, %v2848
    %v2850 = vpop.f32.mrf.mxu0
    %v2851 = vpop.f32.mrf.mxu0
    %v2852 = vadd.f32 %v2740, %v2851
    %v2853 = vpop.f32.mrf.mxu0
    %2854 = vmatprep.mubr.bf16.mxu0 0
    %2855 = vmatmul.mubr.bf16.gmra.mxu0 %v2695
    %v2856 = vpop.f32.mrf.mxu0
    %v2857 = vadd.f32 %v2740, %v2856
    %v2858 = vpop.f32.mrf.mxu0
    %v2859 = vpop.f32.mrf.mxu0
    %v2860 = vadd.f32 %v2740, %v2859
    %v2861 = vpop.f32.mrf.mxu0
    %2862 = vmatprep.mubr.bf16.mxu0 0
    %2863 = vmatmul.mubr.bf16.gmra.mxu0 %v2697
    %v2864 = vpop.f32.mrf.mxu0
    %v2865 = vadd.f32 %v2740, %v2864
    %v2866 = vpop.f32.mrf.mxu0
    %v2867 = vpop.f32.mrf.mxu0
    %v2868 = vadd.f32 %v2740, %v2867
    %v2869 = vpop.f32.mrf.mxu0
    %2870 = vmatprep.mubr.bf16.mxu0 0
    %2871 = vmatmul.mubr.bf16.gmra.mxu0 %v2699
    %v2872 = vpop.f32.mrf.mxu0
    %v2873 = vadd.f32 %v2740, %v2872
    %v2874 = vpop.f32.mrf.mxu0
    %v2875 = vpop.f32.mrf.mxu0
    %v2876 = vadd.f32 %v2740, %v2875
    %v2877 = vpop.f32.mrf.mxu0
    %2878 = vmatprep.mubr.bf16.mxu0 0
    %2879 = vmatmul.mubr.bf16.gmra.mxu0 %v2701
    %v2880 = vpop.f32.mrf.mxu0
    %v2881 = vadd.f32 %v2740, %v2880
    %v2882 = vpop.f32.mrf.mxu0
    %v2883 = vpop.f32.mrf.mxu0
    %v2884 = vadd.f32 %v2740, %v2883
    %v2885 = vpop.f32.mrf.mxu0
    %2886 = vmatprep.mubr.bf16.mxu0 0
    %2887 = vmatmul.mubr.bf16.gmra.mxu0 %v2703
    %v2888 = vpop.f32.mrf.mxu0
    %v2889 = vadd.f32 %v2740, %v2888
    %v2890 = vpop.f32.mrf.mxu0
    %v2891 = vpop.f32.mrf.mxu0
    %v2892 = vadd.f32 %v2740, %v2891
    %v2893 = vpop.f32.mrf.mxu0
    %2894 = vmatprep.mubr.bf16.mxu0 0
    %2895 = vmatmul.mubr.bf16.gmra.mxu0 %v2705
    %v2896 = vpop.f32.mrf.mxu0
    %v2897 = vadd.f32 %v2740, %v2896
    %v2898 = vpop.f32.mrf.mxu0
    %v2899 = vpop.f32.mrf.mxu0
    %v2900 = vadd.f32 %v2740, %v2899
    %v2901 = vpop.f32.mrf.mxu0
    %2902 = vmatprep.mubr.bf16.mxu0 0
    %2903 = vmatmul.mubr.bf16.gmra.mxu0 %v2707
    %v2904 = vpop.f32.mrf.mxu0
    %v2905 = vadd.f32 %v2740, %v2904
    %v2906 = vpop.f32.mrf.mxu0
    %v2907 = vpop.f32.mrf.mxu0
    %v2908 = vadd.f32 %v2740, %v2907
    %v2909 = vpop.f32.mrf.mxu0
    %2910 = vmatprep.mubr.bf16.mxu0 0
    %2911 = vmatmul.mubr.bf16.gmra.mxu0 %v2709
    %v2912 = vpop.f32.mrf.mxu0
    %v2913 = vadd.f32 %v2740, %v2912
    %v2914 = vpop.f32.mrf.mxu0
    %v2915 = vpop.f32.mrf.mxu0
    %v2916 = vadd.f32 %v2740, %v2915
    %v2917 = vpop.f32.mrf.mxu0
    %2918 = vmatprep.mubr.bf16.mxu0 0
    %2919 = vmatmul.mubr.bf16.gmra.mxu0 %v2711
    %v2920 = vpop.f32.mrf.mxu0
    %v2921 = vadd.f32 %v2740, %v2920
    %v2922 = vpop.f32.mrf.mxu0
    %v2923 = vpop.f32.mrf.mxu0
    %v2924 = vadd.f32 %v2740, %v2923
    %v2925 = vpop.f32.mrf.mxu0
    %2926 = vmatprep.mubr.bf16.mxu0 0
    %2927 = vmatmul.mubr.bf16.gmra.mxu0 %v2713
    %v2928 = vpop.f32.mrf.mxu0
    %v2929 = vadd.f32 %v2740, %v2928
    %v2930 = vpop.f32.mrf.mxu0
    %v2931 = vpop.f32.mrf.mxu0
    %v2932 = vadd.f32 %v2740, %v2931
    %v2933 = vpop.f32.mrf.mxu0
    %2934 = vmatprep.mubr.bf16.mxu0 0
    %2935 = vmatmul.mubr.bf16.gmra.mxu0 %v2715
    %v2936 = vpop.f32.mrf.mxu0
    %v2937 = vadd.f32 %v2740, %v2936
    %v2938 = vpop.f32.mrf.mxu0
    %v2939 = vpop.f32.mrf.mxu0
    %v2940 = vadd.f32 %v2740, %v2939
    %v2941 = vpop.f32.mrf.mxu0
    %2942 = vmatprep.mubr.bf16.mxu0 0
    %2943 = vmatmul.mubr.bf16.gmra.mxu0 %v2717
    %v2944 = vpop.f32.mrf.mxu0
    %v2945 = vadd.f32 %v2740, %v2944
    %v2946 = vpop.f32.mrf.mxu0
    %v2947 = vpop.f32.mrf.mxu0
    %v2948 = vadd.f32 %v2740, %v2947
    %v2949 = vpop.f32.mrf.mxu0
    %2950 = vdwg.mxu0
    %v2951 = vpack.c.bf16 %v2828, %v2825
    %v2952 = vpack.c.bf16 %v2836, %v2833
    %v2953 = vpack.c.bf16 %v2844, %v2841
    %v2954 = vpack.c.bf16 %v2852, %v2849
    %v2955 = vpack.c.bf16 %v2860, %v2857
    %v2956 = vpack.c.bf16 %v2868, %v2865
    %v2957 = vpack.c.bf16 %v2876, %v2873
    %v2958 = vpack.c.bf16 %v2884, %v2881
    %v2959 = vpack.c.bf16 %v2892, %v2889
    %v2960 = vpack.c.bf16 %v2900, %v2897
    %v2961 = vpack.c.bf16 %v2908, %v2905
    %v2962 = vpack.c.bf16 %v2916, %v2913
    %v2963 = vpack.c.bf16 %v2924, %v2921
    %v2964 = vpack.c.bf16 %v2932, %v2929
    %v2965 = vpack.c.bf16 %v2940, %v2937
    %v2966 = vpack.c.bf16 %v2948, %v2945
    %v2967 = vxor.u32 %v2951, 2147516416
    %v2968 = vxor.u32 %v2952, 2147516416
    %v2969 = vxor.u32 %v2953, 2147516416
    %v2970 = vxor.u32 %v2954, 2147516416
    %v2971 = vxor.u32 %v2955, 2147516416
    %v2972 = vxor.u32 %v2956, 2147516416
    %v2973 = vxor.u32 %v2957, 2147516416
    %v2974 = vxor.u32 %v2958, 2147516416
    %v2975 = vxor.u32 %v2959, 2147516416
    %v2976 = vxor.u32 %v2960, 2147516416
    %v2977 = vxor.u32 %v2961, 2147516416
    %v2978 = vxor.u32 %v2962, 2147516416
    %v2979 = vxor.u32 %v2963, 2147516416
    %v2980 = vxor.u32 %v2964, 2147516416
    %v2981 = vxor.u32 %v2965, 2147516416
    %v2982 = vxor.u32 %v2966, 2147516416
    %v2984 = vmul.bf16 %v2967, 1069105081
    %v2985 = vpow.bf16.pop %v2984
    %v2987 = vmul.bf16 %v2968, 1069105081
    %v2988 = vpow.bf16.pop %v2987
    %v2990 = vmul.bf16 %v2969, 1069105081
    %v2991 = vpow.bf16.pop %v2990
    %v2993 = vmul.bf16 %v2970, 1069105081
    %v2994 = vpow.bf16.pop %v2993
    %v2996 = vmul.bf16 %v2971, 1069105081
    %v2997 = vpow.bf16.pop %v2996
    %v2999 = vmul.bf16 %v2972, 1069105081
    %v3000 = vpow.bf16.pop %v2999
    %v3002 = vmul.bf16 %v2973, 1069105081
    %v3003 = vpow.bf16.pop %v3002
    %v3005 = vmul.bf16 %v2974, 1069105081
    %v3006 = vpow.bf16.pop %v3005
    %v3008 = vmul.bf16 %v2975, 1069105081
    %v3009 = vpow.bf16.pop %v3008
    %v3011 = vmul.bf16 %v2976, 1069105081
    %v3012 = vpow.bf16.pop %v3011
    %v3014 = vmul.bf16 %v2977, 1069105081
    %v3015 = vpow.bf16.pop %v3014
    %v3017 = vmul.bf16 %v2978, 1069105081
    %v3018 = vpow.bf16.pop %v3017
    %v3020 = vmul.bf16 %v2979, 1069105081
    %v3021 = vpow.bf16.pop %v3020
    %v3023 = vmul.bf16 %v2980, 1069105081
    %v3024 = vpow.bf16.pop %v3023
    %v3026 = vmul.bf16 %v2981, 1069105081
    %v3027 = vpow.bf16.pop %v3026
    %v3029 = vmul.bf16 %v2982, 1069105081
    %v3030 = vpow.bf16.pop %v3029
    %v3031 = vadd.bf16 %v2985, 1065369472
    %v3032 = vadd.bf16 %v2988, 1065369472
    %v3033 = vadd.bf16 %v2991, 1065369472
    %v3034 = vadd.bf16 %v2994, 1065369472
    %v3035 = vadd.bf16 %v2997, 1065369472
    %v3036 = vadd.bf16 %v3000, 1065369472
    %v3037 = vadd.bf16 %v3003, 1065369472
    %v3038 = vadd.bf16 %v3006, 1065369472
    %v3039 = vadd.bf16 %v3009, 1065369472
    %v3040 = vadd.bf16 %v3012, 1065369472
    %v3041 = vadd.bf16 %v3015, 1065369472
    %v3042 = vadd.bf16 %v3018, 1065369472
    %v3043 = vadd.bf16 %v3021, 1065369472
    %v3044 = vadd.bf16 %v3024, 1065369472
    %v3045 = vadd.bf16 %v3027, 1065369472
    %v3046 = vadd.bf16 %v3030, 1065369472
    %v3047 = vrcp.bf16.pop %v3031
    %v3048 = vmul.bf16 1065369472, %v3047
    %v3049 = vrcp.bf16.pop %v3032
    %v3050 = vmul.bf16 1065369472, %v3049
    %v3051 = vrcp.bf16.pop %v3033
    %v3052 = vmul.bf16 1065369472, %v3051
    %v3053 = vrcp.bf16.pop %v3034
    %v3054 = vmul.bf16 1065369472, %v3053
    %v3055 = vrcp.bf16.pop %v3035
    %v3056 = vmul.bf16 1065369472, %v3055
    %v3057 = vrcp.bf16.pop %v3036
    %v3058 = vmul.bf16 1065369472, %v3057
    %v3059 = vrcp.bf16.pop %v3037
    %v3060 = vmul.bf16 1065369472, %v3059
    %v3061 = vrcp.bf16.pop %v3038
    %v3062 = vmul.bf16 1065369472, %v3061
    %v3063 = vrcp.bf16.pop %v3039
    %v3064 = vmul.bf16 1065369472, %v3063
    %v3065 = vrcp.bf16.pop %v3040
    %v3066 = vmul.bf16 1065369472, %v3065
    %v3067 = vrcp.bf16.pop %v3041
    %v3068 = vmul.bf16 1065369472, %v3067
    %v3069 = vrcp.bf16.pop %v3042
    %v3070 = vmul.bf16 1065369472, %v3069
    %v3071 = vrcp.bf16.pop %v3043
    %v3072 = vmul.bf16 1065369472, %v3071
    %v3073 = vrcp.bf16.pop %v3044
    %v3074 = vmul.bf16 1065369472, %v3073
    %v3075 = vrcp.bf16.pop %v3045
    %v3076 = vmul.bf16 1065369472, %v3075
    %v3077 = vrcp.bf16.pop %v3046
    %v3078 = vmul.bf16 1065369472, %v3077
    %v3079 = vunpack.c.l.bf16 %v3048
    %v3080 = vunpack.c.h.bf16 %v3048
    %v3081 = vunpack.c.l.bf16 %v3050
    %v3082 = vunpack.c.h.bf16 %v3050
    %v3083 = vunpack.c.l.bf16 %v3052
    %v3084 = vunpack.c.h.bf16 %v3052
    %v3085 = vunpack.c.l.bf16 %v3054
    %v3086 = vunpack.c.h.bf16 %v3054
    %v3087 = vunpack.c.l.bf16 %v3056
    %v3088 = vunpack.c.h.bf16 %v3056
    %v3089 = vunpack.c.l.bf16 %v3058
    %v3090 = vunpack.c.h.bf16 %v3058
    %v3091 = vunpack.c.l.bf16 %v3060
    %v3092 = vunpack.c.h.bf16 %v3060
    %v3093 = vunpack.c.l.bf16 %v3062
    %v3094 = vunpack.c.h.bf16 %v3062
    %v3095 = vunpack.c.l.bf16 %v3064
    %v3096 = vunpack.c.h.bf16 %v3064
    %v3097 = vunpack.c.l.bf16 %v3066
    %v3098 = vunpack.c.h.bf16 %v3066
    %v3099 = vunpack.c.l.bf16 %v3068
    %v3100 = vunpack.c.h.bf16 %v3068
    %v3101 = vunpack.c.l.bf16 %v3070
    %v3102 = vunpack.c.h.bf16 %v3070
    %v3103 = vunpack.c.l.bf16 %v3072
    %v3104 = vunpack.c.h.bf16 %v3072
    %v3105 = vunpack.c.l.bf16 %v3074
    %v3106 = vunpack.c.h.bf16 %v3074
    %v3107 = vunpack.c.l.bf16 %v3076
    %v3108 = vunpack.c.h.bf16 %v3076
    %v3109 = vunpack.c.l.bf16 %v3078
    %v3110 = vunpack.c.h.bf16 %v3078
    %v3111 = vld [vmem:[#allocation18] sm:$0xff]
    %v3112 = vld [vmem:[#allocation18 + $0x8] sm:$0xff]
    %v3113 = vld [vmem:[#allocation18 + $0x10] sm:$0xff]
    %v3114 = vld [vmem:[#allocation18 + $0x18] sm:$0xff]
    %v3115 = vld [vmem:[#allocation18 + $0x20] sm:$0xff]
    %v3116 = vld [vmem:[#allocation18 + $0x28] sm:$0xff]
    %v3117 = vld [vmem:[#allocation18 + $0x30] sm:$0xff]
    %v3118 = vld [vmem:[#allocation18 + $0x38] sm:$0xff]
    %v3119 = vld [vmem:[#allocation18 + $0x40] sm:$0xff]
    %v3120 = vld [vmem:[#allocation18 + $0x48] sm:$0xff]
    %v3121 = vld [vmem:[#allocation18 + $0x50] sm:$0xff]
    %v3122 = vld [vmem:[#allocation18 + $0x58] sm:$0xff]
    %v3123 = vld [vmem:[#allocation18 + $0x60] sm:$0xff]
    %v3124 = vld [vmem:[#allocation18 + $0x68] sm:$0xff]
    %v3125 = vld [vmem:[#allocation18 + $0x70] sm:$0xff]
    %v3126 = vld [vmem:[#allocation18 + $0x78] sm:$0xff]
    %v3127 = vld [vmem:[%s15] sm:$0x3]
    %v3129 = vlaneseq
    %v3130 = vshrl.u32 %v3129, 7
    %v3131 = vsub.s32 0, %v3130
    %v3132 = vrot.slane %v3127, %v3131
    %v3133 = vlaneseq
    %v3134 = vshrl.u32 %v3133, 7
    %v3135 = vsub.s32 1, %v3134
    %v3136 = vrot.slane %v3127, %v3135
    %v3155 = vunpack.c.l.b16 %v3111
    %v3156 = vunpack.c.h.b16 %v3111
    %v3157 = vunpack.c.l.b16 %v3112
    %v3158 = vunpack.c.h.b16 %v3112
    %v3159 = vunpack.c.l.b16 %v3113
    %v3160 = vunpack.c.h.b16 %v3113
    %v3161 = vunpack.c.l.b16 %v3114
    %v3162 = vunpack.c.h.b16 %v3114
    %v3163 = vunpack.c.l.b16 %v3115
    %v3164 = vunpack.c.h.b16 %v3115
    %v3165 = vunpack.c.l.b16 %v3116
    %v3166 = vunpack.c.h.b16 %v3116
    %v3167 = vunpack.c.l.b16 %v3117
    %v3168 = vunpack.c.h.b16 %v3117
    %v3169 = vunpack.c.l.b16 %v3118
    %v3170 = vunpack.c.h.b16 %v3118
    %v3171 = vunpack.c.l.b16 %v3119
    %v3172 = vunpack.c.h.b16 %v3119
    %v3173 = vunpack.c.l.b16 %v3120
    %v3174 = vunpack.c.h.b16 %v3120
    %v3175 = vunpack.c.l.b16 %v3121
    %v3176 = vunpack.c.h.b16 %v3121
    %v3177 = vunpack.c.l.b16 %v3122
    %v3178 = vunpack.c.h.b16 %v3122
    %v3179 = vunpack.c.l.b16 %v3123
    %v3180 = vunpack.c.h.b16 %v3123
    %v3181 = vunpack.c.l.b16 %v3124
    %v3182 = vunpack.c.h.b16 %v3124
    %v3183 = vunpack.c.l.b16 %v3125
    %v3184 = vunpack.c.h.b16 %v3125
    %v3185 = vunpack.c.l.b16 %v3126
    %v3186 = vunpack.c.h.b16 %v3126
    %v3187 = vpack.c.b16 %v3157, %v3155
    %v3188 = vpack.c.b16 %v3158, %v3156
    %v3189 = vpack.c.b16 %v3161, %v3159
    %v3190 = vpack.c.b16 %v3162, %v3160
    %v3191 = vpack.c.b16 %v3165, %v3163
    %v3192 = vpack.c.b16 %v3166, %v3164
    %v3193 = vpack.c.b16 %v3169, %v3167
    %v3194 = vpack.c.b16 %v3170, %v3168
    %v3195 = vpack.c.b16 %v3173, %v3171
    %v3196 = vpack.c.b16 %v3174, %v3172
    %v3197 = vpack.c.b16 %v3177, %v3175
    %v3198 = vpack.c.b16 %v3178, %v3176
    %v3199 = vpack.c.b16 %v3181, %v3179
    %v3200 = vpack.c.b16 %v3182, %v3180
    %v3201 = vpack.c.b16 %v3185, %v3183
    %v3202 = vpack.c.b16 %v3186, %v3184
    %3219 = vmatprep.subr.bf16.mxu0 %v3202
    %3220 = vmatpush1.bf16.msra.mxu0 %v3201
    %3221 = vmatprep.subr.bf16.mxu0 %v3200
    %3222 = vmatpush1.bf16.msra.mxu0 %v3199
    %3223 = vmatprep.subr.bf16.mxu0 %v3198
    %3224 = vmatpush1.bf16.msra.mxu0 %v3197
    %3225 = vmatprep.subr.bf16.mxu0 %v3196
    %3226 = vmatpush1.bf16.msra.mxu0 %v3195
    %3227 = vmatprep.subr.bf16.mxu0 %v3194
    %3228 = vmatpush1.bf16.msra.mxu0 %v3193
    %3229 = vmatprep.subr.bf16.mxu0 %v3192
    %3230 = vmatpush1.bf16.msra.mxu0 %v3191
    %3231 = vmatprep.subr.bf16.mxu0 %v3190
    %3232 = vmatpush1.bf16.msra.mxu0 %v3189
    %3233 = vmatprep.subr.bf16.mxu0 %v3188
    %3234 = vmatpush1.bf16.msra.mxu0 %v3187
    %3235 = vmatprep.subr.bf16.mxu0 0
    %3236 = vmatpush2.bf16.msra.mxu0 0
    %3237 = vmatprep.subr.bf16.mxu0 0
    %3238 = vmatpush2.bf16.msra.mxu0 0
    %3239 = vmatprep.subr.bf16.mxu0 0
    %3240 = vmatpush2.bf16.msra.mxu0 0
    %3241 = vmatprep.subr.bf16.mxu0 0
    %3242 = vmatpush2.bf16.msra.mxu0 0
    %3243 = vmatprep.subr.bf16.mxu0 0
    %3244 = vmatpush2.bf16.msra.mxu0 0
    %3245 = vmatprep.subr.bf16.mxu0 0
    %3246 = vmatpush2.bf16.msra.mxu0 0
    %3247 = vmatprep.subr.bf16.mxu0 0
    %3248 = vmatpush2.bf16.msra.mxu0 0
    %3249 = vmatprep.subr.bf16.mxu0 0
    %3250 = vmatpush2.bf16.msra.mxu0 0
    %3251 = vmatprep.mubr.bf16.mxu0 0
    %3252 = vmatmul.mubr.bf16.gmra.mxu0 %v2688
    %v3253 = vpop.f32.mrf.mxu0
    %v3254 = vadd.f32 %v3132, %v3253
    %v3255 = vpop.f32.mrf.mxu0
    %v3256 = vadd.f32 %v3136, %v3255
    %v3257 = vpop.f32.mrf.mxu0
    %v3258 = vadd.f32 %v3132, %v3257
    %v3259 = vpop.f32.mrf.mxu0
    %v3260 = vadd.f32 %v3136, %v3259
    %3261 = vmatprep.mubr.bf16.mxu0 0
    %3262 = vmatmul.mubr.bf16.gmra.mxu0 %v2690
    %v3263 = vpop.f32.mrf.mxu0
    %v3264 = vadd.f32 %v3132, %v3263
    %v3265 = vpop.f32.mrf.mxu0
    %v3266 = vadd.f32 %v3136, %v3265
    %v3267 = vpop.f32.mrf.mxu0
    %v3268 = vadd.f32 %v3132, %v3267
    %v3269 = vpop.f32.mrf.mxu0
    %v3270 = vadd.f32 %v3136, %v3269
    %3271 = vmatprep.mubr.bf16.mxu0 0
    %3272 = vmatmul.mubr.bf16.gmra.mxu0 %v2692
    %v3273 = vpop.f32.mrf.mxu0
    %v3274 = vadd.f32 %v3132, %v3273
    %v3275 = vpop.f32.mrf.mxu0
    %v3276 = vadd.f32 %v3136, %v3275
    %v3277 = vpop.f32.mrf.mxu0
    %v3278 = vadd.f32 %v3132, %v3277
    %v3279 = vpop.f32.mrf.mxu0
    %v3280 = vadd.f32 %v3136, %v3279
    %3281 = vmatprep.mubr.bf16.mxu0 0
    %3282 = vmatmul.mubr.bf16.gmra.mxu0 %v2694
    %v3283 = vpop.f32.mrf.mxu0
    %v3284 = vadd.f32 %v3132, %v3283
    %v3285 = vpop.f32.mrf.mxu0
    %v3286 = vadd.f32 %v3136, %v3285
    %v3287 = vpop.f32.mrf.mxu0
    %v3288 = vadd.f32 %v3132, %v3287
    %v3289 = vpop.f32.mrf.mxu0
    %v3290 = vadd.f32 %v3136, %v3289
    %3291 = vmatprep.mubr.bf16.mxu0 0
    %3292 = vmatmul.mubr.bf16.gmra.mxu0 %v2696
    %v3293 = vpop.f32.mrf.mxu0
    %v3294 = vadd.f32 %v3132, %v3293
    %v3295 = vpop.f32.mrf.mxu0
    %v3296 = vadd.f32 %v3136, %v3295
    %v3297 = vpop.f32.mrf.mxu0
    %v3298 = vadd.f32 %v3132, %v3297
    %v3299 = vpop.f32.mrf.mxu0
    %v3300 = vadd.f32 %v3136, %v3299
    %3301 = vmatprep.mubr.bf16.mxu0 0
    %3302 = vmatmul.mubr.bf16.gmra.mxu0 %v2698
    %v3303 = vpop.f32.mrf.mxu0
    %v3304 = vadd.f32 %v3132, %v3303
    %v3305 = vpop.f32.mrf.mxu0
    %v3306 = vadd.f32 %v3136, %v3305
    %v3307 = vpop.f32.mrf.mxu0
    %v3308 = vadd.f32 %v3132, %v3307
    %v3309 = vpop.f32.mrf.mxu0
    %v3310 = vadd.f32 %v3136, %v3309
    %3311 = vmatprep.mubr.bf16.mxu0 0
    %3312 = vmatmul.mubr.bf16.gmra.mxu0 %v2700
    %v3313 = vpop.f32.mrf.mxu0
    %v3314 = vadd.f32 %v3132, %v3313
    %v3315 = vpop.f32.mrf.mxu0
    %v3316 = vadd.f32 %v3136, %v3315
    %v3317 = vpop.f32.mrf.mxu0
    %v3318 = vadd.f32 %v3132, %v3317
    %v3319 = vpop.f32.mrf.mxu0
    %v3320 = vadd.f32 %v3136, %v3319
    %3321 = vmatprep.mubr.bf16.mxu0 0
    %3322 = vmatmul.mubr.bf16.gmra.mxu0 %v2702
    %v3323 = vpop.f32.mrf.mxu0
    %v3324 = vadd.f32 %v3132, %v3323
    %v3325 = vpop.f32.mrf.mxu0
    %v3326 = vadd.f32 %v3136, %v3325
    %v3327 = vpop.f32.mrf.mxu0
    %v3328 = vadd.f32 %v3132, %v3327
    %v3329 = vpop.f32.mrf.mxu0
    %v3330 = vadd.f32 %v3136, %v3329
    %3331 = vmatprep.mubr.bf16.mxu0 0
    %3332 = vmatmul.mubr.bf16.gmra.mxu0 %v2704
    %v3333 = vpop.f32.mrf.mxu0
    %v3334 = vadd.f32 %v3132, %v3333
    %v3335 = vpop.f32.mrf.mxu0
    %v3336 = vadd.f32 %v3136, %v3335
    %v3337 = vpop.f32.mrf.mxu0
    %v3338 = vadd.f32 %v3132, %v3337
    %v3339 = vpop.f32.mrf.mxu0
    %v3340 = vadd.f32 %v3136, %v3339
    %3341 = vmatprep.mubr.bf16.mxu0 0
    %3342 = vmatmul.mubr.bf16.gmra.mxu0 %v2706
    %v3343 = vpop.f32.mrf.mxu0
    %v3344 = vadd.f32 %v3132, %v3343
    %v3345 = vpop.f32.mrf.mxu0
    %v3346 = vadd.f32 %v3136, %v3345
    %v3347 = vpop.f32.mrf.mxu0
    %v3348 = vadd.f32 %v3132, %v3347
    %v3349 = vpop.f32.mrf.mxu0
    %v3350 = vadd.f32 %v3136, %v3349
    %3351 = vmatprep.mubr.bf16.mxu0 0
    %3352 = vmatmul.mubr.bf16.gmra.mxu0 %v2708
    %v3353 = vpop.f32.mrf.mxu0
    %v3354 = vadd.f32 %v3132, %v3353
    %v3355 = vpop.f32.mrf.mxu0
    %v3356 = vadd.f32 %v3136, %v3355
    %v3357 = vpop.f32.mrf.mxu0
    %v3358 = vadd.f32 %v3132, %v3357
    %v3359 = vpop.f32.mrf.mxu0
    %v3360 = vadd.f32 %v3136, %v3359
    %3361 = vmatprep.mubr.bf16.mxu0 0
    %3362 = vmatmul.mubr.bf16.gmra.mxu0 %v2710
    %v3363 = vpop.f32.mrf.mxu0
    %v3364 = vadd.f32 %v3132, %v3363
    %v3365 = vpop.f32.mrf.mxu0
    %v3366 = vadd.f32 %v3136, %v3365
    %v3367 = vpop.f32.mrf.mxu0
    %v3368 = vadd.f32 %v3132, %v3367
    %v3369 = vpop.f32.mrf.mxu0
    %v3370 = vadd.f32 %v3136, %v3369
    %3371 = vmatprep.mubr.bf16.mxu0 0
    %3372 = vmatmul.mubr.bf16.gmra.mxu0 %v2712
    %v3373 = vpop.f32.mrf.mxu0
    %v3374 = vadd.f32 %v3132, %v3373
    %v3375 = vpop.f32.mrf.mxu0
    %v3376 = vadd.f32 %v3136, %v3375
    %v3377 = vpop.f32.mrf.mxu0
    %v3378 = vadd.f32 %v3132, %v3377
    %v3379 = vpop.f32.mrf.mxu0
    %v3380 = vadd.f32 %v3136, %v3379
    %3381 = vmatprep.mubr.bf16.mxu0 0
    %3382 = vmatmul.mubr.bf16.gmra.mxu0 %v2714
    %v3383 = vpop.f32.mrf.mxu0
    %v3384 = vadd.f32 %v3132, %v3383
    %v3385 = vpop.f32.mrf.mxu0
    %v3386 = vadd.f32 %v3136, %v3385
    %v3387 = vpop.f32.mrf.mxu0
    %v3388 = vadd.f32 %v3132, %v3387
    %v3389 = vpop.f32.mrf.mxu0
    %v3390 = vadd.f32 %v3136, %v3389
    %3391 = vmatprep.mubr.bf16.mxu0 0
    %3392 = vmatmul.mubr.bf16.gmra.mxu0 %v2716
    %v3393 = vpop.f32.mrf.mxu0
    %v3394 = vadd.f32 %v3132, %v3393
    %v3395 = vpop.f32.mrf.mxu0
    %v3396 = vadd.f32 %v3136, %v3395
    %v3397 = vpop.f32.mrf.mxu0
    %v3398 = vadd.f32 %v3132, %v3397
    %v3399 = vpop.f32.mrf.mxu0
    %v3400 = vadd.f32 %v3136, %v3399
    %3401 = vmatprep.mubr.bf16.mxu0 0
    %3402 = vmatmul.mubr.bf16.gmra.mxu0 %v2718
    %v3403 = vpop.f32.mrf.mxu0
    %v3404 = vadd.f32 %v3132, %v3403
    %v3405 = vpop.f32.mrf.mxu0
    %v3406 = vadd.f32 %v3136, %v3405
    %v3407 = vpop.f32.mrf.mxu0
    %v3408 = vadd.f32 %v3132, %v3407
    %v3409 = vpop.f32.mrf.mxu0
    %v3410 = vadd.f32 %v3136, %v3409
    %3411 = vdwg.mxu0
    %v3412 = vpack.c.bf16 %v3258, %v3254
    %v3413 = vpack.c.bf16 %v3260, %v3256
    %v3414 = vpack.c.bf16 %v3268, %v3264
    %v3415 = vpack.c.bf16 %v3270, %v3266
    %v3416 = vpack.c.bf16 %v3278, %v3274
    %v3417 = vpack.c.bf16 %v3280, %v3276
    %v3418 = vpack.c.bf16 %v3288, %v3284
    %v3419 = vpack.c.bf16 %v3290, %v3286
    %v3420 = vpack.c.bf16 %v3298, %v3294
    %v3421 = vpack.c.bf16 %v3300, %v3296
    %v3422 = vpack.c.bf16 %v3308, %v3304
    %v3423 = vpack.c.bf16 %v3310, %v3306
    %v3424 = vpack.c.bf16 %v3318, %v3314
    %v3425 = vpack.c.bf16 %v3320, %v3316
    %v3426 = vpack.c.bf16 %v3328, %v3324
    %v3427 = vpack.c.bf16 %v3330, %v3326
    %v3428 = vpack.c.bf16 %v3338, %v3334
    %v3429 = vpack.c.bf16 %v3340, %v3336
    %v3430 = vpack.c.bf16 %v3348, %v3344
    %v3431 = vpack.c.bf16 %v3350, %v3346
    %v3432 = vpack.c.bf16 %v3358, %v3354
    %v3433 = vpack.c.bf16 %v3360, %v3356
    %v3434 = vpack.c.bf16 %v3368, %v3364
    %v3435 = vpack.c.bf16 %v3370, %v3366
    %v3436 = vpack.c.bf16 %v3378, %v3374
    %v3437 = vpack.c.bf16 %v3380, %v3376
    %v3438 = vpack.c.bf16 %v3388, %v3384
    %v3439 = vpack.c.bf16 %v3390, %v3386
    %v3440 = vpack.c.bf16 %v3398, %v3394
    %v3441 = vpack.c.bf16 %v3400, %v3396
    %v3442 = vpack.c.bf16 %v3408, %v3404
    %v3443 = vpack.c.bf16 %v3410, %v3406
    %v3444 = vxor.u32 %v3412, 2147516416
    %v3445 = vxor.u32 %v3413, 2147516416
    %v3446 = vxor.u32 %v3414, 2147516416
    %v3447 = vxor.u32 %v3415, 2147516416
    %v3448 = vxor.u32 %v3416, 2147516416
    %v3449 = vxor.u32 %v3417, 2147516416
    %v3450 = vxor.u32 %v3418, 2147516416
    %v3451 = vxor.u32 %v3419, 2147516416
    %v3452 = vxor.u32 %v3420, 2147516416
    %v3453 = vxor.u32 %v3421, 2147516416
    %v3454 = vxor.u32 %v3422, 2147516416
    %v3455 = vxor.u32 %v3423, 2147516416
    %v3456 = vxor.u32 %v3424, 2147516416
    %v3457 = vxor.u32 %v3425, 2147516416
    %v3458 = vxor.u32 %v3426, 2147516416
    %v3459 = vxor.u32 %v3427, 2147516416
    %v3460 = vxor.u32 %v3428, 2147516416
    %v3461 = vxor.u32 %v3429, 2147516416
    %v3462 = vxor.u32 %v3430, 2147516416
    %v3463 = vxor.u32 %v3431, 2147516416
    %v3464 = vxor.u32 %v3432, 2147516416
    %v3465 = vxor.u32 %v3433, 2147516416
    %v3466 = vxor.u32 %v3434, 2147516416
    %v3467 = vxor.u32 %v3435, 2147516416
    %v3468 = vxor.u32 %v3436, 2147516416
    %v3469 = vxor.u32 %v3437, 2147516416
    %v3470 = vxor.u32 %v3438, 2147516416
    %v3471 = vxor.u32 %v3439, 2147516416
    %v3472 = vxor.u32 %v3440, 2147516416
    %v3473 = vxor.u32 %v3441, 2147516416
    %v3474 = vxor.u32 %v3442, 2147516416
    %v3475 = vxor.u32 %v3443, 2147516416
    %v3477 = vmul.bf16 %v3444, 1069105081
    %v3478 = vpow.bf16.pop %v3477
    %v3480 = vmul.bf16 %v3445, 1069105081
    %v3481 = vpow.bf16.pop %v3480
    %v3483 = vmul.bf16 %v3446, 1069105081
    %v3484 = vpow.bf16.pop %v3483
    %v3486 = vmul.bf16 %v3447, 1069105081
    %v3487 = vpow.bf16.pop %v3486
    %v3489 = vmul.bf16 %v3448, 1069105081
    %v3490 = vpow.bf16.pop %v3489
    %v3492 = vmul.bf16 %v3449, 1069105081
    %v3493 = vpow.bf16.pop %v3492
    %v3495 = vmul.bf16 %v3450, 1069105081
    %v3496 = vpow.bf16.pop %v3495
    %v3498 = vmul.bf16 %v3451, 1069105081
    %v3499 = vpow.bf16.pop %v3498
    %v3501 = vmul.bf16 %v3452, 1069105081
    %v3502 = vpow.bf16.pop %v3501
    %v3504 = vmul.bf16 %v3453, 1069105081
    %v3505 = vpow.bf16.pop %v3504
    %v3507 = vmul.bf16 %v3454, 1069105081
    %v3508 = vpow.bf16.pop %v3507
    %v3510 = vmul.bf16 %v3455, 1069105081
    %v3511 = vpow.bf16.pop %v3510
    %v3513 = vmul.bf16 %v3456, 1069105081
    %v3514 = vpow.bf16.pop %v3513
    %v3516 = vmul.bf16 %v3457, 1069105081
    %v3517 = vpow.bf16.pop %v3516
    %v3519 = vmul.bf16 %v3458, 1069105081
    %v3520 = vpow.bf16.pop %v3519
    %v3522 = vmul.bf16 %v3459, 1069105081
    %v3523 = vpow.bf16.pop %v3522
    %v3525 = vmul.bf16 %v3460, 1069105081
    %v3526 = vpow.bf16.pop %v3525
    %v3528 = vmul.bf16 %v3461, 1069105081
    %v3529 = vpow.bf16.pop %v3528
    %v3531 = vmul.bf16 %v3462, 1069105081
    %v3532 = vpow.bf16.pop %v3531
    %v3534 = vmul.bf16 %v3463, 1069105081
    %v3535 = vpow.bf16.pop %v3534
    %v3537 = vmul.bf16 %v3464, 1069105081
    %v3538 = vpow.bf16.pop %v3537
    %v3540 = vmul.bf16 %v3465, 1069105081
    %v3541 = vpow.bf16.pop %v3540
    %v3543 = vmul.bf16 %v3466, 1069105081
    %v3544 = vpow.bf16.pop %v3543
    %v3546 = vmul.bf16 %v3467, 1069105081
    %v3547 = vpow.bf16.pop %v3546
    %v3549 = vmul.bf16 %v3468, 1069105081
    %v3550 = vpow.bf16.pop %v3549
    %v3552 = vmul.bf16 %v3469, 1069105081
    %v3553 = vpow.bf16.pop %v3552
    %v3555 = vmul.bf16 %v3470, 1069105081
    %v3556 = vpow.bf16.pop %v3555
    %v3558 = vmul.bf16 %v3471, 1069105081
    %v3559 = vpow.bf16.pop %v3558
    %v3561 = vmul.bf16 %v3472, 1069105081
    %v3562 = vpow.bf16.pop %v3561
    %v3564 = vmul.bf16 %v3473, 1069105081
    %v3565 = vpow.bf16.pop %v3564
    %v3567 = vmul.bf16 %v3474, 1069105081
    %v3568 = vpow.bf16.pop %v3567
    %v3570 = vmul.bf16 %v3475, 1069105081
    %v3571 = vpow.bf16.pop %v3570
    %v3572 = vadd.bf16 %v3478, 1065369472
    %v3573 = vadd.bf16 %v3481, 1065369472
    %v3574 = vadd.bf16 %v3484, 1065369472
    %v3575 = vadd.bf16 %v3487, 1065369472
    %v3576 = vadd.bf16 %v3490, 1065369472
    %v3577 = vadd.bf16 %v3493, 1065369472
    %v3578 = vadd.bf16 %v3496, 1065369472
    %v3579 = vadd.bf16 %v3499, 1065369472
    %v3580 = vadd.bf16 %v3502, 1065369472
    %v3581 = vadd.bf16 %v3505, 1065369472
    %v3582 = vadd.bf16 %v3508, 1065369472
    %v3583 = vadd.bf16 %v3511, 1065369472
    %v3584 = vadd.bf16 %v3514, 1065369472
    %v3585 = vadd.bf16 %v3517, 1065369472
    %v3586 = vadd.bf16 %v3520, 1065369472
    %v3587 = vadd.bf16 %v3523, 1065369472
    %v3588 = vadd.bf16 %v3526, 1065369472
    %v3589 = vadd.bf16 %v3529, 1065369472
    %v3590 = vadd.bf16 %v3532, 1065369472
    %v3591 = vadd.bf16 %v3535, 1065369472
    %v3592 = vadd.bf16 %v3538, 1065369472
    %v3593 = vadd.bf16 %v3541, 1065369472
    %v3594 = vadd.bf16 %v3544, 1065369472
    %v3595 = vadd.bf16 %v3547, 1065369472
    %v3596 = vadd.bf16 %v3550, 1065369472
    %v3597 = vadd.bf16 %v3553, 1065369472
    %v3598 = vadd.bf16 %v3556, 1065369472
    %v3599 = vadd.bf16 %v3559, 1065369472
    %v3600 = vadd.bf16 %v3562, 1065369472
    %v3601 = vadd.bf16 %v3565, 1065369472
    %v3602 = vadd.bf16 %v3568, 1065369472
    %v3603 = vadd.bf16 %v3571, 1065369472
    %v3604 = vrcp.bf16.pop %v3572
    %v3605 = vmul.bf16 1065369472, %v3604
    %v3606 = vrcp.bf16.pop %v3573
    %v3607 = vmul.bf16 1065369472, %v3606
    %v3608 = vrcp.bf16.pop %v3574
    %v3609 = vmul.bf16 1065369472, %v3608
    %v3610 = vrcp.bf16.pop %v3575
    %v3611 = vmul.bf16 1065369472, %v3610
    %v3612 = vrcp.bf16.pop %v3576
    %v3613 = vmul.bf16 1065369472, %v3612
    %v3614 = vrcp.bf16.pop %v3577
    %v3615 = vmul.bf16 1065369472, %v3614
    %v3616 = vrcp.bf16.pop %v3578
    %v3617 = vmul.bf16 1065369472, %v3616
    %v3618 = vrcp.bf16.pop %v3579
    %v3619 = vmul.bf16 1065369472, %v3618
    %v3620 = vrcp.bf16.pop %v3580
    %v3621 = vmul.bf16 1065369472, %v3620
    %v3622 = vrcp.bf16.pop %v3581
    %v3623 = vmul.bf16 1065369472, %v3622
    %v3624 = vrcp.bf16.pop %v3582
    %v3625 = vmul.bf16 1065369472, %v3624
    %v3626 = vrcp.bf16.pop %v3583
    %v3627 = vmul.bf16 1065369472, %v3626
    %v3628 = vrcp.bf16.pop %v3584
    %v3629 = vmul.bf16 1065369472, %v3628
    %v3630 = vrcp.bf16.pop %v3585
    %v3631 = vmul.bf16 1065369472, %v3630
    %v3632 = vrcp.bf16.pop %v3586
    %v3633 = vmul.bf16 1065369472, %v3632
    %v3634 = vrcp.bf16.pop %v3587
    %v3635 = vmul.bf16 1065369472, %v3634
    %v3636 = vrcp.bf16.pop %v3588
    %v3637 = vmul.bf16 1065369472, %v3636
    %v3638 = vrcp.bf16.pop %v3589
    %v3639 = vmul.bf16 1065369472, %v3638
    %v3640 = vrcp.bf16.pop %v3590
    %v3641 = vmul.bf16 1065369472, %v3640
    %v3642 = vrcp.bf16.pop %v3591
    %v3643 = vmul.bf16 1065369472, %v3642
    %v3644 = vrcp.bf16.pop %v3592
    %v3645 = vmul.bf16 1065369472, %v3644
    %v3646 = vrcp.bf16.pop %v3593
    %v3647 = vmul.bf16 1065369472, %v3646
    %v3648 = vrcp.bf16.pop %v3594
    %v3649 = vmul.bf16 1065369472, %v3648
    %v3650 = vrcp.bf16.pop %v3595
    %v3651 = vmul.bf16 1065369472, %v3650
    %v3652 = vrcp.bf16.pop %v3596
    %v3653 = vmul.bf16 1065369472, %v3652
    %v3654 = vrcp.bf16.pop %v3597
    %v3655 = vmul.bf16 1065369472, %v3654
    %v3656 = vrcp.bf16.pop %v3598
    %v3657 = vmul.bf16 1065369472, %v3656
    %v3658 = vrcp.bf16.pop %v3599
    %v3659 = vmul.bf16 1065369472, %v3658
    %v3660 = vrcp.bf16.pop %v3600
    %v3661 = vmul.bf16 1065369472, %v3660
    %v3662 = vrcp.bf16.pop %v3601
    %v3663 = vmul.bf16 1065369472, %v3662
    %v3664 = vrcp.bf16.pop %v3602
    %v3665 = vmul.bf16 1065369472, %v3664
    %v3666 = vrcp.bf16.pop %v3603
    %v3667 = vmul.bf16 1065369472, %v3666
    %v3668 = vunpack.c.l.bf16 %v3605
    %v3669 = vunpack.c.l.bf16 %v3607
    %v3670 = vunpack.c.h.bf16 %v3605
    %v3671 = vunpack.c.h.bf16 %v3607
    %v3672 = vunpack.c.l.bf16 %v3609
    %v3673 = vunpack.c.l.bf16 %v3611
    %v3674 = vunpack.c.h.bf16 %v3609
    %v3675 = vunpack.c.h.bf16 %v3611
    %v3676 = vunpack.c.l.bf16 %v3613
    %v3677 = vunpack.c.l.bf16 %v3615
    %v3678 = vunpack.c.h.bf16 %v3613
    %v3679 = vunpack.c.h.bf16 %v3615
    %v3680 = vunpack.c.l.bf16 %v3617
    %v3681 = vunpack.c.l.bf16 %v3619
    %v3682 = vunpack.c.h.bf16 %v3617
    %v3683 = vunpack.c.h.bf16 %v3619
    %v3684 = vunpack.c.l.bf16 %v3621
    %v3685 = vunpack.c.l.bf16 %v3623
    %v3686 = vunpack.c.h.bf16 %v3621
    %v3687 = vunpack.c.h.bf16 %v3623
    %v3688 = vunpack.c.l.bf16 %v3625
    %v3689 = vunpack.c.l.bf16 %v3627
    %v3690 = vunpack.c.h.bf16 %v3625
    %v3691 = vunpack.c.h.bf16 %v3627
    %v3692 = vunpack.c.l.bf16 %v3629
    %v3693 = vunpack.c.l.bf16 %v3631
    %v3694 = vunpack.c.h.bf16 %v3629
    %v3695 = vunpack.c.h.bf16 %v3631
    %v3696 = vunpack.c.l.bf16 %v3633
    %v3697 = vunpack.c.l.bf16 %v3635
    %v3698 = vunpack.c.h.bf16 %v3633
    %v3699 = vunpack.c.h.bf16 %v3635
    %v3700 = vunpack.c.l.bf16 %v3637
    %v3701 = vunpack.c.l.bf16 %v3639
    %v3702 = vunpack.c.h.bf16 %v3637
    %v3703 = vunpack.c.h.bf16 %v3639
    %v3704 = vunpack.c.l.bf16 %v3641
    %v3705 = vunpack.c.l.bf16 %v3643
    %v3706 = vunpack.c.h.bf16 %v3641
    %v3707 = vunpack.c.h.bf16 %v3643
    %v3708 = vunpack.c.l.bf16 %v3645
    %v3709 = vunpack.c.l.bf16 %v3647
    %v3710 = vunpack.c.h.bf16 %v3645
    %v3711 = vunpack.c.h.bf16 %v3647
    %v3712 = vunpack.c.l.bf16 %v3649
    %v3713 = vunpack.c.l.bf16 %v3651
    %v3714 = vunpack.c.h.bf16 %v3649
    %v3715 = vunpack.c.h.bf16 %v3651
    %v3716 = vunpack.c.l.bf16 %v3653
    %v3717 = vunpack.c.l.bf16 %v3655
    %v3718 = vunpack.c.h.bf16 %v3653
    %v3719 = vunpack.c.h.bf16 %v3655
    %v3720 = vunpack.c.l.bf16 %v3657
    %v3721 = vunpack.c.l.bf16 %v3659
    %v3722 = vunpack.c.h.bf16 %v3657
    %v3723 = vunpack.c.h.bf16 %v3659
    %v3724 = vunpack.c.l.bf16 %v3661
    %v3725 = vunpack.c.l.bf16 %v3663
    %v3726 = vunpack.c.h.bf16 %v3661
    %v3727 = vunpack.c.h.bf16 %v3663
    %v3728 = vunpack.c.l.bf16 %v3665
    %v3729 = vunpack.c.l.bf16 %v3667
    %v3730 = vunpack.c.h.bf16 %v3665
    %v3731 = vunpack.c.h.bf16 %v3667
    %3732 = vst [vmem:[%s16] sm:$0xff] %v1923
    %3733 = vst [vmem:[%s16 + $0x8] sm:$0xff] %v1925
    %3734 = vst [vmem:[%s16 + $0x10] sm:$0xff] %v1927
    %3735 = vst [vmem:[%s16 + $0x18] sm:$0xff] %v1929
    %3736 = vst [vmem:[%s16 + $0x20] sm:$0xff] %v1931
    %3737 = vst [vmem:[%s16 + $0x28] sm:$0xff] %v1933
    %3738 = vst [vmem:[%s16 + $0x30] sm:$0xff] %v1935
    %3739 = vst [vmem:[%s16 + $0x38] sm:$0xff] %v1937
    %3740 = vst [vmem:[%s16 + $0x40] sm:$0xff] %v1939
    %3741 = vst [vmem:[%s16 + $0x48] sm:$0xff] %v1941
    %3742 = vst [vmem:[%s16 + $0x50] sm:$0xff] %v1943
    %3743 = vst [vmem:[%s16 + $0x58] sm:$0xff] %v1945
    %3744 = vst [vmem:[%s16 + $0x60] sm:$0xff] %v1947
    %3745 = vst [vmem:[%s16 + $0x68] sm:$0xff] %v1949
    %3746 = vst [vmem:[%s16 + $0x70] sm:$0xff] %v1951
    %3747 = vst [vmem:[%s16 + $0x78] sm:$0xff] %v1953
    %3748 = vst [vmem:[%s16 + $0x80] sm:$0xff] %v1955
    %3749 = vst [vmem:[%s16 + $0x88] sm:$0xff] %v1957
    %3750 = vst [vmem:[%s16 + $0x90] sm:$0xff] %v1959
    %3751 = vst [vmem:[%s16 + $0x98] sm:$0xff] %v1961
    %3752 = vst [vmem:[%s16 + $0xa0] sm:$0xff] %v1963
    %3753 = vst [vmem:[%s16 + $0xa8] sm:$0xff] %v1965
    %3754 = vst [vmem:[%s16 + $0xb0] sm:$0xff] %v1967
    %3755 = vst [vmem:[%s16 + $0xb8] sm:$0xff] %v1969
    %3756 = vst [vmem:[%s16 + $0xc0] sm:$0xff] %v1971
    %3757 = vst [vmem:[%s16 + $0xc8] sm:$0xff] %v1973
    %3758 = vst [vmem:[%s16 + $0xd0] sm:$0xff] %v1975
    %3759 = vst [vmem:[%s16 + $0xd8] sm:$0xff] %v1977
    %3760 = vst [vmem:[%s16 + $0xe0] sm:$0xff] %v1979
    %3761 = vst [vmem:[%s16 + $0xe8] sm:$0xff] %v1981
    %3762 = vst [vmem:[%s16 + $0xf0] sm:$0xff] %v1983
    %3763 = vst [vmem:[%s16 + $0xf8] sm:$0xff] %v1985
    %v3764 = vlaneseq
    %v3765 = vshrl.u32 %v3764, 7
    %v3766 = vadd.s32 %v3765, 8
    %v3767 = vadd.s32 %v3765, 16
    %v3768 = vadd.s32 %v3765, 24
    %v3769 = vadd.s32 %v3765, 32
    %v3770 = vadd.s32 %v3765, 40
    %v3771 = vadd.s32 %v3765, 48
    %v3772 = vadd.s32 %v3765, 56
    %v3773 = vadd.s32 %v3765, 64
    %v3774 = vadd.s32 %v3765, 72
    %v3775 = vadd.s32 %v3765, 80
    %v3776 = vadd.s32 %v3765, 88
    %v3777 = vadd.s32 %v3765, 96
    %v3778 = vadd.s32 %v3765, 104
    %v3779 = vadd.s32 %v3765, 112
    %v3780 = vadd.s32 %v3765, 120
    %v3781 = vadd.s32 %v3765, 128
    %v3782 = vadd.s32 %v3765, 136
    %v3783 = vadd.s32 %v3765, 144
    %v3784 = vadd.s32 %v3765, 152
    %v3785 = vadd.s32 %v3765, 160
    %v3786 = vadd.s32 %v3765, 168
    %v3787 = vadd.s32 %v3765, 176
    %v3788 = vadd.s32 %v3765, 184
    %v3789 = vadd.s32 %v3765, 192
    %v3790 = vadd.s32 %v3765, 200
    %v3791 = vadd.s32 %v3765, 208
    %v3792 = vadd.s32 %v3765, 216
    %v3793 = vadd.s32 %v3765, 224
    %v3794 = vadd.s32 %v3765, 232
    %v3795 = vadd.s32 %v3765, 240
    %v3796 = vadd.s32 %v3765, 248
    %v3797 = vstv %s164
    %v3798 = vadd.s32 %v3765, %v3797
    %v3799 = vadd.s32 %v3766, %v3797
    %v3800 = vadd.s32 %v3767, %v3797
    %v3801 = vadd.s32 %v3768, %v3797
    %v3802 = vadd.s32 %v3769, %v3797
    %v3803 = vadd.s32 %v3770, %v3797
    %v3804 = vadd.s32 %v3771, %v3797
    %v3805 = vadd.s32 %v3772, %v3797
    %v3806 = vadd.s32 %v3773, %v3797
    %v3807 = vadd.s32 %v3774, %v3797
    %v3808 = vadd.s32 %v3775, %v3797
    %v3809 = vadd.s32 %v3776, %v3797
    %v3810 = vadd.s32 %v3777, %v3797
    %v3811 = vadd.s32 %v3778, %v3797
    %v3812 = vadd.s32 %v3779, %v3797
    %v3813 = vadd.s32 %v3780, %v3797
    %v3814 = vadd.s32 %v3781, %v3797
    %v3815 = vadd.s32 %v3782, %v3797
    %v3816 = vadd.s32 %v3783, %v3797
    %v3817 = vadd.s32 %v3784, %v3797
    %v3818 = vadd.s32 %v3785, %v3797
    %v3819 = vadd.s32 %v3786, %v3797
    %v3820 = vadd.s32 %v3787, %v3797
    %v3821 = vadd.s32 %v3788, %v3797
    %v3822 = vadd.s32 %v3789, %v3797
    %v3823 = vadd.s32 %v3790, %v3797
    %v3824 = vadd.s32 %v3791, %v3797
    %v3825 = vadd.s32 %v3792, %v3797
    %v3826 = vadd.s32 %v3793, %v3797
    %v3827 = vadd.s32 %v3794, %v3797
    %v3828 = vadd.s32 %v3795, %v3797
    %v3829 = vadd.s32 %v3796, %v3797
    %vm3830 = vcmp.lt.s32.totalorder %v3798, 200
    %vm3831 = vcmp.lt.s32.totalorder %v3799, 200
    %vm3832 = vcmp.lt.s32.totalorder %v3800, 200
    %vm3833 = vcmp.lt.s32.totalorder %v3801, 200
    %vm3834 = vcmp.lt.s32.totalorder %v3802, 200
    %vm3835 = vcmp.lt.s32.totalorder %v3803, 200
    %vm3836 = vcmp.lt.s32.totalorder %v3804, 200
    %vm3837 = vcmp.lt.s32.totalorder %v3805, 200
    %vm3838 = vcmp.lt.s32.totalorder %v3806, 200
    %vm3839 = vcmp.lt.s32.totalorder %v3807, 200
    %vm3840 = vcmp.lt.s32.totalorder %v3808, 200
    %vm3841 = vcmp.lt.s32.totalorder %v3809, 200
    %vm3842 = vcmp.lt.s32.totalorder %v3810, 200
    %vm3843 = vcmp.lt.s32.totalorder %v3811, 200
    %vm3844 = vcmp.lt.s32.totalorder %v3812, 200
    %vm3845 = vcmp.lt.s32.totalorder %v3813, 200
    %vm3846 = vcmp.lt.s32.totalorder %v3814, 200
    %vm3847 = vcmp.lt.s32.totalorder %v3815, 200
    %vm3848 = vcmp.lt.s32.totalorder %v3816, 200
    %vm3849 = vcmp.lt.s32.totalorder %v3817, 200
    %vm3850 = vcmp.lt.s32.totalorder %v3818, 200
    %vm3851 = vcmp.lt.s32.totalorder %v3819, 200
    %vm3852 = vcmp.lt.s32.totalorder %v3820, 200
    %vm3853 = vcmp.lt.s32.totalorder %v3821, 200
    %vm3854 = vcmp.lt.s32.totalorder %v3822, 200
    %vm3855 = vcmp.lt.s32.totalorder %v3823, 200
    %vm3856 = vcmp.lt.s32.totalorder %v3824, 200
    %vm3857 = vcmp.lt.s32.totalorder %v3825, 200
    %vm3858 = vcmp.lt.s32.totalorder %v3826, 200
    %vm3859 = vcmp.lt.s32.totalorder %v3827, 200
    %vm3860 = vcmp.lt.s32.totalorder %v3828, 200
    %vm3861 = vcmp.lt.s32.totalorder %v3829, 200
    %v3862 = vsel %vm3830, 1, 0
    %v3863 = vsel %vm3831, 1, 0
    %v3864 = vsel %vm3832, 1, 0
    %v3865 = vsel %vm3833, 1, 0
    %v3866 = vsel %vm3834, 1, 0
    %v3867 = vsel %vm3835, 1, 0
    %v3868 = vsel %vm3836, 1, 0
    %v3869 = vsel %vm3837, 1, 0
    %v3870 = vsel %vm3838, 1, 0
    %v3871 = vsel %vm3839, 1, 0
    %v3872 = vsel %vm3840, 1, 0
    %v3873 = vsel %vm3841, 1, 0
    %v3874 = vsel %vm3842, 1, 0
    %v3875 = vsel %vm3843, 1, 0
    %v3876 = vsel %vm3844, 1, 0
    %v3877 = vsel %vm3845, 1, 0
    %v3878 = vsel %vm3846, 1, 0
    %v3879 = vsel %vm3847, 1, 0
    %v3880 = vsel %vm3848, 1, 0
    %v3881 = vsel %vm3849, 1, 0
    %v3882 = vsel %vm3850, 1, 0
    %v3883 = vsel %vm3851, 1, 0
    %v3884 = vsel %vm3852, 1, 0
    %v3885 = vsel %vm3853, 1, 0
    %v3886 = vsel %vm3854, 1, 0
    %v3887 = vsel %vm3855, 1, 0
    %v3888 = vsel %vm3856, 1, 0
    %v3889 = vsel %vm3857, 1, 0
    %v3890 = vsel %vm3858, 1, 0
    %v3891 = vsel %vm3859, 1, 0
    %v3892 = vsel %vm3860, 1, 0
    %v3893 = vsel %vm3861, 1, 0
    %v3894 = vcvt.s32.f32 %v3862
    %v3895 = vcvt.s32.f32 %v3863
    %v3896 = vcvt.s32.f32 %v3864
    %v3897 = vcvt.s32.f32 %v3865
    %v3898 = vcvt.s32.f32 %v3866
    %v3899 = vcvt.s32.f32 %v3867
    %v3900 = vcvt.s32.f32 %v3868
    %v3901 = vcvt.s32.f32 %v3869
    %v3902 = vcvt.s32.f32 %v3870
    %v3903 = vcvt.s32.f32 %v3871
    %v3904 = vcvt.s32.f32 %v3872
    %v3905 = vcvt.s32.f32 %v3873
    %v3906 = vcvt.s32.f32 %v3874
    %v3907 = vcvt.s32.f32 %v3875
    %v3908 = vcvt.s32.f32 %v3876
    %v3909 = vcvt.s32.f32 %v3877
    %v3910 = vcvt.s32.f32 %v3878
    %v3911 = vcvt.s32.f32 %v3879
    %v3912 = vcvt.s32.f32 %v3880
    %v3913 = vcvt.s32.f32 %v3881
    %v3914 = vcvt.s32.f32 %v3882
    %v3915 = vcvt.s32.f32 %v3883
    %v3916 = vcvt.s32.f32 %v3884
    %v3917 = vcvt.s32.f32 %v3885
    %v3918 = vcvt.s32.f32 %v3886
    %v3919 = vcvt.s32.f32 %v3887
    %v3920 = vcvt.s32.f32 %v3888
    %v3921 = vcvt.s32.f32 %v3889
    %v3922 = vcvt.s32.f32 %v3890
    %v3923 = vcvt.s32.f32 %v3891
    %v3924 = vcvt.s32.f32 %v3892
    %v3925 = vcvt.s32.f32 %v3893
    %v3926 = vsub.f32 %v217, %v3079
    %v3927 = vsub.f32 %v218, %v3080
    %v3928 = vsub.f32 %v219, %v3081
    %v3929 = vsub.f32 %v220, %v3082
    %v3930 = vsub.f32 %v221, %v3083
    %v3931 = vsub.f32 %v222, %v3084
    %v3932 = vsub.f32 %v223, %v3085
    %v3933 = vsub.f32 %v224, %v3086
    %v3934 = vsub.f32 %v225, %v3087
    %v3935 = vsub.f32 %v226, %v3088
    %v3936 = vsub.f32 %v227, %v3089
    %v3937 = vsub.f32 %v228, %v3090
    %v3938 = vsub.f32 %v229, %v3091
    %v3939 = vsub.f32 %v230, %v3092
    %v3940 = vsub.f32 %v231, %v3093
    %v3941 = vsub.f32 %v232, %v3094
    %v3942 = vsub.f32 %v233, %v3095
    %v3943 = vsub.f32 %v234, %v3096
    %v3944 = vsub.f32 %v235, %v3097
    %v3945 = vsub.f32 %v236, %v3098
    %v3946 = vsub.f32 %v237, %v3099
    %v3947 = vsub.f32 %v238, %v3100
    %v3948 = vsub.f32 %v239, %v3101
    %v3949 = vsub.f32 %v240, %v3102
    %v3950 = vsub.f32 %v241, %v3103
    %v3951 = vsub.f32 %v242, %v3104
    %v3952 = vsub.f32 %v243, %v3105
    %v3953 = vsub.f32 %v244, %v3106
    %v3954 = vsub.f32 %v245, %v3107
    %v3955 = vsub.f32 %v246, %v3108
    %v3956 = vsub.f32 %v247, %v3109
    %v3957 = vsub.f32 %v248, %v3110
    %v3958 = vsub.f32 %v249, %v3668
    %v3959 = vsub.f32 %v250, %v3669
    %v3960 = vsub.f32 %v251, %v3670
    %v3961 = vsub.f32 %v252, %v3671
    %v3962 = vsub.f32 %v253, %v3672
    %v3963 = vsub.f32 %v254, %v3673
    %v3964 = vsub.f32 %v255, %v3674
    %v3965 = vsub.f32 %v256, %v3675
    %v3966 = vsub.f32 %v257, %v3676
    %v3967 = vsub.f32 %v258, %v3677
    %v3968 = vsub.f32 %v259, %v3678
    %v3969 = vsub.f32 %v260, %v3679
    %v3970 = vsub.f32 %v261, %v3680
    %v3971 = vsub.f32 %v262, %v3681
    %v3972 = vsub.f32 %v263, %v3682
    %v3973 = vsub.f32 %v264, %v3683
    %v3974 = vsub.f32 %v265, %v3684
    %v3975 = vsub.f32 %v266, %v3685
    %v3976 = vsub.f32 %v267, %v3686
    %v3977 = vsub.f32 %v268, %v3687
    %v3978 = vsub.f32 %v269, %v3688
    %v3979 = vsub.f32 %v270, %v3689
    %v3980 = vsub.f32 %v271, %v3690
    %v3981 = vsub.f32 %v272, %v3691
    %v3982 = vsub.f32 %v273, %v3692
    %v3983 = vsub.f32 %v274, %v3693
    %v3984 = vsub.f32 %v275, %v3694
    %v3985 = vsub.f32 %v276, %v3695
    %v3986 = vsub.f32 %v277, %v3696
    %v3987 = vsub.f32 %v278, %v3697
    %v3988 = vsub.f32 %v279, %v3698
    %v3989 = vsub.f32 %v280, %v3699
    %v3990 = vsub.f32 %v281, %v3700
    %v3991 = vsub.f32 %v282, %v3701
    %v3992 = vsub.f32 %v283, %v3702
    %v3993 = vsub.f32 %v284, %v3703
    %v3994 = vsub.f32 %v285, %v3704
    %v3995 = vsub.f32 %v286, %v3705
    %v3996 = vsub.f32 %v287, %v3706
    %v3997 = vsub.f32 %v288, %v3707
    %v3998 = vsub.f32 %v289, %v3708
    %v3999 = vsub.f32 %v290, %v3709
    %v4000 = vsub.f32 %v291, %v3710
    %v4001 = vsub.f32 %v292, %v3711
    %v4002 = vsub.f32 %v293, %v3712
    %v4003 = vsub.f32 %v294, %v3713
    %v4004 = vsub.f32 %v295, %v3714
    %v4005 = vsub.f32 %v296, %v3715
    %v4006 = vsub.f32 %v297, %v3716
    %v4007 = vsub.f32 %v298, %v3717
    %v4008 = vsub.f32 %v299, %v3718
    %v4009 = vsub.f32 %v300, %v3719
    %v4010 = vsub.f32 %v301, %v3720
    %v4011 = vsub.f32 %v302, %v3721
    %v4012 = vsub.f32 %v303, %v3722
    %v4013 = vsub.f32 %v304, %v3723
    %v4014 = vsub.f32 %v305, %v3724
    %v4015 = vsub.f32 %v306, %v3725
    %v4016 = vsub.f32 %v307, %v3726
    %v4017 = vsub.f32 %v308, %v3727
    %v4018 = vsub.f32 %v309, %v3728
    %v4019 = vsub.f32 %v310, %v3729
    %v4020 = vsub.f32 %v311, %v3730
    %v4021 = vsub.f32 %v312, %v3731
    %v4022 = vmul.f32 %v3926, %v3926
    %v4023 = vmul.f32 %v3927, %v3927
    %v4024 = vmul.f32 %v3928, %v3928
    %v4025 = vmul.f32 %v3929, %v3929
    %v4026 = vmul.f32 %v3930, %v3930
    %v4027 = vmul.f32 %v3931, %v3931
    %v4028 = vmul.f32 %v3932, %v3932
    %v4029 = vmul.f32 %v3933, %v3933
    %v4030 = vmul.f32 %v3934, %v3934
    %v4031 = vmul.f32 %v3935, %v3935
    %v4032 = vmul.f32 %v3936, %v3936
    %v4033 = vmul.f32 %v3937, %v3937
    %v4034 = vmul.f32 %v3938, %v3938
    %v4035 = vmul.f32 %v3939, %v3939
    %v4036 = vmul.f32 %v3940, %v3940
    %v4037 = vmul.f32 %v3941, %v3941
    %v4038 = vmul.f32 %v3942, %v3942
    %v4039 = vmul.f32 %v3943, %v3943
    %v4040 = vmul.f32 %v3944, %v3944
    %v4041 = vmul.f32 %v3945, %v3945
    %v4042 = vmul.f32 %v3946, %v3946
    %v4043 = vmul.f32 %v3947, %v3947
    %v4044 = vmul.f32 %v3948, %v3948
    %v4045 = vmul.f32 %v3949, %v3949
    %v4046 = vmul.f32 %v3950, %v3950
    %v4047 = vmul.f32 %v3951, %v3951
    %v4048 = vmul.f32 %v3952, %v3952
    %v4049 = vmul.f32 %v3953, %v3953
    %v4050 = vmul.f32 %v3954, %v3954
    %v4051 = vmul.f32 %v3955, %v3955
    %v4052 = vmul.f32 %v3956, %v3956
    %v4053 = vmul.f32 %v3957, %v3957
    %4054 = vadd.xlane.f32.xlu0 %v4022
    %v4055 = vpop.xlane.xlu0 %4054
    %4056 = vadd.xlane.f32.xlu0 %v4023
    %v4057 = vpop.xlane.xlu0 %4056
    %4058 = vadd.xlane.f32.xlu0 %v4024
    %v4059 = vpop.xlane.xlu0 %4058
    %4060 = vadd.xlane.f32.xlu0 %v4025
    %v4061 = vpop.xlane.xlu0 %4060
    %4062 = vadd.xlane.f32.xlu0 %v4026
    %v4063 = vpop.xlane.xlu0 %4062
    %4064 = vadd.xlane.f32.xlu0 %v4027
    %v4065 = vpop.xlane.xlu0 %4064
    %4066 = vadd.xlane.f32.xlu0 %v4028
    %v4067 = vpop.xlane.xlu0 %4066
    %4068 = vadd.xlane.f32.xlu0 %v4029
    %v4069 = vpop.xlane.xlu0 %4068
    %4070 = vadd.xlane.f32.xlu0 %v4030
    %v4071 = vpop.xlane.xlu0 %4070
    %4072 = vadd.xlane.f32.xlu0 %v4031
    %v4073 = vpop.xlane.xlu0 %4072
    %4074 = vadd.xlane.f32.xlu0 %v4032
    %v4075 = vpop.xlane.xlu0 %4074
    %4076 = vadd.xlane.f32.xlu0 %v4033
    %v4077 = vpop.xlane.xlu0 %4076
    %4078 = vadd.xlane.f32.xlu0 %v4034
    %v4079 = vpop.xlane.xlu0 %4078
    %4080 = vadd.xlane.f32.xlu0 %v4035
    %v4081 = vpop.xlane.xlu0 %4080
    %4082 = vadd.xlane.f32.xlu0 %v4036
    %v4083 = vpop.xlane.xlu0 %4082
    %4084 = vadd.xlane.f32.xlu0 %v4037
    %v4085 = vpop.xlane.xlu0 %4084
    %4086 = vadd.xlane.f32.xlu0 %v4038
    %v4087 = vpop.xlane.xlu0 %4086
    %4088 = vadd.xlane.f32.xlu0 %v4039
    %v4089 = vpop.xlane.xlu0 %4088
    %4090 = vadd.xlane.f32.xlu0 %v4040
    %v4091 = vpop.xlane.xlu0 %4090
    %4092 = vadd.xlane.f32.xlu0 %v4041
    %v4093 = vpop.xlane.xlu0 %4092
    %4094 = vadd.xlane.f32.xlu0 %v4042
    %v4095 = vpop.xlane.xlu0 %4094
    %4096 = vadd.xlane.f32.xlu0 %v4043
    %v4097 = vpop.xlane.xlu0 %4096
    %4098 = vadd.xlane.f32.xlu0 %v4044
    %v4099 = vpop.xlane.xlu0 %4098
    %4100 = vadd.xlane.f32.xlu0 %v4045
    %v4101 = vpop.xlane.xlu0 %4100
    %4102 = vadd.xlane.f32.xlu0 %v4046
    %v4103 = vpop.xlane.xlu0 %4102
    %4104 = vadd.xlane.f32.xlu0 %v4047
    %v4105 = vpop.xlane.xlu0 %4104
    %4106 = vadd.xlane.f32.xlu0 %v4048
    %v4107 = vpop.xlane.xlu0 %4106
    %4108 = vadd.xlane.f32.xlu0 %v4049
    %v4109 = vpop.xlane.xlu0 %4108
    %4110 = vadd.xlane.f32.xlu0 %v4050
    %v4111 = vpop.xlane.xlu0 %4110
    %4112 = vadd.xlane.f32.xlu0 %v4051
    %v4113 = vpop.xlane.xlu0 %4112
    %4114 = vadd.xlane.f32.xlu0 %v4052
    %v4115 = vpop.xlane.xlu0 %4114
    %4116 = vadd.xlane.f32.xlu0 %v4053
    %v4117 = vpop.xlane.xlu0 %4116
    %v4118 = vmul.f32 %v4055, %v3894
    %v4119 = vmul.f32 %v4057, %v3895
    %v4120 = vmul.f32 %v4059, %v3896
    %v4121 = vmul.f32 %v4061, %v3897
    %v4122 = vmul.f32 %v4063, %v3898
    %v4123 = vmul.f32 %v4065, %v3899
    %v4124 = vmul.f32 %v4067, %v3900
    %v4125 = vmul.f32 %v4069, %v3901
    %v4126 = vmul.f32 %v4071, %v3902
    %v4127 = vmul.f32 %v4073, %v3903
    %v4128 = vmul.f32 %v4075, %v3904
    %v4129 = vmul.f32 %v4077, %v3905
    %v4130 = vmul.f32 %v4079, %v3906
    %v4131 = vmul.f32 %v4081, %v3907
    %v4132 = vmul.f32 %v4083, %v3908
    %v4133 = vmul.f32 %v4085, %v3909
    %v4134 = vmul.f32 %v4087, %v3910
    %v4135 = vmul.f32 %v4089, %v3911
    %v4136 = vmul.f32 %v4091, %v3912
    %v4137 = vmul.f32 %v4093, %v3913
    %v4138 = vmul.f32 %v4095, %v3914
    %v4139 = vmul.f32 %v4097, %v3915
    %v4140 = vmul.f32 %v4099, %v3916
    %v4141 = vmul.f32 %v4101, %v3917
    %v4142 = vmul.f32 %v4103, %v3918
    %v4143 = vmul.f32 %v4105, %v3919
    %v4144 = vmul.f32 %v4107, %v3920
    %v4145 = vmul.f32 %v4109, %v3921
    %v4146 = vmul.f32 %v4111, %v3922
    %v4147 = vmul.f32 %v4113, %v3923
    %v4148 = vmul.f32 %v4115, %v3924
    %v4149 = vmul.f32 %v4117, %v3925
    %vm4150 = vcmask 7168
    %v4151 = vsel %vm4150, %v4118, 0.0
    %v4152 = vsel %vm4150, %v4119, 0.0
    %v4153 = vadd.f32 %v4151, %v4152
    %v4154 = vsel %vm4150, %v4120, 0.0
    %v4155 = vadd.f32 %v4153, %v4154
    %v4156 = vsel %vm4150, %v4121, 0.0
    %v4157 = vadd.f32 %v4155, %v4156
    %v4158 = vsel %vm4150, %v4122, 0.0
    %v4159 = vadd.f32 %v4157, %v4158
    %v4160 = vsel %vm4150, %v4123, 0.0
    %v4161 = vadd.f32 %v4159, %v4160
    %v4162 = vsel %vm4150, %v4124, 0.0
    %v4163 = vadd.f32 %v4161, %v4162
    %v4164 = vsel %vm4150, %v4125, 0.0
    %v4165 = vadd.f32 %v4163, %v4164
    %v4166 = vsel %vm4150, %v4126, 0.0
    %v4167 = vadd.f32 %v4165, %v4166
    %v4168 = vsel %vm4150, %v4127, 0.0
    %v4169 = vadd.f32 %v4167, %v4168
    %v4170 = vsel %vm4150, %v4128, 0.0
    %v4171 = vadd.f32 %v4169, %v4170
    %v4172 = vsel %vm4150, %v4129, 0.0
    %v4173 = vadd.f32 %v4171, %v4172
    %v4174 = vsel %vm4150, %v4130, 0.0
    %v4175 = vadd.f32 %v4173, %v4174
    %v4176 = vsel %vm4150, %v4131, 0.0
    %v4177 = vadd.f32 %v4175, %v4176
    %v4178 = vsel %vm4150, %v4132, 0.0
    %v4179 = vadd.f32 %v4177, %v4178
    %v4180 = vsel %vm4150, %v4133, 0.0
    %v4181 = vadd.f32 %v4179, %v4180
    %v4182 = vsel %vm4150, %v4134, 0.0
    %v4183 = vadd.f32 %v4181, %v4182
    %v4184 = vsel %vm4150, %v4135, 0.0
    %v4185 = vadd.f32 %v4183, %v4184
    %v4186 = vsel %vm4150, %v4136, 0.0
    %v4187 = vadd.f32 %v4185, %v4186
    %v4188 = vsel %vm4150, %v4137, 0.0
    %v4189 = vadd.f32 %v4187, %v4188
    %v4190 = vsel %vm4150, %v4138, 0.0
    %v4191 = vadd.f32 %v4189, %v4190
    %v4192 = vsel %vm4150, %v4139, 0.0
    %v4193 = vadd.f32 %v4191, %v4192
    %v4194 = vsel %vm4150, %v4140, 0.0
    %v4195 = vadd.f32 %v4193, %v4194
    %v4196 = vsel %vm4150, %v4141, 0.0
    %v4197 = vadd.f32 %v4195, %v4196
    %v4198 = vsel %vm4150, %v4142, 0.0
    %v4199 = vadd.f32 %v4197, %v4198
    %v4200 = vsel %vm4150, %v4143, 0.0
    %v4201 = vadd.f32 %v4199, %v4200
    %v4202 = vsel %vm4150, %v4144, 0.0
    %v4203 = vadd.f32 %v4201, %v4202
    %v4204 = vsel %vm4150, %v4145, 0.0
    %v4205 = vadd.f32 %v4203, %v4204
    %v4206 = vsel %vm4150, %v4146, 0.0
    %v4207 = vadd.f32 %v4205, %v4206
    %v4208 = vsel %vm4150, %v4147, 0.0
    %v4209 = vadd.f32 %v4207, %v4208
    %v4210 = vsel %vm4150, %v4148, 0.0
    %v4211 = vadd.f32 %v4209, %v4210
    %v4212 = vsel %vm4150, %v4149, 0.0
    %v4213 = vadd.f32 %v4211, %v4212
    %4214 = vadd.xlane.f32.xlu0 %v4213
    %v4215 = vpop.xlane.xlu0 %4214
    %v4216 = vrot.slane %v4215, 4
    %v4217 = vadd.f32 %v4215, %v4216
    %v4218 = vrot.slane %v4217, 2
    %v4219 = vadd.f32 %v4217, %v4218
    %v4220 = vrot.slane %v4219, 1
    %v4221 = vadd.f32 %v4219, %v4220
    %s4222 = vtos %v4221
    %v4223 = vmul.f32 %v3958, %v3958
    %v4224 = vmul.f32 %v3959, %v3959
    %v4225 = vmul.f32 %v3960, %v3960
    %v4226 = vmul.f32 %v3961, %v3961
    %v4227 = vmul.f32 %v3962, %v3962
    %v4228 = vmul.f32 %v3963, %v3963
    %v4229 = vmul.f32 %v3964, %v3964
    %v4230 = vmul.f32 %v3965, %v3965
    %v4231 = vmul.f32 %v3966, %v3966
    %v4232 = vmul.f32 %v3967, %v3967
    %v4233 = vmul.f32 %v3968, %v3968
    %v4234 = vmul.f32 %v3969, %v3969
    %v4235 = vmul.f32 %v3970, %v3970
    %v4236 = vmul.f32 %v3971, %v3971
    %v4237 = vmul.f32 %v3972, %v3972
    %v4238 = vmul.f32 %v3973, %v3973
    %v4239 = vmul.f32 %v3974, %v3974
    %v4240 = vmul.f32 %v3975, %v3975
    %v4241 = vmul.f32 %v3976, %v3976
    %v4242 = vmul.f32 %v3977, %v3977
    %v4243 = vmul.f32 %v3978, %v3978
    %v4244 = vmul.f32 %v3979, %v3979
    %v4245 = vmul.f32 %v3980, %v3980
    %v4246 = vmul.f32 %v3981, %v3981
    %v4247 = vmul.f32 %v3982, %v3982
    %v4248 = vmul.f32 %v3983, %v3983
    %v4249 = vmul.f32 %v3984, %v3984
    %v4250 = vmul.f32 %v3985, %v3985
    %v4251 = vmul.f32 %v3986, %v3986
    %v4252 = vmul.f32 %v3987, %v3987
    %v4253 = vmul.f32 %v3988, %v3988
    %v4254 = vmul.f32 %v3989, %v3989
    %v4255 = vmul.f32 %v3990, %v3990
    %v4256 = vmul.f32 %v3991, %v3991
    %v4257 = vmul.f32 %v3992, %v3992
    %v4258 = vmul.f32 %v3993, %v3993
    %v4259 = vmul.f32 %v3994, %v3994
    %v4260 = vmul.f32 %v3995, %v3995
    %v4261 = vmul.f32 %v3996, %v3996
    %v4262 = vmul.f32 %v3997, %v3997
    %v4263 = vmul.f32 %v3998, %v3998
    %v4264 = vmul.f32 %v3999, %v3999
    %v4265 = vmul.f32 %v4000, %v4000
    %v4266 = vmul.f32 %v4001, %v4001
    %v4267 = vmul.f32 %v4002, %v4002
    %v4268 = vmul.f32 %v4003, %v4003
    %v4269 = vmul.f32 %v4004, %v4004
    %v4270 = vmul.f32 %v4005, %v4005
    %v4271 = vmul.f32 %v4006, %v4006
    %v4272 = vmul.f32 %v4007, %v4007
    %v4273 = vmul.f32 %v4008, %v4008
    %v4274 = vmul.f32 %v4009, %v4009
    %v4275 = vmul.f32 %v4010, %v4010
    %v4276 = vmul.f32 %v4011, %v4011
    %v4277 = vmul.f32 %v4012, %v4012
    %v4278 = vmul.f32 %v4013, %v4013
    %v4279 = vmul.f32 %v4014, %v4014
    %v4280 = vmul.f32 %v4015, %v4015
    %v4281 = vmul.f32 %v4016, %v4016
    %v4282 = vmul.f32 %v4017, %v4017
    %v4283 = vmul.f32 %v4018, %v4018
    %v4284 = vmul.f32 %v4019, %v4019
    %v4285 = vmul.f32 %v4020, %v4020
    %v4286 = vmul.f32 %v4021, %v4021
    %v4287 = vadd.f32 %v4223, %v4224
    %4288 = vadd.xlane.f32.xlu0 %v4287
    %v4289 = vpop.xlane.xlu0 %4288
    %v4290 = vadd.f32 %v4225, %v4226
    %4291 = vadd.xlane.f32.xlu0 %v4290
    %v4292 = vpop.xlane.xlu0 %4291
    %v4293 = vadd.f32 %v4227, %v4228
    %4294 = vadd.xlane.f32.xlu0 %v4293
    %v4295 = vpop.xlane.xlu0 %4294
    %v4296 = vadd.f32 %v4229, %v4230
    %4297 = vadd.xlane.f32.xlu0 %v4296
    %v4298 = vpop.xlane.xlu0 %4297
    %v4299 = vadd.f32 %v4231, %v4232
    %4300 = vadd.xlane.f32.xlu0 %v4299
    %v4301 = vpop.xlane.xlu0 %4300
    %v4302 = vadd.f32 %v4233, %v4234
    %4303 = vadd.xlane.f32.xlu0 %v4302
    %v4304 = vpop.xlane.xlu0 %4303
    %v4305 = vadd.f32 %v4235, %v4236
    %4306 = vadd.xlane.f32.xlu0 %v4305
    %v4307 = vpop.xlane.xlu0 %4306
    %v4308 = vadd.f32 %v4237, %v4238
    %4309 = vadd.xlane.f32.xlu0 %v4308
    %v4310 = vpop.xlane.xlu0 %4309
    %v4311 = vadd.f32 %v4239, %v4240
    %4312 = vadd.xlane.f32.xlu0 %v4311
    %v4313 = vpop.xlane.xlu0 %4312
    %v4314 = vadd.f32 %v4241, %v4242
    %4315 = vadd.xlane.f32.xlu0 %v4314
    %v4316 = vpop.xlane.xlu0 %4315
    %v4317 = vadd.f32 %v4243, %v4244
    %4318 = vadd.xlane.f32.xlu0 %v4317
    %v4319 = vpop.xlane.xlu0 %4318
    %v4320 = vadd.f32 %v4245, %v4246
    %4321 = vadd.xlane.f32.xlu0 %v4320
    %v4322 = vpop.xlane.xlu0 %4321
    %v4323 = vadd.f32 %v4247, %v4248
    %4324 = vadd.xlane.f32.xlu0 %v4323
    %v4325 = vpop.xlane.xlu0 %4324
    %v4326 = vadd.f32 %v4249, %v4250
    %4327 = vadd.xlane.f32.xlu0 %v4326
    %v4328 = vpop.xlane.xlu0 %4327
    %v4329 = vadd.f32 %v4251, %v4252
    %4330 = vadd.xlane.f32.xlu0 %v4329
    %v4331 = vpop.xlane.xlu0 %4330
    %v4332 = vadd.f32 %v4253, %v4254
    %4333 = vadd.xlane.f32.xlu0 %v4332
    %v4334 = vpop.xlane.xlu0 %4333
    %v4335 = vadd.f32 %v4255, %v4256
    %4336 = vadd.xlane.f32.xlu0 %v4335
    %v4337 = vpop.xlane.xlu0 %4336
    %v4338 = vadd.f32 %v4257, %v4258
    %4339 = vadd.xlane.f32.xlu0 %v4338
    %v4340 = vpop.xlane.xlu0 %4339
    %v4341 = vadd.f32 %v4259, %v4260
    %4342 = vadd.xlane.f32.xlu0 %v4341
    %v4343 = vpop.xlane.xlu0 %4342
    %v4344 = vadd.f32 %v4261, %v4262
    %4345 = vadd.xlane.f32.xlu0 %v4344
    %v4346 = vpop.xlane.xlu0 %4345
    %v4347 = vadd.f32 %v4263, %v4264
    %4348 = vadd.xlane.f32.xlu0 %v4347
    %v4349 = vpop.xlane.xlu0 %4348
    %v4350 = vadd.f32 %v4265, %v4266
    %4351 = vadd.xlane.f32.xlu0 %v4350
    %v4352 = vpop.xlane.xlu0 %4351
    %v4353 = vadd.f32 %v4267, %v4268
    %4354 = vadd.xlane.f32.xlu0 %v4353
    %v4355 = vpop.xlane.xlu0 %4354
    %v4356 = vadd.f32 %v4269, %v4270
    %4357 = vadd.xlane.f32.xlu0 %v4356
    %v4358 = vpop.xlane.xlu0 %4357
    %v4359 = vadd.f32 %v4271, %v4272
    %4360 = vadd.xlane.f32.xlu0 %v4359
    %v4361 = vpop.xlane.xlu0 %4360
    %v4362 = vadd.f32 %v4273, %v4274
    %4363 = vadd.xlane.f32.xlu0 %v4362
    %v4364 = vpop.xlane.xlu0 %4363
    %v4365 = vadd.f32 %v4275, %v4276
    %4366 = vadd.xlane.f32.xlu0 %v4365
    %v4367 = vpop.xlane.xlu0 %4366
    %v4368 = vadd.f32 %v4277, %v4278
    %4369 = vadd.xlane.f32.xlu0 %v4368
    %v4370 = vpop.xlane.xlu0 %4369
    %v4371 = vadd.f32 %v4279, %v4280
    %4372 = vadd.xlane.f32.xlu0 %v4371
    %v4373 = vpop.xlane.xlu0 %4372
    %v4374 = vadd.f32 %v4281, %v4282
    %4375 = vadd.xlane.f32.xlu0 %v4374
    %v4376 = vpop.xlane.xlu0 %4375
    %v4377 = vadd.f32 %v4283, %v4284
    %4378 = vadd.xlane.f32.xlu0 %v4377
    %v4379 = vpop.xlane.xlu0 %4378
    %v4380 = vadd.f32 %v4285, %v4286
    %4381 = vadd.xlane.f32.xlu0 %v4380
    %v4382 = vpop.xlane.xlu0 %4381
    %v4383 = vmul.f32 %v4289, %v3894
    %v4384 = vmul.f32 %v4292, %v3895
    %v4385 = vmul.f32 %v4295, %v3896
    %v4386 = vmul.f32 %v4298, %v3897
    %v4387 = vmul.f32 %v4301, %v3898
    %v4388 = vmul.f32 %v4304, %v3899
    %v4389 = vmul.f32 %v4307, %v3900
    %v4390 = vmul.f32 %v4310, %v3901
    %v4391 = vmul.f32 %v4313, %v3902
    %v4392 = vmul.f32 %v4316, %v3903
    %v4393 = vmul.f32 %v4319, %v3904
    %v4394 = vmul.f32 %v4322, %v3905
    %v4395 = vmul.f32 %v4325, %v3906
    %v4396 = vmul.f32 %v4328, %v3907
    %v4397 = vmul.f32 %v4331, %v3908
    %v4398 = vmul.f32 %v4334, %v3909
    %v4399 = vmul.f32 %v4337, %v3910
    %v4400 = vmul.f32 %v4340, %v3911
    %v4401 = vmul.f32 %v4343, %v3912
    %v4402 = vmul.f32 %v4346, %v3913
    %v4403 = vmul.f32 %v4349, %v3914
    %v4404 = vmul.f32 %v4352, %v3915
    %v4405 = vmul.f32 %v4355, %v3916
    %v4406 = vmul.f32 %v4358, %v3917
    %v4407 = vmul.f32 %v4361, %v3918
    %v4408 = vmul.f32 %v4364, %v3919
    %v4409 = vmul.f32 %v4367, %v3920
    %v4410 = vmul.f32 %v4370, %v3921
    %v4411 = vmul.f32 %v4373, %v3922
    %v4412 = vmul.f32 %v4376, %v3923
    %v4413 = vmul.f32 %v4379, %v3924
    %v4414 = vmul.f32 %v4382, %v3925
    %v4415 = vsel %vm4150, %v4383, 0.0
    %v4416 = vsel %vm4150, %v4384, 0.0
    %v4417 = vadd.f32 %v4415, %v4416
    %v4418 = vsel %vm4150, %v4385, 0.0
    %v4419 = vadd.f32 %v4417, %v4418
    %v4420 = vsel %vm4150, %v4386, 0.0
    %v4421 = vadd.f32 %v4419, %v4420
    %v4422 = vsel %vm4150, %v4387, 0.0
    %v4423 = vadd.f32 %v4421, %v4422
    %v4424 = vsel %vm4150, %v4388, 0.0
    %v4425 = vadd.f32 %v4423, %v4424
    %v4426 = vsel %vm4150, %v4389, 0.0
    %v4427 = vadd.f32 %v4425, %v4426
    %v4428 = vsel %vm4150, %v4390, 0.0
    %v4429 = vadd.f32 %v4427, %v4428
    %v4430 = vsel %vm4150, %v4391, 0.0
    %v4431 = vadd.f32 %v4429, %v4430
    %v4432 = vsel %vm4150, %v4392, 0.0
    %v4433 = vadd.f32 %v4431, %v4432
    %v4434 = vsel %vm4150, %v4393, 0.0
    %v4435 = vadd.f32 %v4433, %v4434
    %v4436 = vsel %vm4150, %v4394, 0.0
    %v4437 = vadd.f32 %v4435, %v4436
    %v4438 = vsel %vm4150, %v4395, 0.0
    %v4439 = vadd.f32 %v4437, %v4438
    %v4440 = vsel %vm4150, %v4396, 0.0
    %v4441 = vadd.f32 %v4439, %v4440
    %v4442 = vsel %vm4150, %v4397, 0.0
    %v4443 = vadd.f32 %v4441, %v4442
    %v4444 = vsel %vm4150, %v4398, 0.0
    %v4445 = vadd.f32 %v4443, %v4444
    %v4446 = vsel %vm4150, %v4399, 0.0
    %v4447 = vadd.f32 %v4445, %v4446
    %v4448 = vsel %vm4150, %v4400, 0.0
    %v4449 = vadd.f32 %v4447, %v4448
    %v4450 = vsel %vm4150, %v4401, 0.0
    %v4451 = vadd.f32 %v4449, %v4450
    %v4452 = vsel %vm4150, %v4402, 0.0
    %v4453 = vadd.f32 %v4451, %v4452
    %v4454 = vsel %vm4150, %v4403, 0.0
    %v4455 = vadd.f32 %v4453, %v4454
    %v4456 = vsel %vm4150, %v4404, 0.0
    %v4457 = vadd.f32 %v4455, %v4456
    %v4458 = vsel %vm4150, %v4405, 0.0
    %v4459 = vadd.f32 %v4457, %v4458
    %v4460 = vsel %vm4150, %v4406, 0.0
    %v4461 = vadd.f32 %v4459, %v4460
    %v4462 = vsel %vm4150, %v4407, 0.0
    %v4463 = vadd.f32 %v4461, %v4462
    %v4464 = vsel %vm4150, %v4408, 0.0
    %v4465 = vadd.f32 %v4463, %v4464
    %v4466 = vsel %vm4150, %v4409, 0.0
    %v4467 = vadd.f32 %v4465, %v4466
    %v4468 = vsel %vm4150, %v4410, 0.0
    %v4469 = vadd.f32 %v4467, %v4468
    %v4470 = vsel %vm4150, %v4411, 0.0
    %v4471 = vadd.f32 %v4469, %v4470
    %v4472 = vsel %vm4150, %v4412, 0.0
    %v4473 = vadd.f32 %v4471, %v4472
    %v4474 = vsel %vm4150, %v4413, 0.0
    %v4475 = vadd.f32 %v4473, %v4474
    %v4476 = vsel %vm4150, %v4414, 0.0
    %v4477 = vadd.f32 %v4475, %v4476
    %4478 = vadd.xlane.f32.xlu0 %v4477
    %v4479 = vpop.xlane.xlu0 %4478
    %v4480 = vrot.slane %v4479, 4
    %v4481 = vadd.f32 %v4479, %v4480
    %v4482 = vrot.slane %v4481, 2
    %v4483 = vadd.f32 %v4481, %v4482
    %v4484 = vrot.slane %v4483, 1
    %v4485 = vadd.f32 %v4483, %v4484
    %s4486 = vtos %v4485
    %v4487 = vlaneseq
    %v4488 = vand.u32 %v4487, 127
    %vm4489 = vcmp.eq.s32.totalorder %v4488, 0
    %vm4490 = vcmp.eq.s32.totalorder %v4488, 1
    %v4491 = vstv %s4486
    %v4492 = vsel %vm4490, %v4491, 0.0
    %v4493 = vstv %s4222
    %v4494 = vsel %vm4489, %v4493, %v4492
    %4495 = vst [vmem:[%s17] sm:$0x1] %v4494
    // Predicated region
    $region104: #{autoencoder_forward.1} parent=1 // pred_check
      _
    $region105: #{autoencoder_forward.1} parent=1 // pred_check_branch
      %4497 = sbr.rel (0) target = $region107
    $region106: #{autoencoder_forward.1} parent=1 // pred_region
      _
    $region107: #{autoencoder_forward.1} parent=1 // pred_fallthru
      _
    // Predicated region
    $region108: #{autoencoder_forward.1} parent=1 // pred_check
      _
    $region109: #{autoencoder_forward.1} parent=1 // pred_check_branch
      %4499 = sbr.rel (0) target = $region111
    $region110: #{autoencoder_forward.1} parent=1 // pred_region
      _
    $region111: #{autoencoder_forward.1} parent=1 // pred_fallthru
      _
    // Predicated region
    $region112: #{autoencoder_forward.1} parent=1 // pred_check
      _
    $region113: #{autoencoder_forward.1} parent=1 // pred_check_branch
      %4501 = sbr.rel (0) target = $region115
    $region114: #{autoencoder_forward.1} parent=1 // pred_region
      _
    $region115: #{autoencoder_forward.1} parent=1 // pred_fallthru
      _
    // Predicated region
    $region116: #{autoencoder_forward.1} parent=1 // pred_check
      _
    $region117: #{autoencoder_forward.1} parent=1 // pred_check_branch
      %4503 = sbr.rel (0) target = $region119
    $region118: #{autoencoder_forward.1} parent=1 // pred_region
      _
    $region119: #{autoencoder_forward.1} parent=1 // pred_fallthru
      _
    %4504 = vsyncpa [#allocation8], 1
    %4505 = vsyncpa [#allocation10], 1
    %4506 = vsyncpa [#allocation13], 1
    %4507 = vsyncpa [#allocation16], 1
    %4508 = vsyncpa [#allocation19], 1
  %4509 = vsyncmov [#allocation4]
  %s4510 = vpop.sfrf %4509
  %p4511 = scmp.eq.s32.totalorder %s4510, 0
  %p4512 = pneg %p4511
  %4514 = shalt.err (%p4512)
  %s4515 = scalar_lea.sflag [#allocation4], 1
  %4516 = vsyncmov %s4515
  %s4517 = vpop.sfrf %4516
  %p4518 = scmp.eq.s32.totalorder %s4517, 0
  %p4519 = pneg %p4518
  %4521 = shalt.err (%p4519)

// kernel: autoencoder_forward.1
$region0: #{autoencoder_forward.1}
  #allocation0 [shape = 'u32[]', space=smem, size = 0x4, offset = 0x4, fixed_abs, tag = 'smem constant byte address 0x4 - core index']
  #allocation1 [shape = 'u32[144,128]{1,0:T(1,128)}', space=vmem, size = 0x12000, scoped, tag = 'internal scratch']
  #allocation2 [shape = 'f32[256,128]{1,0:T(8,128)}', space=vmem, size = 0x20000, scoped, tag = 'scratch operand']
  #allocation3 [shape = 'f32[256,256]{1,0:T(8,128)}', space=vmem, size = 0x40000, scoped, tag = 'scratch operand']
  #allocation4 [shape = 's32[2]{0}', space=sflag, size = 0x8, scoped, tag = 'scratch operand']
  #allocation5 [shape = 's32[1]{0}', space=sflag, size = 0x4, scoped, tag = 'scoped memory for autoencoder_forward.1']
  #allocation6 [shape = 'u8[1024]{0}', space=smem, size = 0x400, scoped, tag = 'prefetched SMEM operand 0']
  #allocation20 [shape = 's32[]', space=sflag, size = 0x4, offset = 0, fixed_abs, tag = 'sflag constant byte address 0x0 - dummy sync flag']
  #allocation21 [shape = 's32[]', space=sflag, size = 0x4, offset = 0, fixed_abs, tag = 'sflag constant byte address 0x0 - dummy sync flag']
  #allocation22 [shape = 'u32[]', space=smem, size = 0x4, offset = 0x44, fixed_abs, tag = 'smem constant byte address 0x44 - assertion arg 0']
  #allocation23 [shape = 'u32[]', space=smem, size = 0x4, offset = 0x48, fixed_abs, tag = 'smem constant byte address 0x48 - assertion arg 1']
  #allocation24 [shape = 's32[]', space=sflag, size = 0x4, offset = 0, fixed_abs, tag = 'sflag constant byte address 0x0 - dummy sync flag']
  %s0 = inlined_call_operand.vmem [shape: s32[256], index: 0, kind: input, shape index: {}]
  %s1 = inlined_call_operand.hbm [shape: f32[64,128], index: 1, kind: input, shape index: {}]
  %s2 = inlined_call_operand.hbm [shape: f32[64,256], index: 2, kind: input, shape index: {}]
  %s3 = inlined_call_operand.hbm [shape: bf16[128,128], index: 3, kind: input, shape index: {}]
  %s4 = inlined_call_operand.vmem [shape: f32[1,128], index: 4, kind: input, shape index: {}]
  %s5 = inlined_call_operand.hbm [shape: bf16[256,128], index: 5, kind: input, shape index: {}]
  %s6 = inlined_call_operand.vmem [shape: f32[1,128], index: 6, kind: input, shape index: {}]
  %s7 = inlined_call_operand.hbm [shape: bf16[128,128], index: 7, kind: input, shape index: {}]
  %s8 = inlined_call_operand.hbm [shape: bf16[128,128], index: 8, kind: input, shape index: {}]
  %s9 = inlined_call_operand.hbm [shape: f32[1,128], index: 9, kind: input, shape index: {}]
  %s10 = inlined_call_operand.hbm [shape: bf16[128,256], index: 10, kind: input, shape index: {}]
  %s11 = inlined_call_operand.vmem [shape: f32[1,256], index: 11, kind: input, shape index: {}]
  %s12 = inlined_call_operand.hbm [shape: bf16[128,128], index: 12, kind: input, shape index: {}]
  %s13 = inlined_call_operand.vmem [shape: f32[1,128], index: 13, kind: input, shape index: {}]
  %s14 = inlined_call_operand.hbm [shape: bf16[128,256], index: 14, kind: input, shape index: {}]
  %s15 = inlined_call_operand.vmem [shape: f32[1,256], index: 15, kind: input, shape index: {}]
  %s16 = inlined_call_operand.vmem [shape: f32[256,128], index: 16, kind: output, shape index: {0}]
  %s17 = inlined_call_operand.vmem [shape: f32[1,1,128], index: 17, kind: output, shape index: {1}]
  %18 = xla_tuple %s16, %s17
  %s19 = sld [smem:[#allocation0]]
  $region120: #{autoencoder_forward.1} parent=0
    _
  %s21 = ssub.s32 1, %s19
  %s22 = scalar_select 0, %s21, %s19
  %s23 = sshll.u32 %s0, 4
  %s24 = int_to_ptr.vmem [resolvable:$true] %s23
  %26 = dma.vmem_to_smem %s24, 32, [#allocation6], [#allocation5]
  %27 = dma.done [#allocation5], 32
  %28 = sfence
  $region1: #{autoencoder_forward.1} parent=0
    #allocation7 [shape = 'u8[32768]{0}', space=vmem, size = 0x8000, scoped, tag = 'input window, operand 3, single buffered']
    #allocation8 [shape = 's32[1]{0}', space=sflag, size = 0x4, scoped, tag = 'scoped memory for autoencoder_forward.1']
    #allocation9 [shape = 'u8[65536]{0}', space=vmem, size = 0x10000, scoped, tag = 'input window, operand 5, single buffered']
    #allocation10 [shape = 's32[1]{0}', space=sflag, size = 0x4, scoped, tag = 'scoped memory for autoencoder_forward.1']
    #allocation11 [shape = 'u8[32768]{0}', space=vmem, size = 0x8000, scoped, tag = 'input window, operand 7, single buffered']
    #allocation12 [shape = 'u8[32768]{0}', space=vmem, size = 0x8000, scoped, tag = 'input window, operand 8, single buffered']
    #allocation13 [shape = 's32[1]{0}', space=sflag, size = 0x4, scoped, tag = 'scoped memory for autoencoder_forward.1']
    #allocation14 [shape = 'u8[512]{0}', space=vmem, size = 0x400, scoped, tag = 'input window, operand 9, single buffered']
    #allocation15 [shape = 'u8[65536]{0}', space=vmem, size = 0x10000, scoped, tag = 'input window, operand 10, single buffered']
    #allocation16 [shape = 's32[1]{0}', space=sflag, size = 0x4, scoped, tag = 'scoped memory for autoencoder_forward.1']
    #allocation17 [shape = 'u8[32768]{0}', space=vmem, size = 0x8000, scoped, tag = 'input window, operand 12, single buffered']
    #allocation18 [shape = 'u8[65536]{0}', space=vmem, size = 0x10000, scoped, tag = 'input window, operand 14, single buffered']
    #allocation19 [shape = 's32[1]{0}', space=sflag, size = 0x4, scoped, tag = 'scoped memory for autoencoder_forward.1']
    %29 = vsyncpa [#allocation8], 0
    %30 = vsyncpa [#allocation10], 0
    %31 = vsyncpa [#allocation13], 0
    %32 = vsyncpa [#allocation16], 0
    %33 = vsyncpa [#allocation19], 0
    // Predicated region
    $region2: #{autoencoder_forward.1} parent=1 // pred_check
      _
    $region3: #{autoencoder_forward.1} parent=1 // pred_check_branch
      %35 = sbr.rel (0) target = $region5
    $region4: #{autoencoder_forward.1} parent=1 // pred_region
      %s37 = ssub.s32 1024, 1024
      %38 = vsyncadd [#allocation8], %s37
      %s39 = sshll.u32 [#allocation7], 4
      %s40 = int_to_ptr.vmem [resolvable:$true] %s39
      %45 = dma.hbm_to_vmem [thread:$0]  %s3, 1024, %s40, [#allocation8], 64, 64, 4
    $region5: #{autoencoder_forward.1} parent=1 // pred_fallthru
      _
    // Predicated region
    $region6: #{autoencoder_forward.1} parent=1 // pred_check
      _
    $region7: #{autoencoder_forward.1} parent=1 // pred_check_branch
      %47 = sbr.rel (0) target = $region9
    $region8: #{autoencoder_forward.1} parent=1 // pred_region
      _
    $region9: #{autoencoder_forward.1} parent=1 // pred_fallthru
      _
    // Predicated region
    $region10: #{autoencoder_forward.1} parent=1 // pred_check
      _
    $region11: #{autoencoder_forward.1} parent=1 // pred_check_branch
      %49 = sbr.rel (0) target = $region13
    $region12: #{autoencoder_forward.1} parent=1 // pred_region
      %s51 = ssub.s32 2048, 2048
      %52 = vsyncadd [#allocation10], %s51
      %s53 = sshll.u32 [#allocation9], 4
      %s54 = int_to_ptr.vmem [resolvable:$true] %s53
      %59 = dma.hbm_to_vmem [thread:$0]  %s5, 2048, %s54, [#allocation10], 64, 64, 4
    $region13: #{autoencoder_forward.1} parent=1 // pred_fallthru
      _
    // Predicated region
    $region14: #{autoencoder_forward.1} parent=1 // pred_check
      _
    $region15: #{autoencoder_forward.1} parent=1 // pred_check_branch
      %61 = sbr.rel (0) target = $region17
    $region16: #{autoencoder_forward.1} parent=1 // pred_region
      _
    $region17: #{autoencoder_forward.1} parent=1 // pred_fallthru
      _
    // Predicated region
    $region18: #{autoencoder_forward.1} parent=1 // pred_check
      _
    $region19: #{autoencoder_forward.1} parent=1 // pred_check_branch
      %63 = sbr.rel (0) target = $region21
    $region20: #{autoencoder_forward.1} parent=1 // pred_region
      %s65 = ssub.s32 1024, 1024
      %66 = vsyncadd [#allocation10], %s65
      %s67 = sshll.u32 [#allocation11], 4
      %s68 = int_to_ptr.vmem [resolvable:$true] %s67
      %73 = dma.hbm_to_vmem [thread:$0]  %s7, 1024, %s68, [#allocation10], 64, 64, 4
    $region21: #{autoencoder_forward.1} parent=1 // pred_fallthru
      _
    // Predicated region
    $region22: #{autoencoder_forward.1} parent=1 // pred_check
      _
    $region23: #{autoencoder_forward.1} parent=1 // pred_check_branch
      %75 = sbr.rel (0) target = $region25
    $region24: #{autoencoder_forward.1} parent=1 // pred_region
      %s77 = ssub.s32 1024, 1024
      %78 = vsyncadd [#allocation13], %s77
      %s79 = sshll.u32 [#allocation12], 4
      %s80 = int_to_ptr.vmem [resolvable:$true] %s79
      %85 = dma.hbm_to_vmem [thread:$0]  %s8, 1024, %s80, [#allocation13], 64, 64, 4
    $region25: #{autoencoder_forward.1} parent=1 // pred_fallthru
      _
    // Predicated region
    $region26: #{autoencoder_forward.1} parent=1 // pred_check
      _
    $region27: #{autoencoder_forward.1} parent=1 // pred_check_branch
      %87 = sbr.rel (0) target = $region29
    $region28: #{autoencoder_forward.1} parent=1 // pred_region
      %s89 = ssub.s32 16, 16
      %90 = vsyncadd [#allocation13], %s89
      %s92 = sshll.u32 [#allocation14], 4
      %s93 = int_to_ptr.vmem [resolvable:$true] %s92
      %95 = dma.hbm_to_vmem [thread:$0]  %s9, 16, %s93, [#allocation13]
    $region29: #{autoencoder_forward.1} parent=1 // pred_fallthru
      _
    // Predicated region
    $region30: #{autoencoder_forward.1} parent=1 // pred_check
      _
    $region31: #{autoencoder_forward.1} parent=1 // pred_check_branch
      %97 = sbr.rel (0) target = $region33
    $region32: #{autoencoder_forward.1} parent=1 // pred_region
      %s99 = ssub.s32 2048, 2048
      %100 = vsyncadd [#allocation16], %s99
      %s101 = sshll.u32 [#allocation15], 4
      %s102 = int_to_ptr.vmem [resolvable:$true] %s101
      %107 = dma.hbm_to_vmem [thread:$0]  %s10, 2048, %s102, [#allocation16], 128, 128, 8
    $region33: #{autoencoder_forward.1} parent=1 // pred_fallthru
      _
    // Predicated region
    $region34: #{autoencoder_forward.1} parent=1 // pred_check
      _
    $region35: #{autoencoder_forward.1} parent=1 // pred_check_branch
      %109 = sbr.rel (0) target = $region37
    $region36: #{autoencoder_forward.1} parent=1 // pred_region
      _
    $region37: #{autoencoder_forward.1} parent=1 // pred_fallthru
      _
    // Predicated region
    $region38: #{autoencoder_forward.1} parent=1 // pred_check
      _
    $region39: #{autoencoder_forward.1} parent=1 // pred_check_branch
      %111 = sbr.rel (0) target = $region41
    $region40: #{autoencoder_forward.1} parent=1 // pred_region
      %s113 = ssub.s32 1024, 1024
      %114 = vsyncadd [#allocation16], %s113
      %s115 = sshll.u32 [#allocation17], 4
      %s116 = int_to_ptr.vmem [resolvable:$true] %s115
      %121 = dma.hbm_to_vmem [thread:$0]  %s12, 1024, %s116, [#allocation16], 64, 64, 4
    $region41: #{autoencoder_forward.1} parent=1 // pred_fallthru
      _
    // Predicated region
    $region42: #{autoencoder_forward.1} parent=1 // pred_check
      _
    $region43: #{autoencoder_forward.1} parent=1 // pred_check_branch
      %123 = sbr.rel (0) target = $region45
    $region44: #{autoencoder_forward.1} parent=1 // pred_region
      _
    $region45: #{autoencoder_forward.1} parent=1 // pred_fallthru
      _
    // Predicated region
    $region46: #{autoencoder_forward.1} parent=1 // pred_check
      _
    $region47: #{autoencoder_forward.1} parent=1 // pred_check_branch
      %125 = sbr.rel (0) target = $region49
    $region48: #{autoencoder_forward.1} parent=1 // pred_region
      %s127 = ssub.s32 2048, 2048
      %128 = vsyncadd [#allocation19], %s127
      %s129 = sshll.u32 [#allocation18], 4
      %s130 = int_to_ptr.vmem [resolvable:$true] %s129
      %135 = dma.hbm_to_vmem [thread:$0]  %s14, 2048, %s130, [#allocation19], 128, 128, 8
    $region49: #{autoencoder_forward.1} parent=1 // pred_fallthru
      _
    // Predicated region
    $region50: #{autoencoder_forward.1} parent=1 // pred_check
      _
    $region51: #{autoencoder_forward.1} parent=1 // pred_check_branch
      %137 = sbr.rel (0) target = $region53
    $region52: #{autoencoder_forward.1} parent=1 // pred_region
      _
    $region53: #{autoencoder_forward.1} parent=1 // pred_fallthru
      _
    // Predicated region
    $region54: #{autoencoder_forward.1} parent=1 // pred_check
      _
    $region55: #{autoencoder_forward.1} parent=1 // pred_check_branch
      %139 = sbr.rel (0) target = $region57
    $region56: #{autoencoder_forward.1} parent=1 // pred_region
      %140 = dma.done [#allocation8], 1024
    $region57: #{autoencoder_forward.1} parent=1 // pred_fallthru
      _
    // Predicated region
    $region58: #{autoencoder_forward.1} parent=1 // pred_check
      _
    $region59: #{autoencoder_forward.1} parent=1 // pred_check_branch
      %142 = sbr.rel (0) target = $region61
    $region60: #{autoencoder_forward.1} parent=1 // pred_region
      %143 = dma.done [#allocation10], 2048
    $region61: #{autoencoder_forward.1} parent=1 // pred_fallthru
      _
    // Predicated region
    $region62: #{autoencoder_forward.1} parent=1 // pred_check
      _
    $region63: #{autoencoder_forward.1} parent=1 // pred_check_branch
      %145 = sbr.rel (0) target = $region65
    $region64: #{autoencoder_forward.1} parent=1 // pred_region
      %146 = dma.done [#allocation10], 1024
    $region65: #{autoencoder_forward.1} parent=1 // pred_fallthru
      _
    // Predicated region
    $region66: #{autoencoder_forward.1} parent=1 // pred_check
      _
    $region67: #{autoencoder_forward.1} parent=1 // pred_check_branch
      %148 = sbr.rel (0) target = $region69
    $region68: #{autoencoder_forward.1} parent=1 // pred_region
      %149 = dma.done [#allocation13], 1024
    $region69: #{autoencoder_forward.1} parent=1 // pred_fallthru
      _
    // Predicated region
    $region70: #{autoencoder_forward.1} parent=1 // pred_check
      _
    $region71: #{autoencoder_forward.1} parent=1 // pred_check_branch
      %151 = sbr.rel (0) target = $region73
    $region72: #{autoencoder_forward.1} parent=1 // pred_region
      %152 = dma.done [#allocation13], 16
    $region73: #{autoencoder_forward.1} parent=1 // pred_fallthru
      _
    // Predicated region
    $region74: #{autoencoder_forward.1} parent=1 // pred_check
      _
    $region75: #{autoencoder_forward.1} parent=1 // pred_check_branch
      %154 = sbr.rel (0) target = $region77
    $region76: #{autoencoder_forward.1} parent=1 // pred_region
      %155 = dma.done [#allocation16], 2048
    $region77: #{autoencoder_forward.1} parent=1 // pred_fallthru
      _
    // Predicated region
    $region78: #{autoencoder_forward.1} parent=1 // pred_check
      _
    $region79: #{autoencoder_forward.1} parent=1 // pred_check_branch
      %157 = sbr.rel (0) target = $region81
    $region80: #{autoencoder_forward.1} parent=1 // pred_region
      %158 = dma.done [#allocation16], 1024
    $region81: #{autoencoder_forward.1} parent=1 // pred_fallthru
      _
    // Predicated region
    $region82: #{autoencoder_forward.1} parent=1 // pred_check
      _
    $region83: #{autoencoder_forward.1} parent=1 // pred_check_branch
      %160 = sbr.rel (0) target = $region85
    $region84: #{autoencoder_forward.1} parent=1 // pred_region
      %161 = dma.done [#allocation19], 2048
    $region85: #{autoencoder_forward.1} parent=1 // pred_fallthru
      _
    %s164 = smul.u32 0, 256
    loop: start=0, step=1, limit=256
    $region86: #{autoencoder_forward.1} parent=1 // loop_pre_header
      _
    $region87: #{autoencoder_forward.1} parent=1 // loop_header
      %s166 = sphi 0, %s170
      %p167 = scmp.ge.s32.totalorder %s166, 256
    $region88: #{autoencoder_forward.1} parent=1 // loop_header_branch
      %169 = sbr.rel (%p167) target = $region92
    $region89: #{autoencoder_forward.1} parent=1 // loop_body
      %s171 = sadd.s32 %s164, %s166
      %s172 = sld [smem:[#allocation6 + %s171]]
      %s173 = smul.addr %s172, 16
      %s174 = scalar_lea.hbm %s1, %s173
      %s175 = scalar_lea.vmem [#allocation2], %s166
      // Predicated region
      $region93: #{autoencoder_forward.1} parent=89 // pred_check
        _
      $region94: #{autoencoder_forward.1} parent=89 // pred_check_branch
        %177 = sbr.rel target = $region96
      $region95: #{autoencoder_forward.1} parent=89 // pred_region
        %178 = sst [smem:[#allocation22]] [#allocation21]
        %179 = sst [smem:[#allocation23]] [#allocation20]
      $region96: #{autoencoder_forward.1} parent=89 // pred_fallthru
        _
      %181 = shalt.err (0)
      %s183 = sshll.u32 %s175, 4
      %s184 = int_to_ptr.vmem [resolvable:$true] %s183
      %186 = dma.hbm_to_vmem [thread:$0]  %s174, 16, %s184, [#allocation4]
      %s187 = sshrl.u32 %s172, 3
      %s188 = sand.u32 %s172, 7
      %s189 = smul.u32 %s187, 16
      %s190 = sadd.s32 %s188, %s189
      %s191 = smul.addr %s190, 16
      %s192 = scalar_lea.hbm %s2, %s191
      %s193 = sshrl.u32 %s166, 3
      %s194 = sand.u32 %s166, 7
      %s195 = smul.u32 %s193, 16
      %s196 = sadd.s32 %s194, %s195
      %s197 = scalar_lea.vmem [#allocation3], %s196
      %s198 = scalar_lea.sflag [#allocation4], 1
      %s200 = sshll.u32 %s197, 4
      %s201 = int_to_ptr.vmem [resolvable:$true] %s200
      %203 = dma.hbm_to_vmem [thread:$0]  %s192, 32, %s201, %s198, 128, 128, 1
    $region90: #{autoencoder_forward.1} parent=1 // loop_footer
      %s170 = sadd.s32 1, %s166
    $region91: #{autoencoder_forward.1} parent=1 // loop_footer_branch
      %165 = sbr.rel target = $region87
    $region92: #{autoencoder_forward.1} parent=1 // loop_exit
      _
    loop: start=0, step=1, limit=256
    $region97: #{autoencoder_forward.1} parent=1 // loop_pre_header
      _
    $region98: #{autoencoder_forward.1} parent=1 // loop_header
      %s205 = sphi 0, %s209
      %p206 = scmp.ge.s32.totalorder %s205, 256
    $region99: #{autoencoder_forward.1} parent=1 // loop_header_branch
      %208 = sbr.rel (%p206) target = $region103
    $region100: #{autoencoder_forward.1} parent=1 // loop_body
      %s210 = smul.u32 1, 1
      %s211 = sshll.u32 %s210, 4
      %212 = dma.done [#allocation4], %s211
      %s213 = scalar_lea.sflag [#allocation4], 1
      %s214 = smul.u32 1, 2
      %s215 = sshll.u32 %s214, 4
      %216 = dma.done %s213, %s215
    $region101: #{autoencoder_forward.1} parent=1 // loop_footer
      %s209 = sadd.s32 1, %s205
    $region102: #{autoencoder_forward.1} parent=1 // loop_footer_branch
      %204 = sbr.rel target = $region98
    $region103: #{autoencoder_forward.1} parent=1 // loop_exit
      _
    %v217 = vld [vmem:[#allocation2] sm:$0xff]
    %v218 = vld [vmem:[#allocation2 + $0x8] sm:$0xff]
    %v219 = vld [vmem:[#allocation2 + $0x10] sm:$0xff]
    %v220 = vld [vmem:[#allocation2 + $0x18] sm:$0xff]
    %v221 = vld [vmem:[#allocation2 + $0x20] sm:$0xff]
    %v222 = vld [vmem:[#allocation2 + $0x28] sm:$0xff]
    %v223 = vld [vmem:[#allocation2 + $0x30] sm:$0xff]
    %v224 = vld [vmem:[#allocation2 + $0x38] sm:$0xff]
    %v225 = vld [vmem:[#allocation2 + $0x40] sm:$0xff]
    %v226 = vld [vmem:[#allocation2 + $0x48] sm:$0xff]
    %v227 = vld [vmem:[#allocation2 + $0x50] sm:$0xff]
    %v228 = vld [vmem:[#allocation2 + $0x58] sm:$0xff]
    %v229 = vld [vmem:[#allocation2 + $0x60] sm:$0xff]
    %v230 = vld [vmem:[#allocation2 + $0x68] sm:$0xff]
    %v231 = vld [vmem:[#allocation2 + $0x70] sm:$0xff]
    %v232 = vld [vmem:[#allocation2 + $0x78] sm:$0xff]
    %v233 = vld [vmem:[#allocation2 + $0x80] sm:$0xff]
    %v234 = vld [vmem:[#allocation2 + $0x88] sm:$0xff]
    %v235 = vld [vmem:[#allocation2 + $0x90] sm:$0xff]
    %v236 = vld [vmem:[#allocation2 + $0x98] sm:$0xff]
    %v237 = vld [vmem:[#allocation2 + $0xa0] sm:$0xff]
    %v238 = vld [vmem:[#allocation2 + $0xa8] sm:$0xff]
    %v239 = vld [vmem:[#allocation2 + $0xb0] sm:$0xff]
    %v240 = vld [vmem:[#allocation2 + $0xb8] sm:$0xff]
    %v241 = vld [vmem:[#allocation2 + $0xc0] sm:$0xff]
    %v242 = vld [vmem:[#allocation2 + $0xc8] sm:$0xff]
    %v243 = vld [vmem:[#allocation2 + $0xd0] sm:$0xff]
    %v244 = vld [vmem:[#allocation2 + $0xd8] sm:$0xff]
    %v245 = vld [vmem:[#allocation2 + $0xe0] sm:$0xff]
    %v246 = vld [vmem:[#allocation2 + $0xe8] sm:$0xff]
    %v247 = vld [vmem:[#allocation2 + $0xf0] sm:$0xff]
    %v248 = vld [vmem:[#allocation2 + $0xf8] sm:$0xff]
    %v249 = vld [vmem:[#allocation3] sm:$0xff]
    %v250 = vld [vmem:[#allocation3 + $0x8] sm:$0xff]
    %v251 = vld [vmem:[#allocation3 + $0x10] sm:$0xff]
    %v252 = vld [vmem:[#allocation3 + $0x18] sm:$0xff]
    %v253 = vld [vmem:[#allocation3 + $0x20] sm:$0xff]
    %v254 = vld [vmem:[#allocation3 + $0x28] sm:$0xff]
    %v255 = vld [vmem:[#allocation3 + $0x30] sm:$0xff]
    %v256 = vld [vmem:[#allocation3 + $0x38] sm:$0xff]
    %v257 = vld [vmem:[#allocation3 + $0x40] sm:$0xff]
    %v258 = vld [vmem:[#allocation3 + $0x48] sm:$0xff]
    %v259 = vld [vmem:[#allocation3 + $0x50] sm:$0xff]
    %v260 = vld [vmem:[#allocation3 + $0x58] sm:$0xff]
    %v261 = vld [vmem:[#allocation3 + $0x60] sm:$0xff]
    %v262 = vld [vmem:[#allocation3 + $0x68] sm:$0xff]
    %v263 = vld [vmem:[#allocation3 + $0x70] sm:$0xff]
    %v264 = vld [vmem:[#allocation3 + $0x78] sm:$0xff]
    %v265 = vld [vmem:[#allocation3 + $0x80] sm:$0xff]
    %v266 = vld [vmem:[#allocation3 + $0x88] sm:$0xff]
    %v267 = vld [vmem:[#allocation3 + $0x90] sm:$0xff]
    %v268 = vld [vmem:[#allocation3 + $0x98] sm:$0xff]
    %v269 = vld [vmem:[#allocation3 + $0xa0] sm:$0xff]
    %v270 = vld [vmem:[#allocation3 + $0xa8] sm:$0xff]
    %v271 = vld [vmem:[#allocation3 + $0xb0] sm:$0xff]
    %v272 = vld [vmem:[#allocation3 + $0xb8] sm:$0xff]
    %v273 = vld [vmem:[#allocation3 + $0xc0] sm:$0xff]
    %v274 = vld [vmem:[#allocation3 + $0xc8] sm:$0xff]
    %v275 = vld [vmem:[#allocation3 + $0xd0] sm:$0xff]
    %v276 = vld [vmem:[#allocation3 + $0xd8] sm:$0xff]
    %v277 = vld [vmem:[#allocation3 + $0xe0] sm:$0xff]
    %v278 = vld [vmem:[#allocation3 + $0xe8] sm:$0xff]
    %v279 = vld [vmem:[#allocation3 + $0xf0] sm:$0xff]
    %v280 = vld [vmem:[#allocation3 + $0xf8] sm:$0xff]
    %v281 = vld [vmem:[#allocation3 + $0x100] sm:$0xff]
    %v282 = vld [vmem:[#allocation3 + $0x108] sm:$0xff]
    %v283 = vld [vmem:[#allocation3 + $0x110] sm:$0xff]
    %v284 = vld [vmem:[#allocation3 + $0x118] sm:$0xff]
    %v285 = vld [vmem:[#allocation3 + $0x120] sm:$0xff]
    %v286 = vld [vmem:[#allocation3 + $0x128] sm:$0xff]
    %v287 = vld [vmem:[#allocation3 + $0x130] sm:$0xff]
    %v288 = vld [vmem:[#allocation3 + $0x138] sm:$0xff]
    %v289 = vld [vmem:[#allocation3 + $0x140] sm:$0xff]
    %v290 = vld [vmem:[#allocation3 + $0x148] sm:$0xff]
    %v291 = vld [vmem:[#allocation3 + $0x150] sm:$0xff]
    %v292 = vld [vmem:[#allocation3 + $0x158] sm:$0xff]
    %v293 = vld [vmem:[#allocation3 + $0x160] sm:$0xff]
    %v294 = vld [vmem:[#allocation3 + $0x168] sm:$0xff]
    %v295 = vld [vmem:[#allocation3 + $0x170] sm:$0xff]
    %v296 = vld [vmem:[#allocation3 + $0x178] sm:$0xff]
    %v297 = vld [vmem:[#allocation3 + $0x180] sm:$0xff]
    %v298 = vld [vmem:[#allocation3 + $0x188] sm:$0xff]
    %v299 = vld [vmem:[#allocation3 + $0x190] sm:$0xff]
    %v300 = vld [vmem:[#allocation3 + $0x198] sm:$0xff]
    %v301 = vld [vmem:[#allocation3 + $0x1a0] sm:$0xff]
    %v302 = vld [vmem:[#allocation3 + $0x1a8] sm:$0xff]
    %v303 = vld [vmem:[#allocation3 + $0x1b0] sm:$0xff]
    %v304 = vld [vmem:[#allocation3 + $0x1b8] sm:$0xff]
    %v305 = vld [vmem:[#allocation3 + $0x1c0] sm:$0xff]
    %v306 = vld [vmem:[#allocation3 + $0x1c8] sm:$0xff]
    %v307 = vld [vmem:[#allocation3 + $0x1d0] sm:$0xff]
    %v308 = vld [vmem:[#allocation3 + $0x1d8] sm:$0xff]
    %v309 = vld [vmem:[#allocation3 + $0x1e0] sm:$0xff]
    %v310 = vld [vmem:[#allocation3 + $0x1e8] sm:$0xff]
    %v311 = vld [vmem:[#allocation3 + $0x1f0] sm:$0xff]
    %v312 = vld [vmem:[#allocation3 + $0x1f8] sm:$0xff]
    %v313 = vpack.c.bf16 %v218, %v217
    %v314 = vpack.c.bf16 %v220, %v219
    %v315 = vpack.c.bf16 %v222, %v221
    %v316 = vpack.c.bf16 %v224, %v223
    %v317 = vpack.c.bf16 %v226, %v225
    %v318 = vpack.c.bf16 %v228, %v227
    %v319 = vpack.c.bf16 %v230, %v229
    %v320 = vpack.c.bf16 %v232, %v231
    %v321 = vpack.c.bf16 %v234, %v233
    %v322 = vpack.c.bf16 %v236, %v235
    %v323 = vpack.c.bf16 %v238, %v237
    %v324 = vpack.c.bf16 %v240, %v239
    %v325 = vpack.c.bf16 %v242, %v241
    %v326 = vpack.c.bf16 %v244, %v243
    %v327 = vpack.c.bf16 %v246, %v245
    %v328 = vpack.c.bf16 %v248, %v247
    %v329 = vld [vmem:[#allocation7] sm:$0xf]
    %v330 = vld [vmem:[#allocation7 + $0x4] sm:$0xf]
    %v331 = vld [vmem:[#allocation7 + $0x8] sm:$0xf]
    %v332 = vld [vmem:[#allocation7 + $0xc] sm:$0xf]
    %v333 = vld [vmem:[#allocation7 + $0x10] sm:$0xf]
    %v334 = vld [vmem:[#allocation7 + $0x14] sm:$0xf]
    %v335 = vld [vmem:[#allocation7 + $0x18] sm:$0xf]
    %v336 = vld [vmem:[#allocation7 + $0x1c] sm:$0xf]
    %v337 = vld [vmem:[#allocation7 + $0x20] sm:$0xf]
    %v338 = vld [vmem:[#allocation7 + $0x24] sm:$0xf]
    %v339 = vld [vmem:[#allocation7 + $0x28] sm:$0xf]
    %v340 = vld [vmem:[#allocation7 + $0x2c] sm:$0xf]
    %v341 = vld [vmem:[#allocation7 + $0x30] sm:$0xf]
    %v342 = vld [vmem:[#allocation7 + $0x34] sm:$0xf]
    %v343 = vld [vmem:[#allocation7 + $0x38] sm:$0xf]
    %v344 = vld [vmem:[#allocation7 + $0x3c] sm:$0xf]
    %v345 = vld [vmem:[%s4] sm:$0x1]
    %v347 = vlaneseq
    %v348 = vshrl.u32 %v347, 7
    %v349 = vsub.s32 0, %v348
    %v350 = vrot.slane %v345, %v349
    %v368 = vunpack.c.l.b16 %v329
    %v369 = vunpack.c.l.b16 %v330
    %v370 = vunpack.c.l.b16 %v331
    %v371 = vunpack.c.l.b16 %v332
    %v372 = vunpack.c.l.b16 %v333
    %v373 = vunpack.c.l.b16 %v334
    %v374 = vunpack.c.l.b16 %v335
    %v375 = vunpack.c.l.b16 %v336
    %v376 = vunpack.c.l.b16 %v337
    %v377 = vunpack.c.l.b16 %v338
    %v378 = vunpack.c.l.b16 %v339
    %v379 = vunpack.c.l.b16 %v340
    %v380 = vunpack.c.l.b16 %v341
    %v381 = vunpack.c.l.b16 %v342
    %v382 = vunpack.c.l.b16 %v343
    %v383 = vunpack.c.l.b16 %v344
    %v384 = vpack.c.b16 %v369, %v368
    %v385 = vpack.c.b16 %v371, %v370
    %v386 = vpack.c.b16 %v373, %v372
    %v387 = vpack.c.b16 %v375, %v374
    %v388 = vpack.c.b16 %v377, %v376
    %v389 = vpack.c.b16 %v379, %v378
    %v390 = vpack.c.b16 %v381, %v380
    %v391 = vpack.c.b16 %v383, %v382
    %400 = vmatprep.subr.bf16.mxu0 0
    %401 = vmatpush1.bf16.msra.mxu0 %v391
    %402 = vmatprep.subr.bf16.mxu0 0
    %403 = vmatpush1.bf16.msra.mxu0 %v390
    %404 = vmatprep.subr.bf16.mxu0 0
    %405 = vmatpush1.bf16.msra.mxu0 %v389
    %406 = vmatprep.subr.bf16.mxu0 0
    %407 = vmatpush1.bf16.msra.mxu0 %v388
    %408 = vmatprep.subr.bf16.mxu0 0
    %409 = vmatpush1.bf16.msra.mxu0 %v387
    %410 = vmatprep.subr.bf16.mxu0 0
    %411 = vmatpush1.bf16.msra.mxu0 %v386
    %412 = vmatprep.subr.bf16.mxu0 0
    %413 = vmatpush1.bf16.msra.mxu0 %v385
    %414 = vmatprep.subr.bf16.mxu0 0
    %415 = vmatpush1.bf16.msra.mxu0 %v384
    %416 = vmatprep.subr.bf16.mxu0 0
    %417 = vmatpush2.bf16.msra.mxu0 0
    %418 = vmatprep.subr.bf16.mxu0 0
    %419 = vmatpush2.bf16.msra.mxu0 0
    %420 = vmatprep.subr.bf16.mxu0 0
    %421 = vmatpush2.bf16.msra.mxu0 0
    %422 = vmatprep.subr.bf16.mxu0 0
    %423 = vmatpush2.bf16.msra.mxu0 0
    %424 = vmatprep.subr.bf16.mxu0 0
    %425 = vmatpush2.bf16.msra.mxu0 0
    %426 = vmatprep.subr.bf16.mxu0 0
    %427 = vmatpush2.bf16.msra.mxu0 0
    %428 = vmatprep.subr.bf16.mxu0 0
    %429 = vmatpush2.bf16.msra.mxu0 0
    %430 = vmatprep.subr.bf16.mxu0 0
    %431 = vmatpush2.bf16.msra.mxu0 0
    %432 = vmatprep.mubr.bf16.mxu0 0
    %433 = vmatmul.mubr.bf16.gmra.mxu0 %v313
    %v434 = vpop.f32.mrf.mxu0
    %v435 = vadd.f32 %v350, %v434
    %v436 = vpop.f32.mrf.mxu0
    %v437 = vpop.f32.mrf.mxu0
    %v438 = vadd.f32 %v350, %v437
    %v439 = vpop.f32.mrf.mxu0
    %440 = vmatprep.mubr.bf16.mxu0 0
    %441 = vmatmul.mubr.bf16.gmra.mxu0 %v314
    %v442 = vpop.f32.mrf.mxu0
    %v443 = vadd.f32 %v350, %v442
    %v444 = vpop.f32.mrf.mxu0
    %v445 = vpop.f32.mrf.mxu0
    %v446 = vadd.f32 %v350, %v445
    %v447 = vpop.f32.mrf.mxu0
    %448 = vmatprep.mubr.bf16.mxu0 0
    %449 = vmatmul.mubr.bf16.gmra.mxu0 %v315
    %v450 = vpop.f32.mrf.mxu0
    %v451 = vadd.f32 %v350, %v450
    %v452 = vpop.f32.mrf.mxu0
    %v453 = vpop.f32.mrf.mxu0
    %v454 = vadd.f32 %v350, %v453
    %v455 = vpop.f32.mrf.mxu0
    %456 = vmatprep.mubr.bf16.mxu0 0
    %457 = vmatmul.mubr.bf16.gmra.mxu0 %v316
    %v458 = vpop.f32.mrf.mxu0
    %v459 = vadd.f32 %v350, %v458
    %v460 = vpop.f32.mrf.mxu0
    %v461 = vpop.f32.mrf.mxu0
    %v462 = vadd.f32 %v350, %v461
    %v463 = vpop.f32.mrf.mxu0
    %464 = vmatprep.mubr.bf16.mxu0 0
    %465 = vmatmul.mubr.bf16.gmra.mxu0 %v317
    %v466 = vpop.f32.mrf.mxu0
    %v467 = vadd.f32 %v350, %v466
    %v468 = vpop.f32.mrf.mxu0
    %v469 = vpop.f32.mrf.mxu0
    %v470 = vadd.f32 %v350, %v469
    %v471 = vpop.f32.mrf.mxu0
    %472 = vmatprep.mubr.bf16.mxu0 0
    %473 = vmatmul.mubr.bf16.gmra.mxu0 %v318
    %v474 = vpop.f32.mrf.mxu0
    %v475 = vadd.f32 %v350, %v474
    %v476 = vpop.f32.mrf.mxu0
    %v477 = vpop.f32.mrf.mxu0
    %v478 = vadd.f32 %v350, %v477
    %v479 = vpop.f32.mrf.mxu0
    %480 = vmatprep.mubr.bf16.mxu0 0
    %481 = vmatmul.mubr.bf16.gmra.mxu0 %v319
    %v482 = vpop.f32.mrf.mxu0
    %v483 = vadd.f32 %v350, %v482
    %v484 = vpop.f32.mrf.mxu0
    %v485 = vpop.f32.mrf.mxu0
    %v486 = vadd.f32 %v350, %v485
    %v487 = vpop.f32.mrf.mxu0
    %488 = vmatprep.mubr.bf16.mxu0 0
    %489 = vmatmul.mubr.bf16.gmra.mxu0 %v320
    %v490 = vpop.f32.mrf.mxu0
    %v491 = vadd.f32 %v350, %v490
    %v492 = vpop.f32.mrf.mxu0
    %v493 = vpop.f32.mrf.mxu0
    %v494 = vadd.f32 %v350, %v493
    %v495 = vpop.f32.mrf.mxu0
    %496 = vmatprep.mubr.bf16.mxu0 0
    %497 = vmatmul.mubr.bf16.gmra.mxu0 %v321
    %v498 = vpop.f32.mrf.mxu0
    %v499 = vadd.f32 %v350, %v498
    %v500 = vpop.f32.mrf.mxu0
    %v501 = vpop.f32.mrf.mxu0
    %v502 = vadd.f32 %v350, %v501
    %v503 = vpop.f32.mrf.mxu0
    %504 = vmatprep.mubr.bf16.mxu0 0
    %505 = vmatmul.mubr.bf16.gmra.mxu0 %v322
    %v506 = vpop.f32.mrf.mxu0
    %v507 = vadd.f32 %v350, %v506
    %v508 = vpop.f32.mrf.mxu0
    %v509 = vpop.f32.mrf.mxu0
    %v510 = vadd.f32 %v350, %v509
    %v511 = vpop.f32.mrf.mxu0
    %512 = vmatprep.mubr.bf16.mxu0 0
    %513 = vmatmul.mubr.bf16.gmra.mxu0 %v323
    %v514 = vpop.f32.mrf.mxu0
    %v515 = vadd.f32 %v350, %v514
    %v516 = vpop.f32.mrf.mxu0
    %v517 = vpop.f32.mrf.mxu0
    %v518 = vadd.f32 %v350, %v517
    %v519 = vpop.f32.mrf.mxu0
    %520 = vmatprep.mubr.bf16.mxu0 0
    %521 = vmatmul.mubr.bf16.gmra.mxu0 %v324
    %v522 = vpop.f32.mrf.mxu0
    %v523 = vadd.f32 %v350, %v522
    %v524 = vpop.f32.mrf.mxu0
    %v525 = vpop.f32.mrf.mxu0
    %v526 = vadd.f32 %v350, %v525
    %v527 = vpop.f32.mrf.mxu0
    %528 = vmatprep.mubr.bf16.mxu0 0
    %529 = vmatmul.mubr.bf16.gmra.mxu0 %v325
    %v530 = vpop.f32.mrf.mxu0
    %v531 = vadd.f32 %v350, %v530
    %v532 = vpop.f32.mrf.mxu0
    %v533 = vpop.f32.mrf.mxu0
    %v534 = vadd.f32 %v350, %v533
    %v535 = vpop.f32.mrf.mxu0
    %536 = vmatprep.mubr.bf16.mxu0 0
    %537 = vmatmul.mubr.bf16.gmra.mxu0 %v326
    %v538 = vpop.f32.mrf.mxu0
    %v539 = vadd.f32 %v350, %v538
    %v540 = vpop.f32.mrf.mxu0
    %v541 = vpop.f32.mrf.mxu0
    %v542 = vadd.f32 %v350, %v541
    %v543 = vpop.f32.mrf.mxu0
    %544 = vmatprep.mubr.bf16.mxu0 0
    %545 = vmatmul.mubr.bf16.gmra.mxu0 %v327
    %v546 = vpop.f32.mrf.mxu0
    %v547 = vadd.f32 %v350, %v546
    %v548 = vpop.f32.mrf.mxu0
    %v549 = vpop.f32.mrf.mxu0
    %v550 = vadd.f32 %v350, %v549
    %v551 = vpop.f32.mrf.mxu0
    %552 = vmatprep.mubr.bf16.mxu0 0
    %553 = vmatmul.mubr.bf16.gmra.mxu0 %v328
    %v554 = vpop.f32.mrf.mxu0
    %v555 = vadd.f32 %v350, %v554
    %v556 = vpop.f32.mrf.mxu0
    %v557 = vpop.f32.mrf.mxu0
    %v558 = vadd.f32 %v350, %v557
    %v559 = vpop.f32.mrf.mxu0
    %560 = vdwg.mxu0
    %v561 = vxor.u32 %v435, 2147483648
    %v562 = vxor.u32 %v438, 2147483648
    %v563 = vxor.u32 %v443, 2147483648
    %v564 = vxor.u32 %v446, 2147483648
    %v565 = vxor.u32 %v451, 2147483648
    %v566 = vxor.u32 %v454, 2147483648
    %v567 = vxor.u32 %v459, 2147483648
    %v568 = vxor.u32 %v462, 2147483648
    %v569 = vxor.u32 %v467, 2147483648
    %v570 = vxor.u32 %v470, 2147483648
    %v571 = vxor.u32 %v475, 2147483648
    %v572 = vxor.u32 %v478, 2147483648
    %v573 = vxor.u32 %v483, 2147483648
    %v574 = vxor.u32 %v486, 2147483648
    %v575 = vxor.u32 %v491, 2147483648
    %v576 = vxor.u32 %v494, 2147483648
    %v577 = vxor.u32 %v499, 2147483648
    %v578 = vxor.u32 %v502, 2147483648
    %v579 = vxor.u32 %v507, 2147483648
    %v580 = vxor.u32 %v510, 2147483648
    %v581 = vxor.u32 %v515, 2147483648
    %v582 = vxor.u32 %v518, 2147483648
    %v583 = vxor.u32 %v523, 2147483648
    %v584 = vxor.u32 %v526, 2147483648
    %v585 = vxor.u32 %v531, 2147483648
    %v586 = vxor.u32 %v534, 2147483648
    %v587 = vxor.u32 %v539, 2147483648
    %v588 = vxor.u32 %v542, 2147483648
    %v589 = vxor.u32 %v547, 2147483648
    %v590 = vxor.u32 %v550, 2147483648
    %v591 = vxor.u32 %v555, 2147483648
    %v592 = vxor.u32 %v558, 2147483648
    %v593 = vmul.f32 %v561, 1.442695
    %v594 = vpow.pop %v593
    %v595 = vmul.f32 %v562, 1.442695
    %v596 = vpow.pop %v595
    %v597 = vmul.f32 %v563, 1.442695
    %v598 = vpow.pop %v597
    %v599 = vmul.f32 %v564, 1.442695
    %v600 = vpow.pop %v599
    %v601 = vmul.f32 %v565, 1.442695
    %v602 = vpow.pop %v601
    %v603 = vmul.f32 %v566, 1.442695
    %v604 = vpow.pop %v603
    %v605 = vmul.f32 %v567, 1.442695
    %v606 = vpow.pop %v605
    %v607 = vmul.f32 %v568, 1.442695
    %v608 = vpow.pop %v607
    %v609 = vmul.f32 %v569, 1.442695
    %v610 = vpow.pop %v609
    %v611 = vmul.f32 %v570, 1.442695
    %v612 = vpow.pop %v611
    %v613 = vmul.f32 %v571, 1.442695
    %v614 = vpow.pop %v613
    %v615 = vmul.f32 %v572, 1.442695
    %v616 = vpow.pop %v615
    %v617 = vmul.f32 %v573, 1.442695
    %v618 = vpow.pop %v617
    %v619 = vmul.f32 %v574, 1.442695
    %v620 = vpow.pop %v619
    %v621 = vmul.f32 %v575, 1.442695
    %v622 = vpow.pop %v621
    %v623 = vmul.f32 %v576, 1.442695
    %v624 = vpow.pop %v623
    %v625 = vmul.f32 %v577, 1.442695
    %v626 = vpow.pop %v625
    %v627 = vmul.f32 %v578, 1.442695
    %v628 = vpow.pop %v627
    %v629 = vmul.f32 %v579, 1.442695
    %v630 = vpow.pop %v629
    %v631 = vmul.f32 %v580, 1.442695
    %v632 = vpow.pop %v631
    %v633 = vmul.f32 %v581, 1.442695
    %v634 = vpow.pop %v633
    %v635 = vmul.f32 %v582, 1.442695
    %v636 = vpow.pop %v635
    %v637 = vmul.f32 %v583, 1.442695
    %v638 = vpow.pop %v637
    %v639 = vmul.f32 %v584, 1.442695
    %v640 = vpow.pop %v639
    %v641 = vmul.f32 %v585, 1.442695
    %v642 = vpow.pop %v641
    %v643 = vmul.f32 %v586, 1.442695
    %v644 = vpow.pop %v643
    %v645 = vmul.f32 %v587, 1.442695
    %v646 = vpow.pop %v645
    %v647 = vmul.f32 %v588, 1.442695
    %v648 = vpow.pop %v647
    %v649 = vmul.f32 %v589, 1.442695
    %v650 = vpow.pop %v649
    %v651 = vmul.f32 %v590, 1.442695
    %v652 = vpow.pop %v651
    %v653 = vmul.f32 %v591, 1.442695
    %v654 = vpow.pop %v653
    %v655 = vmul.f32 %v592, 1.442695
    %v656 = vpow.pop %v655
    %v657 = vadd.f32 %v594, 1.0
    %v658 = vadd.f32 %v596, 1.0
    %v659 = vadd.f32 %v598, 1.0
    %v660 = vadd.f32 %v600, 1.0
    %v661 = vadd.f32 %v602, 1.0
    %v662 = vadd.f32 %v604, 1.0
    %v663 = vadd.f32 %v606, 1.0
    %v664 = vadd.f32 %v608, 1.0
    %v665 = vadd.f32 %v610, 1.0
    %v666 = vadd.f32 %v612, 1.0
    %v667 = vadd.f32 %v614, 1.0
    %v668 = vadd.f32 %v616, 1.0
    %v669 = vadd.f32 %v618, 1.0
    %v670 = vadd.f32 %v620, 1.0
    %v671 = vadd.f32 %v622, 1.0
    %v672 = vadd.f32 %v624, 1.0
    %v673 = vadd.f32 %v626, 1.0
    %v674 = vadd.f32 %v628, 1.0
    %v675 = vadd.f32 %v630, 1.0
    %v676 = vadd.f32 %v632, 1.0
    %v677 = vadd.f32 %v634, 1.0
    %v678 = vadd.f32 %v636, 1.0
    %v679 = vadd.f32 %v638, 1.0
    %v680 = vadd.f32 %v640, 1.0
    %v681 = vadd.f32 %v642, 1.0
    %v682 = vadd.f32 %v644, 1.0
    %v683 = vadd.f32 %v646, 1.0
    %v684 = vadd.f32 %v648, 1.0
    %v685 = vadd.f32 %v650, 1.0
    %v686 = vadd.f32 %v652, 1.0
    %v687 = vadd.f32 %v654, 1.0
    %v688 = vadd.f32 %v656, 1.0
    %v689 = vrcp.pop %v657
    %v690 = vmul.f32 1.0, %v689
    %v691 = vrcp.pop %v658
    %v692 = vmul.f32 1.0, %v691
    %v693 = vrcp.pop %v659
    %v694 = vmul.f32 1.0, %v693
    %v695 = vrcp.pop %v660
    %v696 = vmul.f32 1.0, %v695
    %v697 = vrcp.pop %v661
    %v698 = vmul.f32 1.0, %v697
    %v699 = vrcp.pop %v662
    %v700 = vmul.f32 1.0, %v699
    %v701 = vrcp.pop %v663
    %v702 = vmul.f32 1.0, %v701
    %v703 = vrcp.pop %v664
    %v704 = vmul.f32 1.0, %v703
    %v705 = vrcp.pop %v665
    %v706 = vmul.f32 1.0, %v705
    %v707 = vrcp.pop %v666
    %v708 = vmul.f32 1.0, %v707
    %v709 = vrcp.pop %v667
    %v710 = vmul.f32 1.0, %v709
    %v711 = vrcp.pop %v668
    %v712 = vmul.f32 1.0, %v711
    %v713 = vrcp.pop %v669
    %v714 = vmul.f32 1.0, %v713
    %v715 = vrcp.pop %v670
    %v716 = vmul.f32 1.0, %v715
    %v717 = vrcp.pop %v671
    %v718 = vmul.f32 1.0, %v717
    %v719 = vrcp.pop %v672
    %v720 = vmul.f32 1.0, %v719
    %v721 = vrcp.pop %v673
    %v722 = vmul.f32 1.0, %v721
    %v723 = vrcp.pop %v674
    %v724 = vmul.f32 1.0, %v723
    %v725 = vrcp.pop %v675
    %v726 = vmul.f32 1.0, %v725
    %v727 = vrcp.pop %v676
    %v728 = vmul.f32 1.0, %v727
    %v729 = vrcp.pop %v677
    %v730 = vmul.f32 1.0, %v729
    %v731 = vrcp.pop %v678
    %v732 = vmul.f32 1.0, %v731
    %v733 = vrcp.pop %v679
    %v734 = vmul.f32 1.0, %v733
    %v735 = vrcp.pop %v680
    %v736 = vmul.f32 1.0, %v735
    %v737 = vrcp.pop %v681
    %v738 = vmul.f32 1.0, %v737
    %v739 = vrcp.pop %v682
    %v740 = vmul.f32 1.0, %v739
    %v741 = vrcp.pop %v683
    %v742 = vmul.f32 1.0, %v741
    %v743 = vrcp.pop %v684
    %v744 = vmul.f32 1.0, %v743
    %v745 = vrcp.pop %v685
    %v746 = vmul.f32 1.0, %v745
    %v747 = vrcp.pop %v686
    %v748 = vmul.f32 1.0, %v747
    %v749 = vrcp.pop %v687
    %v750 = vmul.f32 1.0, %v749
    %v751 = vrcp.pop %v688
    %v752 = vmul.f32 1.0, %v751
    %v753 = vpack.c.bf16 %v692, %v690
    %v754 = vpack.c.bf16 %v696, %v694
    %v755 = vpack.c.bf16 %v700, %v698
    %v756 = vpack.c.bf16 %v704, %v702
    %v757 = vpack.c.bf16 %v708, %v706
    %v758 = vpack.c.bf16 %v712, %v710
    %v759 = vpack.c.bf16 %v716, %v714
    %v760 = vpack.c.bf16 %v720, %v718
    %v761 = vpack.c.bf16 %v724, %v722
    %v762 = vpack.c.bf16 %v728, %v726
    %v763 = vpack.c.bf16 %v732, %v730
    %v764 = vpack.c.bf16 %v736, %v734
    %v765 = vpack.c.bf16 %v740, %v738
    %v766 = vpack.c.bf16 %v744, %v742
    %v767 = vpack.c.bf16 %v748, %v746
    %v768 = vpack.c.bf16 %v752, %v750
    %v769 = vpack.c.bf16 %v251, %v249
    %v770 = vpack.c.bf16 %v252, %v250
    %v771 = vpack.c.bf16 %v255, %v253
    %v772 = vpack.c.bf16 %v256, %v254
    %v773 = vpack.c.bf16 %v259, %v257
    %v774 = vpack.c.bf16 %v260, %v258
    %v775 = vpack.c.bf16 %v263, %v261
    %v776 = vpack.c.bf16 %v264, %v262
    %v777 = vpack.c.bf16 %v267, %v265
    %v778 = vpack.c.bf16 %v268, %v266
    %v779 = vpack.c.bf16 %v271, %v269
    %v780 = vpack.c.bf16 %v272, %v270
    %v781 = vpack.c.bf16 %v275, %v273
    %v782 = vpack.c.bf16 %v276, %v274
    %v783 = vpack.c.bf16 %v279, %v277
    %v784 = vpack.c.bf16 %v280, %v278
    %v785 = vpack.c.bf16 %v283, %v281
    %v786 = vpack.c.bf16 %v284, %v282
    %v787 = vpack.c.bf16 %v287, %v285
    %v788 = vpack.c.bf16 %v288, %v286
    %v789 = vpack.c.bf16 %v291, %v289
    %v790 = vpack.c.bf16 %v292, %v290
    %v791 = vpack.c.bf16 %v295, %v293
    %v792 = vpack.c.bf16 %v296, %v294
    %v793 = vpack.c.bf16 %v299, %v297
    %v794 = vpack.c.bf16 %v300, %v298
    %v795 = vpack.c.bf16 %v303, %v301
    %v796 = vpack.c.bf16 %v304, %v302
    %v797 = vpack.c.bf16 %v307, %v305
    %v798 = vpack.c.bf16 %v308, %v306
    %v799 = vpack.c.bf16 %v311, %v309
    %v800 = vpack.c.bf16 %v312, %v310
    %v801 = vld [vmem:[#allocation9] sm:$0xf]
    %v802 = vld [vmem:[#allocation9 + $0x4] sm:$0xf]
    %v803 = vld [vmem:[#allocation9 + $0x8] sm:$0xf]
    %v804 = vld [vmem:[#allocation9 + $0xc] sm:$0xf]
    %v805 = vld [vmem:[#allocation9 + $0x10] sm:$0xf]
    %v806 = vld [vmem:[#allocation9 + $0x14] sm:$0xf]
    %v807 = vld [vmem:[#allocation9 + $0x18] sm:$0xf]
    %v808 = vld [vmem:[#allocation9 + $0x1c] sm:$0xf]
    %v809 = vld [vmem:[#allocation9 + $0x20] sm:$0xf]
    %v810 = vld [vmem:[#allocation9 + $0x24] sm:$0xf]
    %v811 = vld [vmem:[#allocation9 + $0x28] sm:$0xf]
    %v812 = vld [vmem:[#allocation9 + $0x2c] sm:$0xf]
    %v813 = vld [vmem:[#allocation9 + $0x30] sm:$0xf]
    %v814 = vld [vmem:[#allocation9 + $0x34] sm:$0xf]
    %v815 = vld [vmem:[#allocation9 + $0x38] sm:$0xf]
    %v816 = vld [vmem:[#allocation9 + $0x3c] sm:$0xf]
    %v817 = vld [vmem:[#allocation9 + $0x40] sm:$0xf]
    %v818 = vld [vmem:[#allocation9 + $0x44] sm:$0xf]
    %v819 = vld [vmem:[#allocation9 + $0x48] sm:$0xf]
    %v820 = vld [vmem:[#allocation9 + $0x4c] sm:$0xf]
    %v821 = vld [vmem:[#allocation9 + $0x50] sm:$0xf]
    %v822 = vld [vmem:[#allocation9 + $0x54] sm:$0xf]
    %v823 = vld [vmem:[#allocation9 + $0x58] sm:$0xf]
    %v824 = vld [vmem:[#allocation9 + $0x5c] sm:$0xf]
    %v825 = vld [vmem:[#allocation9 + $0x60] sm:$0xf]
    %v826 = vld [vmem:[#allocation9 + $0x64] sm:$0xf]
    %v827 = vld [vmem:[#allocation9 + $0x68] sm:$0xf]
    %v828 = vld [vmem:[#allocation9 + $0x6c] sm:$0xf]
    %v829 = vld [vmem:[#allocation9 + $0x70] sm:$0xf]
    %v830 = vld [vmem:[#allocation9 + $0x74] sm:$0xf]
    %v831 = vld [vmem:[#allocation9 + $0x78] sm:$0xf]
    %v832 = vld [vmem:[#allocation9 + $0x7c] sm:$0xf]
    %v833 = vld [vmem:[%s6] sm:$0x1]
    %v835 = vlaneseq
    %v836 = vshrl.u32 %v835, 7
    %v837 = vsub.s32 0, %v836
    %v838 = vrot.slane %v833, %v837
    %v872 = vunpack.c.l.b16 %v801
    %v873 = vunpack.c.l.b16 %v802
    %v874 = vunpack.c.l.b16 %v803
    %v875 = vunpack.c.l.b16 %v804
    %v876 = vunpack.c.l.b16 %v805
    %v877 = vunpack.c.l.b16 %v806
    %v878 = vunpack.c.l.b16 %v807
    %v879 = vunpack.c.l.b16 %v808
    %v880 = vunpack.c.l.b16 %v809
    %v881 = vunpack.c.l.b16 %v810
    %v882 = vunpack.c.l.b16 %v811
    %v883 = vunpack.c.l.b16 %v812
    %v884 = vunpack.c.l.b16 %v813
    %v885 = vunpack.c.l.b16 %v814
    %v886 = vunpack.c.l.b16 %v815
    %v887 = vunpack.c.l.b16 %v816
    %v888 = vunpack.c.l.b16 %v817
    %v889 = vunpack.c.l.b16 %v818
    %v890 = vunpack.c.l.b16 %v819
    %v891 = vunpack.c.l.b16 %v820
    %v892 = vunpack.c.l.b16 %v821
    %v893 = vunpack.c.l.b16 %v822
    %v894 = vunpack.c.l.b16 %v823
    %v895 = vunpack.c.l.b16 %v824
    %v896 = vunpack.c.l.b16 %v825
    %v897 = vunpack.c.l.b16 %v826
    %v898 = vunpack.c.l.b16 %v827
    %v899 = vunpack.c.l.b16 %v828
    %v900 = vunpack.c.l.b16 %v829
    %v901 = vunpack.c.l.b16 %v830
    %v902 = vunpack.c.l.b16 %v831
    %v903 = vunpack.c.l.b16 %v832
    %v904 = vpack.c.b16 %v873, %v872
    %v905 = vpack.c.b16 %v875, %v874
    %v906 = vpack.c.b16 %v877, %v876
    %v907 = vpack.c.b16 %v879, %v878
    %v908 = vpack.c.b16 %v881, %v880
    %v909 = vpack.c.b16 %v883, %v882
    %v910 = vpack.c.b16 %v885, %v884
    %v911 = vpack.c.b16 %v887, %v886
    %v912 = vpack.c.b16 %v889, %v888
    %v913 = vpack.c.b16 %v891, %v890
    %v914 = vpack.c.b16 %v893, %v892
    %v915 = vpack.c.b16 %v895, %v894
    %v916 = vpack.c.b16 %v897, %v896
    %v917 = vpack.c.b16 %v899, %v898
    %v918 = vpack.c.b16 %v901, %v900
    %v919 = vpack.c.b16 %v903, %v902
    %936 = vmatprep.subr.bf16.mxu0 0
    %937 = vmatpush1.bf16.msra.mxu0 %v911
    %938 = vmatprep.subr.bf16.mxu0 0
    %939 = vmatpush1.bf16.msra.mxu0 %v910
    %940 = vmatprep.subr.bf16.mxu0 0
    %941 = vmatpush1.bf16.msra.mxu0 %v909
    %942 = vmatprep.subr.bf16.mxu0 0
    %943 = vmatpush1.bf16.msra.mxu0 %v908
    %944 = vmatprep.subr.bf16.mxu0 0
    %945 = vmatpush1.bf16.msra.mxu0 %v907
    %946 = vmatprep.subr.bf16.mxu0 0
    %947 = vmatpush1.bf16.msra.mxu0 %v906
    %948 = vmatprep.subr.bf16.mxu0 0
    %949 = vmatpush1.bf16.msra.mxu0 %v905
    %950 = vmatprep.subr.bf16.mxu0 0
    %951 = vmatpush1.bf16.msra.mxu0 %v904
    %952 = vmatprep.subr.bf16.mxu0 0
    %953 = vmatpush2.bf16.msra.mxu0 %v919
    %954 = vmatprep.subr.bf16.mxu0 0
    %955 = vmatpush2.bf16.msra.mxu0 %v918
    %956 = vmatprep.subr.bf16.mxu0 0
    %957 = vmatpush2.bf16.msra.mxu0 %v917
    %958 = vmatprep.subr.bf16.mxu0 0
    %959 = vmatpush2.bf16.msra.mxu0 %v916
    %960 = vmatprep.subr.bf16.mxu0 0
    %961 = vmatpush2.bf16.msra.mxu0 %v915
    %962 = vmatprep.subr.bf16.mxu0 0
    %963 = vmatpush2.bf16.msra.mxu0 %v914
    %964 = vmatprep.subr.bf16.mxu0 0
    %965 = vmatpush2.bf16.msra.mxu0 %v913
    %966 = vmatprep.subr.bf16.mxu0 0
    %967 = vmatpush2.bf16.msra.mxu0 %v912
    %968 = vmatprep.mubr.bf16.mxu0 %v770
    %969 = vmatmul.mubr.bf16.gmra.mxu0 %v769
    %v970 = vpop.f32.mrf.mxu0
    %v971 = vadd.f32 %v838, %v970
    %v972 = vpop.f32.mrf.mxu0
    %v973 = vpop.f32.mrf.mxu0
    %v974 = vadd.f32 %v838, %v973
    %v975 = vpop.f32.mrf.mxu0
    %976 = vmatprep.mubr.bf16.mxu0 %v772
    %977 = vmatmul.mubr.bf16.gmra.mxu0 %v771
    %v978 = vpop.f32.mrf.mxu0
    %v979 = vadd.f32 %v838, %v978
    %v980 = vpop.f32.mrf.mxu0
    %v981 = vpop.f32.mrf.mxu0
    %v982 = vadd.f32 %v838, %v981
    %v983 = vpop.f32.mrf.mxu0
    %984 = vmatprep.mubr.bf16.mxu0 %v774
    %985 = vmatmul.mubr.bf16.gmra.mxu0 %v773
    %v986 = vpop.f32.mrf.mxu0
    %v987 = vadd.f32 %v838, %v986
    %v988 = vpop.f32.mrf.mxu0
    %v989 = vpop.f32.mrf.mxu0
    %v990 = vadd.f32 %v838, %v989
    %v991 = vpop.f32.mrf.mxu0
    %992 = vmatprep.mubr.bf16.mxu0 %v776
    %993 = vmatmul.mubr.bf16.gmra.mxu0 %v775
    %v994 = vpop.f32.mrf.mxu0
    %v995 = vadd.f32 %v838, %v994
    %v996 = vpop.f32.mrf.mxu0
    %v997 = vpop.f32.mrf.mxu0
    %v998 = vadd.f32 %v838, %v997
    %v999 = vpop.f32.mrf.mxu0
    %1000 = vmatprep.mubr.bf16.mxu0 %v778
    %1001 = vmatmul.mubr.bf16.gmra.mxu0 %v777
    %v1002 = vpop.f32.mrf.mxu0
    %v1003 = vadd.f32 %v838, %v1002
    %v1004 = vpop.f32.mrf.mxu0
    %v1005 = vpop.f32.mrf.mxu0
    %v1006 = vadd.f32 %v838, %v1005
    %v1007 = vpop.f32.mrf.mxu0
    %1008 = vmatprep.mubr.bf16.mxu0 %v780
    %1009 = vmatmul.mubr.bf16.gmra.mxu0 %v779
    %v1010 = vpop.f32.mrf.mxu0
    %v1011 = vadd.f32 %v838, %v1010
    %v1012 = vpop.f32.mrf.mxu0
    %v1013 = vpop.f32.mrf.mxu0
    %v1014 = vadd.f32 %v838, %v1013
    %v1015 = vpop.f32.mrf.mxu0
    %1016 = vmatprep.mubr.bf16.mxu0 %v782
    %1017 = vmatmul.mubr.bf16.gmra.mxu0 %v781
    %v1018 = vpop.f32.mrf.mxu0
    %v1019 = vadd.f32 %v838, %v1018
    %v1020 = vpop.f32.mrf.mxu0
    %v1021 = vpop.f32.mrf.mxu0
    %v1022 = vadd.f32 %v838, %v1021
    %v1023 = vpop.f32.mrf.mxu0
    %1024 = vmatprep.mubr.bf16.mxu0 %v784
    %1025 = vmatmul.mubr.bf16.gmra.mxu0 %v783
    %v1026 = vpop.f32.mrf.mxu0
    %v1027 = vadd.f32 %v838, %v1026
    %v1028 = vpop.f32.mrf.mxu0
    %v1029 = vpop.f32.mrf.mxu0
    %v1030 = vadd.f32 %v838, %v1029
    %v1031 = vpop.f32.mrf.mxu0
    %1032 = vmatprep.mubr.bf16.mxu0 %v786
    %1033 = vmatmul.mubr.bf16.gmra.mxu0 %v785
    %v1034 = vpop.f32.mrf.mxu0
    %v1035 = vadd.f32 %v838, %v1034
    %v1036 = vpop.f32.mrf.mxu0
    %v1037 = vpop.f32.mrf.mxu0
    %v1038 = vadd.f32 %v838, %v1037
    %v1039 = vpop.f32.mrf.mxu0
    %1040 = vmatprep.mubr.bf16.mxu0 %v788
    %1041 = vmatmul.mubr.bf16.gmra.mxu0 %v787
    %v1042 = vpop.f32.mrf.mxu0
    %v1043 = vadd.f32 %v838, %v1042
    %v1044 = vpop.f32.mrf.mxu0
    %v1045 = vpop.f32.mrf.mxu0
    %v1046 = vadd.f32 %v838, %v1045
    %v1047 = vpop.f32.mrf.mxu0
    %1048 = vmatprep.mubr.bf16.mxu0 %v790
    %1049 = vmatmul.mubr.bf16.gmra.mxu0 %v789
    %v1050 = vpop.f32.mrf.mxu0
    %v1051 = vadd.f32 %v838, %v1050
    %v1052 = vpop.f32.mrf.mxu0
    %v1053 = vpop.f32.mrf.mxu0
    %v1054 = vadd.f32 %v838, %v1053
    %v1055 = vpop.f32.mrf.mxu0
    %1056 = vmatprep.mubr.bf16.mxu0 %v792
    %1057 = vmatmul.mubr.bf16.gmra.mxu0 %v791
    %v1058 = vpop.f32.mrf.mxu0
    %v1059 = vadd.f32 %v838, %v1058
    %v1060 = vpop.f32.mrf.mxu0
    %v1061 = vpop.f32.mrf.mxu0
    %v1062 = vadd.f32 %v838, %v1061
    %v1063 = vpop.f32.mrf.mxu0
    %1064 = vmatprep.mubr.bf16.mxu0 %v794
    %1065 = vmatmul.mubr.bf16.gmra.mxu0 %v793
    %v1066 = vpop.f32.mrf.mxu0
    %v1067 = vadd.f32 %v838, %v1066
    %v1068 = vpop.f32.mrf.mxu0
    %v1069 = vpop.f32.mrf.mxu0
    %v1070 = vadd.f32 %v838, %v1069
    %v1071 = vpop.f32.mrf.mxu0
    %1072 = vmatprep.mubr.bf16.mxu0 %v796
    %1073 = vmatmul.mubr.bf16.gmra.mxu0 %v795
    %v1074 = vpop.f32.mrf.mxu0
    %v1075 = vadd.f32 %v838, %v1074
    %v1076 = vpop.f32.mrf.mxu0
    %v1077 = vpop.f32.mrf.mxu0
    %v1078 = vadd.f32 %v838, %v1077
    %v1079 = vpop.f32.mrf.mxu0
    %1080 = vmatprep.mubr.bf16.mxu0 %v798
    %1081 = vmatmul.mubr.bf16.gmra.mxu0 %v797
    %v1082 = vpop.f32.mrf.mxu0
    %v1083 = vadd.f32 %v838, %v1082
    %v1084 = vpop.f32.mrf.mxu0
    %v1085 = vpop.f32.mrf.mxu0
    %v1086 = vadd.f32 %v838, %v1085
    %v1087 = vpop.f32.mrf.mxu0
    %1088 = vmatprep.mubr.bf16.mxu0 %v800
    %1089 = vmatmul.mubr.bf16.gmra.mxu0 %v799
    %v1090 = vpop.f32.mrf.mxu0
    %v1091 = vadd.f32 %v838, %v1090
    %v1092 = vpop.f32.mrf.mxu0
    %v1093 = vpop.f32.mrf.mxu0
    %v1094 = vadd.f32 %v838, %v1093
    %v1095 = vpop.f32.mrf.mxu0
    %1096 = vdwg.mxu0
    %v1097 = vxor.u32 %v971, 2147483648
    %v1098 = vxor.u32 %v974, 2147483648
    %v1099 = vxor.u32 %v979, 2147483648
    %v1100 = vxor.u32 %v982, 2147483648
    %v1101 = vxor.u32 %v987, 2147483648
    %v1102 = vxor.u32 %v990, 2147483648
    %v1103 = vxor.u32 %v995, 2147483648
    %v1104 = vxor.u32 %v998, 2147483648
    %v1105 = vxor.u32 %v1003, 2147483648
    %v1106 = vxor.u32 %v1006, 2147483648
    %v1107 = vxor.u32 %v1011, 2147483648
    %v1108 = vxor.u32 %v1014, 2147483648
    %v1109 = vxor.u32 %v1019, 2147483648
    %v1110 = vxor.u32 %v1022, 2147483648
    %v1111 = vxor.u32 %v1027, 2147483648
    %v1112 = vxor.u32 %v1030, 2147483648
    %v1113 = vxor.u32 %v1035, 2147483648
    %v1114 = vxor.u32 %v1038, 2147483648
    %v1115 = vxor.u32 %v1043, 2147483648
    %v1116 = vxor.u32 %v1046, 2147483648
    %v1117 = vxor.u32 %v1051, 2147483648
    %v1118 = vxor.u32 %v1054, 2147483648
    %v1119 = vxor.u32 %v1059, 2147483648
    %v1120 = vxor.u32 %v1062, 2147483648
    %v1121 = vxor.u32 %v1067, 2147483648
    %v1122 = vxor.u32 %v1070, 2147483648
    %v1123 = vxor.u32 %v1075, 2147483648
    %v1124 = vxor.u32 %v1078, 2147483648
    %v1125 = vxor.u32 %v1083, 2147483648
    %v1126 = vxor.u32 %v1086, 2147483648
    %v1127 = vxor.u32 %v1091, 2147483648
    %v1128 = vxor.u32 %v1094, 2147483648
    %v1129 = vmul.f32 %v1097, 1.442695
    %v1130 = vpow.pop %v1129
    %v1131 = vmul.f32 %v1098, 1.442695
    %v1132 = vpow.pop %v1131
    %v1133 = vmul.f32 %v1099, 1.442695
    %v1134 = vpow.pop %v1133
    %v1135 = vmul.f32 %v1100, 1.442695
    %v1136 = vpow.pop %v1135
    %v1137 = vmul.f32 %v1101, 1.442695
    %v1138 = vpow.pop %v1137
    %v1139 = vmul.f32 %v1102, 1.442695
    %v1140 = vpow.pop %v1139
    %v1141 = vmul.f32 %v1103, 1.442695
    %v1142 = vpow.pop %v1141
    %v1143 = vmul.f32 %v1104, 1.442695
    %v1144 = vpow.pop %v1143
    %v1145 = vmul.f32 %v1105, 1.442695
    %v1146 = vpow.pop %v1145
    %v1147 = vmul.f32 %v1106, 1.442695
    %v1148 = vpow.pop %v1147
    %v1149 = vmul.f32 %v1107, 1.442695
    %v1150 = vpow.pop %v1149
    %v1151 = vmul.f32 %v1108, 1.442695
    %v1152 = vpow.pop %v1151
    %v1153 = vmul.f32 %v1109, 1.442695
    %v1154 = vpow.pop %v1153
    %v1155 = vmul.f32 %v1110, 1.442695
    %v1156 = vpow.pop %v1155
    %v1157 = vmul.f32 %v1111, 1.442695
    %v1158 = vpow.pop %v1157
    %v1159 = vmul.f32 %v1112, 1.442695
    %v1160 = vpow.pop %v1159
    %v1161 = vmul.f32 %v1113, 1.442695
    %v1162 = vpow.pop %v1161
    %v1163 = vmul.f32 %v1114, 1.442695
    %v1164 = vpow.pop %v1163
    %v1165 = vmul.f32 %v1115, 1.442695
    %v1166 = vpow.pop %v1165
    %v1167 = vmul.f32 %v1116, 1.442695
    %v1168 = vpow.pop %v1167
    %v1169 = vmul.f32 %v1117, 1.442695
    %v1170 = vpow.pop %v1169
    %v1171 = vmul.f32 %v1118, 1.442695
    %v1172 = vpow.pop %v1171
    %v1173 = vmul.f32 %v1119, 1.442695
    %v1174 = vpow.pop %v1173
    %v1175 = vmul.f32 %v1120, 1.442695
    %v1176 = vpow.pop %v1175
    %v1177 = vmul.f32 %v1121, 1.442695
    %v1178 = vpow.pop %v1177
    %v1179 = vmul.f32 %v1122, 1.442695
    %v1180 = vpow.pop %v1179
    %v1181 = vmul.f32 %v1123, 1.442695
    %v1182 = vpow.pop %v1181
    %v1183 = vmul.f32 %v1124, 1.442695
    %v1184 = vpow.pop %v1183
    %v1185 = vmul.f32 %v1125, 1.442695
    %v1186 = vpow.pop %v1185
    %v1187 = vmul.f32 %v1126, 1.442695
    %v1188 = vpow.pop %v1187
    %v1189 = vmul.f32 %v1127, 1.442695
    %v1190 = vpow.pop %v1189
    %v1191 = vmul.f32 %v1128, 1.442695
    %v1192 = vpow.pop %v1191
    %v1193 = vadd.f32 %v1130, 1.0
    %v1194 = vadd.f32 %v1132, 1.0
    %v1195 = vadd.f32 %v1134, 1.0
    %v1196 = vadd.f32 %v1136, 1.0
    %v1197 = vadd.f32 %v1138, 1.0
    %v1198 = vadd.f32 %v1140, 1.0
    %v1199 = vadd.f32 %v1142, 1.0
    %v1200 = vadd.f32 %v1144, 1.0
    %v1201 = vadd.f32 %v1146, 1.0
    %v1202 = vadd.f32 %v1148, 1.0
    %v1203 = vadd.f32 %v1150, 1.0
    %v1204 = vadd.f32 %v1152, 1.0
    %v1205 = vadd.f32 %v1154, 1.0
    %v1206 = vadd.f32 %v1156, 1.0
    %v1207 = vadd.f32 %v1158, 1.0
    %v1208 = vadd.f32 %v1160, 1.0
    %v1209 = vadd.f32 %v1162, 1.0
    %v1210 = vadd.f32 %v1164, 1.0
    %v1211 = vadd.f32 %v1166, 1.0
    %v1212 = vadd.f32 %v1168, 1.0
    %v1213 = vadd.f32 %v1170, 1.0
    %v1214 = vadd.f32 %v1172, 1.0
    %v1215 = vadd.f32 %v1174, 1.0
    %v1216 = vadd.f32 %v1176, 1.0
    %v1217 = vadd.f32 %v1178, 1.0
    %v1218 = vadd.f32 %v1180, 1.0
    %v1219 = vadd.f32 %v1182, 1.0
    %v1220 = vadd.f32 %v1184, 1.0
    %v1221 = vadd.f32 %v1186, 1.0
    %v1222 = vadd.f32 %v1188, 1.0
    %v1223 = vadd.f32 %v1190, 1.0
    %v1224 = vadd.f32 %v1192, 1.0
    %v1225 = vrcp.pop %v1193
    %v1226 = vmul.f32 1.0, %v1225
    %v1227 = vrcp.pop %v1194
    %v1228 = vmul.f32 1.0, %v1227
    %v1229 = vrcp.pop %v1195
    %v1230 = vmul.f32 1.0, %v1229
    %v1231 = vrcp.pop %v1196
    %v1232 = vmul.f32 1.0, %v1231
    %v1233 = vrcp.pop %v1197
    %v1234 = vmul.f32 1.0, %v1233
    %v1235 = vrcp.pop %v1198
    %v1236 = vmul.f32 1.0, %v1235
    %v1237 = vrcp.pop %v1199
    %v1238 = vmul.f32 1.0, %v1237
    %v1239 = vrcp.pop %v1200
    %v1240 = vmul.f32 1.0, %v1239
    %v1241 = vrcp.pop %v1201
    %v1242 = vmul.f32 1.0, %v1241
    %v1243 = vrcp.pop %v1202
    %v1244 = vmul.f32 1.0, %v1243
    %v1245 = vrcp.pop %v1203
    %v1246 = vmul.f32 1.0, %v1245
    %v1247 = vrcp.pop %v1204
    %v1248 = vmul.f32 1.0, %v1247
    %v1249 = vrcp.pop %v1205
    %v1250 = vmul.f32 1.0, %v1249
    %v1251 = vrcp.pop %v1206
    %v1252 = vmul.f32 1.0, %v1251
    %v1253 = vrcp.pop %v1207
    %v1254 = vmul.f32 1.0, %v1253
    %v1255 = vrcp.pop %v1208
    %v1256 = vmul.f32 1.0, %v1255
    %v1257 = vrcp.pop %v1209
    %v1258 = vmul.f32 1.0, %v1257
    %v1259 = vrcp.pop %v1210
    %v1260 = vmul.f32 1.0, %v1259
    %v1261 = vrcp.pop %v1211
    %v1262 = vmul.f32 1.0, %v1261
    %v1263 = vrcp.pop %v1212
    %v1264 = vmul.f32 1.0, %v1263
    %v1265 = vrcp.pop %v1213
    %v1266 = vmul.f32 1.0, %v1265
    %v1267 = vrcp.pop %v1214
    %v1268 = vmul.f32 1.0, %v1267
    %v1269 = vrcp.pop %v1215
    %v1270 = vmul.f32 1.0, %v1269
    %v1271 = vrcp.pop %v1216
    %v1272 = vmul.f32 1.0, %v1271
    %v1273 = vrcp.pop %v1217
    %v1274 = vmul.f32 1.0, %v1273
    %v1275 = vrcp.pop %v1218
    %v1276 = vmul.f32 1.0, %v1275
    %v1277 = vrcp.pop %v1219
    %v1278 = vmul.f32 1.0, %v1277
    %v1279 = vrcp.pop %v1220
    %v1280 = vmul.f32 1.0, %v1279
    %v1281 = vrcp.pop %v1221
    %v1282 = vmul.f32 1.0, %v1281
    %v1283 = vrcp.pop %v1222
    %v1284 = vmul.f32 1.0, %v1283
    %v1285 = vrcp.pop %v1223
    %v1286 = vmul.f32 1.0, %v1285
    %v1287 = vrcp.pop %v1224
    %v1288 = vmul.f32 1.0, %v1287
    %v1289 = vpack.c.bf16 %v1228, %v1226
    %v1290 = vpack.c.bf16 %v1232, %v1230
    %v1291 = vpack.c.bf16 %v1236, %v1234
    %v1292 = vpack.c.bf16 %v1240, %v1238
    %v1293 = vpack.c.bf16 %v1244, %v1242
    %v1294 = vpack.c.bf16 %v1248, %v1246
    %v1295 = vpack.c.bf16 %v1252, %v1250
    %v1296 = vpack.c.bf16 %v1256, %v1254
    %v1297 = vpack.c.bf16 %v1260, %v1258
    %v1298 = vpack.c.bf16 %v1264, %v1262
    %v1299 = vpack.c.bf16 %v1268, %v1266
    %v1300 = vpack.c.bf16 %v1272, %v1270
    %v1301 = vpack.c.bf16 %v1276, %v1274
    %v1302 = vpack.c.bf16 %v1280, %v1278
    %v1303 = vpack.c.bf16 %v1284, %v1282
    %v1304 = vpack.c.bf16 %v1288, %v1286
    %v1305 = vld [vmem:[#allocation11] sm:$0xf]
    %v1306 = vld [vmem:[#allocation11 + $0x4] sm:$0xf]
    %v1307 = vld [vmem:[#allocation11 + $0x8] sm:$0xf]
    %v1308 = vld [vmem:[#allocation11 + $0xc] sm:$0xf]
    %v1309 = vld [vmem:[#allocation11 + $0x10] sm:$0xf]
    %v1310 = vld [vmem:[#allocation11 + $0x14] sm:$0xf]
    %v1311 = vld [vmem:[#allocation11 + $0x18] sm:$0xf]
    %v1312 = vld [vmem:[#allocation11 + $0x1c] sm:$0xf]
    %v1313 = vld [vmem:[#allocation11 + $0x20] sm:$0xf]
    %v1314 = vld [vmem:[#allocation11 + $0x24] sm:$0xf]
    %v1315 = vld [vmem:[#allocation11 + $0x28] sm:$0xf]
    %v1316 = vld [vmem:[#allocation11 + $0x2c] sm:$0xf]
    %v1317 = vld [vmem:[#allocation11 + $0x30] sm:$0xf]
    %v1318 = vld [vmem:[#allocation11 + $0x34] sm:$0xf]
    %v1319 = vld [vmem:[#allocation11 + $0x38] sm:$0xf]
    %v1320 = vld [vmem:[#allocation11 + $0x3c] sm:$0xf]
    %v1321 = vld [vmem:[#allocation12] sm:$0xf]
    %v1322 = vld [vmem:[#allocation12 + $0x4] sm:$0xf]
    %v1323 = vld [vmem:[#allocation12 + $0x8] sm:$0xf]
    %v1324 = vld [vmem:[#allocation12 + $0xc] sm:$0xf]
    %v1325 = vld [vmem:[#allocation12 + $0x10] sm:$0xf]
    %v1326 = vld [vmem:[#allocation12 + $0x14] sm:$0xf]
    %v1327 = vld [vmem:[#allocation12 + $0x18] sm:$0xf]
    %v1328 = vld [vmem:[#allocation12 + $0x1c] sm:$0xf]
    %v1329 = vld [vmem:[#allocation12 + $0x20] sm:$0xf]
    %v1330 = vld [vmem:[#allocation12 + $0x24] sm:$0xf]
    %v1331 = vld [vmem:[#allocation12 + $0x28] sm:$0xf]
    %v1332 = vld [vmem:[#allocation12 + $0x2c] sm:$0xf]
    %v1333 = vld [vmem:[#allocation12 + $0x30] sm:$0xf]
    %v1334 = vld [vmem:[#allocation12 + $0x34] sm:$0xf]
    %v1335 = vld [vmem:[#allocation12 + $0x38] sm:$0xf]
    %v1336 = vld [vmem:[#allocation12 + $0x3c] sm:$0xf]
    %v1353 = vunpack.c.l.b16 %v1321
    %v1354 = vunpack.c.l.b16 %v1322
    %v1355 = vunpack.c.l.b16 %v1323
    %v1356 = vunpack.c.l.b16 %v1324
    %v1357 = vunpack.c.l.b16 %v1325
    %v1358 = vunpack.c.l.b16 %v1326
    %v1359 = vunpack.c.l.b16 %v1327
    %v1360 = vunpack.c.l.b16 %v1328
    %v1361 = vunpack.c.l.b16 %v1329
    %v1362 = vunpack.c.l.b16 %v1330
    %v1363 = vunpack.c.l.b16 %v1331
    %v1364 = vunpack.c.l.b16 %v1332
    %v1365 = vunpack.c.l.b16 %v1333
    %v1366 = vunpack.c.l.b16 %v1334
    %v1367 = vunpack.c.l.b16 %v1335
    %v1368 = vunpack.c.l.b16 %v1336
    %v1369 = vpack.c.b16 %v1354, %v1353
    %v1370 = vpack.c.b16 %v1356, %v1355
    %v1371 = vpack.c.b16 %v1358, %v1357
    %v1372 = vpack.c.b16 %v1360, %v1359
    %v1373 = vpack.c.b16 %v1362, %v1361
    %v1374 = vpack.c.b16 %v1364, %v1363
    %v1375 = vpack.c.b16 %v1366, %v1365
    %v1376 = vpack.c.b16 %v1368, %v1367
    %1385 = vmatprep.subr.bf16.mxu0 0
    %1386 = vmatpush1.bf16.msra.mxu0 %v1376
    %1387 = vmatprep.subr.bf16.mxu0 0
    %1388 = vmatpush1.bf16.msra.mxu0 %v1375
    %1389 = vmatprep.subr.bf16.mxu0 0
    %1390 = vmatpush1.bf16.msra.mxu0 %v1374
    %1391 = vmatprep.subr.bf16.mxu0 0
    %1392 = vmatpush1.bf16.msra.mxu0 %v1373
    %1393 = vmatprep.subr.bf16.mxu0 0
    %1394 = vmatpush1.bf16.msra.mxu0 %v1372
    %1395 = vmatprep.subr.bf16.mxu0 0
    %1396 = vmatpush1.bf16.msra.mxu0 %v1371
    %1397 = vmatprep.subr.bf16.mxu0 0
    %1398 = vmatpush1.bf16.msra.mxu0 %v1370
    %1399 = vmatprep.subr.bf16.mxu0 0
    %1400 = vmatpush1.bf16.msra.mxu0 %v1369
    %1401 = vmatprep.subr.bf16.mxu0 0
    %1402 = vmatpush2.bf16.msra.mxu0 0
    %1403 = vmatprep.subr.bf16.mxu0 0
    %1404 = vmatpush2.bf16.msra.mxu0 0
    %1405 = vmatprep.subr.bf16.mxu0 0
    %1406 = vmatpush2.bf16.msra.mxu0 0
    %1407 = vmatprep.subr.bf16.mxu0 0
    %1408 = vmatpush2.bf16.msra.mxu0 0
    %1409 = vmatprep.subr.bf16.mxu0 0
    %1410 = vmatpush2.bf16.msra.mxu0 0
    %1411 = vmatprep.subr.bf16.mxu0 0
    %1412 = vmatpush2.bf16.msra.mxu0 0
    %1413 = vmatprep.subr.bf16.mxu0 0
    %1414 = vmatpush2.bf16.msra.mxu0 0
    %1415 = vmatprep.subr.bf16.mxu0 0
    %1416 = vmatpush2.bf16.msra.mxu0 0
    %1417 = vmatprep.mubr.bf16.mxu0 0
    %1418 = vmatmul.mubr.bf16.gmra.mxu0 %v1289
    %v1419 = vpop.f32.mrf.mxu0
    %v1420 = vadd.f32 0.0, %v1419
    %v1421 = vpop.f32.mrf.mxu0
    %v1422 = vpop.f32.mrf.mxu0
    %v1423 = vadd.f32 0.0, %v1422
    %v1424 = vpop.f32.mrf.mxu0
    %1425 = vmatprep.mubr.bf16.mxu0 0
    %1426 = vmatmul.mubr.bf16.gmra.mxu0 %v1290
    %v1427 = vpop.f32.mrf.mxu0
    %v1428 = vadd.f32 0.0, %v1427
    %v1429 = vpop.f32.mrf.mxu0
    %v1430 = vpop.f32.mrf.mxu0
    %v1431 = vadd.f32 0.0, %v1430
    %v1432 = vpop.f32.mrf.mxu0
    %1433 = vmatprep.mubr.bf16.mxu0 0
    %1434 = vmatmul.mubr.bf16.gmra.mxu0 %v1291
    %v1435 = vpop.f32.mrf.mxu0
    %v1436 = vadd.f32 0.0, %v1435
    %v1437 = vpop.f32.mrf.mxu0
    %v1438 = vpop.f32.mrf.mxu0
    %v1439 = vadd.f32 0.0, %v1438
    %v1440 = vpop.f32.mrf.mxu0
    %1441 = vmatprep.mubr.bf16.mxu0 0
    %1442 = vmatmul.mubr.bf16.gmra.mxu0 %v1292
    %v1443 = vpop.f32.mrf.mxu0
    %v1444 = vadd.f32 0.0, %v1443
    %v1445 = vpop.f32.mrf.mxu0
    %v1446 = vpop.f32.mrf.mxu0
    %v1447 = vadd.f32 0.0, %v1446
    %v1448 = vpop.f32.mrf.mxu0
    %1449 = vmatprep.mubr.bf16.mxu0 0
    %1450 = vmatmul.mubr.bf16.gmra.mxu0 %v1293
    %v1451 = vpop.f32.mrf.mxu0
    %v1452 = vadd.f32 0.0, %v1451
    %v1453 = vpop.f32.mrf.mxu0
    %v1454 = vpop.f32.mrf.mxu0
    %v1455 = vadd.f32 0.0, %v1454
    %v1456 = vpop.f32.mrf.mxu0
    %1457 = vmatprep.mubr.bf16.mxu0 0
    %1458 = vmatmul.mubr.bf16.gmra.mxu0 %v1294
    %v1459 = vpop.f32.mrf.mxu0
    %v1460 = vadd.f32 0.0, %v1459
    %v1461 = vpop.f32.mrf.mxu0
    %v1462 = vpop.f32.mrf.mxu0
    %v1463 = vadd.f32 0.0, %v1462
    %v1464 = vpop.f32.mrf.mxu0
    %1465 = vmatprep.mubr.bf16.mxu0 0
    %1466 = vmatmul.mubr.bf16.gmra.mxu0 %v1295
    %v1467 = vpop.f32.mrf.mxu0
    %v1468 = vadd.f32 0.0, %v1467
    %v1469 = vpop.f32.mrf.mxu0
    %v1470 = vpop.f32.mrf.mxu0
    %v1471 = vadd.f32 0.0, %v1470
    %v1472 = vpop.f32.mrf.mxu0
    %1473 = vmatprep.mubr.bf16.mxu0 0
    %1474 = vmatmul.mubr.bf16.gmra.mxu0 %v1296
    %v1475 = vpop.f32.mrf.mxu0
    %v1476 = vadd.f32 0.0, %v1475
    %v1477 = vpop.f32.mrf.mxu0
    %v1478 = vpop.f32.mrf.mxu0
    %v1479 = vadd.f32 0.0, %v1478
    %v1480 = vpop.f32.mrf.mxu0
    %1481 = vmatprep.mubr.bf16.mxu0 0
    %1482 = vmatmul.mubr.bf16.gmra.mxu0 %v1297
    %v1483 = vpop.f32.mrf.mxu0
    %v1484 = vadd.f32 0.0, %v1483
    %v1485 = vpop.f32.mrf.mxu0
    %v1486 = vpop.f32.mrf.mxu0
    %v1487 = vadd.f32 0.0, %v1486
    %v1488 = vpop.f32.mrf.mxu0
    %1489 = vmatprep.mubr.bf16.mxu0 0
    %1490 = vmatmul.mubr.bf16.gmra.mxu0 %v1298
    %v1491 = vpop.f32.mrf.mxu0
    %v1492 = vadd.f32 0.0, %v1491
    %v1493 = vpop.f32.mrf.mxu0
    %v1494 = vpop.f32.mrf.mxu0
    %v1495 = vadd.f32 0.0, %v1494
    %v1496 = vpop.f32.mrf.mxu0
    %1497 = vmatprep.mubr.bf16.mxu0 0
    %1498 = vmatmul.mubr.bf16.gmra.mxu0 %v1299
    %v1499 = vpop.f32.mrf.mxu0
    %v1500 = vadd.f32 0.0, %v1499
    %v1501 = vpop.f32.mrf.mxu0
    %v1502 = vpop.f32.mrf.mxu0
    %v1503 = vadd.f32 0.0, %v1502
    %v1504 = vpop.f32.mrf.mxu0
    %1505 = vmatprep.mubr.bf16.mxu0 0
    %1506 = vmatmul.mubr.bf16.gmra.mxu0 %v1300
    %v1507 = vpop.f32.mrf.mxu0
    %v1508 = vadd.f32 0.0, %v1507
    %v1509 = vpop.f32.mrf.mxu0
    %v1510 = vpop.f32.mrf.mxu0
    %v1511 = vadd.f32 0.0, %v1510
    %v1512 = vpop.f32.mrf.mxu0
    %1513 = vmatprep.mubr.bf16.mxu0 0
    %1514 = vmatmul.mubr.bf16.gmra.mxu0 %v1301
    %v1515 = vpop.f32.mrf.mxu0
    %v1516 = vadd.f32 0.0, %v1515
    %v1517 = vpop.f32.mrf.mxu0
    %v1518 = vpop.f32.mrf.mxu0
    %v1519 = vadd.f32 0.0, %v1518
    %v1520 = vpop.f32.mrf.mxu0
    %1521 = vmatprep.mubr.bf16.mxu0 0
    %1522 = vmatmul.mubr.bf16.gmra.mxu0 %v1302
    %v1523 = vpop.f32.mrf.mxu0
    %v1524 = vadd.f32 0.0, %v1523
    %v1525 = vpop.f32.mrf.mxu0
    %v1526 = vpop.f32.mrf.mxu0
    %v1527 = vadd.f32 0.0, %v1526
    %v1528 = vpop.f32.mrf.mxu0
    %1529 = vmatprep.mubr.bf16.mxu0 0
    %1530 = vmatmul.mubr.bf16.gmra.mxu0 %v1303
    %v1531 = vpop.f32.mrf.mxu0
    %v1532 = vadd.f32 0.0, %v1531
    %v1533 = vpop.f32.mrf.mxu0
    %v1534 = vpop.f32.mrf.mxu0
    %v1535 = vadd.f32 0.0, %v1534
    %v1536 = vpop.f32.mrf.mxu0
    %1537 = vmatprep.mubr.bf16.mxu0 0
    %1538 = vmatmul.mubr.bf16.gmra.mxu0 %v1304
    %v1539 = vpop.f32.mrf.mxu0
    %v1540 = vadd.f32 0.0, %v1539
    %v1541 = vpop.f32.mrf.mxu0
    %v1542 = vpop.f32.mrf.mxu0
    %v1543 = vadd.f32 0.0, %v1542
    %v1544 = vpop.f32.mrf.mxu0
    %1545 = vdwg.mxu0
    %v1562 = vunpack.c.l.b16 %v1305
    %v1563 = vunpack.c.l.b16 %v1306
    %v1564 = vunpack.c.l.b16 %v1307
    %v1565 = vunpack.c.l.b16 %v1308
    %v1566 = vunpack.c.l.b16 %v1309
    %v1567 = vunpack.c.l.b16 %v1310
    %v1568 = vunpack.c.l.b16 %v1311
    %v1569 = vunpack.c.l.b16 %v1312
    %v1570 = vunpack.c.l.b16 %v1313
    %v1571 = vunpack.c.l.b16 %v1314
    %v1572 = vunpack.c.l.b16 %v1315
    %v1573 = vunpack.c.l.b16 %v1316
    %v1574 = vunpack.c.l.b16 %v1317
    %v1575 = vunpack.c.l.b16 %v1318
    %v1576 = vunpack.c.l.b16 %v1319
    %v1577 = vunpack.c.l.b16 %v1320
    %v1578 = vpack.c.b16 %v1563, %v1562
    %v1579 = vpack.c.b16 %v1565, %v1564
    %v1580 = vpack.c.b16 %v1567, %v1566
    %v1581 = vpack.c.b16 %v1569, %v1568
    %v1582 = vpack.c.b16 %v1571, %v1570
    %v1583 = vpack.c.b16 %v1573, %v1572
    %v1584 = vpack.c.b16 %v1575, %v1574
    %v1585 = vpack.c.b16 %v1577, %v1576
    %1594 = vmatprep.subr.bf16.mxu0 0
    %1595 = vmatpush1.bf16.msra.mxu0 %v1585
    %1596 = vmatprep.subr.bf16.mxu0 0
    %1597 = vmatpush1.bf16.msra.mxu0 %v1584
    %1598 = vmatprep.subr.bf16.mxu0 0
    %1599 = vmatpush1.bf16.msra.mxu0 %v1583
    %1600 = vmatprep.subr.bf16.mxu0 0
    %1601 = vmatpush1.bf16.msra.mxu0 %v1582
    %1602 = vmatprep.subr.bf16.mxu0 0
    %1603 = vmatpush1.bf16.msra.mxu0 %v1581
    %1604 = vmatprep.subr.bf16.mxu0 0
    %1605 = vmatpush1.bf16.msra.mxu0 %v1580
    %1606 = vmatprep.subr.bf16.mxu0 0
    %1607 = vmatpush1.bf16.msra.mxu0 %v1579
    %1608 = vmatprep.subr.bf16.mxu0 0
    %1609 = vmatpush1.bf16.msra.mxu0 %v1578
    %1610 = vmatprep.subr.bf16.mxu0 0
    %1611 = vmatpush2.bf16.msra.mxu0 0
    %1612 = vmatprep.subr.bf16.mxu0 0
    %1613 = vmatpush2.bf16.msra.mxu0 0
    %1614 = vmatprep.subr.bf16.mxu0 0
    %1615 = vmatpush2.bf16.msra.mxu0 0
    %1616 = vmatprep.subr.bf16.mxu0 0
    %1617 = vmatpush2.bf16.msra.mxu0 0
    %1618 = vmatprep.subr.bf16.mxu0 0
    %1619 = vmatpush2.bf16.msra.mxu0 0
    %1620 = vmatprep.subr.bf16.mxu0 0
    %1621 = vmatpush2.bf16.msra.mxu0 0
    %1622 = vmatprep.subr.bf16.mxu0 0
    %1623 = vmatpush2.bf16.msra.mxu0 0
    %1624 = vmatprep.subr.bf16.mxu0 0
    %1625 = vmatpush2.bf16.msra.mxu0 0
    %1626 = vmatprep.mubr.bf16.mxu0 0
    %1627 = vmatmul.mubr.bf16.gmra.mxu0 %v753
    %v1628 = vpop.f32.mrf.mxu0
    %v1629 = vadd.f32 %v1420, %v1628
    %v1630 = vpop.f32.mrf.mxu0
    %v1631 = vpop.f32.mrf.mxu0
    %v1632 = vadd.f32 %v1423, %v1631
    %v1633 = vpop.f32.mrf.mxu0
    %1634 = vmatprep.mubr.bf16.mxu0 0
    %1635 = vmatmul.mubr.bf16.gmra.mxu0 %v754
    %v1636 = vpop.f32.mrf.mxu0
    %v1637 = vadd.f32 %v1428, %v1636
    %v1638 = vpop.f32.mrf.mxu0
    %v1639 = vpop.f32.mrf.mxu0
    %v1640 = vadd.f32 %v1431, %v1639
    %v1641 = vpop.f32.mrf.mxu0
    %1642 = vmatprep.mubr.bf16.mxu0 0
    %1643 = vmatmul.mubr.bf16.gmra.mxu0 %v755
    %v1644 = vpop.f32.mrf.mxu0
    %v1645 = vadd.f32 %v1436, %v1644
    %v1646 = vpop.f32.mrf.mxu0
    %v1647 = vpop.f32.mrf.mxu0
    %v1648 = vadd.f32 %v1439, %v1647
    %v1649 = vpop.f32.mrf.mxu0
    %1650 = vmatprep.mubr.bf16.mxu0 0
    %1651 = vmatmul.mubr.bf16.gmra.mxu0 %v756
    %v1652 = vpop.f32.mrf.mxu0
    %v1653 = vadd.f32 %v1444, %v1652
    %v1654 = vpop.f32.mrf.mxu0
    %v1655 = vpop.f32.mrf.mxu0
    %v1656 = vadd.f32 %v1447, %v1655
    %v1657 = vpop.f32.mrf.mxu0
    %1658 = vmatprep.mubr.bf16.mxu0 0
    %1659 = vmatmul.mubr.bf16.gmra.mxu0 %v757
    %v1660 = vpop.f32.mrf.mxu0
    %v1661 = vadd.f32 %v1452, %v1660
    %v1662 = vpop.f32.mrf.mxu0
    %v1663 = vpop.f32.mrf.mxu0
    %v1664 = vadd.f32 %v1455, %v1663
    %v1665 = vpop.f32.mrf.mxu0
    %1666 = vmatprep.mubr.bf16.mxu0 0
    %1667 = vmatmul.mubr.bf16.gmra.mxu0 %v758
    %v1668 = vpop.f32.mrf.mxu0
    %v1669 = vadd.f32 %v1460, %v1668
    %v1670 = vpop.f32.mrf.mxu0
    %v1671 = vpop.f32.mrf.mxu0
    %v1672 = vadd.f32 %v1463, %v1671
    %v1673 = vpop.f32.mrf.mxu0
    %1674 = vmatprep.mubr.bf16.mxu0 0
    %1675 = vmatmul.mubr.bf16.gmra.mxu0 %v759
    %v1676 = vpop.f32.mrf.mxu0
    %v1677 = vadd.f32 %v1468, %v1676
    %v1678 = vpop.f32.mrf.mxu0
    %v1679 = vpop.f32.mrf.mxu0
    %v1680 = vadd.f32 %v1471, %v1679
    %v1681 = vpop.f32.mrf.mxu0
    %1682 = vmatprep.mubr.bf16.mxu0 0
    %1683 = vmatmul.mubr.bf16.gmra.mxu0 %v760
    %v1684 = vpop.f32.mrf.mxu0
    %v1685 = vadd.f32 %v1476, %v1684
    %v1686 = vpop.f32.mrf.mxu0
    %v1687 = vpop.f32.mrf.mxu0
    %v1688 = vadd.f32 %v1479, %v1687
    %v1689 = vpop.f32.mrf.mxu0
    %1690 = vmatprep.mubr.bf16.mxu0 0
    %1691 = vmatmul.mubr.bf16.gmra.mxu0 %v761
    %v1692 = vpop.f32.mrf.mxu0
    %v1693 = vadd.f32 %v1484, %v1692
    %v1694 = vpop.f32.mrf.mxu0
    %v1695 = vpop.f32.mrf.mxu0
    %v1696 = vadd.f32 %v1487, %v1695
    %v1697 = vpop.f32.mrf.mxu0
    %1698 = vmatprep.mubr.bf16.mxu0 0
    %1699 = vmatmul.mubr.bf16.gmra.mxu0 %v762
    %v1700 = vpop.f32.mrf.mxu0
    %v1701 = vadd.f32 %v1492, %v1700
    %v1702 = vpop.f32.mrf.mxu0
    %v1703 = vpop.f32.mrf.mxu0
    %v1704 = vadd.f32 %v1495, %v1703
    %v1705 = vpop.f32.mrf.mxu0
    %1706 = vmatprep.mubr.bf16.mxu0 0
    %1707 = vmatmul.mubr.bf16.gmra.mxu0 %v763
    %v1708 = vpop.f32.mrf.mxu0
    %v1709 = vadd.f32 %v1500, %v1708
    %v1710 = vpop.f32.mrf.mxu0
    %v1711 = vpop.f32.mrf.mxu0
    %v1712 = vadd.f32 %v1503, %v1711
    %v1713 = vpop.f32.mrf.mxu0
    %1714 = vmatprep.mubr.bf16.mxu0 0
    %1715 = vmatmul.mubr.bf16.gmra.mxu0 %v764
    %v1716 = vpop.f32.mrf.mxu0
    %v1717 = vadd.f32 %v1508, %v1716
    %v1718 = vpop.f32.mrf.mxu0
    %v1719 = vpop.f32.mrf.mxu0
    %v1720 = vadd.f32 %v1511, %v1719
    %v1721 = vpop.f32.mrf.mxu0
    %1722 = vmatprep.mubr.bf16.mxu0 0
    %1723 = vmatmul.mubr.bf16.gmra.mxu0 %v765
    %v1724 = vpop.f32.mrf.mxu0
    %v1725 = vadd.f32 %v1516, %v1724
    %v1726 = vpop.f32.mrf.mxu0
    %v1727 = vpop.f32.mrf.mxu0
    %v1728 = vadd.f32 %v1519, %v1727
    %v1729 = vpop.f32.mrf.mxu0
    %1730 = vmatprep.mubr.bf16.mxu0 0
    %1731 = vmatmul.mubr.bf16.gmra.mxu0 %v766
    %v1732 = vpop.f32.mrf.mxu0
    %v1733 = vadd.f32 %v1524, %v1732
    %v1734 = vpop.f32.mrf.mxu0
    %v1735 = vpop.f32.mrf.mxu0
    %v1736 = vadd.f32 %v1527, %v1735
    %v1737 = vpop.f32.mrf.mxu0
    %1738 = vmatprep.mubr.bf16.mxu0 0
    %1739 = vmatmul.mubr.bf16.gmra.mxu0 %v767
    %v1740 = vpop.f32.mrf.mxu0
    %v1741 = vadd.f32 %v1532, %v1740
    %v1742 = vpop.f32.mrf.mxu0
    %v1743 = vpop.f32.mrf.mxu0
    %v1744 = vadd.f32 %v1535, %v1743
    %v1745 = vpop.f32.mrf.mxu0
    %1746 = vmatprep.mubr.bf16.mxu0 0
    %1747 = vmatmul.mubr.bf16.gmra.mxu0 %v768
    %v1748 = vpop.f32.mrf.mxu0
    %v1749 = vadd.f32 %v1540, %v1748
    %v1750 = vpop.f32.mrf.mxu0
    %v1751 = vpop.f32.mrf.mxu0
    %v1752 = vadd.f32 %v1543, %v1751
    %v1753 = vpop.f32.mrf.mxu0
    %1754 = vdwg.mxu0
    %v1755 = vld [vmem:[#allocation14] sm:$0x1]
    %v1757 = vlaneseq
    %v1758 = vshrl.u32 %v1757, 7
    %v1759 = vsub.s32 0, %v1758
    %v1760 = vrot.slane %v1755, %v1759
    %v1762 = vadd.f32 %v1629, %v1760
    %v1763 = vadd.f32 %v1632, %v1760
    %v1764 = vadd.f32 %v1637, %v1760
    %v1765 = vadd.f32 %v1640, %v1760
    %v1766 = vadd.f32 %v1645, %v1760
    %v1767 = vadd.f32 %v1648, %v1760
    %v1768 = vadd.f32 %v1653, %v1760
    %v1769 = vadd.f32 %v1656, %v1760
    %v1770 = vadd.f32 %v1661, %v1760
    %v1771 = vadd.f32 %v1664, %v1760
    %v1772 = vadd.f32 %v1669, %v1760
    %v1773 = vadd.f32 %v1672, %v1760
    %v1774 = vadd.f32 %v1677, %v1760
    %v1775 = vadd.f32 %v1680, %v1760
    %v1776 = vadd.f32 %v1685, %v1760
    %v1777 = vadd.f32 %v1688, %v1760
    %v1778 = vadd.f32 %v1693, %v1760
    %v1779 = vadd.f32 %v1696, %v1760
    %v1780 = vadd.f32 %v1701, %v1760
    %v1781 = vadd.f32 %v1704, %v1760
    %v1782 = vadd.f32 %v1709, %v1760
    %v1783 = vadd.f32 %v1712, %v1760
    %v1784 = vadd.f32 %v1717, %v1760
    %v1785 = vadd.f32 %v1720, %v1760
    %v1786 = vadd.f32 %v1725, %v1760
    %v1787 = vadd.f32 %v1728, %v1760
    %v1788 = vadd.f32 %v1733, %v1760
    %v1789 = vadd.f32 %v1736, %v1760
    %v1790 = vadd.f32 %v1741, %v1760
    %v1791 = vadd.f32 %v1744, %v1760
    %v1792 = vadd.f32 %v1749, %v1760
    %v1793 = vadd.f32 %v1752, %v1760
    %v1794 = vxor.u32 %v1762, 2147483648
    %v1795 = vxor.u32 %v1763, 2147483648
    %v1796 = vxor.u32 %v1764, 2147483648
    %v1797 = vxor.u32 %v1765, 2147483648
    %v1798 = vxor.u32 %v1766, 2147483648
    %v1799 = vxor.u32 %v1767, 2147483648
    %v1800 = vxor.u32 %v1768, 2147483648
    %v1801 = vxor.u32 %v1769, 2147483648
    %v1802 = vxor.u32 %v1770, 2147483648
    %v1803 = vxor.u32 %v1771, 2147483648
    %v1804 = vxor.u32 %v1772, 2147483648
    %v1805 = vxor.u32 %v1773, 2147483648
    %v1806 = vxor.u32 %v1774, 2147483648
    %v1807 = vxor.u32 %v1775, 2147483648
    %v1808 = vxor.u32 %v1776, 2147483648
    %v1809 = vxor.u32 %v1777, 2147483648
    %v1810 = vxor.u32 %v1778, 2147483648
    %v1811 = vxor.u32 %v1779, 2147483648
    %v1812 = vxor.u32 %v1780, 2147483648
    %v1813 = vxor.u32 %v1781, 2147483648
    %v1814 = vxor.u32 %v1782, 2147483648
    %v1815 = vxor.u32 %v1783, 2147483648
    %v1816 = vxor.u32 %v1784, 2147483648
    %v1817 = vxor.u32 %v1785, 2147483648
    %v1818 = vxor.u32 %v1786, 2147483648
    %v1819 = vxor.u32 %v1787, 2147483648
    %v1820 = vxor.u32 %v1788, 2147483648
    %v1821 = vxor.u32 %v1789, 2147483648
    %v1822 = vxor.u32 %v1790, 2147483648
    %v1823 = vxor.u32 %v1791, 2147483648
    %v1824 = vxor.u32 %v1792, 2147483648
    %v1825 = vxor.u32 %v1793, 2147483648
    %v1826 = vmul.f32 %v1794, 1.442695
    %v1827 = vpow.pop %v1826
    %v1828 = vmul.f32 %v1795, 1.442695
    %v1829 = vpow.pop %v1828
    %v1830 = vmul.f32 %v1796, 1.442695
    %v1831 = vpow.pop %v1830
    %v1832 = vmul.f32 %v1797, 1.442695
    %v1833 = vpow.pop %v1832
    %v1834 = vmul.f32 %v1798, 1.442695
    %v1835 = vpow.pop %v1834
    %v1836 = vmul.f32 %v1799, 1.442695
    %v1837 = vpow.pop %v1836
    %v1838 = vmul.f32 %v1800, 1.442695
    %v1839 = vpow.pop %v1838
    %v1840 = vmul.f32 %v1801, 1.442695
    %v1841 = vpow.pop %v1840
    %v1842 = vmul.f32 %v1802, 1.442695
    %v1843 = vpow.pop %v1842
    %v1844 = vmul.f32 %v1803, 1.442695
    %v1845 = vpow.pop %v1844
    %v1846 = vmul.f32 %v1804, 1.442695
    %v1847 = vpow.pop %v1846
    %v1848 = vmul.f32 %v1805, 1.442695
    %v1849 = vpow.pop %v1848
    %v1850 = vmul.f32 %v1806, 1.442695
    %v1851 = vpow.pop %v1850
    %v1852 = vmul.f32 %v1807, 1.442695
    %v1853 = vpow.pop %v1852
    %v1854 = vmul.f32 %v1808, 1.442695
    %v1855 = vpow.pop %v1854
    %v1856 = vmul.f32 %v1809, 1.442695
    %v1857 = vpow.pop %v1856
    %v1858 = vmul.f32 %v1810, 1.442695
    %v1859 = vpow.pop %v1858
    %v1860 = vmul.f32 %v1811, 1.442695
    %v1861 = vpow.pop %v1860
    %v1862 = vmul.f32 %v1812, 1.442695
    %v1863 = vpow.pop %v1862
    %v1864 = vmul.f32 %v1813, 1.442695
    %v1865 = vpow.pop %v1864
    %v1866 = vmul.f32 %v1814, 1.442695
    %v1867 = vpow.pop %v1866
    %v1868 = vmul.f32 %v1815, 1.442695
    %v1869 = vpow.pop %v1868
    %v1870 = vmul.f32 %v1816, 1.442695
    %v1871 = vpow.pop %v1870
    %v1872 = vmul.f32 %v1817, 1.442695
    %v1873 = vpow.pop %v1872
    %v1874 = vmul.f32 %v1818, 1.442695
    %v1875 = vpow.pop %v1874
    %v1876 = vmul.f32 %v1819, 1.442695
    %v1877 = vpow.pop %v1876
    %v1878 = vmul.f32 %v1820, 1.442695
    %v1879 = vpow.pop %v1878
    %v1880 = vmul.f32 %v1821, 1.442695
    %v1881 = vpow.pop %v1880
    %v1882 = vmul.f32 %v1822, 1.442695
    %v1883 = vpow.pop %v1882
    %v1884 = vmul.f32 %v1823, 1.442695
    %v1885 = vpow.pop %v1884
    %v1886 = vmul.f32 %v1824, 1.442695
    %v1887 = vpow.pop %v1886
    %v1888 = vmul.f32 %v1825, 1.442695
    %v1889 = vpow.pop %v1888
    %v1890 = vadd.f32 %v1827, 1.0
    %v1891 = vadd.f32 %v1829, 1.0
    %v1892 = vadd.f32 %v1831, 1.0
    %v1893 = vadd.f32 %v1833, 1.0
    %v1894 = vadd.f32 %v1835, 1.0
    %v1895 = vadd.f32 %v1837, 1.0
    %v1896 = vadd.f32 %v1839, 1.0
    %v1897 = vadd.f32 %v1841, 1.0
    %v1898 = vadd.f32 %v1843, 1.0
    %v1899 = vadd.f32 %v1845, 1.0
    %v1900 = vadd.f32 %v1847, 1.0
    %v1901 = vadd.f32 %v1849, 1.0
    %v1902 = vadd.f32 %v1851, 1.0
    %v1903 = vadd.f32 %v1853, 1.0
    %v1904 = vadd.f32 %v1855, 1.0
    %v1905 = vadd.f32 %v1857, 1.0
    %v1906 = vadd.f32 %v1859, 1.0
    %v1907 = vadd.f32 %v1861, 1.0
    %v1908 = vadd.f32 %v1863, 1.0
    %v1909 = vadd.f32 %v1865, 1.0
    %v1910 = vadd.f32 %v1867, 1.0
    %v1911 = vadd.f32 %v1869, 1.0
    %v1912 = vadd.f32 %v1871, 1.0
    %v1913 = vadd.f32 %v1873, 1.0
    %v1914 = vadd.f32 %v1875, 1.0
    %v1915 = vadd.f32 %v1877, 1.0
    %v1916 = vadd.f32 %v1879, 1.0
    %v1917 = vadd.f32 %v1881, 1.0
    %v1918 = vadd.f32 %v1883, 1.0
    %v1919 = vadd.f32 %v1885, 1.0
    %v1920 = vadd.f32 %v1887, 1.0
    %v1921 = vadd.f32 %v1889, 1.0
    %v1922 = vrcp.pop %v1890
    %v1923 = vmul.f32 1.0, %v1922
    %v1924 = vrcp.pop %v1891
    %v1925 = vmul.f32 1.0, %v1924
    %v1926 = vrcp.pop %v1892
    %v1927 = vmul.f32 1.0, %v1926
    %v1928 = vrcp.pop %v1893
    %v1929 = vmul.f32 1.0, %v1928
    %v1930 = vrcp.pop %v1894
    %v1931 = vmul.f32 1.0, %v1930
    %v1932 = vrcp.pop %v1895
    %v1933 = vmul.f32 1.0, %v1932
    %v1934 = vrcp.pop %v1896
    %v1935 = vmul.f32 1.0, %v1934
    %v1936 = vrcp.pop %v1897
    %v1937 = vmul.f32 1.0, %v1936
    %v1938 = vrcp.pop %v1898
    %v1939 = vmul.f32 1.0, %v1938
    %v1940 = vrcp.pop %v1899
    %v1941 = vmul.f32 1.0, %v1940
    %v1942 = vrcp.pop %v1900
    %v1943 = vmul.f32 1.0, %v1942
    %v1944 = vrcp.pop %v1901
    %v1945 = vmul.f32 1.0, %v1944
    %v1946 = vrcp.pop %v1902
    %v1947 = vmul.f32 1.0, %v1946
    %v1948 = vrcp.pop %v1903
    %v1949 = vmul.f32 1.0, %v1948
    %v1950 = vrcp.pop %v1904
    %v1951 = vmul.f32 1.0, %v1950
    %v1952 = vrcp.pop %v1905
    %v1953 = vmul.f32 1.0, %v1952
    %v1954 = vrcp.pop %v1906
    %v1955 = vmul.f32 1.0, %v1954
    %v1956 = vrcp.pop %v1907
    %v1957 = vmul.f32 1.0, %v1956
    %v1958 = vrcp.pop %v1908
    %v1959 = vmul.f32 1.0, %v1958
    %v1960 = vrcp.pop %v1909
    %v1961 = vmul.f32 1.0, %v1960
    %v1962 = vrcp.pop %v1910
    %v1963 = vmul.f32 1.0, %v1962
    %v1964 = vrcp.pop %v1911
    %v1965 = vmul.f32 1.0, %v1964
    %v1966 = vrcp.pop %v1912
    %v1967 = vmul.f32 1.0, %v1966
    %v1968 = vrcp.pop %v1913
    %v1969 = vmul.f32 1.0, %v1968
    %v1970 = vrcp.pop %v1914
    %v1971 = vmul.f32 1.0, %v1970
    %v1972 = vrcp.pop %v1915
    %v1973 = vmul.f32 1.0, %v1972
    %v1974 = vrcp.pop %v1916
    %v1975 = vmul.f32 1.0, %v1974
    %v1976 = vrcp.pop %v1917
    %v1977 = vmul.f32 1.0, %v1976
    %v1978 = vrcp.pop %v1918
    %v1979 = vmul.f32 1.0, %v1978
    %v1980 = vrcp.pop %v1919
    %v1981 = vmul.f32 1.0, %v1980
    %v1982 = vrcp.pop %v1920
    %v1983 = vmul.f32 1.0, %v1982
    %v1984 = vrcp.pop %v1921
    %v1985 = vmul.f32 1.0, %v1984
    %v1986 = vpack.c.bf16 %v1925, %v1923
    %v1987 = vpack.c.bf16 %v1929, %v1927
    %v1988 = vpack.c.bf16 %v1933, %v1931
    %v1989 = vpack.c.bf16 %v1937, %v1935
    %v1990 = vpack.c.bf16 %v1941, %v1939
    %v1991 = vpack.c.bf16 %v1945, %v1943
    %v1992 = vpack.c.bf16 %v1949, %v1947
    %v1993 = vpack.c.bf16 %v1953, %v1951
    %v1994 = vpack.c.bf16 %v1957, %v1955
    %v1995 = vpack.c.bf16 %v1961, %v1959
    %v1996 = vpack.c.bf16 %v1965, %v1963
    %v1997 = vpack.c.bf16 %v1969, %v1967
    %v1998 = vpack.c.bf16 %v1973, %v1971
    %v1999 = vpack.c.bf16 %v1977, %v1975
    %v2000 = vpack.c.bf16 %v1981, %v1979
    %v2001 = vpack.c.bf16 %v1985, %v1983
    %v2002 = vld [vmem:[#allocation15] sm:$0xff]
    %v2003 = vld [vmem:[#allocation15 + $0x8] sm:$0xff]
    %v2004 = vld [vmem:[#allocation15 + $0x10] sm:$0xff]
    %v2005 = vld [vmem:[#allocation15 + $0x18] sm:$0xff]
    %v2006 = vld [vmem:[#allocation15 + $0x20] sm:$0xff]
    %v2007 = vld [vmem:[#allocation15 + $0x28] sm:$0xff]
    %v2008 = vld [vmem:[#allocation15 + $0x30] sm:$0xff]
    %v2009 = vld [vmem:[#allocation15 + $0x38] sm:$0xff]
    %v2010 = vld [vmem:[#allocation15 + $0x40] sm:$0xff]
    %v2011 = vld [vmem:[#allocation15 + $0x48] sm:$0xff]
    %v2012 = vld [vmem:[#allocation15 + $0x50] sm:$0xff]
    %v2013 = vld [vmem:[#allocation15 + $0x58] sm:$0xff]
    %v2014 = vld [vmem:[#allocation15 + $0x60] sm:$0xff]
    %v2015 = vld [vmem:[#allocation15 + $0x68] sm:$0xff]
    %v2016 = vld [vmem:[#allocation15 + $0x70] sm:$0xff]
    %v2017 = vld [vmem:[#allocation15 + $0x78] sm:$0xff]
    %v2018 = vld [vmem:[%s11] sm:$0x3]
    %v2020 = vlaneseq
    %v2021 = vshrl.u32 %v2020, 7
    %v2022 = vsub.s32 0, %v2021
    %v2023 = vrot.slane %v2018, %v2022
    %v2024 = vlaneseq
    %v2025 = vshrl.u32 %v2024, 7
    %v2026 = vsub.s32 1, %v2025
    %v2027 = vrot.slane %v2018, %v2026
    %v2046 = vunpack.c.l.b16 %v2002
    %v2047 = vunpack.c.h.b16 %v2002
    %v2048 = vunpack.c.l.b16 %v2003
    %v2049 = vunpack.c.h.b16 %v2003
    %v2050 = vunpack.c.l.b16 %v2004
    %v2051 = vunpack.c.h.b16 %v2004
    %v2052 = vunpack.c.l.b16 %v2005
    %v2053 = vunpack.c.h.b16 %v2005
    %v2054 = vunpack.c.l.b16 %v2006
    %v2055 = vunpack.c.h.b16 %v2006
    %v2056 = vunpack.c.l.b16 %v2007
    %v2057 = vunpack.c.h.b16 %v2007
    %v2058 = vunpack.c.l.b16 %v2008
    %v2059 = vunpack.c.h.b16 %v2008
    %v2060 = vunpack.c.l.b16 %v2009
    %v2061 = vunpack.c.h.b16 %v2009
    %v2062 = vunpack.c.l.b16 %v2010
    %v2063 = vunpack.c.h.b16 %v2010
    %v2064 = vunpack.c.l.b16 %v2011
    %v2065 = vunpack.c.h.b16 %v2011
    %v2066 = vunpack.c.l.b16 %v2012
    %v2067 = vunpack.c.h.b16 %v2012
    %v2068 = vunpack.c.l.b16 %v2013
    %v2069 = vunpack.c.h.b16 %v2013
    %v2070 = vunpack.c.l.b16 %v2014
    %v2071 = vunpack.c.h.b16 %v2014
    %v2072 = vunpack.c.l.b16 %v2015
    %v2073 = vunpack.c.h.b16 %v2015
    %v2074 = vunpack.c.l.b16 %v2016
    %v2075 = vunpack.c.h.b16 %v2016
    %v2076 = vunpack.c.l.b16 %v2017
    %v2077 = vunpack.c.h.b16 %v2017
    %v2078 = vpack.c.b16 %v2048, %v2046
    %v2079 = vpack.c.b16 %v2049, %v2047
    %v2080 = vpack.c.b16 %v2052, %v2050
    %v2081 = vpack.c.b16 %v2053, %v2051
    %v2082 = vpack.c.b16 %v2056, %v2054
    %v2083 = vpack.c.b16 %v2057, %v2055
    %v2084 = vpack.c.b16 %v2060, %v2058
    %v2085 = vpack.c.b16 %v2061, %v2059
    %v2086 = vpack.c.b16 %v2064, %v2062
    %v2087 = vpack.c.b16 %v2065, %v2063
    %v2088 = vpack.c.b16 %v2068, %v2066
    %v2089 = vpack.c.b16 %v2069, %v2067
    %v2090 = vpack.c.b16 %v2072, %v2070
    %v2091 = vpack.c.b16 %v2073, %v2071
    %v2092 = vpack.c.b16 %v2076, %v2074
    %v2093 = vpack.c.b16 %v2077, %v2075
    %2110 = vmatprep.subr.bf16.mxu0 %v2093
    %2111 = vmatpush1.bf16.msra.mxu0 %v2092
    %2112 = vmatprep.subr.bf16.mxu0 %v2091
    %2113 = vmatpush1.bf16.msra.mxu0 %v2090
    %2114 = vmatprep.subr.bf16.mxu0 %v2089
    %2115 = vmatpush1.bf16.msra.mxu0 %v2088
    %2116 = vmatprep.subr.bf16.mxu0 %v2087
    %2117 = vmatpush1.bf16.msra.mxu0 %v2086
    %2118 = vmatprep.subr.bf16.mxu0 %v2085
    %2119 = vmatpush1.bf16.msra.mxu0 %v2084
    %2120 = vmatprep.subr.bf16.mxu0 %v2083
    %2121 = vmatpush1.bf16.msra.mxu0 %v2082
    %2122 = vmatprep.subr.bf16.mxu0 %v2081
    %2123 = vmatpush1.bf16.msra.mxu0 %v2080
    %2124 = vmatprep.subr.bf16.mxu0 %v2079
    %2125 = vmatpush1.bf16.msra.mxu0 %v2078
    %2126 = vmatprep.subr.bf16.mxu0 0
    %2127 = vmatpush2.bf16.msra.mxu0 0
    %2128 = vmatprep.subr.bf16.mxu0 0
    %2129 = vmatpush2.bf16.msra.mxu0 0
    %2130 = vmatprep.subr.bf16.mxu0 0
    %2131 = vmatpush2.bf16.msra.mxu0 0
    %2132 = vmatprep.subr.bf16.mxu0 0
    %2133 = vmatpush2.bf16.msra.mxu0 0
    %2134 = vmatprep.subr.bf16.mxu0 0
    %2135 = vmatpush2.bf16.msra.mxu0 0
    %2136 = vmatprep.subr.bf16.mxu0 0
    %2137 = vmatpush2.bf16.msra.mxu0 0
    %2138 = vmatprep.subr.bf16.mxu0 0
    %2139 = vmatpush2.bf16.msra.mxu0 0
    %2140 = vmatprep.subr.bf16.mxu0 0
    %2141 = vmatpush2.bf16.msra.mxu0 0
    %2142 = vmatprep.mubr.bf16.mxu0 0
    %2143 = vmatmul.mubr.bf16.gmra.mxu0 %v1986
    %v2144 = vpop.f32.mrf.mxu0
    %v2145 = vadd.f32 %v2023, %v2144
    %v2146 = vpop.f32.mrf.mxu0
    %v2147 = vadd.f32 %v2027, %v2146
    %v2148 = vpop.f32.mrf.mxu0
    %v2149 = vadd.f32 %v2023, %v2148
    %v2150 = vpop.f32.mrf.mxu0
    %v2151 = vadd.f32 %v2027, %v2150
    %2152 = vmatprep.mubr.bf16.mxu0 0
    %2153 = vmatmul.mubr.bf16.gmra.mxu0 %v1987
    %v2154 = vpop.f32.mrf.mxu0
    %v2155 = vadd.f32 %v2023, %v2154
    %v2156 = vpop.f32.mrf.mxu0
    %v2157 = vadd.f32 %v2027, %v2156
    %v2158 = vpop.f32.mrf.mxu0
    %v2159 = vadd.f32 %v2023, %v2158
    %v2160 = vpop.f32.mrf.mxu0
    %v2161 = vadd.f32 %v2027, %v2160
    %2162 = vmatprep.mubr.bf16.mxu0 0
    %2163 = vmatmul.mubr.bf16.gmra.mxu0 %v1988
    %v2164 = vpop.f32.mrf.mxu0
    %v2165 = vadd.f32 %v2023, %v2164
    %v2166 = vpop.f32.mrf.mxu0
    %v2167 = vadd.f32 %v2027, %v2166
    %v2168 = vpop.f32.mrf.mxu0
    %v2169 = vadd.f32 %v2023, %v2168
    %v2170 = vpop.f32.mrf.mxu0
    %v2171 = vadd.f32 %v2027, %v2170
    %2172 = vmatprep.mubr.bf16.mxu0 0
    %2173 = vmatmul.mubr.bf16.gmra.mxu0 %v1989
    %v2174 = vpop.f32.mrf.mxu0
    %v2175 = vadd.f32 %v2023, %v2174
    %v2176 = vpop.f32.mrf.mxu0
    %v2177 = vadd.f32 %v2027, %v2176
    %v2178 = vpop.f32.mrf.mxu0
    %v2179 = vadd.f32 %v2023, %v2178
    %v2180 = vpop.f32.mrf.mxu0
    %v2181 = vadd.f32 %v2027, %v2180
    %2182 = vmatprep.mubr.bf16.mxu0 0
    %2183 = vmatmul.mubr.bf16.gmra.mxu0 %v1990
    %v2184 = vpop.f32.mrf.mxu0
    %v2185 = vadd.f32 %v2023, %v2184
    %v2186 = vpop.f32.mrf.mxu0
    %v2187 = vadd.f32 %v2027, %v2186
    %v2188 = vpop.f32.mrf.mxu0
    %v2189 = vadd.f32 %v2023, %v2188
    %v2190 = vpop.f32.mrf.mxu0
    %v2191 = vadd.f32 %v2027, %v2190
    %2192 = vmatprep.mubr.bf16.mxu0 0
    %2193 = vmatmul.mubr.bf16.gmra.mxu0 %v1991
    %v2194 = vpop.f32.mrf.mxu0
    %v2195 = vadd.f32 %v2023, %v2194
    %v2196 = vpop.f32.mrf.mxu0
    %v2197 = vadd.f32 %v2027, %v2196
    %v2198 = vpop.f32.mrf.mxu0
    %v2199 = vadd.f32 %v2023, %v2198
    %v2200 = vpop.f32.mrf.mxu0
    %v2201 = vadd.f32 %v2027, %v2200
    %2202 = vmatprep.mubr.bf16.mxu0 0
    %2203 = vmatmul.mubr.bf16.gmra.mxu0 %v1992
    %v2204 = vpop.f32.mrf.mxu0
    %v2205 = vadd.f32 %v2023, %v2204
    %v2206 = vpop.f32.mrf.mxu0
    %v2207 = vadd.f32 %v2027, %v2206
    %v2208 = vpop.f32.mrf.mxu0
    %v2209 = vadd.f32 %v2023, %v2208
    %v2210 = vpop.f32.mrf.mxu0
    %v2211 = vadd.f32 %v2027, %v2210
    %2212 = vmatprep.mubr.bf16.mxu0 0
    %2213 = vmatmul.mubr.bf16.gmra.mxu0 %v1993
    %v2214 = vpop.f32.mrf.mxu0
    %v2215 = vadd.f32 %v2023, %v2214
    %v2216 = vpop.f32.mrf.mxu0
    %v2217 = vadd.f32 %v2027, %v2216
    %v2218 = vpop.f32.mrf.mxu0
    %v2219 = vadd.f32 %v2023, %v2218
    %v2220 = vpop.f32.mrf.mxu0
    %v2221 = vadd.f32 %v2027, %v2220
    %2222 = vmatprep.mubr.bf16.mxu0 0
    %2223 = vmatmul.mubr.bf16.gmra.mxu0 %v1994
    %v2224 = vpop.f32.mrf.mxu0
    %v2225 = vadd.f32 %v2023, %v2224
    %v2226 = vpop.f32.mrf.mxu0
    %v2227 = vadd.f32 %v2027, %v2226
    %v2228 = vpop.f32.mrf.mxu0
    %v2229 = vadd.f32 %v2023, %v2228
    %v2230 = vpop.f32.mrf.mxu0
    %v2231 = vadd.f32 %v2027, %v2230
    %2232 = vmatprep.mubr.bf16.mxu0 0
    %2233 = vmatmul.mubr.bf16.gmra.mxu0 %v1995
    %v2234 = vpop.f32.mrf.mxu0
    %v2235 = vadd.f32 %v2023, %v2234
    %v2236 = vpop.f32.mrf.mxu0
    %v2237 = vadd.f32 %v2027, %v2236
    %v2238 = vpop.f32.mrf.mxu0
    %v2239 = vadd.f32 %v2023, %v2238
    %v2240 = vpop.f32.mrf.mxu0
    %v2241 = vadd.f32 %v2027, %v2240
    %2242 = vmatprep.mubr.bf16.mxu0 0
    %2243 = vmatmul.mubr.bf16.gmra.mxu0 %v1996
    %v2244 = vpop.f32.mrf.mxu0
    %v2245 = vadd.f32 %v2023, %v2244
    %v2246 = vpop.f32.mrf.mxu0
    %v2247 = vadd.f32 %v2027, %v2246
    %v2248 = vpop.f32.mrf.mxu0
    %v2249 = vadd.f32 %v2023, %v2248
    %v2250 = vpop.f32.mrf.mxu0
    %v2251 = vadd.f32 %v2027, %v2250
    %2252 = vmatprep.mubr.bf16.mxu0 0
    %2253 = vmatmul.mubr.bf16.gmra.mxu0 %v1997
    %v2254 = vpop.f32.mrf.mxu0
    %v2255 = vadd.f32 %v2023, %v2254
    %v2256 = vpop.f32.mrf.mxu0
    %v2257 = vadd.f32 %v2027, %v2256
    %v2258 = vpop.f32.mrf.mxu0
    %v2259 = vadd.f32 %v2023, %v2258
    %v2260 = vpop.f32.mrf.mxu0
    %v2261 = vadd.f32 %v2027, %v2260
    %2262 = vmatprep.mubr.bf16.mxu0 0
    %2263 = vmatmul.mubr.bf16.gmra.mxu0 %v1998
    %v2264 = vpop.f32.mrf.mxu0
    %v2265 = vadd.f32 %v2023, %v2264
    %v2266 = vpop.f32.mrf.mxu0
    %v2267 = vadd.f32 %v2027, %v2266
    %v2268 = vpop.f32.mrf.mxu0
    %v2269 = vadd.f32 %v2023, %v2268
    %v2270 = vpop.f32.mrf.mxu0
    %v2271 = vadd.f32 %v2027, %v2270
    %2272 = vmatprep.mubr.bf16.mxu0 0
    %2273 = vmatmul.mubr.bf16.gmra.mxu0 %v1999
    %v2274 = vpop.f32.mrf.mxu0
    %v2275 = vadd.f32 %v2023, %v2274
    %v2276 = vpop.f32.mrf.mxu0
    %v2277 = vadd.f32 %v2027, %v2276
    %v2278 = vpop.f32.mrf.mxu0
    %v2279 = vadd.f32 %v2023, %v2278
    %v2280 = vpop.f32.mrf.mxu0
    %v2281 = vadd.f32 %v2027, %v2280
    %2282 = vmatprep.mubr.bf16.mxu0 0
    %2283 = vmatmul.mubr.bf16.gmra.mxu0 %v2000
    %v2284 = vpop.f32.mrf.mxu0
    %v2285 = vadd.f32 %v2023, %v2284
    %v2286 = vpop.f32.mrf.mxu0
    %v2287 = vadd.f32 %v2027, %v2286
    %v2288 = vpop.f32.mrf.mxu0
    %v2289 = vadd.f32 %v2023, %v2288
    %v2290 = vpop.f32.mrf.mxu0
    %v2291 = vadd.f32 %v2027, %v2290
    %2292 = vmatprep.mubr.bf16.mxu0 0
    %2293 = vmatmul.mubr.bf16.gmra.mxu0 %v2001
    %v2294 = vpop.f32.mrf.mxu0
    %v2295 = vadd.f32 %v2023, %v2294
    %v2296 = vpop.f32.mrf.mxu0
    %v2297 = vadd.f32 %v2027, %v2296
    %v2298 = vpop.f32.mrf.mxu0
    %v2299 = vadd.f32 %v2023, %v2298
    %v2300 = vpop.f32.mrf.mxu0
    %v2301 = vadd.f32 %v2027, %v2300
    %2302 = vdwg.mxu0
    %v2303 = vxor.u32 %v2145, 2147483648
    %v2304 = vxor.u32 %v2147, 2147483648
    %v2305 = vxor.u32 %v2149, 2147483648
    %v2306 = vxor.u32 %v2151, 2147483648
    %v2307 = vxor.u32 %v2155, 2147483648
    %v2308 = vxor.u32 %v2157, 2147483648
    %v2309 = vxor.u32 %v2159, 2147483648
    %v2310 = vxor.u32 %v2161, 2147483648
    %v2311 = vxor.u32 %v2165, 2147483648
    %v2312 = vxor.u32 %v2167, 2147483648
    %v2313 = vxor.u32 %v2169, 2147483648
    %v2314 = vxor.u32 %v2171, 2147483648
    %v2315 = vxor.u32 %v2175, 2147483648
    %v2316 = vxor.u32 %v2177, 2147483648
    %v2317 = vxor.u32 %v2179, 2147483648
    %v2318 = vxor.u32 %v2181, 2147483648
    %v2319 = vxor.u32 %v2185, 2147483648
    %v2320 = vxor.u32 %v2187, 2147483648
    %v2321 = vxor.u32 %v2189, 2147483648
    %v2322 = vxor.u32 %v2191, 2147483648
    %v2323 = vxor.u32 %v2195, 2147483648
    %v2324 = vxor.u32 %v2197, 2147483648
    %v2325 = vxor.u32 %v2199, 2147483648
    %v2326 = vxor.u32 %v2201, 2147483648
    %v2327 = vxor.u32 %v2205, 2147483648
    %v2328 = vxor.u32 %v2207, 2147483648
    %v2329 = vxor.u32 %v2209, 2147483648
    %v2330 = vxor.u32 %v2211, 2147483648
    %v2331 = vxor.u32 %v2215, 2147483648
    %v2332 = vxor.u32 %v2217, 2147483648
    %v2333 = vxor.u32 %v2219, 2147483648
    %v2334 = vxor.u32 %v2221, 2147483648
    %v2335 = vxor.u32 %v2225, 2147483648
    %v2336 = vxor.u32 %v2227, 2147483648
    %v2337 = vxor.u32 %v2229, 2147483648
    %v2338 = vxor.u32 %v2231, 2147483648
    %v2339 = vxor.u32 %v2235, 2147483648
    %v2340 = vxor.u32 %v2237, 2147483648
    %v2341 = vxor.u32 %v2239, 2147483648
    %v2342 = vxor.u32 %v2241, 2147483648
    %v2343 = vxor.u32 %v2245, 2147483648
    %v2344 = vxor.u32 %v2247, 2147483648
    %v2345 = vxor.u32 %v2249, 2147483648
    %v2346 = vxor.u32 %v2251, 2147483648
    %v2347 = vxor.u32 %v2255, 2147483648
    %v2348 = vxor.u32 %v2257, 2147483648
    %v2349 = vxor.u32 %v2259, 2147483648
    %v2350 = vxor.u32 %v2261, 2147483648
    %v2351 = vxor.u32 %v2265, 2147483648
    %v2352 = vxor.u32 %v2267, 2147483648
    %v2353 = vxor.u32 %v2269, 2147483648
    %v2354 = vxor.u32 %v2271, 2147483648
    %v2355 = vxor.u32 %v2275, 2147483648
    %v2356 = vxor.u32 %v2277, 2147483648
    %v2357 = vxor.u32 %v2279, 2147483648
    %v2358 = vxor.u32 %v2281, 2147483648
    %v2359 = vxor.u32 %v2285, 2147483648
    %v2360 = vxor.u32 %v2287, 2147483648
    %v2361 = vxor.u32 %v2289, 2147483648
    %v2362 = vxor.u32 %v2291, 2147483648
    %v2363 = vxor.u32 %v2295, 2147483648
    %v2364 = vxor.u32 %v2297, 2147483648
    %v2365 = vxor.u32 %v2299, 2147483648
    %v2366 = vxor.u32 %v2301, 2147483648
    %v2367 = vmul.f32 %v2303, 1.442695
    %v2368 = vpow.pop %v2367
    %v2369 = vmul.f32 %v2304, 1.442695
    %v2370 = vpow.pop %v2369
    %v2371 = vmul.f32 %v2305, 1.442695
    %v2372 = vpow.pop %v2371
    %v2373 = vmul.f32 %v2306, 1.442695
    %v2374 = vpow.pop %v2373
    %v2375 = vmul.f32 %v2307, 1.442695
    %v2376 = vpow.pop %v2375
    %v2377 = vmul.f32 %v2308, 1.442695
    %v2378 = vpow.pop %v2377
    %v2379 = vmul.f32 %v2309, 1.442695
    %v2380 = vpow.pop %v2379
    %v2381 = vmul.f32 %v2310, 1.442695
    %v2382 = vpow.pop %v2381
    %v2383 = vmul.f32 %v2311, 1.442695
    %v2384 = vpow.pop %v2383
    %v2385 = vmul.f32 %v2312, 1.442695
    %v2386 = vpow.pop %v2385
    %v2387 = vmul.f32 %v2313, 1.442695
    %v2388 = vpow.pop %v2387
    %v2389 = vmul.f32 %v2314, 1.442695
    %v2390 = vpow.pop %v2389
    %v2391 = vmul.f32 %v2315, 1.442695
    %v2392 = vpow.pop %v2391
    %v2393 = vmul.f32 %v2316, 1.442695
    %v2394 = vpow.pop %v2393
    %v2395 = vmul.f32 %v2317, 1.442695
    %v2396 = vpow.pop %v2395
    %v2397 = vmul.f32 %v2318, 1.442695
    %v2398 = vpow.pop %v2397
    %v2399 = vmul.f32 %v2319, 1.442695
    %v2400 = vpow.pop %v2399
    %v2401 = vmul.f32 %v2320, 1.442695
    %v2402 = vpow.pop %v2401
    %v2403 = vmul.f32 %v2321, 1.442695
    %v2404 = vpow.pop %v2403
    %v2405 = vmul.f32 %v2322, 1.442695
    %v2406 = vpow.pop %v2405
    %v2407 = vmul.f32 %v2323, 1.442695
    %v2408 = vpow.pop %v2407
    %v2409 = vmul.f32 %v2324, 1.442695
    %v2410 = vpow.pop %v2409
    %v2411 = vmul.f32 %v2325, 1.442695
    %v2412 = vpow.pop %v2411
    %v2413 = vmul.f32 %v2326, 1.442695
    %v2414 = vpow.pop %v2413
    %v2415 = vmul.f32 %v2327, 1.442695
    %v2416 = vpow.pop %v2415
    %v2417 = vmul.f32 %v2328, 1.442695
    %v2418 = vpow.pop %v2417
    %v2419 = vmul.f32 %v2329, 1.442695
    %v2420 = vpow.pop %v2419
    %v2421 = vmul.f32 %v2330, 1.442695
    %v2422 = vpow.pop %v2421
    %v2423 = vmul.f32 %v2331, 1.442695
    %v2424 = vpow.pop %v2423
    %v2425 = vmul.f32 %v2332, 1.442695
    %v2426 = vpow.pop %v2425
    %v2427 = vmul.f32 %v2333, 1.442695
    %v2428 = vpow.pop %v2427
    %v2429 = vmul.f32 %v2334, 1.442695
    %v2430 = vpow.pop %v2429
    %v2431 = vmul.f32 %v2335, 1.442695
    %v2432 = vpow.pop %v2431
    %v2433 = vmul.f32 %v2336, 1.442695
    %v2434 = vpow.pop %v2433
    %v2435 = vmul.f32 %v2337, 1.442695
    %v2436 = vpow.pop %v2435
    %v2437 = vmul.f32 %v2338, 1.442695
    %v2438 = vpow.pop %v2437
    %v2439 = vmul.f32 %v2339, 1.442695
    %v2440 = vpow.pop %v2439
    %v2441 = vmul.f32 %v2340, 1.442695
    %v2442 = vpow.pop %v2441
    %v2443 = vmul.f32 %v2341, 1.442695
    %v2444 = vpow.pop %v2443
    %v2445 = vmul.f32 %v2342, 1.442695
    %v2446 = vpow.pop %v2445
    %v2447 = vmul.f32 %v2343, 1.442695
    %v2448 = vpow.pop %v2447
    %v2449 = vmul.f32 %v2344, 1.442695
    %v2450 = vpow.pop %v2449
    %v2451 = vmul.f32 %v2345, 1.442695
    %v2452 = vpow.pop %v2451
    %v2453 = vmul.f32 %v2346, 1.442695
    %v2454 = vpow.pop %v2453
    %v2455 = vmul.f32 %v2347, 1.442695
    %v2456 = vpow.pop %v2455
    %v2457 = vmul.f32 %v2348, 1.442695
    %v2458 = vpow.pop %v2457
    %v2459 = vmul.f32 %v2349, 1.442695
    %v2460 = vpow.pop %v2459
    %v2461 = vmul.f32 %v2350, 1.442695
    %v2462 = vpow.pop %v2461
    %v2463 = vmul.f32 %v2351, 1.442695
    %v2464 = vpow.pop %v2463
    %v2465 = vmul.f32 %v2352, 1.442695
    %v2466 = vpow.pop %v2465
    %v2467 = vmul.f32 %v2353, 1.442695
    %v2468 = vpow.pop %v2467
    %v2469 = vmul.f32 %v2354, 1.442695
    %v2470 = vpow.pop %v2469
    %v2471 = vmul.f32 %v2355, 1.442695
    %v2472 = vpow.pop %v2471
    %v2473 = vmul.f32 %v2356, 1.442695
    %v2474 = vpow.pop %v2473
    %v2475 = vmul.f32 %v2357, 1.442695
    %v2476 = vpow.pop %v2475
    %v2477 = vmul.f32 %v2358, 1.442695
    %v2478 = vpow.pop %v2477
    %v2479 = vmul.f32 %v2359, 1.442695
    %v2480 = vpow.pop %v2479
    %v2481 = vmul.f32 %v2360, 1.442695
    %v2482 = vpow.pop %v2481
    %v2483 = vmul.f32 %v2361, 1.442695
    %v2484 = vpow.pop %v2483
    %v2485 = vmul.f32 %v2362, 1.442695
    %v2486 = vpow.pop %v2485
    %v2487 = vmul.f32 %v2363, 1.442695
    %v2488 = vpow.pop %v2487
    %v2489 = vmul.f32 %v2364, 1.442695
    %v2490 = vpow.pop %v2489
    %v2491 = vmul.f32 %v2365, 1.442695
    %v2492 = vpow.pop %v2491
    %v2493 = vmul.f32 %v2366, 1.442695
    %v2494 = vpow.pop %v2493
    %v2495 = vadd.f32 %v2368, 1.0
    %v2496 = vadd.f32 %v2370, 1.0
    %v2497 = vadd.f32 %v2372, 1.0
    %v2498 = vadd.f32 %v2374, 1.0
    %v2499 = vadd.f32 %v2376, 1.0
    %v2500 = vadd.f32 %v2378, 1.0
    %v2501 = vadd.f32 %v2380, 1.0
    %v2502 = vadd.f32 %v2382, 1.0
    %v2503 = vadd.f32 %v2384, 1.0
    %v2504 = vadd.f32 %v2386, 1.0
    %v2505 = vadd.f32 %v2388, 1.0
    %v2506 = vadd.f32 %v2390, 1.0
    %v2507 = vadd.f32 %v2392, 1.0
    %v2508 = vadd.f32 %v2394, 1.0
    %v2509 = vadd.f32 %v2396, 1.0
    %v2510 = vadd.f32 %v2398, 1.0
    %v2511 = vadd.f32 %v2400, 1.0
    %v2512 = vadd.f32 %v2402, 1.0
    %v2513 = vadd.f32 %v2404, 1.0
    %v2514 = vadd.f32 %v2406, 1.0
    %v2515 = vadd.f32 %v2408, 1.0
    %v2516 = vadd.f32 %v2410, 1.0
    %v2517 = vadd.f32 %v2412, 1.0
    %v2518 = vadd.f32 %v2414, 1.0
    %v2519 = vadd.f32 %v2416, 1.0
    %v2520 = vadd.f32 %v2418, 1.0
    %v2521 = vadd.f32 %v2420, 1.0
    %v2522 = vadd.f32 %v2422, 1.0
    %v2523 = vadd.f32 %v2424, 1.0
    %v2524 = vadd.f32 %v2426, 1.0
    %v2525 = vadd.f32 %v2428, 1.0
    %v2526 = vadd.f32 %v2430, 1.0
    %v2527 = vadd.f32 %v2432, 1.0
    %v2528 = vadd.f32 %v2434, 1.0
    %v2529 = vadd.f32 %v2436, 1.0
    %v2530 = vadd.f32 %v2438, 1.0
    %v2531 = vadd.f32 %v2440, 1.0
    %v2532 = vadd.f32 %v2442, 1.0
    %v2533 = vadd.f32 %v2444, 1.0
    %v2534 = vadd.f32 %v2446, 1.0
    %v2535 = vadd.f32 %v2448, 1.0
    %v2536 = vadd.f32 %v2450, 1.0
    %v2537 = vadd.f32 %v2452, 1.0
    %v2538 = vadd.f32 %v2454, 1.0
    %v2539 = vadd.f32 %v2456, 1.0
    %v2540 = vadd.f32 %v2458, 1.0
    %v2541 = vadd.f32 %v2460, 1.0
    %v2542 = vadd.f32 %v2462, 1.0
    %v2543 = vadd.f32 %v2464, 1.0
    %v2544 = vadd.f32 %v2466, 1.0
    %v2545 = vadd.f32 %v2468, 1.0
    %v2546 = vadd.f32 %v2470, 1.0
    %v2547 = vadd.f32 %v2472, 1.0
    %v2548 = vadd.f32 %v2474, 1.0
    %v2549 = vadd.f32 %v2476, 1.0
    %v2550 = vadd.f32 %v2478, 1.0
    %v2551 = vadd.f32 %v2480, 1.0
    %v2552 = vadd.f32 %v2482, 1.0
    %v2553 = vadd.f32 %v2484, 1.0
    %v2554 = vadd.f32 %v2486, 1.0
    %v2555 = vadd.f32 %v2488, 1.0
    %v2556 = vadd.f32 %v2490, 1.0
    %v2557 = vadd.f32 %v2492, 1.0
    %v2558 = vadd.f32 %v2494, 1.0
    %v2559 = vrcp.pop %v2495
    %v2560 = vmul.f32 1.0, %v2559
    %v2561 = vrcp.pop %v2496
    %v2562 = vmul.f32 1.0, %v2561
    %v2563 = vrcp.pop %v2497
    %v2564 = vmul.f32 1.0, %v2563
    %v2565 = vrcp.pop %v2498
    %v2566 = vmul.f32 1.0, %v2565
    %v2567 = vrcp.pop %v2499
    %v2568 = vmul.f32 1.0, %v2567
    %v2569 = vrcp.pop %v2500
    %v2570 = vmul.f32 1.0, %v2569
    %v2571 = vrcp.pop %v2501
    %v2572 = vmul.f32 1.0, %v2571
    %v2573 = vrcp.pop %v2502
    %v2574 = vmul.f32 1.0, %v2573
    %v2575 = vrcp.pop %v2503
    %v2576 = vmul.f32 1.0, %v2575
    %v2577 = vrcp.pop %v2504
    %v2578 = vmul.f32 1.0, %v2577
    %v2579 = vrcp.pop %v2505
    %v2580 = vmul.f32 1.0, %v2579
    %v2581 = vrcp.pop %v2506
    %v2582 = vmul.f32 1.0, %v2581
    %v2583 = vrcp.pop %v2507
    %v2584 = vmul.f32 1.0, %v2583
    %v2585 = vrcp.pop %v2508
    %v2586 = vmul.f32 1.0, %v2585
    %v2587 = vrcp.pop %v2509
    %v2588 = vmul.f32 1.0, %v2587
    %v2589 = vrcp.pop %v2510
    %v2590 = vmul.f32 1.0, %v2589
    %v2591 = vrcp.pop %v2511
    %v2592 = vmul.f32 1.0, %v2591
    %v2593 = vrcp.pop %v2512
    %v2594 = vmul.f32 1.0, %v2593
    %v2595 = vrcp.pop %v2513
    %v2596 = vmul.f32 1.0, %v2595
    %v2597 = vrcp.pop %v2514
    %v2598 = vmul.f32 1.0, %v2597
    %v2599 = vrcp.pop %v2515
    %v2600 = vmul.f32 1.0, %v2599
    %v2601 = vrcp.pop %v2516
    %v2602 = vmul.f32 1.0, %v2601
    %v2603 = vrcp.pop %v2517
    %v2604 = vmul.f32 1.0, %v2603
    %v2605 = vrcp.pop %v2518
    %v2606 = vmul.f32 1.0, %v2605
    %v2607 = vrcp.pop %v2519
    %v2608 = vmul.f32 1.0, %v2607
    %v2609 = vrcp.pop %v2520
    %v2610 = vmul.f32 1.0, %v2609
    %v2611 = vrcp.pop %v2521
    %v2612 = vmul.f32 1.0, %v2611
    %v2613 = vrcp.pop %v2522
    %v2614 = vmul.f32 1.0, %v2613
    %v2615 = vrcp.pop %v2523
    %v2616 = vmul.f32 1.0, %v2615
    %v2617 = vrcp.pop %v2524
    %v2618 = vmul.f32 1.0, %v2617
    %v2619 = vrcp.pop %v2525
    %v2620 = vmul.f32 1.0, %v2619
    %v2621 = vrcp.pop %v2526
    %v2622 = vmul.f32 1.0, %v2621
    %v2623 = vrcp.pop %v2527
    %v2624 = vmul.f32 1.0, %v2623
    %v2625 = vrcp.pop %v2528
    %v2626 = vmul.f32 1.0, %v2625
    %v2627 = vrcp.pop %v2529
    %v2628 = vmul.f32 1.0, %v2627
    %v2629 = vrcp.pop %v2530
    %v2630 = vmul.f32 1.0, %v2629
    %v2631 = vrcp.pop %v2531
    %v2632 = vmul.f32 1.0, %v2631
    %v2633 = vrcp.pop %v2532
    %v2634 = vmul.f32 1.0, %v2633
    %v2635 = vrcp.pop %v2533
    %v2636 = vmul.f32 1.0, %v2635
    %v2637 = vrcp.pop %v2534
    %v2638 = vmul.f32 1.0, %v2637
    %v2639 = vrcp.pop %v2535
    %v2640 = vmul.f32 1.0, %v2639
    %v2641 = vrcp.pop %v2536
    %v2642 = vmul.f32 1.0, %v2641
    %v2643 = vrcp.pop %v2537
    %v2644 = vmul.f32 1.0, %v2643
    %v2645 = vrcp.pop %v2538
    %v2646 = vmul.f32 1.0, %v2645
    %v2647 = vrcp.pop %v2539
    %v2648 = vmul.f32 1.0, %v2647
    %v2649 = vrcp.pop %v2540
    %v2650 = vmul.f32 1.0, %v2649
    %v2651 = vrcp.pop %v2541
    %v2652 = vmul.f32 1.0, %v2651
    %v2653 = vrcp.pop %v2542
    %v2654 = vmul.f32 1.0, %v2653
    %v2655 = vrcp.pop %v2543
    %v2656 = vmul.f32 1.0, %v2655
    %v2657 = vrcp.pop %v2544
    %v2658 = vmul.f32 1.0, %v2657
    %v2659 = vrcp.pop %v2545
    %v2660 = vmul.f32 1.0, %v2659
    %v2661 = vrcp.pop %v2546
    %v2662 = vmul.f32 1.0, %v2661
    %v2663 = vrcp.pop %v2547
    %v2664 = vmul.f32 1.0, %v2663
    %v2665 = vrcp.pop %v2548
    %v2666 = vmul.f32 1.0, %v2665
    %v2667 = vrcp.pop %v2549
    %v2668 = vmul.f32 1.0, %v2667
    %v2669 = vrcp.pop %v2550
    %v2670 = vmul.f32 1.0, %v2669
    %v2671 = vrcp.pop %v2551
    %v2672 = vmul.f32 1.0, %v2671
    %v2673 = vrcp.pop %v2552
    %v2674 = vmul.f32 1.0, %v2673
    %v2675 = vrcp.pop %v2553
    %v2676 = vmul.f32 1.0, %v2675
    %v2677 = vrcp.pop %v2554
    %v2678 = vmul.f32 1.0, %v2677
    %v2679 = vrcp.pop %v2555
    %v2680 = vmul.f32 1.0, %v2679
    %v2681 = vrcp.pop %v2556
    %v2682 = vmul.f32 1.0, %v2681
    %v2683 = vrcp.pop %v2557
    %v2684 = vmul.f32 1.0, %v2683
    %v2685 = vrcp.pop %v2558
    %v2686 = vmul.f32 1.0, %v2685
    %v2687 = vpack.c.bf16 %v2564, %v2560
    %v2688 = vpack.c.bf16 %v2566, %v2562
    %v2689 = vpack.c.bf16 %v2572, %v2568
    %v2690 = vpack.c.bf16 %v2574, %v2570
    %v2691 = vpack.c.bf16 %v2580, %v2576
    %v2692 = vpack.c.bf16 %v2582, %v2578
    %v2693 = vpack.c.bf16 %v2588, %v2584
    %v2694 = vpack.c.bf16 %v2590, %v2586
    %v2695 = vpack.c.bf16 %v2596, %v2592
    %v2696 = vpack.c.bf16 %v2598, %v2594
    %v2697 = vpack.c.bf16 %v2604, %v2600
    %v2698 = vpack.c.bf16 %v2606, %v2602
    %v2699 = vpack.c.bf16 %v2612, %v2608
    %v2700 = vpack.c.bf16 %v2614, %v2610
    %v2701 = vpack.c.bf16 %v2620, %v2616
    %v2702 = vpack.c.bf16 %v2622, %v2618
    %v2703 = vpack.c.bf16 %v2628, %v2624
    %v2704 = vpack.c.bf16 %v2630, %v2626
    %v2705 = vpack.c.bf16 %v2636, %v2632
    %v2706 = vpack.c.bf16 %v2638, %v2634
    %v2707 = vpack.c.bf16 %v2644, %v2640
    %v2708 = vpack.c.bf16 %v2646, %v2642
    %v2709 = vpack.c.bf16 %v2652, %v2648
    %v2710 = vpack.c.bf16 %v2654, %v2650
    %v2711 = vpack.c.bf16 %v2660, %v2656
    %v2712 = vpack.c.bf16 %v2662, %v2658
    %v2713 = vpack.c.bf16 %v2668, %v2664
    %v2714 = vpack.c.bf16 %v2670, %v2666
    %v2715 = vpack.c.bf16 %v2676, %v2672
    %v2716 = vpack.c.bf16 %v2678, %v2674
    %v2717 = vpack.c.bf16 %v2684, %v2680
    %v2718 = vpack.c.bf16 %v2686, %v2682
    %v2719 = vld [vmem:[#allocation17] sm:$0xf]
    %v2720 = vld [vmem:[#allocation17 + $0x4] sm:$0xf]
    %v2721 = vld [vmem:[#allocation17 + $0x8] sm:$0xf]
    %v2722 = vld [vmem:[#allocation17 + $0xc] sm:$0xf]
    %v2723 = vld [vmem:[#allocation17 + $0x10] sm:$0xf]
    %v2724 = vld [vmem:[#allocation17 + $0x14] sm:$0xf]
    %v2725 = vld [vmem:[#allocation17 + $0x18] sm:$0xf]
    %v2726 = vld [vmem:[#allocation17 + $0x1c] sm:$0xf]
    %v2727 = vld [vmem:[#allocation17 + $0x20] sm:$0xf]
    %v2728 = vld [vmem:[#allocation17 + $0x24] sm:$0xf]
    %v2729 = vld [vmem:[#allocation17 + $0x28] sm:$0xf]
    %v2730 = vld [vmem:[#allocation17 + $0x2c] sm:$0xf]
    %v2731 = vld [vmem:[#allocation17 + $0x30] sm:$0xf]
    %v2732 = vld [vmem:[#allocation17 + $0x34] sm:$0xf]
    %v2733 = vld [vmem:[#allocation17 + $0x38] sm:$0xf]
    %v2734 = vld [vmem:[#allocation17 + $0x3c] sm:$0xf]
    %v2735 = vld [vmem:[%s13] sm:$0x1]
    %v2737 = vlaneseq
    %v2738 = vshrl.u32 %v2737, 7
    %v2739 = vsub.s32 0, %v2738
    %v2740 = vrot.slane %v2735, %v2739
    %v2758 = vunpack.c.l.b16 %v2719
    %v2759 = vunpack.c.l.b16 %v2720
    %v2760 = vunpack.c.l.b16 %v2721
    %v2761 = vunpack.c.l.b16 %v2722
    %v2762 = vunpack.c.l.b16 %v2723
    %v2763 = vunpack.c.l.b16 %v2724
    %v2764 = vunpack.c.l.b16 %v2725
    %v2765 = vunpack.c.l.b16 %v2726
    %v2766 = vunpack.c.l.b16 %v2727
    %v2767 = vunpack.c.l.b16 %v2728
    %v2768 = vunpack.c.l.b16 %v2729
    %v2769 = vunpack.c.l.b16 %v2730
    %v2770 = vunpack.c.l.b16 %v2731
    %v2771 = vunpack.c.l.b16 %v2732
    %v2772 = vunpack.c.l.b16 %v2733
    %v2773 = vunpack.c.l.b16 %v2734
    %v2774 = vpack.c.b16 %v2759, %v2758
    %v2775 = vpack.c.b16 %v2761, %v2760
    %v2776 = vpack.c.b16 %v2763, %v2762
    %v2777 = vpack.c.b16 %v2765, %v2764
    %v2778 = vpack.c.b16 %v2767, %v2766
    %v2779 = vpack.c.b16 %v2769, %v2768
    %v2780 = vpack.c.b16 %v2771, %v2770
    %v2781 = vpack.c.b16 %v2773, %v2772
    %2790 = vmatprep.subr.bf16.mxu0 0
    %2791 = vmatpush1.bf16.msra.mxu0 %v2781
    %2792 = vmatprep.subr.bf16.mxu0 0
    %2793 = vmatpush1.bf16.msra.mxu0 %v2780
    %2794 = vmatprep.subr.bf16.mxu0 0
    %2795 = vmatpush1.bf16.msra.mxu0 %v2779
    %2796 = vmatprep.subr.bf16.mxu0 0
    %2797 = vmatpush1.bf16.msra.mxu0 %v2778
    %2798 = vmatprep.subr.bf16.mxu0 0
    %2799 = vmatpush1.bf16.msra.mxu0 %v2777
    %2800 = vmatprep.subr.bf16.mxu0 0
    %2801 = vmatpush1.bf16.msra.mxu0 %v2776
    %2802 = vmatprep.subr.bf16.mxu0 0
    %2803 = vmatpush1.bf16.msra.mxu0 %v2775
    %2804 = vmatprep.subr.bf16.mxu0 0
    %2805 = vmatpush1.bf16.msra.mxu0 %v2774
    %2806 = vmatprep.subr.bf16.mxu0 0
    %2807 = vmatpush2.bf16.msra.mxu0 0
    %2808 = vmatprep.subr.bf16.mxu0 0
    %2809 = vmatpush2.bf16.msra.mxu0 0
    %2810 = vmatprep.subr.bf16.mxu0 0
    %2811 = vmatpush2.bf16.msra.mxu0 0
    %2812 = vmatprep.subr.bf16.mxu0 0
    %2813 = vmatpush2.bf16.msra.mxu0 0
    %2814 = vmatprep.subr.bf16.mxu0 0
    %2815 = vmatpush2.bf16.msra.mxu0 0
    %2816 = vmatprep.subr.bf16.mxu0 0
    %2817 = vmatpush2.bf16.msra.mxu0 0
    %2818 = vmatprep.subr.bf16.mxu0 0
    %2819 = vmatpush2.bf16.msra.mxu0 0
    %2820 = vmatprep.subr.bf16.mxu0 0
    %2821 = vmatpush2.bf16.msra.mxu0 0
    %2822 = vmatprep.mubr.bf16.mxu0 0
    %2823 = vmatmul.mubr.bf16.gmra.mxu0 %v2687
    %v2824 = vpop.f32.mrf.mxu0
    %v2825 = vadd.f32 %v2740, %v2824
    %v2826 = vpop.f32.mrf.mxu0
    %v2827 = vpop.f32.mrf.mxu0
    %v2828 = vadd.f32 %v2740, %v2827
    %v2829 = vpop.f32.mrf.mxu0
    %2830 = vmatprep.mubr.bf16.mxu0 0
    %2831 = vmatmul.mubr.bf16.gmra.mxu0 %v2689
    %v2832 = vpop.f32.mrf.mxu0
    %v2833 = vadd.f32 %v2740, %v2832
    %v2834 = vpop.f32.mrf.mxu0
    %v2835 = vpop.f32.mrf.mxu0
    %v2836 = vadd.f32 %v2740, %v2835
    %v2837 = vpop.f32.mrf.mxu0
    %2838 = vmatprep.mubr.bf16.mxu0 0
    %2839 = vmatmul.mubr.bf16.gmra.mxu0 %v2691
    %v2840 = vpop.f32.mrf.mxu0
    %v2841 = vadd.f32 %v2740, %v2840
    %v2842 = vpop.f32.mrf.mxu0
    %v2843 = vpop.f32.mrf.mxu0
    %v2844 = vadd.f32 %v2740, %v2843
    %v2845 = vpop.f32.mrf.mxu0
    %2846 = vmatprep.mubr.bf16.mxu0 0
    %2847 = vmatmul.mubr.bf16.gmra.mxu0 %v2693
    %v2848 = vpop.f32.mrf.mxu0
    %v2849 = vadd.f32 %v2740, %v2848
    %v2850 = vpop.f32.mrf.mxu0
    %v2851 = vpop.f32.mrf.mxu0
    %v2852 = vadd.f32 %v2740, %v2851
    %v2853 = vpop.f32.mrf.mxu0
    %2854 = vmatprep.mubr.bf16.mxu0 0
    %2855 = vmatmul.mubr.bf16.gmra.mxu0 %v2695
    %v2856 = vpop.f32.mrf.mxu0
    %v2857 = vadd.f32 %v2740, %v2856
    %v2858 = vpop.f32.mrf.mxu0
    %v2859 = vpop.f32.mrf.mxu0
    %v2860 = vadd.f32 %v2740, %v2859
    %v2861 = vpop.f32.mrf.mxu0
    %2862 = vmatprep.mubr.bf16.mxu0 0
    %2863 = vmatmul.mubr.bf16.gmra.mxu0 %v2697
    %v2864 = vpop.f32.mrf.mxu0
    %v2865 = vadd.f32 %v2740, %v2864
    %v2866 = vpop.f32.mrf.mxu0
    %v2867 = vpop.f32.mrf.mxu0
    %v2868 = vadd.f32 %v2740, %v2867
    %v2869 = vpop.f32.mrf.mxu0
    %2870 = vmatprep.mubr.bf16.mxu0 0
    %2871 = vmatmul.mubr.bf16.gmra.mxu0 %v2699
    %v2872 = vpop.f32.mrf.mxu0
    %v2873 = vadd.f32 %v2740, %v2872
    %v2874 = vpop.f32.mrf.mxu0
    %v2875 = vpop.f32.mrf.mxu0
    %v2876 = vadd.f32 %v2740, %v2875
    %v2877 = vpop.f32.mrf.mxu0
    %2878 = vmatprep.mubr.bf16.mxu0 0
    %2879 = vmatmul.mubr.bf16.gmra.mxu0 %v2701
    %v2880 = vpop.f32.mrf.mxu0
    %v2881 = vadd.f32 %v2740, %v2880
    %v2882 = vpop.f32.mrf.mxu0
    %v2883 = vpop.f32.mrf.mxu0
    %v2884 = vadd.f32 %v2740, %v2883
    %v2885 = vpop.f32.mrf.mxu0
    %2886 = vmatprep.mubr.bf16.mxu0 0
    %2887 = vmatmul.mubr.bf16.gmra.mxu0 %v2703
    %v2888 = vpop.f32.mrf.mxu0
    %v2889 = vadd.f32 %v2740, %v2888
    %v2890 = vpop.f32.mrf.mxu0
    %v2891 = vpop.f32.mrf.mxu0
    %v2892 = vadd.f32 %v2740, %v2891
    %v2893 = vpop.f32.mrf.mxu0
    %2894 = vmatprep.mubr.bf16.mxu0 0
    %2895 = vmatmul.mubr.bf16.gmra.mxu0 %v2705
    %v2896 = vpop.f32.mrf.mxu0
    %v2897 = vadd.f32 %v2740, %v2896
    %v2898 = vpop.f32.mrf.mxu0
    %v2899 = vpop.f32.mrf.mxu0
    %v2900 = vadd.f32 %v2740, %v2899
    %v2901 = vpop.f32.mrf.mxu0
    %2902 = vmatprep.mubr.bf16.mxu0 0
    %2903 = vmatmul.mubr.bf16.gmra.mxu0 %v2707
    %v2904 = vpop.f32.mrf.mxu0
    %v2905 = vadd.f32 %v2740, %v2904
    %v2906 = vpop.f32.mrf.mxu0
    %v2907 = vpop.f32.mrf.mxu0
    %v2908 = vadd.f32 %v2740, %v2907
    %v2909 = vpop.f32.mrf.mxu0
    %2910 = vmatprep.mubr.bf16.mxu0 0
    %2911 = vmatmul.mubr.bf16.gmra.mxu0 %v2709
    %v2912 = vpop.f32.mrf.mxu0
    %v2913 = vadd.f32 %v2740, %v2912
    %v2914 = vpop.f32.mrf.mxu0
    %v2915 = vpop.f32.mrf.mxu0
    %v2916 = vadd.f32 %v2740, %v2915
    %v2917 = vpop.f32.mrf.mxu0
    %2918 = vmatprep.mubr.bf16.mxu0 0
    %2919 = vmatmul.mubr.bf16.gmra.mxu0 %v2711
    %v2920 = vpop.f32.mrf.mxu0
    %v2921 = vadd.f32 %v2740, %v2920
    %v2922 = vpop.f32.mrf.mxu0
    %v2923 = vpop.f32.mrf.mxu0
    %v2924 = vadd.f32 %v2740, %v2923
    %v2925 = vpop.f32.mrf.mxu0
    %2926 = vmatprep.mubr.bf16.mxu0 0
    %2927 = vmatmul.mubr.bf16.gmra.mxu0 %v2713
    %v2928 = vpop.f32.mrf.mxu0
    %v2929 = vadd.f32 %v2740, %v2928
    %v2930 = vpop.f32.mrf.mxu0
    %v2931 = vpop.f32.mrf.mxu0
    %v2932 = vadd.f32 %v2740, %v2931
    %v2933 = vpop.f32.mrf.mxu0
    %2934 = vmatprep.mubr.bf16.mxu0 0
    %2935 = vmatmul.mubr.bf16.gmra.mxu0 %v2715
    %v2936 = vpop.f32.mrf.mxu0
    %v2937 = vadd.f32 %v2740, %v2936
    %v2938 = vpop.f32.mrf.mxu0
    %v2939 = vpop.f32.mrf.mxu0
    %v2940 = vadd.f32 %v2740, %v2939
    %v2941 = vpop.f32.mrf.mxu0
    %2942 = vmatprep.mubr.bf16.mxu0 0
    %2943 = vmatmul.mubr.bf16.gmra.mxu0 %v2717
    %v2944 = vpop.f32.mrf.mxu0
    %v2945 = vadd.f32 %v2740, %v2944
    %v2946 = vpop.f32.mrf.mxu0
    %v2947 = vpop.f32.mrf.mxu0
    %v2948 = vadd.f32 %v2740, %v2947
    %v2949 = vpop.f32.mrf.mxu0
    %2950 = vdwg.mxu0
    %v2951 = vpack.c.bf16 %v2828, %v2825
    %v2952 = vpack.c.bf16 %v2836, %v2833
    %v2953 = vpack.c.bf16 %v2844, %v2841
    %v2954 = vpack.c.bf16 %v2852, %v2849
    %v2955 = vpack.c.bf16 %v2860, %v2857
    %v2956 = vpack.c.bf16 %v2868, %v2865
    %v2957 = vpack.c.bf16 %v2876, %v2873
    %v2958 = vpack.c.bf16 %v2884, %v2881
    %v2959 = vpack.c.bf16 %v2892, %v2889
    %v2960 = vpack.c.bf16 %v2900, %v2897
    %v2961 = vpack.c.bf16 %v2908, %v2905
    %v2962 = vpack.c.bf16 %v2916, %v2913
    %v2963 = vpack.c.bf16 %v2924, %v2921
    %v2964 = vpack.c.bf16 %v2932, %v2929
    %v2965 = vpack.c.bf16 %v2940, %v2937
    %v2966 = vpack.c.bf16 %v2948, %v2945
    %v2967 = vxor.u32 %v2951, 2147516416
    %v2968 = vxor.u32 %v2952, 2147516416
    %v2969 = vxor.u32 %v2953, 2147516416
    %v2970 = vxor.u32 %v2954, 2147516416
    %v2971 = vxor.u32 %v2955, 2147516416
    %v2972 = vxor.u32 %v2956, 2147516416
    %v2973 = vxor.u32 %v2957, 2147516416
    %v2974 = vxor.u32 %v2958, 2147516416
    %v2975 = vxor.u32 %v2959, 2147516416
    %v2976 = vxor.u32 %v2960, 2147516416
    %v2977 = vxor.u32 %v2961, 2147516416
    %v2978 = vxor.u32 %v2962, 2147516416
    %v2979 = vxor.u32 %v2963, 2147516416
    %v2980 = vxor.u32 %v2964, 2147516416
    %v2981 = vxor.u32 %v2965, 2147516416
    %v2982 = vxor.u32 %v2966, 2147516416
    %v2984 = vmul.bf16 %v2967, 1069105081
    %v2985 = vpow.bf16.pop %v2984
    %v2987 = vmul.bf16 %v2968, 1069105081
    %v2988 = vpow.bf16.pop %v2987
    %v2990 = vmul.bf16 %v2969, 1069105081
    %v2991 = vpow.bf16.pop %v2990
    %v2993 = vmul.bf16 %v2970, 1069105081
    %v2994 = vpow.bf16.pop %v2993
    %v2996 = vmul.bf16 %v2971, 1069105081
    %v2997 = vpow.bf16.pop %v2996
    %v2999 = vmul.bf16 %v2972, 1069105081
    %v3000 = vpow.bf16.pop %v2999
    %v3002 = vmul.bf16 %v2973, 1069105081
    %v3003 = vpow.bf16.pop %v3002
    %v3005 = vmul.bf16 %v2974, 1069105081
    %v3006 = vpow.bf16.pop %v3005
    %v3008 = vmul.bf16 %v2975, 1069105081
    %v3009 = vpow.bf16.pop %v3008
    %v3011 = vmul.bf16 %v2976, 1069105081
    %v3012 = vpow.bf16.pop %v3011
    %v3014 = vmul.bf16 %v2977, 1069105081
    %v3015 = vpow.bf16.pop %v3014
    %v3017 = vmul.bf16 %v2978, 1069105081
    %v3018 = vpow.bf16.pop %v3017
    %v3020 = vmul.bf16 %v2979, 1069105081
    %v3021 = vpow.bf16.pop %v3020
    %v3023 = vmul.bf16 %v2980, 1069105081
    %v3024 = vpow.bf16.pop %v3023
    %v3026 = vmul.bf16 %v2981, 1069105081
    %v3027 = vpow.bf16.pop %v3026
    %v3029 = vmul.bf16 %v2982, 1069105081
    %v3030 = vpow.bf16.pop %v3029
    %v3031 = vadd.bf16 %v2985, 1065369472
    %v3032 = vadd.bf16 %v2988, 1065369472
    %v3033 = vadd.bf16 %v2991, 1065369472
    %v3034 = vadd.bf16 %v2994, 1065369472
    %v3035 = vadd.bf16 %v2997, 1065369472
    %v3036 = vadd.bf16 %v3000, 1065369472
    %v3037 = vadd.bf16 %v3003, 1065369472
    %v3038 = vadd.bf16 %v3006, 1065369472
    %v3039 = vadd.bf16 %v3009, 1065369472
    %v3040 = vadd.bf16 %v3012, 1065369472
    %v3041 = vadd.bf16 %v3015, 1065369472
    %v3042 = vadd.bf16 %v3018, 1065369472
    %v3043 = vadd.bf16 %v3021, 1065369472
    %v3044 = vadd.bf16 %v3024, 1065369472
    %v3045 = vadd.bf16 %v3027, 1065369472
    %v3046 = vadd.bf16 %v3030, 1065369472
    %v3047 = vrcp.bf16.pop %v3031
    %v3048 = vmul.bf16 1065369472, %v3047
    %v3049 = vrcp.bf16.pop %v3032
    %v3050 = vmul.bf16 1065369472, %v3049
    %v3051 = vrcp.bf16.pop %v3033
    %v3052 = vmul.bf16 1065369472, %v3051
    %v3053 = vrcp.bf16.pop %v3034
    %v3054 = vmul.bf16 1065369472, %v3053
    %v3055 = vrcp.bf16.pop %v3035
    %v3056 = vmul.bf16 1065369472, %v3055
    %v3057 = vrcp.bf16.pop %v3036
    %v3058 = vmul.bf16 1065369472, %v3057
    %v3059 = vrcp.bf16.pop %v3037
    %v3060 = vmul.bf16 1065369472, %v3059
    %v3061 = vrcp.bf16.pop %v3038
    %v3062 = vmul.bf16 1065369472, %v3061
    %v3063 = vrcp.bf16.pop %v3039
    %v3064 = vmul.bf16 1065369472, %v3063
    %v3065 = vrcp.bf16.pop %v3040
    %v3066 = vmul.bf16 1065369472, %v3065
    %v3067 = vrcp.bf16.pop %v3041
    %v3068 = vmul.bf16 1065369472, %v3067
    %v3069 = vrcp.bf16.pop %v3042
    %v3070 = vmul.bf16 1065369472, %v3069
    %v3071 = vrcp.bf16.pop %v3043
    %v3072 = vmul.bf16 1065369472, %v3071
    %v3073 = vrcp.bf16.pop %v3044
    %v3074 = vmul.bf16 1065369472, %v3073
    %v3075 = vrcp.bf16.pop %v3045
    %v3076 = vmul.bf16 1065369472, %v3075
    %v3077 = vrcp.bf16.pop %v3046
    %v3078 = vmul.bf16 1065369472, %v3077
    %v3079 = vunpack.c.l.bf16 %v3048
    %v3080 = vunpack.c.h.bf16 %v3048
    %v3081 = vunpack.c.l.bf16 %v3050
    %v3082 = vunpack.c.h.bf16 %v3050
    %v3083 = vunpack.c.l.bf16 %v3052
    %v3084 = vunpack.c.h.bf16 %v3052
    %v3085 = vunpack.c.l.bf16 %v3054
    %v3086 = vunpack.c.h.bf16 %v3054
    %v3087 = vunpack.c.l.bf16 %v3056
    %v3088 = vunpack.c.h.bf16 %v3056
    %v3089 = vunpack.c.l.bf16 %v3058
    %v3090 = vunpack.c.h.bf16 %v3058
    %v3091 = vunpack.c.l.bf16 %v3060
    %v3092 = vunpack.c.h.bf16 %v3060
    %v3093 = vunpack.c.l.bf16 %v3062
    %v3094 = vunpack.c.h.bf16 %v3062
    %v3095 = vunpack.c.l.bf16 %v3064
    %v3096 = vunpack.c.h.bf16 %v3064
    %v3097 = vunpack.c.l.bf16 %v3066
    %v3098 = vunpack.c.h.bf16 %v3066
    %v3099 = vunpack.c.l.bf16 %v3068
    %v3100 = vunpack.c.h.bf16 %v3068
    %v3101 = vunpack.c.l.bf16 %v3070
    %v3102 = vunpack.c.h.bf16 %v3070
    %v3103 = vunpack.c.l.bf16 %v3072
    %v3104 = vunpack.c.h.bf16 %v3072
    %v3105 = vunpack.c.l.bf16 %v3074
    %v3106 = vunpack.c.h.bf16 %v3074
    %v3107 = vunpack.c.l.bf16 %v3076
    %v3108 = vunpack.c.h.bf16 %v3076
    %v3109 = vunpack.c.l.bf16 %v3078
    %v3110 = vunpack.c.h.bf16 %v3078
    %v3111 = vld [vmem:[#allocation18] sm:$0xff]
    %v3112 = vld [vmem:[#allocation18 + $0x8] sm:$0xff]
    %v3113 = vld [vmem:[#allocation18 + $0x10] sm:$0xff]
    %v3114 = vld [vmem:[#allocation18 + $0x18] sm:$0xff]
    %v3115 = vld [vmem:[#allocation18 + $0x20] sm:$0xff]
    %v3116 = vld [vmem:[#allocation18 + $0x28] sm:$0xff]
    %v3117 = vld [vmem:[#allocation18 + $0x30] sm:$0xff]
    %v3118 = vld [vmem:[#allocation18 + $0x38] sm:$0xff]
    %v3119 = vld [vmem:[#allocation18 + $0x40] sm:$0xff]
    %v3120 = vld [vmem:[#allocation18 + $0x48] sm:$0xff]
    %v3121 = vld [vmem:[#allocation18 + $0x50] sm:$0xff]
    %v3122 = vld [vmem:[#allocation18 + $0x58] sm:$0xff]
    %v3123 = vld [vmem:[#allocation18 + $0x60] sm:$0xff]
    %v3124 = vld [vmem:[#allocation18 + $0x68] sm:$0xff]
    %v3125 = vld [vmem:[#allocation18 + $0x70] sm:$0xff]
    %v3126 = vld [vmem:[#allocation18 + $0x78] sm:$0xff]
    %v3127 = vld [vmem:[%s15] sm:$0x3]
    %v3129 = vlaneseq
    %v3130 = vshrl.u32 %v3129, 7
    %v3131 = vsub.s32 0, %v3130
    %v3132 = vrot.slane %v3127, %v3131
    %v3133 = vlaneseq
    %v3134 = vshrl.u32 %v3133, 7
    %v3135 = vsub.s32 1, %v3134
    %v3136 = vrot.slane %v3127, %v3135
    %v3155 = vunpack.c.l.b16 %v3111
    %v3156 = vunpack.c.h.b16 %v3111
    %v3157 = vunpack.c.l.b16 %v3112
    %v3158 = vunpack.c.h.b16 %v3112
    %v3159 = vunpack.c.l.b16 %v3113
    %v3160 = vunpack.c.h.b16 %v3113
    %v3161 = vunpack.c.l.b16 %v3114
    %v3162 = vunpack.c.h.b16 %v3114
    %v3163 = vunpack.c.l.b16 %v3115
    %v3164 = vunpack.c.h.b16 %v3115
    %v3165 = vunpack.c.l.b16 %v3116
    %v3166 = vunpack.c.h.b16 %v3116
    %v3167 = vunpack.c.l.b16 %v3117
    %v3168 = vunpack.c.h.b16 %v3117
    %v3169 = vunpack.c.l.b16 %v3118
    %v3170 = vunpack.c.h.b16 %v3118
    %v3171 = vunpack.c.l.b16 %v3119
    %v3172 = vunpack.c.h.b16 %v3119
    %v3173 = vunpack.c.l.b16 %v3120
    %v3174 = vunpack.c.h.b16 %v3120
    %v3175 = vunpack.c.l.b16 %v3121
    %v3176 = vunpack.c.h.b16 %v3121
    %v3177 = vunpack.c.l.b16 %v3122
    %v3178 = vunpack.c.h.b16 %v3122
    %v3179 = vunpack.c.l.b16 %v3123
    %v3180 = vunpack.c.h.b16 %v3123
    %v3181 = vunpack.c.l.b16 %v3124
    %v3182 = vunpack.c.h.b16 %v3124
    %v3183 = vunpack.c.l.b16 %v3125
    %v3184 = vunpack.c.h.b16 %v3125
    %v3185 = vunpack.c.l.b16 %v3126
    %v3186 = vunpack.c.h.b16 %v3126
    %v3187 = vpack.c.b16 %v3157, %v3155
    %v3188 = vpack.c.b16 %v3158, %v3156
    %v3189 = vpack.c.b16 %v3161, %v3159
    %v3190 = vpack.c.b16 %v3162, %v3160
    %v3191 = vpack.c.b16 %v3165, %v3163
    %v3192 = vpack.c.b16 %v3166, %v3164
    %v3193 = vpack.c.b16 %v3169, %v3167
    %v3194 = vpack.c.b16 %v3170, %v3168
    %v3195 = vpack.c.b16 %v3173, %v3171
    %v3196 = vpack.c.b16 %v3174, %v3172
    %v3197 = vpack.c.b16 %v3177, %v3175
    %v3198 = vpack.c.b16 %v3178, %v3176
    %v3199 = vpack.c.b16 %v3181, %v3179
    %v3200 = vpack.c.b16 %v3182, %v3180
    %v3201 = vpack.c.b16 %v3185, %v3183
    %v3202 = vpack.c.b16 %v3186, %v3184
    %3219 = vmatprep.subr.bf16.mxu0 %v3202
    %3220 = vmatpush1.bf16.msra.mxu0 %v3201
    %3221 = vmatprep.subr.bf16.mxu0 %v3200
    %3222 = vmatpush1.bf16.msra.mxu0 %v3199
    %3223 = vmatprep.subr.bf16.mxu0 %v3198
    %3224 = vmatpush1.bf16.msra.mxu0 %v3197
    %3225 = vmatprep.subr.bf16.mxu0 %v3196
    %3226 = vmatpush1.bf16.msra.mxu0 %v3195
    %3227 = vmatprep.subr.bf16.mxu0 %v3194
    %3228 = vmatpush1.bf16.msra.mxu0 %v3193
    %3229 = vmatprep.subr.bf16.mxu0 %v3192
    %3230 = vmatpush1.bf16.msra.mxu0 %v3191
    %3231 = vmatprep.subr.bf16.mxu0 %v3190
    %3232 = vmatpush1.bf16.msra.mxu0 %v3189
    %3233 = vmatprep.subr.bf16.mxu0 %v3188
    %3234 = vmatpush1.bf16.msra.mxu0 %v3187
    %3235 = vmatprep.subr.bf16.mxu0 0
    %3236 = vmatpush2.bf16.msra.mxu0 0
    %3237 = vmatprep.subr.bf16.mxu0 0
    %3238 = vmatpush2.bf16.msra.mxu0 0
    %3239 = vmatprep.subr.bf16.mxu0 0
    %3240 = vmatpush2.bf16.msra.mxu0 0
    %3241 = vmatprep.subr.bf16.mxu0 0
    %3242 = vmatpush2.bf16.msra.mxu0 0
    %3243 = vmatprep.subr.bf16.mxu0 0
    %3244 = vmatpush2.bf16.msra.mxu0 0
    %3245 = vmatprep.subr.bf16.mxu0 0
    %3246 = vmatpush2.bf16.msra.mxu0 0
    %3247 = vmatprep.subr.bf16.mxu0 0
    %3248 = vmatpush2.bf16.msra.mxu0 0
    %3249 = vmatprep.subr.bf16.mxu0 0
    %3250 = vmatpush2.bf16.msra.mxu0 0
    %3251 = vmatprep.mubr.bf16.mxu0 0
    %3252 = vmatmul.mubr.bf16.gmra.mxu0 %v2688
    %v3253 = vpop.f32.mrf.mxu0
    %v3254 = vadd.f32 %v3132, %v3253
    %v3255 = vpop.f32.mrf.mxu0
    %v3256 = vadd.f32 %v3136, %v3255
    %v3257 = vpop.f32.mrf.mxu0
    %v3258 = vadd.f32 %v3132, %v3257
    %v3259 = vpop.f32.mrf.mxu0
    %v3260 = vadd.f32 %v3136, %v3259
    %3261 = vmatprep.mubr.bf16.mxu0 0
    %3262 = vmatmul.mubr.bf16.gmra.mxu0 %v2690
    %v3263 = vpop.f32.mrf.mxu0
    %v3264 = vadd.f32 %v3132, %v3263
    %v3265 = vpop.f32.mrf.mxu0
    %v3266 = vadd.f32 %v3136, %v3265
    %v3267 = vpop.f32.mrf.mxu0
    %v3268 = vadd.f32 %v3132, %v3267
    %v3269 = vpop.f32.mrf.mxu0
    %v3270 = vadd.f32 %v3136, %v3269
    %3271 = vmatprep.mubr.bf16.mxu0 0
    %3272 = vmatmul.mubr.bf16.gmra.mxu0 %v2692
    %v3273 = vpop.f32.mrf.mxu0
    %v3274 = vadd.f32 %v3132, %v3273
    %v3275 = vpop.f32.mrf.mxu0
    %v3276 = vadd.f32 %v3136, %v3275
    %v3277 = vpop.f32.mrf.mxu0
    %v3278 = vadd.f32 %v3132, %v3277
    %v3279 = vpop.f32.mrf.mxu0
    %v3280 = vadd.f32 %v3136, %v3279
    %3281 = vmatprep.mubr.bf16.mxu0 0
    %3282 = vmatmul.mubr.bf16.gmra.mxu0 %v2694
    %v3283 = vpop.f32.mrf.mxu0
    %v3284 = vadd.f32 %v3132, %v3283
    %v3285 = vpop.f32.mrf.mxu0
    %v3286 = vadd.f32 %v3136, %v3285
    %v3287 = vpop.f32.mrf.mxu0
    %v3288 = vadd.f32 %v3132, %v3287
    %v3289 = vpop.f32.mrf.mxu0
    %v3290 = vadd.f32 %v3136, %v3289
    %3291 = vmatprep.mubr.bf16.mxu0 0
    %3292 = vmatmul.mubr.bf16.gmra.mxu0 %v2696
    %v3293 = vpop.f32.mrf.mxu0
    %v3294 = vadd.f32 %v3132, %v3293
    %v3295 = vpop.f32.mrf.mxu0
    %v3296 = vadd.f32 %v3136, %v3295
    %v3297 = vpop.f32.mrf.mxu0
    %v3298 = vadd.f32 %v3132, %v3297
    %v3299 = vpop.f32.mrf.mxu0
    %v3300 = vadd.f32 %v3136, %v3299
    %3301 = vmatprep.mubr.bf16.mxu0 0
    %3302 = vmatmul.mubr.bf16.gmra.mxu0 %v2698
    %v3303 = vpop.f32.mrf.mxu0
    %v3304 = vadd.f32 %v3132, %v3303
    %v3305 = vpop.f32.mrf.mxu0
    %v3306 = vadd.f32 %v3136, %v3305
    %v3307 = vpop.f32.mrf.mxu0
    %v3308 = vadd.f32 %v3132, %v3307
    %v3309 = vpop.f32.mrf.mxu0
    %v3310 = vadd.f32 %v3136, %v3309
    %3311 = vmatprep.mubr.bf16.mxu0 0
    %3312 = vmatmul.mubr.bf16.gmra.mxu0 %v2700
    %v3313 = vpop.f32.mrf.mxu0
    %v3314 = vadd.f32 %v3132, %v3313
    %v3315 = vpop.f32.mrf.mxu0
    %v3316 = vadd.f32 %v3136, %v3315
    %v3317 = vpop.f32.mrf.mxu0
    %v3318 = vadd.f32 %v3132, %v3317
    %v3319 = vpop.f32.mrf.mxu0
    %v3320 = vadd.f32 %v3136, %v3319
    %3321 = vmatprep.mubr.bf16.mxu0 0
    %3322 = vmatmul.mubr.bf16.gmra.mxu0 %v2702
    %v3323 = vpop.f32.mrf.mxu0
    %v3324 = vadd.f32 %v3132, %v3323
    %v3325 = vpop.f32.mrf.mxu0
    %v3326 = vadd.f32 %v3136, %v3325
    %v3327 = vpop.f32.mrf.mxu0
    %v3328 = vadd.f32 %v3132, %v3327
    %v3329 = vpop.f32.mrf.mxu0
    %v3330 = vadd.f32 %v3136, %v3329
    %3331 = vmatprep.mubr.bf16.mxu0 0
    %3332 = vmatmul.mubr.bf16.gmra.mxu0 %v2704
    %v3333 = vpop.f32.mrf.mxu0
    %v3334 = vadd.f32 %v3132, %v3333
    %v3335 = vpop.f32.mrf.mxu0
    %v3336 = vadd.f32 %v3136, %v3335
    %v3337 = vpop.f32.mrf.mxu0
    %v3338 = vadd.f32 %v3132, %v3337
    %v3339 = vpop.f32.mrf.mxu0
    %v3340 = vadd.f32 %v3136, %v3339
    %3341 = vmatprep.mubr.bf16.mxu0 0
    %3342 = vmatmul.mubr.bf16.gmra.mxu0 %v2706
    %v3343 = vpop.f32.mrf.mxu0
    %v3344 = vadd.f32 %v3132, %v3343
    %v3345 = vpop.f32.mrf.mxu0
    %v3346 = vadd.f32 %v3136, %v3345
    %v3347 = vpop.f32.mrf.mxu0
    %v3348 = vadd.f32 %v3132, %v3347
    %v3349 = vpop.f32.mrf.mxu0
    %v3350 = vadd.f32 %v3136, %v3349
    %3351 = vmatprep.mubr.bf16.mxu0 0
    %3352 = vmatmul.mubr.bf16.gmra.mxu0 %v2708
    %v3353 = vpop.f32.mrf.mxu0
    %v3354 = vadd.f32 %v3132, %v3353
    %v3355 = vpop.f32.mrf.mxu0
    %v3356 = vadd.f32 %v3136, %v3355
    %v3357 = vpop.f32.mrf.mxu0
    %v3358 = vadd.f32 %v3132, %v3357
    %v3359 = vpop.f32.mrf.mxu0
    %v3360 = vadd.f32 %v3136, %v3359
    %3361 = vmatprep.mubr.bf16.mxu0 0
    %3362 = vmatmul.mubr.bf16.gmra.mxu0 %v2710
    %v3363 = vpop.f32.mrf.mxu0
    %v3364 = vadd.f32 %v3132, %v3363
    %v3365 = vpop.f32.mrf.mxu0
    %v3366 = vadd.f32 %v3136, %v3365
    %v3367 = vpop.f32.mrf.mxu0
    %v3368 = vadd.f32 %v3132, %v3367
    %v3369 = vpop.f32.mrf.mxu0
    %v3370 = vadd.f32 %v3136, %v3369
    %3371 = vmatprep.mubr.bf16.mxu0 0
    %3372 = vmatmul.mubr.bf16.gmra.mxu0 %v2712
    %v3373 = vpop.f32.mrf.mxu0
    %v3374 = vadd.f32 %v3132, %v3373
    %v3375 = vpop.f32.mrf.mxu0
    %v3376 = vadd.f32 %v3136, %v3375
    %v3377 = vpop.f32.mrf.mxu0
    %v3378 = vadd.f32 %v3132, %v3377
    %v3379 = vpop.f32.mrf.mxu0
    %v3380 = vadd.f32 %v3136, %v3379
    %3381 = vmatprep.mubr.bf16.mxu0 0
    %3382 = vmatmul.mubr.bf16.gmra.mxu0 %v2714
    %v3383 = vpop.f32.mrf.mxu0
    %v3384 = vadd.f32 %v3132, %v3383
    %v3385 = vpop.f32.mrf.mxu0
    %v3386 = vadd.f32 %v3136, %v3385
    %v3387 = vpop.f32.mrf.mxu0
    %v3388 = vadd.f32 %v3132, %v3387
    %v3389 = vpop.f32.mrf.mxu0
    %v3390 = vadd.f32 %v3136, %v3389
    %3391 = vmatprep.mubr.bf16.mxu0 0
    %3392 = vmatmul.mubr.bf16.gmra.mxu0 %v2716
    %v3393 = vpop.f32.mrf.mxu0
    %v3394 = vadd.f32 %v3132, %v3393
    %v3395 = vpop.f32.mrf.mxu0
    %v3396 = vadd.f32 %v3136, %v3395
    %v3397 = vpop.f32.mrf.mxu0
    %v3398 = vadd.f32 %v3132, %v3397
    %v3399 = vpop.f32.mrf.mxu0
    %v3400 = vadd.f32 %v3136, %v3399
    %3401 = vmatprep.mubr.bf16.mxu0 0
    %3402 = vmatmul.mubr.bf16.gmra.mxu0 %v2718
    %v3403 = vpop.f32.mrf.mxu0
    %v3404 = vadd.f32 %v3132, %v3403
    %v3405 = vpop.f32.mrf.mxu0
    %v3406 = vadd.f32 %v3136, %v3405
    %v3407 = vpop.f32.mrf.mxu0
    %v3408 = vadd.f32 %v3132, %v3407
    %v3409 = vpop.f32.mrf.mxu0
    %v3410 = vadd.f32 %v3136, %v3409
    %3411 = vdwg.mxu0
    %v3412 = vpack.c.bf16 %v3258, %v3254
    %v3413 = vpack.c.bf16 %v3260, %v3256
    %v3414 = vpack.c.bf16 %v3268, %v3264
    %v3415 = vpack.c.bf16 %v3270, %v3266
    %v3416 = vpack.c.bf16 %v3278, %v3274
    %v3417 = vpack.c.bf16 %v3280, %v3276
    %v3418 = vpack.c.bf16 %v3288, %v3284
    %v3419 = vpack.c.bf16 %v3290, %v3286
    %v3420 = vpack.c.bf16 %v3298, %v3294
    %v3421 = vpack.c.bf16 %v3300, %v3296
    %v3422 = vpack.c.bf16 %v3308, %v3304
    %v3423 = vpack.c.bf16 %v3310, %v3306
    %v3424 = vpack.c.bf16 %v3318, %v3314
    %v3425 = vpack.c.bf16 %v3320, %v3316
    %v3426 = vpack.c.bf16 %v3328, %v3324
    %v3427 = vpack.c.bf16 %v3330, %v3326
    %v3428 = vpack.c.bf16 %v3338, %v3334
    %v3429 = vpack.c.bf16 %v3340, %v3336
    %v3430 = vpack.c.bf16 %v3348, %v3344
    %v3431 = vpack.c.bf16 %v3350, %v3346
    %v3432 = vpack.c.bf16 %v3358, %v3354
    %v3433 = vpack.c.bf16 %v3360, %v3356
    %v3434 = vpack.c.bf16 %v3368, %v3364
    %v3435 = vpack.c.bf16 %v3370, %v3366
    %v3436 = vpack.c.bf16 %v3378, %v3374
    %v3437 = vpack.c.bf16 %v3380, %v3376
    %v3438 = vpack.c.bf16 %v3388, %v3384
    %v3439 = vpack.c.bf16 %v3390, %v3386
    %v3440 = vpack.c.bf16 %v3398, %v3394
    %v3441 = vpack.c.bf16 %v3400, %v3396
    %v3442 = vpack.c.bf16 %v3408, %v3404
    %v3443 = vpack.c.bf16 %v3410, %v3406
    %v3444 = vxor.u32 %v3412, 2147516416
    %v3445 = vxor.u32 %v3413, 2147516416
    %v3446 = vxor.u32 %v3414, 2147516416
    %v3447 = vxor.u32 %v3415, 2147516416
    %v3448 = vxor.u32 %v3416, 2147516416
    %v3449 = vxor.u32 %v3417, 2147516416
    %v3450 = vxor.u32 %v3418, 2147516416
    %v3451 = vxor.u32 %v3419, 2147516416
    %v3452 = vxor.u32 %v3420, 2147516416
    %v3453 = vxor.u32 %v3421, 2147516416
    %v3454 = vxor.u32 %v3422, 2147516416
    %v3455 = vxor.u32 %v3423, 2147516416
    %v3456 = vxor.u32 %v3424, 2147516416
    %v3457 = vxor.u32 %v3425, 2147516416
    %v3458 = vxor.u32 %v3426, 2147516416
    %v3459 = vxor.u32 %v3427, 2147516416
    %v3460 = vxor.u32 %v3428, 2147516416
    %v3461 = vxor.u32 %v3429, 2147516416
    %v3462 = vxor.u32 %v3430, 2147516416
    %v3463 = vxor.u32 %v3431, 2147516416
    %v3464 = vxor.u32 %v3432, 2147516416
    %v3465 = vxor.u32 %v3433, 2147516416
    %v3466 = vxor.u32 %v3434, 2147516416
    %v3467 = vxor.u32 %v3435, 2147516416
    %v3468 = vxor.u32 %v3436, 2147516416
    %v3469 = vxor.u32 %v3437, 2147516416
    %v3470 = vxor.u32 %v3438, 2147516416
    %v3471 = vxor.u32 %v3439, 2147516416
    %v3472 = vxor.u32 %v3440, 2147516416
    %v3473 = vxor.u32 %v3441, 2147516416
    %v3474 = vxor.u32 %v3442, 2147516416
    %v3475 = vxor.u32 %v3443, 2147516416
    %v3477 = vmul.bf16 %v3444, 1069105081
    %v3478 = vpow.bf16.pop %v3477
    %v3480 = vmul.bf16 %v3445, 1069105081
    %v3481 = vpow.bf16.pop %v3480
    %v3483 = vmul.bf16 %v3446, 1069105081
    %v3484 = vpow.bf16.pop %v3483
    %v3486 = vmul.bf16 %v3447, 1069105081
    %v3487 = vpow.bf16.pop %v3486
    %v3489 = vmul.bf16 %v3448, 1069105081
    %v3490 = vpow.bf16.pop %v3489
    %v3492 = vmul.bf16 %v3449, 1069105081
    %v3493 = vpow.bf16.pop %v3492
    %v3495 = vmul.bf16 %v3450, 1069105081
    %v3496 = vpow.bf16.pop %v3495
    %v3498 = vmul.bf16 %v3451, 1069105081
    %v3499 = vpow.bf16.pop %v3498
    %v3501 = vmul.bf16 %v3452, 1069105081
    %v3502 = vpow.bf16.pop %v3501
    %v3504 = vmul.bf16 %v3453, 1069105081
    %v3505 = vpow.bf16.pop %v3504
    %v3507 = vmul.bf16 %v3454, 1069105081
    %v3508 = vpow.bf16.pop %v3507
    %v3510 = vmul.bf16 %v3455, 1069105081
    %v3511 = vpow.bf16.pop %v3510
    %v3513 = vmul.bf16 %v3456, 1069105081
    %v3514 = vpow.bf16.pop %v3513
    %v3516 = vmul.bf16 %v3457, 1069105081
    %v3517 = vpow.bf16.pop %v3516
    %v3519 = vmul.bf16 %v3458, 1069105081
    %v3520 = vpow.bf16.pop %v3519
    %v3522 = vmul.bf16 %v3459, 1069105081
    %v3523 = vpow.bf16.pop %v3522
    %v3525 = vmul.bf16 %v3460, 1069105081
    %v3526 = vpow.bf16.pop %v3525
    %v3528 = vmul.bf16 %v3461, 1069105081
    %v3529 = vpow.bf16.pop %v3528
    %v3531 = vmul.bf16 %v3462, 1069105081
    %v3532 = vpow.bf16.pop %v3531
    %v3534 = vmul.bf16 %v3463, 1069105081
    %v3535 = vpow.bf16.pop %v3534
    %v3537 = vmul.bf16 %v3464, 1069105081
    %v3538 = vpow.bf16.pop %v3537
    %v3540 = vmul.bf16 %v3465, 1069105081
    %v3541 = vpow.bf16.pop %v3540
    %v3543 = vmul.bf16 %v3466, 1069105081
    %v3544 = vpow.bf16.pop %v3543
    %v3546 = vmul.bf16 %v3467, 1069105081
    %v3547 = vpow.bf16.pop %v3546
    %v3549 = vmul.bf16 %v3468, 1069105081
    %v3550 = vpow.bf16.pop %v3549
    %v3552 = vmul.bf16 %v3469, 1069105081
    %v3553 = vpow.bf16.pop %v3552
    %v3555 = vmul.bf16 %v3470, 1069105081
    %v3556 = vpow.bf16.pop %v3555
    %v3558 = vmul.bf16 %v3471, 1069105081
    %v3559 = vpow.bf16.pop %v3558
    %v3561 = vmul.bf16 %v3472, 1069105081
    %v3562 = vpow.bf16.pop %v3561
    %v3564 = vmul.bf16 %v3473, 1069105081
    %v3565 = vpow.bf16.pop %v3564
    %v3567 = vmul.bf16 %v3474, 1069105081
    %v3568 = vpow.bf16.pop %v3567
    %v3570 = vmul.bf16 %v3475, 1069105081
    %v3571 = vpow.bf16.pop %v3570
    %v3572 = vadd.bf16 %v3478, 1065369472
    %v3573 = vadd.bf16 %v3481, 1065369472
    %v3574 = vadd.bf16 %v3484, 1065369472
    %v3575 = vadd.bf16 %v3487, 1065369472
    %v3576 = vadd.bf16 %v3490, 1065369472
    %v3577 = vadd.bf16 %v3493, 1065369472
    %v3578 = vadd.bf16 %v3496, 1065369472
    %v3579 = vadd.bf16 %v3499, 1065369472
    %v3580 = vadd.bf16 %v3502, 1065369472
    %v3581 = vadd.bf16 %v3505, 1065369472
    %v3582 = vadd.bf16 %v3508, 1065369472
    %v3583 = vadd.bf16 %v3511, 1065369472
    %v3584 = vadd.bf16 %v3514, 1065369472
    %v3585 = vadd.bf16 %v3517, 1065369472
    %v3586 = vadd.bf16 %v3520, 1065369472
    %v3587 = vadd.bf16 %v3523, 1065369472
    %v3588 = vadd.bf16 %v3526, 1065369472
    %v3589 = vadd.bf16 %v3529, 1065369472
    %v3590 = vadd.bf16 %v3532, 1065369472
    %v3591 = vadd.bf16 %v3535, 1065369472
    %v3592 = vadd.bf16 %v3538, 1065369472
    %v3593 = vadd.bf16 %v3541, 1065369472
    %v3594 = vadd.bf16 %v3544, 1065369472
    %v3595 = vadd.bf16 %v3547, 1065369472
    %v3596 = vadd.bf16 %v3550, 1065369472
    %v3597 = vadd.bf16 %v3553, 1065369472
    %v3598 = vadd.bf16 %v3556, 1065369472
    %v3599 = vadd.bf16 %v3559, 1065369472
    %v3600 = vadd.bf16 %v3562, 1065369472
    %v3601 = vadd.bf16 %v3565, 1065369472
    %v3602 = vadd.bf16 %v3568, 1065369472
    %v3603 = vadd.bf16 %v3571, 1065369472
    %v3604 = vrcp.bf16.pop %v3572
    %v3605 = vmul.bf16 1065369472, %v3604
    %v3606 = vrcp.bf16.pop %v3573
    %v3607 = vmul.bf16 1065369472, %v3606
    %v3608 = vrcp.bf16.pop %v3574
    %v3609 = vmul.bf16 1065369472, %v3608
    %v3610 = vrcp.bf16.pop %v3575
    %v3611 = vmul.bf16 1065369472, %v3610
    %v3612 = vrcp.bf16.pop %v3576
    %v3613 = vmul.bf16 1065369472, %v3612
    %v3614 = vrcp.bf16.pop %v3577
    %v3615 = vmul.bf16 1065369472, %v3614
    %v3616 = vrcp.bf16.pop %v3578
    %v3617 = vmul.bf16 1065369472, %v3616
    %v3618 = vrcp.bf16.pop %v3579
    %v3619 = vmul.bf16 1065369472, %v3618
    %v3620 = vrcp.bf16.pop %v3580
    %v3621 = vmul.bf16 1065369472, %v3620
    %v3622 = vrcp.bf16.pop %v3581
    %v3623 = vmul.bf16 1065369472, %v3622
    %v3624 = vrcp.bf16.pop %v3582
    %v3625 = vmul.bf16 1065369472, %v3624
    %v3626 = vrcp.bf16.pop %v3583
    %v3627 = vmul.bf16 1065369472, %v3626
    %v3628 = vrcp.bf16.pop %v3584
    %v3629 = vmul.bf16 1065369472, %v3628
    %v3630 = vrcp.bf16.pop %v3585
    %v3631 = vmul.bf16 1065369472, %v3630
    %v3632 = vrcp.bf16.pop %v3586
    %v3633 = vmul.bf16 1065369472, %v3632
    %v3634 = vrcp.bf16.pop %v3587
    %v3635 = vmul.bf16 1065369472, %v3634
    %v3636 = vrcp.bf16.pop %v3588
    %v3637 = vmul.bf16 1065369472, %v3636
    %v3638 = vrcp.bf16.pop %v3589
    %v3639 = vmul.bf16 1065369472, %v3638
    %v3640 = vrcp.bf16.pop %v3590
    %v3641 = vmul.bf16 1065369472, %v3640
    %v3642 = vrcp.bf16.pop %v3591
    %v3643 = vmul.bf16 1065369472, %v3642
    %v3644 = vrcp.bf16.pop %v3592
    %v3645 = vmul.bf16 1065369472, %v3644
    %v3646 = vrcp.bf16.pop %v3593
    %v3647 = vmul.bf16 1065369472, %v3646
    %v3648 = vrcp.bf16.pop %v3594
    %v3649 = vmul.bf16 1065369472, %v3648
    %v3650 = vrcp.bf16.pop %v3595
    %v3651 = vmul.bf16 1065369472, %v3650
    %v3652 = vrcp.bf16.pop %v3596
    %v3653 = vmul.bf16 1065369472, %v3652
    %v3654 = vrcp.bf16.pop %v3597
    %v3655 = vmul.bf16 1065369472, %v3654
    %v3656 = vrcp.bf16.pop %v3598
    %v3657 = vmul.bf16 1065369472, %v3656
    %v3658 = vrcp.bf16.pop %v3599
    %v3659 = vmul.bf16 1065369472, %v3658
    %v3660 = vrcp.bf16.pop %v3600
    %v3661 = vmul.bf16 1065369472, %v3660
    %v3662 = vrcp.bf16.pop %v3601
    %v3663 = vmul.bf16 1065369472, %v3662
    %v3664 = vrcp.bf16.pop %v3602
    %v3665 = vmul.bf16 1065369472, %v3664
    %v3666 = vrcp.bf16.pop %v3603
    %v3667 = vmul.bf16 1065369472, %v3666
    %v3668 = vunpack.c.l.bf16 %v3605
    %v3669 = vunpack.c.l.bf16 %v3607
    %v3670 = vunpack.c.h.bf16 %v3605
    %v3671 = vunpack.c.h.bf16 %v3607
    %v3672 = vunpack.c.l.bf16 %v3609
    %v3673 = vunpack.c.l.bf16 %v3611
    %v3674 = vunpack.c.h.bf16 %v3609
    %v3675 = vunpack.c.h.bf16 %v3611
    %v3676 = vunpack.c.l.bf16 %v3613
    %v3677 = vunpack.c.l.bf16 %v3615
    %v3678 = vunpack.c.h.bf16 %v3613
    %v3679 = vunpack.c.h.bf16 %v3615
    %v3680 = vunpack.c.l.bf16 %v3617
    %v3681 = vunpack.c.l.bf16 %v3619
    %v3682 = vunpack.c.h.bf16 %v3617
    %v3683 = vunpack.c.h.bf16 %v3619
    %v3684 = vunpack.c.l.bf16 %v3621
    %v3685 = vunpack.c.l.bf16 %v3623
    %v3686 = vunpack.c.h.bf16 %v3621
    %v3687 = vunpack.c.h.bf16 %v3623
    %v3688 = vunpack.c.l.bf16 %v3625
    %v3689 = vunpack.c.l.bf16 %v3627
    %v3690 = vunpack.c.h.bf16 %v3625
    %v3691 = vunpack.c.h.bf16 %v3627
    %v3692 = vunpack.c.l.bf16 %v3629
    %v3693 = vunpack.c.l.bf16 %v3631
    %v3694 = vunpack.c.h.bf16 %v3629
    %v3695 = vunpack.c.h.bf16 %v3631
    %v3696 = vunpack.c.l.bf16 %v3633
    %v3697 = vunpack.c.l.bf16 %v3635
    %v3698 = vunpack.c.h.bf16 %v3633
    %v3699 = vunpack.c.h.bf16 %v3635
    %v3700 = vunpack.c.l.bf16 %v3637
    %v3701 = vunpack.c.l.bf16 %v3639
    %v3702 = vunpack.c.h.bf16 %v3637
    %v3703 = vunpack.c.h.bf16 %v3639
    %v3704 = vunpack.c.l.bf16 %v3641
    %v3705 = vunpack.c.l.bf16 %v3643
    %v3706 = vunpack.c.h.bf16 %v3641
    %v3707 = vunpack.c.h.bf16 %v3643
    %v3708 = vunpack.c.l.bf16 %v3645
    %v3709 = vunpack.c.l.bf16 %v3647
    %v3710 = vunpack.c.h.bf16 %v3645
    %v3711 = vunpack.c.h.bf16 %v3647
    %v3712 = vunpack.c.l.bf16 %v3649
    %v3713 = vunpack.c.l.bf16 %v3651
    %v3714 = vunpack.c.h.bf16 %v3649
    %v3715 = vunpack.c.h.bf16 %v3651
    %v3716 = vunpack.c.l.bf16 %v3653
    %v3717 = vunpack.c.l.bf16 %v3655
    %v3718 = vunpack.c.h.bf16 %v3653
    %v3719 = vunpack.c.h.bf16 %v3655
    %v3720 = vunpack.c.l.bf16 %v3657
    %v3721 = vunpack.c.l.bf16 %v3659
    %v3722 = vunpack.c.h.bf16 %v3657
    %v3723 = vunpack.c.h.bf16 %v3659
    %v3724 = vunpack.c.l.bf16 %v3661
    %v3725 = vunpack.c.l.bf16 %v3663
    %v3726 = vunpack.c.h.bf16 %v3661
    %v3727 = vunpack.c.h.bf16 %v3663
    %v3728 = vunpack.c.l.bf16 %v3665
    %v3729 = vunpack.c.l.bf16 %v3667
    %v3730 = vunpack.c.h.bf16 %v3665
    %v3731 = vunpack.c.h.bf16 %v3667
    %3732 = vst [vmem:[%s16] sm:$0xff] %v1923
    %3733 = vst [vmem:[%s16 + $0x8] sm:$0xff] %v1925
    %3734 = vst [vmem:[%s16 + $0x10] sm:$0xff] %v1927
    %3735 = vst [vmem:[%s16 + $0x18] sm:$0xff] %v1929
    %3736 = vst [vmem:[%s16 + $0x20] sm:$0xff] %v1931
    %3737 = vst [vmem:[%s16 + $0x28] sm:$0xff] %v1933
    %3738 = vst [vmem:[%s16 + $0x30] sm:$0xff] %v1935
    %3739 = vst [vmem:[%s16 + $0x38] sm:$0xff] %v1937
    %3740 = vst [vmem:[%s16 + $0x40] sm:$0xff] %v1939
    %3741 = vst [vmem:[%s16 + $0x48] sm:$0xff] %v1941
    %3742 = vst [vmem:[%s16 + $0x50] sm:$0xff] %v1943
    %3743 = vst [vmem:[%s16 + $0x58] sm:$0xff] %v1945
    %3744 = vst [vmem:[%s16 + $0x60] sm:$0xff] %v1947
    %3745 = vst [vmem:[%s16 + $0x68] sm:$0xff] %v1949
    %3746 = vst [vmem:[%s16 + $0x70] sm:$0xff] %v1951
    %3747 = vst [vmem:[%s16 + $0x78] sm:$0xff] %v1953
    %3748 = vst [vmem:[%s16 + $0x80] sm:$0xff] %v1955
    %3749 = vst [vmem:[%s16 + $0x88] sm:$0xff] %v1957
    %3750 = vst [vmem:[%s16 + $0x90] sm:$0xff] %v1959
    %3751 = vst [vmem:[%s16 + $0x98] sm:$0xff] %v1961
    %3752 = vst [vmem:[%s16 + $0xa0] sm:$0xff] %v1963
    %3753 = vst [vmem:[%s16 + $0xa8] sm:$0xff] %v1965
    %3754 = vst [vmem:[%s16 + $0xb0] sm:$0xff] %v1967
    %3755 = vst [vmem:[%s16 + $0xb8] sm:$0xff] %v1969
    %3756 = vst [vmem:[%s16 + $0xc0] sm:$0xff] %v1971
    %3757 = vst [vmem:[%s16 + $0xc8] sm:$0xff] %v1973
    %3758 = vst [vmem:[%s16 + $0xd0] sm:$0xff] %v1975
    %3759 = vst [vmem:[%s16 + $0xd8] sm:$0xff] %v1977
    %3760 = vst [vmem:[%s16 + $0xe0] sm:$0xff] %v1979
    %3761 = vst [vmem:[%s16 + $0xe8] sm:$0xff] %v1981
    %3762 = vst [vmem:[%s16 + $0xf0] sm:$0xff] %v1983
    %3763 = vst [vmem:[%s16 + $0xf8] sm:$0xff] %v1985
    %v3764 = vlaneseq
    %v3765 = vshrl.u32 %v3764, 7
    %v3766 = vadd.s32 %v3765, 8
    %v3767 = vadd.s32 %v3765, 16
    %v3768 = vadd.s32 %v3765, 24
    %v3769 = vadd.s32 %v3765, 32
    %v3770 = vadd.s32 %v3765, 40
    %v3771 = vadd.s32 %v3765, 48
    %v3772 = vadd.s32 %v3765, 56
    %v3773 = vadd.s32 %v3765, 64
    %v3774 = vadd.s32 %v3765, 72
    %v3775 = vadd.s32 %v3765, 80
    %v3776 = vadd.s32 %v3765, 88
    %v3777 = vadd.s32 %v3765, 96
    %v3778 = vadd.s32 %v3765, 104
    %v3779 = vadd.s32 %v3765, 112
    %v3780 = vadd.s32 %v3765, 120
    %v3781 = vadd.s32 %v3765, 128
    %v3782 = vadd.s32 %v3765, 136
    %v3783 = vadd.s32 %v3765, 144
    %v3784 = vadd.s32 %v3765, 152
    %v3785 = vadd.s32 %v3765, 160
    %v3786 = vadd.s32 %v3765, 168
    %v3787 = vadd.s32 %v3765, 176
    %v3788 = vadd.s32 %v3765, 184
    %v3789 = vadd.s32 %v3765, 192
    %v3790 = vadd.s32 %v3765, 200
    %v3791 = vadd.s32 %v3765, 208
    %v3792 = vadd.s32 %v3765, 216
    %v3793 = vadd.s32 %v3765, 224
    %v3794 = vadd.s32 %v3765, 232
    %v3795 = vadd.s32 %v3765, 240
    %v3796 = vadd.s32 %v3765, 248
    %v3797 = vstv %s164
    %v3798 = vadd.s32 %v3765, %v3797
    %v3799 = vadd.s32 %v3766, %v3797
    %v3800 = vadd.s32 %v3767, %v3797
    %v3801 = vadd.s32 %v3768, %v3797
    %v3802 = vadd.s32 %v3769, %v3797
    %v3803 = vadd.s32 %v3770, %v3797
    %v3804 = vadd.s32 %v3771, %v3797
    %v3805 = vadd.s32 %v3772, %v3797
    %v3806 = vadd.s32 %v3773, %v3797
    %v3807 = vadd.s32 %v3774, %v3797
    %v3808 = vadd.s32 %v3775, %v3797
    %v3809 = vadd.s32 %v3776, %v3797
    %v3810 = vadd.s32 %v3777, %v3797
    %v3811 = vadd.s32 %v3778, %v3797
    %v3812 = vadd.s32 %v3779, %v3797
    %v3813 = vadd.s32 %v3780, %v3797
    %v3814 = vadd.s32 %v3781, %v3797
    %v3815 = vadd.s32 %v3782, %v3797
    %v3816 = vadd.s32 %v3783, %v3797
    %v3817 = vadd.s32 %v3784, %v3797
    %v3818 = vadd.s32 %v3785, %v3797
    %v3819 = vadd.s32 %v3786, %v3797
    %v3820 = vadd.s32 %v3787, %v3797
    %v3821 = vadd.s32 %v3788, %v3797
    %v3822 = vadd.s32 %v3789, %v3797
    %v3823 = vadd.s32 %v3790, %v3797
    %v3824 = vadd.s32 %v3791, %v3797
    %v3825 = vadd.s32 %v3792, %v3797
    %v3826 = vadd.s32 %v3793, %v3797
    %v3827 = vadd.s32 %v3794, %v3797
    %v3828 = vadd.s32 %v3795, %v3797
    %v3829 = vadd.s32 %v3796, %v3797
    %vm3830 = vcmp.lt.s32.totalorder %v3798, 200
    %vm3831 = vcmp.lt.s32.totalorder %v3799, 200
    %vm3832 = vcmp.lt.s32.totalorder %v3800, 200
    %vm3833 = vcmp.lt.s32.totalorder %v3801, 200
    %vm3834 = vcmp.lt.s32.totalorder %v3802, 200
    %vm3835 = vcmp.lt.s32.totalorder %v3803, 200
    %vm3836 = vcmp.lt.s32.totalorder %v3804, 200
    %vm3837 = vcmp.lt.s32.totalorder %v3805, 200
    %vm3838 = vcmp.lt.s32.totalorder %v3806, 200
    %vm3839 = vcmp.lt.s32.totalorder %v3807, 200
    %vm3840 = vcmp.lt.s32.totalorder %v3808, 200
    %vm3841 = vcmp.lt.s32.totalorder %v3809, 200
    %vm3842 = vcmp.lt.s32.totalorder %v3810, 200
    %vm3843 = vcmp.lt.s32.totalorder %v3811, 200
    %vm3844 = vcmp.lt.s32.totalorder %v3812, 200
    %vm3845 = vcmp.lt.s32.totalorder %v3813, 200
    %vm3846 = vcmp.lt.s32.totalorder %v3814, 200
    %vm3847 = vcmp.lt.s32.totalorder %v3815, 200
    %vm3848 = vcmp.lt.s32.totalorder %v3816, 200
    %vm3849 = vcmp.lt.s32.totalorder %v3817, 200
    %vm3850 = vcmp.lt.s32.totalorder %v3818, 200
    %vm3851 = vcmp.lt.s32.totalorder %v3819, 200
    %vm3852 = vcmp.lt.s32.totalorder %v3820, 200
    %vm3853 = vcmp.lt.s32.totalorder %v3821, 200
    %vm3854 = vcmp.lt.s32.totalorder %v3822, 200
    %vm3855 = vcmp.lt.s32.totalorder %v3823, 200
    %vm3856 = vcmp.lt.s32.totalorder %v3824, 200
    %vm3857 = vcmp.lt.s32.totalorder %v3825, 200
    %vm3858 = vcmp.lt.s32.totalorder %v3826, 200
    %vm3859 = vcmp.lt.s32.totalorder %v3827, 200
    %vm3860 = vcmp.lt.s32.totalorder %v3828, 200
    %vm3861 = vcmp.lt.s32.totalorder %v3829, 200
    %v3862 = vsel %vm3830, 1, 0
    %v3863 = vsel %vm3831, 1, 0
    %v3864 = vsel %vm3832, 1, 0
    %v3865 = vsel %vm3833, 1, 0
    %v3866 = vsel %vm3834, 1, 0
    %v3867 = vsel %vm3835, 1, 0
    %v3868 = vsel %vm3836, 1, 0
    %v3869 = vsel %vm3837, 1, 0
    %v3870 = vsel %vm3838, 1, 0
    %v3871 = vsel %vm3839, 1, 0
    %v3872 = vsel %vm3840, 1, 0
    %v3873 = vsel %vm3841, 1, 0
    %v3874 = vsel %vm3842, 1, 0
    %v3875 = vsel %vm3843, 1, 0
    %v3876 = vsel %vm3844, 1, 0
    %v3877 = vsel %vm3845, 1, 0
    %v3878 = vsel %vm3846, 1, 0
    %v3879 = vsel %vm3847, 1, 0
    %v3880 = vsel %vm3848, 1, 0
    %v3881 = vsel %vm3849, 1, 0
    %v3882 = vsel %vm3850, 1, 0
    %v3883 = vsel %vm3851, 1, 0
    %v3884 = vsel %vm3852, 1, 0
    %v3885 = vsel %vm3853, 1, 0
    %v3886 = vsel %vm3854, 1, 0
    %v3887 = vsel %vm3855, 1, 0
    %v3888 = vsel %vm3856, 1, 0
    %v3889 = vsel %vm3857, 1, 0
    %v3890 = vsel %vm3858, 1, 0
    %v3891 = vsel %vm3859, 1, 0
    %v3892 = vsel %vm3860, 1, 0
    %v3893 = vsel %vm3861, 1, 0
    %v3894 = vcvt.s32.f32 %v3862
    %v3895 = vcvt.s32.f32 %v3863
    %v3896 = vcvt.s32.f32 %v3864
    %v3897 = vcvt.s32.f32 %v3865
    %v3898 = vcvt.s32.f32 %v3866
    %v3899 = vcvt.s32.f32 %v3867
    %v3900 = vcvt.s32.f32 %v3868
    %v3901 = vcvt.s32.f32 %v3869
    %v3902 = vcvt.s32.f32 %v3870
    %v3903 = vcvt.s32.f32 %v3871
    %v3904 = vcvt.s32.f32 %v3872
    %v3905 = vcvt.s32.f32 %v3873
    %v3906 = vcvt.s32.f32 %v3874
    %v3907 = vcvt.s32.f32 %v3875
    %v3908 = vcvt.s32.f32 %v3876
    %v3909 = vcvt.s32.f32 %v3877
    %v3910 = vcvt.s32.f32 %v3878
    %v3911 = vcvt.s32.f32 %v3879
    %v3912 = vcvt.s32.f32 %v3880
    %v3913 = vcvt.s32.f32 %v3881
    %v3914 = vcvt.s32.f32 %v3882
    %v3915 = vcvt.s32.f32 %v3883
    %v3916 = vcvt.s32.f32 %v3884
    %v3917 = vcvt.s32.f32 %v3885
    %v3918 = vcvt.s32.f32 %v3886
    %v3919 = vcvt.s32.f32 %v3887
    %v3920 = vcvt.s32.f32 %v3888
    %v3921 = vcvt.s32.f32 %v3889
    %v3922 = vcvt.s32.f32 %v3890
    %v3923 = vcvt.s32.f32 %v3891
    %v3924 = vcvt.s32.f32 %v3892
    %v3925 = vcvt.s32.f32 %v3893
    %v3926 = vsub.f32 %v217, %v3079
    %v3927 = vsub.f32 %v218, %v3080
    %v3928 = vsub.f32 %v219, %v3081
    %v3929 = vsub.f32 %v220, %v3082
    %v3930 = vsub.f32 %v221, %v3083
    %v3931 = vsub.f32 %v222, %v3084
    %v3932 = vsub.f32 %v223, %v3085
    %v3933 = vsub.f32 %v224, %v3086
    %v3934 = vsub.f32 %v225, %v3087
    %v3935 = vsub.f32 %v226, %v3088
    %v3936 = vsub.f32 %v227, %v3089
    %v3937 = vsub.f32 %v228, %v3090
    %v3938 = vsub.f32 %v229, %v3091
    %v3939 = vsub.f32 %v230, %v3092
    %v3940 = vsub.f32 %v231, %v3093
    %v3941 = vsub.f32 %v232, %v3094
    %v3942 = vsub.f32 %v233, %v3095
    %v3943 = vsub.f32 %v234, %v3096
    %v3944 = vsub.f32 %v235, %v3097
    %v3945 = vsub.f32 %v236, %v3098
    %v3946 = vsub.f32 %v237, %v3099
    %v3947 = vsub.f32 %v238, %v3100
    %v3948 = vsub.f32 %v239, %v3101
    %v3949 = vsub.f32 %v240, %v3102
    %v3950 = vsub.f32 %v241, %v3103
    %v3951 = vsub.f32 %v242, %v3104
    %v3952 = vsub.f32 %v243, %v3105
    %v3953 = vsub.f32 %v244, %v3106
    %v3954 = vsub.f32 %v245, %v3107
    %v3955 = vsub.f32 %v246, %v3108
    %v3956 = vsub.f32 %v247, %v3109
    %v3957 = vsub.f32 %v248, %v3110
    %v3958 = vsub.f32 %v249, %v3668
    %v3959 = vsub.f32 %v250, %v3669
    %v3960 = vsub.f32 %v251, %v3670
    %v3961 = vsub.f32 %v252, %v3671
    %v3962 = vsub.f32 %v253, %v3672
    %v3963 = vsub.f32 %v254, %v3673
    %v3964 = vsub.f32 %v255, %v3674
    %v3965 = vsub.f32 %v256, %v3675
    %v3966 = vsub.f32 %v257, %v3676
    %v3967 = vsub.f32 %v258, %v3677
    %v3968 = vsub.f32 %v259, %v3678
    %v3969 = vsub.f32 %v260, %v3679
    %v3970 = vsub.f32 %v261, %v3680
    %v3971 = vsub.f32 %v262, %v3681
    %v3972 = vsub.f32 %v263, %v3682
    %v3973 = vsub.f32 %v264, %v3683
    %v3974 = vsub.f32 %v265, %v3684
    %v3975 = vsub.f32 %v266, %v3685
    %v3976 = vsub.f32 %v267, %v3686
    %v3977 = vsub.f32 %v268, %v3687
    %v3978 = vsub.f32 %v269, %v3688
    %v3979 = vsub.f32 %v270, %v3689
    %v3980 = vsub.f32 %v271, %v3690
    %v3981 = vsub.f32 %v272, %v3691
    %v3982 = vsub.f32 %v273, %v3692
    %v3983 = vsub.f32 %v274, %v3693
    %v3984 = vsub.f32 %v275, %v3694
    %v3985 = vsub.f32 %v276, %v3695
    %v3986 = vsub.f32 %v277, %v3696
    %v3987 = vsub.f32 %v278, %v3697
    %v3988 = vsub.f32 %v279, %v3698
    %v3989 = vsub.f32 %v280, %v3699
    %v3990 = vsub.f32 %v281, %v3700
    %v3991 = vsub.f32 %v282, %v3701
    %v3992 = vsub.f32 %v283, %v3702
    %v3993 = vsub.f32 %v284, %v3703
    %v3994 = vsub.f32 %v285, %v3704
    %v3995 = vsub.f32 %v286, %v3705
    %v3996 = vsub.f32 %v287, %v3706
    %v3997 = vsub.f32 %v288, %v3707
    %v3998 = vsub.f32 %v289, %v3708
    %v3999 = vsub.f32 %v290, %v3709
    %v4000 = vsub.f32 %v291, %v3710
    %v4001 = vsub.f32 %v292, %v3711
    %v4002 = vsub.f32 %v293, %v3712
    %v4003 = vsub.f32 %v294, %v3713
    %v4004 = vsub.f32 %v295, %v3714
    %v4005 = vsub.f32 %v296, %v3715
    %v4006 = vsub.f32 %v297, %v3716
    %v4007 = vsub.f32 %v298, %v3717
    %v4008 = vsub.f32 %v299, %v3718
    %v4009 = vsub.f32 %v300, %v3719
    %v4010 = vsub.f32 %v301, %v3720
    %v4011 = vsub.f32 %v302, %v3721
    %v4012 = vsub.f32 %v303, %v3722
    %v4013 = vsub.f32 %v304, %v3723
    %v4014 = vsub.f32 %v305, %v3724
    %v4015 = vsub.f32 %v306, %v3725
    %v4016 = vsub.f32 %v307, %v3726
    %v4017 = vsub.f32 %v308, %v3727
    %v4018 = vsub.f32 %v309, %v3728
    %v4019 = vsub.f32 %v310, %v3729
    %v4020 = vsub.f32 %v311, %v3730
    %v4021 = vsub.f32 %v312, %v3731
    %v4022 = vmul.f32 %v3926, %v3926
    %v4023 = vmul.f32 %v3927, %v3927
    %v4024 = vmul.f32 %v3928, %v3928
    %v4025 = vmul.f32 %v3929, %v3929
    %v4026 = vmul.f32 %v3930, %v3930
    %v4027 = vmul.f32 %v3931, %v3931
    %v4028 = vmul.f32 %v3932, %v3932
    %v4029 = vmul.f32 %v3933, %v3933
    %v4030 = vmul.f32 %v3934, %v3934
    %v4031 = vmul.f32 %v3935, %v3935
    %v4032 = vmul.f32 %v3936, %v3936
    %v4033 = vmul.f32 %v3937, %v3937
    %v4034 = vmul.f32 %v3938, %v3938
    %v4035 = vmul.f32 %v3939, %v3939
    %v4036 = vmul.f32 %v3940, %v3940
    %v4037 = vmul.f32 %v3941, %v3941
    %v4038 = vmul.f32 %v3942, %v3942
    %v4039 = vmul.f32 %v3943, %v3943
    %v4040 = vmul.f32 %v3944, %v3944
    %v4041 = vmul.f32 %v3945, %v3945
    %v4042 = vmul.f32 %v3946, %v3946
    %v4043 = vmul.f32 %v3947, %v3947
    %v4044 = vmul.f32 %v3948, %v3948
    %v4045 = vmul.f32 %v3949, %v3949
    %v4046 = vmul.f32 %v3950, %v3950
    %v4047 = vmul.f32 %v3951, %v3951
    %v4048 = vmul.f32 %v3952, %v3952
    %v4049 = vmul.f32 %v3953, %v3953
    %v4050 = vmul.f32 %v3954, %v3954
    %v4051 = vmul.f32 %v3955, %v3955
    %v4052 = vmul.f32 %v3956, %v3956
    %v4053 = vmul.f32 %v3957, %v3957
    %4054 = vadd.xlane.f32.xlu0 %v4022
    %v4055 = vpop.xlane.xlu0 %4054
    %4056 = vadd.xlane.f32.xlu0 %v4023
    %v4057 = vpop.xlane.xlu0 %4056
    %4058 = vadd.xlane.f32.xlu0 %v4024
    %v4059 = vpop.xlane.xlu0 %4058
    %4060 = vadd.xlane.f32.xlu0 %v4025
    %v4061 = vpop.xlane.xlu0 %4060
    %4062 = vadd.xlane.f32.xlu0 %v4026
    %v4063 = vpop.xlane.xlu0 %4062
    %4064 = vadd.xlane.f32.xlu0 %v4027
    %v4065 = vpop.xlane.xlu0 %4064
    %4066 = vadd.xlane.f32.xlu0 %v4028
    %v4067 = vpop.xlane.xlu0 %4066
    %4068 = vadd.xlane.f32.xlu0 %v4029
    %v4069 = vpop.xlane.xlu0 %4068
    %4070 = vadd.xlane.f32.xlu0 %v4030
    %v4071 = vpop.xlane.xlu0 %4070
    %4072 = vadd.xlane.f32.xlu0 %v4031
    %v4073 = vpop.xlane.xlu0 %4072
    %4074 = vadd.xlane.f32.xlu0 %v4032
    %v4075 = vpop.xlane.xlu0 %4074
    %4076 = vadd.xlane.f32.xlu0 %v4033
    %v4077 = vpop.xlane.xlu0 %4076
    %4078 = vadd.xlane.f32.xlu0 %v4034
    %v4079 = vpop.xlane.xlu0 %4078
    %4080 = vadd.xlane.f32.xlu0 %v4035
    %v4081 = vpop.xlane.xlu0 %4080
    %4082 = vadd.xlane.f32.xlu0 %v4036
    %v4083 = vpop.xlane.xlu0 %4082
    %4084 = vadd.xlane.f32.xlu0 %v4037
    %v4085 = vpop.xlane.xlu0 %4084
    %4086 = vadd.xlane.f32.xlu0 %v4038
    %v4087 = vpop.xlane.xlu0 %4086
    %4088 = vadd.xlane.f32.xlu0 %v4039
    %v4089 = vpop.xlane.xlu0 %4088
    %4090 = vadd.xlane.f32.xlu0 %v4040
    %v4091 = vpop.xlane.xlu0 %4090
    %4092 = vadd.xlane.f32.xlu0 %v4041
    %v4093 = vpop.xlane.xlu0 %4092
    %4094 = vadd.xlane.f32.xlu0 %v4042
    %v4095 = vpop.xlane.xlu0 %4094
    %4096 = vadd.xlane.f32.xlu0 %v4043
    %v4097 = vpop.xlane.xlu0 %4096
    %4098 = vadd.xlane.f32.xlu0 %v4044
    %v4099 = vpop.xlane.xlu0 %4098
    %4100 = vadd.xlane.f32.xlu0 %v4045
    %v4101 = vpop.xlane.xlu0 %4100
    %4102 = vadd.xlane.f32.xlu0 %v4046
    %v4103 = vpop.xlane.xlu0 %4102
    %4104 = vadd.xlane.f32.xlu0 %v4047
    %v4105 = vpop.xlane.xlu0 %4104
    %4106 = vadd.xlane.f32.xlu0 %v4048
    %v4107 = vpop.xlane.xlu0 %4106
    %4108 = vadd.xlane.f32.xlu0 %v4049
    %v4109 = vpop.xlane.xlu0 %4108
    %4110 = vadd.xlane.f32.xlu0 %v4050
    %v4111 = vpop.xlane.xlu0 %4110
    %4112 = vadd.xlane.f32.xlu0 %v4051
    %v4113 = vpop.xlane.xlu0 %4112
    %4114 = vadd.xlane.f32.xlu0 %v4052
    %v4115 = vpop.xlane.xlu0 %4114
    %4116 = vadd.xlane.f32.xlu0 %v4053
    %v4117 = vpop.xlane.xlu0 %4116
    %v4118 = vmul.f32 %v4055, %v3894
    %v4119 = vmul.f32 %v4057, %v3895
    %v4120 = vmul.f32 %v4059, %v3896
    %v4121 = vmul.f32 %v4061, %v3897
    %v4122 = vmul.f32 %v4063, %v3898
    %v4123 = vmul.f32 %v4065, %v3899
    %v4124 = vmul.f32 %v4067, %v3900
    %v4125 = vmul.f32 %v4069, %v3901
    %v4126 = vmul.f32 %v4071, %v3902
    %v4127 = vmul.f32 %v4073, %v3903
    %v4128 = vmul.f32 %v4075, %v3904
    %v4129 = vmul.f32 %v4077, %v3905
    %v4130 = vmul.f32 %v4079, %v3906
    %v4131 = vmul.f32 %v4081, %v3907
    %v4132 = vmul.f32 %v4083, %v3908
    %v4133 = vmul.f32 %v4085, %v3909
    %v4134 = vmul.f32 %v4087, %v3910
    %v4135 = vmul.f32 %v4089, %v3911
    %v4136 = vmul.f32 %v4091, %v3912
    %v4137 = vmul.f32 %v4093, %v3913
    %v4138 = vmul.f32 %v4095, %v3914
    %v4139 = vmul.f32 %v4097, %v3915
    %v4140 = vmul.f32 %v4099, %v3916
    %v4141 = vmul.f32 %v4101, %v3917
    %v4142 = vmul.f32 %v4103, %v3918
    %v4143 = vmul.f32 %v4105, %v3919
    %v4144 = vmul.f32 %v4107, %v3920
    %v4145 = vmul.f32 %v4109, %v3921
    %v4146 = vmul.f32 %v4111, %v3922
    %v4147 = vmul.f32 %v4113, %v3923
    %v4148 = vmul.f32 %v4115, %v3924
    %v4149 = vmul.f32 %v4117, %v3925
    %vm4150 = vcmask 7168
    %v4151 = vsel %vm4150, %v4118, 0.0
    %v4152 = vsel %vm4150, %v4119, 0.0
    %v4153 = vadd.f32 %v4151, %v4152
    %v4154 = vsel %vm4150, %v4120, 0.0
    %v4155 = vadd.f32 %v4153, %v4154
    %v4156 = vsel %vm4150, %v4121, 0.0
    %v4157 = vadd.f32 %v4155, %v4156
    %v4158 = vsel %vm4150, %v4122, 0.0
    %v4159 = vadd.f32 %v4157, %v4158
    %v4160 = vsel %vm4150, %v4123, 0.0
    %v4161 = vadd.f32 %v4159, %v4160
    %v4162 = vsel %vm4150, %v4124, 0.0
    %v4163 = vadd.f32 %v4161, %v4162
    %v4164 = vsel %vm4150, %v4125, 0.0
    %v4165 = vadd.f32 %v4163, %v4164
    %v4166 = vsel %vm4150, %v4126, 0.0
    %v4167 = vadd.f32 %v4165, %v4166
    %v4168 = vsel %vm4150, %v4127, 0.0
    %v4169 = vadd.f32 %v4167, %v4168
    %v4170 = vsel %vm4150, %v4128, 0.0
    %v4171 = vadd.f32 %v4169, %v4170
    %v4172 = vsel %vm4150, %v4129, 0.0
    %v4173 = vadd.f32 %v4171, %v4172
    %v4174 = vsel %vm4150, %v4130, 0.0
    %v4175 = vadd.f32 %v4173, %v4174
    %v4176 = vsel %vm4150, %v4131, 0.0
    %v4177 = vadd.f32 %v4175, %v4176
    %v4178 = vsel %vm4150, %v4132, 0.0
    %v4179 = vadd.f32 %v4177, %v4178
    %v4180 = vsel %vm4150, %v4133, 0.0
    %v4181 = vadd.f32 %v4179, %v4180
    %v4182 = vsel %vm4150, %v4134, 0.0
    %v4183 = vadd.f32 %v4181, %v4182
    %v4184 = vsel %vm4150, %v4135, 0.0
    %v4185 = vadd.f32 %v4183, %v4184
    %v4186 = vsel %vm4150, %v4136, 0.0
    %v4187 = vadd.f32 %v4185, %v4186
    %v4188 = vsel %vm4150, %v4137, 0.0
    %v4189 = vadd.f32 %v4187, %v4188
    %v4190 = vsel %vm4150, %v4138, 0.0
    %v4191 = vadd.f32 %v4189, %v4190
    %v4192 = vsel %vm4150, %v4139, 0.0
    %v4193 = vadd.f32 %v4191, %v4192
    %v4194 = vsel %vm4150, %v4140, 0.0
    %v4195 = vadd.f32 %v4193, %v4194
    %v4196 = vsel %vm4150, %v4141, 0.0
    %v4197 = vadd.f32 %v4195, %v4196
    %v4198 = vsel %vm4150, %v4142, 0.0
    %v4199 = vadd.f32 %v4197, %v4198
    %v4200 = vsel %vm4150, %v4143, 0.0
    %v4201 = vadd.f32 %v4199, %v4200
    %v4202 = vsel %vm4150, %v4144, 0.0
    %v4203 = vadd.f32 %v4201, %v4202
    %v4204 = vsel %vm4150, %v4145, 0.0
    %v4205 = vadd.f32 %v4203, %v4204
    %v4206 = vsel %vm4150, %v4146, 0.0
    %v4207 = vadd.f32 %v4205, %v4206
    %v4208 = vsel %vm4150, %v4147, 0.0
    %v4209 = vadd.f32 %v4207, %v4208
    %v4210 = vsel %vm4150, %v4148, 0.0
    %v4211 = vadd.f32 %v4209, %v4210
    %v4212 = vsel %vm4150, %v4149, 0.0
    %v4213 = vadd.f32 %v4211, %v4212
    %4214 = vadd.xlane.f32.xlu0 %v4213
    %v4215 = vpop.xlane.xlu0 %4214
    %v4216 = vrot.slane %v4215, 4
    %v4217 = vadd.f32 %v4215, %v4216
    %v4218 = vrot.slane %v4217, 2
    %v4219 = vadd.f32 %v4217, %v4218
    %v4220 = vrot.slane %v4219, 1
    %v4221 = vadd.f32 %v4219, %v4220
    %s4222 = vtos %v4221
    %v4223 = vmul.f32 %v3958, %v3958
    %v4224 = vmul.f32 %v3959, %v3959
    %v4225 = vmul.f32 %v3960, %v3960
    %v4226 = vmul.f32 %v3961, %v3961
    %v4227 = vmul.f32 %v3962, %v3962
    %v4228 = vmul.f32 %v3963, %v3963
    %v4229 = vmul.f32 %v3964, %v3964
    %v4230 = vmul.f32 %v3965, %v3965
    %v4231 = vmul.f32 %v3966, %v3966
    %v4232 = vmul.f32 %v3967, %v3967
    %v4233 = vmul.f32 %v3968, %v3968
    %v4234 = vmul.f32 %v3969, %v3969
    %v4235 = vmul.f32 %v3970, %v3970
    %v4236 = vmul.f32 %v3971, %v3971
    %v4237 = vmul.f32 %v3972, %v3972
    %v4238 = vmul.f32 %v3973, %v3973
    %v4239 = vmul.f32 %v3974, %v3974
    %v4240 = vmul.f32 %v3975, %v3975
    %v4241 = vmul.f32 %v3976, %v3976
    %v4242 = vmul.f32 %v3977, %v3977
    %v4243 = vmul.f32 %v3978, %v3978
    %v4244 = vmul.f32 %v3979, %v3979
    %v4245 = vmul.f32 %v3980, %v3980
    %v4246 = vmul.f32 %v3981, %v3981
    %v4247 = vmul.f32 %v3982, %v3982
    %v4248 = vmul.f32 %v3983, %v3983
    %v4249 = vmul.f32 %v3984, %v3984
    %v4250 = vmul.f32 %v3985, %v3985
    %v4251 = vmul.f32 %v3986, %v3986
    %v4252 = vmul.f32 %v3987, %v3987
    %v4253 = vmul.f32 %v3988, %v3988
    %v4254 = vmul.f32 %v3989, %v3989
    %v4255 = vmul.f32 %v3990, %v3990
    %v4256 = vmul.f32 %v3991, %v3991
    %v4257 = vmul.f32 %v3992, %v3992
    %v4258 = vmul.f32 %v3993, %v3993
    %v4259 = vmul.f32 %v3994, %v3994
    %v4260 = vmul.f32 %v3995, %v3995
    %v4261 = vmul.f32 %v3996, %v3996
    %v4262 = vmul.f32 %v3997, %v3997
    %v4263 = vmul.f32 %v3998, %v3998
    %v4264 = vmul.f32 %v3999, %v3999
    %v4265 = vmul.f32 %v4000, %v4000
    %v4266 = vmul.f32 %v4001, %v4001
    %v4267 = vmul.f32 %v4002, %v4002
    %v4268 = vmul.f32 %v4003, %v4003
    %v4269 = vmul.f32 %v4004, %v4004
    %v4270 = vmul.f32 %v4005, %v4005
    %v4271 = vmul.f32 %v4006, %v4006
    %v4272 = vmul.f32 %v4007, %v4007
    %v4273 = vmul.f32 %v4008, %v4008
    %v4274 = vmul.f32 %v4009, %v4009
    %v4275 = vmul.f32 %v4010, %v4010
    %v4276 = vmul.f32 %v4011, %v4011
    %v4277 = vmul.f32 %v4012, %v4012
    %v4278 = vmul.f32 %v4013, %v4013
    %v4279 = vmul.f32 %v4014, %v4014
    %v4280 = vmul.f32 %v4015, %v4015
    %v4281 = vmul.f32 %v4016, %v4016
    %v4282 = vmul.f32 %v4017, %v4017
    %v4283 = vmul.f32 %v4018, %v4018
    %v4284 = vmul.f32 %v4019, %v4019
    %v4285 = vmul.f32 %v4020, %v4020
    %v4286 = vmul.f32 %v4021, %v4021
    %v4287 = vadd.f32 %v4223, %v4224
    %4288 = vadd.xlane.f32.xlu0 %v4287
    %v4289 = vpop.xlane.xlu0 %4288
    %v4290 = vadd.f32 %v4225, %v4226
    %4291 = vadd.xlane.f32.xlu0 %v4290
    %v4292 = vpop.xlane.xlu0 %4291
    %v4293 = vadd.f32 %v4227, %v4228
    %4294 = vadd.xlane.f32.xlu0 %v4293
    %v4295 = vpop.xlane.xlu0 %4294
    %v4296 = vadd.f32 %v4229, %v4230
    %4297 = vadd.xlane.f32.xlu0 %v4296
    %v4298 = vpop.xlane.xlu0 %4297
    %v4299 = vadd.f32 %v4231, %v4232
    %4300 = vadd.xlane.f32.xlu0 %v4299
    %v4301 = vpop.xlane.xlu0 %4300
    %v4302 = vadd.f32 %v4233, %v4234
    %4303 = vadd.xlane.f32.xlu0 %v4302
    %v4304 = vpop.xlane.xlu0 %4303
    %v4305 = vadd.f32 %v4235, %v4236
    %4306 = vadd.xlane.f32.xlu0 %v4305
    %v4307 = vpop.xlane.xlu0 %4306
    %v4308 = vadd.f32 %v4237, %v4238
    %4309 = vadd.xlane.f32.xlu0 %v4308
    %v4310 = vpop.xlane.xlu0 %4309
    %v4311 = vadd.f32 %v4239, %v4240
    %4312 = vadd.xlane.f32.xlu0 %v4311
    %v4313 = vpop.xlane.xlu0 %4312
    %v4314 = vadd.f32 %v4241, %v4242
    %4315 = vadd.xlane.f32.xlu0 %v4314
    %v4316 = vpop.xlane.xlu0 %4315
    %v4317 = vadd.f32 %v4243, %v4244
    %4318 = vadd.xlane.f32.xlu0 %v4317
    %v4319 = vpop.xlane.xlu0 %4318
    %v4320 = vadd.f32 %v4245, %v4246
    %4321 = vadd.xlane.f32.xlu0 %v4320
    %v4322 = vpop.xlane.xlu0 %4321
    %v4323 = vadd.f32 %v4247, %v4248
    %4324 = vadd.xlane.f32.xlu0 %v4323
    %v4325 = vpop.xlane.xlu0 %4324
    %v4326 = vadd.f32 %v4249, %v4250
    %4327 = vadd.xlane.f32.xlu0 %v4326
    %v4328 = vpop.xlane.xlu0 %4327
    %v4329 = vadd.f32 %v4251, %v4252
    %4330 = vadd.xlane.f32.xlu0 %v4329
    %v4331 = vpop.xlane.xlu0 %4330
    %v4332 = vadd.f32 %v4253, %v4254
    %4333 = vadd.xlane.f32.xlu0 %v4332
    %v4334 = vpop.xlane.xlu0 %4333
    %v4335 = vadd.f32 %v4255, %v4256
    %4336 = vadd.xlane.f32.xlu0 %v4335
    %v4337 = vpop.xlane.xlu0 %4336
    %v4338 = vadd.f32 %v4257, %v4258
    %4339 = vadd.xlane.f32.xlu0 %v4338
    %v4340 = vpop.xlane.xlu0 %4339
    %v4341 = vadd.f32 %v4259, %v4260
    %4342 = vadd.xlane.f32.xlu0 %v4341
    %v4343 = vpop.xlane.xlu0 %4342
    %v4344 = vadd.f32 %v4261, %v4262
    %4345 = vadd.xlane.f32.xlu0 %v4344
    %v4346 = vpop.xlane.xlu0 %4345
    %v4347 = vadd.f32 %v4263, %v4264
    %4348 = vadd.xlane.f32.xlu0 %v4347
    %v4349 = vpop.xlane.xlu0 %4348
    %v4350 = vadd.f32 %v4265, %v4266
    %4351 = vadd.xlane.f32.xlu0 %v4350
    %v4352 = vpop.xlane.xlu0 %4351
    %v4353 = vadd.f32 %v4267, %v4268
    %4354 = vadd.xlane.f32.xlu0 %v4353
    %v4355 = vpop.xlane.xlu0 %4354
    %v4356 = vadd.f32 %v4269, %v4270
    %4357 = vadd.xlane.f32.xlu0 %v4356
    %v4358 = vpop.xlane.xlu0 %4357
    %v4359 = vadd.f32 %v4271, %v4272
    %4360 = vadd.xlane.f32.xlu0 %v4359
    %v4361 = vpop.xlane.xlu0 %4360
    %v4362 = vadd.f32 %v4273, %v4274
    %4363 = vadd.xlane.f32.xlu0 %v4362
    %v4364 = vpop.xlane.xlu0 %4363
    %v4365 = vadd.f32 %v4275, %v4276
    %4366 = vadd.xlane.f32.xlu0 %v4365
    %v4367 = vpop.xlane.xlu0 %4366
    %v4368 = vadd.f32 %v4277, %v4278
    %4369 = vadd.xlane.f32.xlu0 %v4368
    %v4370 = vpop.xlane.xlu0 %4369
    %v4371 = vadd.f32 %v4279, %v4280
    %4372 = vadd.xlane.f32.xlu0 %v4371
    %v4373 = vpop.xlane.xlu0 %4372
    %v4374 = vadd.f32 %v4281, %v4282
    %4375 = vadd.xlane.f32.xlu0 %v4374
    %v4376 = vpop.xlane.xlu0 %4375
    %v4377 = vadd.f32 %v4283, %v4284
    %4378 = vadd.xlane.f32.xlu0 %v4377
    %v4379 = vpop.xlane.xlu0 %4378
    %v4380 = vadd.f32 %v4285, %v4286
    %4381 = vadd.xlane.f32.xlu0 %v4380
    %v4382 = vpop.xlane.xlu0 %4381
    %v4383 = vmul.f32 %v4289, %v3894
    %v4384 = vmul.f32 %v4292, %v3895
    %v4385 = vmul.f32 %v4295, %v3896
    %v4386 = vmul.f32 %v4298, %v3897
    %v4387 = vmul.f32 %v4301, %v3898
    %v4388 = vmul.f32 %v4304, %v3899
    %v4389 = vmul.f32 %v4307, %v3900
    %v4390 = vmul.f32 %v4310, %v3901
    %v4391 = vmul.f32 %v4313, %v3902
    %v4392 = vmul.f32 %v4316, %v3903
    %v4393 = vmul.f32 %v4319, %v3904
    %v4394 = vmul.f32 %v4322, %v3905
    %v4395 = vmul.f32 %v4325, %v3906
    %v4396 = vmul.f32 %v4328, %v3907
    %v4397 = vmul.f32 %v4331, %v3908
    %v4398 = vmul.f32 %v4334, %v3909
    %v4399 = vmul.f32 %v4337, %v3910
    %v4400 = vmul.f32 %v4340, %v3911
    %v4401 = vmul.f32 %v4343, %v3912
    %v4402 = vmul.f32 %v4346, %v3913
    %v4403 = vmul.f32 %v4349, %v3914
    %v4404 = vmul.f32 %v4352, %v3915
    %v4405 = vmul.f32 %v4355, %v3916
    %v4406 = vmul.f32 %v4358, %v3917
    %v4407 = vmul.f32 %v4361, %v3918
    %v4408 = vmul.f32 %v4364, %v3919
    %v4409 = vmul.f32 %v4367, %v3920
    %v4410 = vmul.f32 %v4370, %v3921
    %v4411 = vmul.f32 %v4373, %v3922
    %v4412 = vmul.f32 %v4376, %v3923
    %v4413 = vmul.f32 %v4379, %v3924
    %v4414 = vmul.f32 %v4382, %v3925
    %v4415 = vsel %vm4150, %v4383, 0.0
    %v4416 = vsel %vm4150, %v4384, 0.0
    %v4417 = vadd.f32 %v4415, %v4416
    %v4418 = vsel %vm4150, %v4385, 0.0
    %v4419 = vadd.f32 %v4417, %v4418
    %v4420 = vsel %vm4150, %v4386, 0.0
    %v4421 = vadd.f32 %v4419, %v4420
    %v4422 = vsel %vm4150, %v4387, 0.0
    %v4423 = vadd.f32 %v4421, %v4422
    %v4424 = vsel %vm4150, %v4388, 0.0
    %v4425 = vadd.f32 %v4423, %v4424
    %v4426 = vsel %vm4150, %v4389, 0.0
    %v4427 = vadd.f32 %v4425, %v4426
    %v4428 = vsel %vm4150, %v4390, 0.0
    %v4429 = vadd.f32 %v4427, %v4428
    %v4430 = vsel %vm4150, %v4391, 0.0
    %v4431 = vadd.f32 %v4429, %v4430
    %v4432 = vsel %vm4150, %v4392, 0.0
    %v4433 = vadd.f32 %v4431, %v4432
    %v4434 = vsel %vm4150, %v4393, 0.0
    %v4435 = vadd.f32 %v4433, %v4434
    %v4436 = vsel %vm4150, %v4394, 0.0
    %v4437 = vadd.f32 %v4435, %v4436
    %v4438 = vsel %vm4150, %v4395, 0.0
    %v4439 = vadd.f32 %v4437, %v4438
    %v4440 = vsel %vm4150, %v4396, 0.0
    %v4441 = vadd.f32 %v4439, %v4440
    %v4442 = vsel %vm4150, %v4397, 0.0
    %v4443 = vadd.f32 %v4441, %v4442
    %v4444 = vsel %vm4150, %v4398, 0.0
    %v4445 = vadd.f32 %v4443, %v4444
    %v4446 = vsel %vm4150, %v4399, 0.0
    %v4447 = vadd.f32 %v4445, %v4446
    %v4448 = vsel %vm4150, %v4400, 0.0
    %v4449 = vadd.f32 %v4447, %v4448
    %v4450 = vsel %vm4150, %v4401, 0.0
    %v4451 = vadd.f32 %v4449, %v4450
    %v4452 = vsel %vm4150, %v4402, 0.0
    %v4453 = vadd.f32 %v4451, %v4452
    %v4454 = vsel %vm4150, %v4403, 0.0
    %v4455 = vadd.f32 %v4453, %v4454
    %v4456 = vsel %vm4150, %v4404, 0.0
    %v4457 = vadd.f32 %v4455, %v4456
    %v4458 = vsel %vm4150, %v4405, 0.0
    %v4459 = vadd.f32 %v4457, %v4458
    %v4460 = vsel %vm4150, %v4406, 0.0
    %v4461 = vadd.f32 %v4459, %v4460
    %v4462 = vsel %vm4150, %v4407, 0.0
    %v4463 = vadd.f32 %v4461, %v4462
    %v4464 = vsel %vm4150, %v4408, 0.0
    %v4465 = vadd.f32 %v4463, %v4464
    %v4466 = vsel %vm4150, %v4409, 0.0
    %v4467 = vadd.f32 %v4465, %v4466
    %v4468 = vsel %vm4150, %v4410, 0.0
    %v4469 = vadd.f32 %v4467, %v4468
    %v4470 = vsel %vm4150, %v4411, 0.0
    %v4471 = vadd.f32 %v4469, %v4470
    %v4472 = vsel %vm4150, %v4412, 0.0
    %v4473 = vadd.f32 %v4471, %v4472
    %v4474 = vsel %vm4150, %v4413, 0.0
    %v4475 = vadd.f32 %v4473, %v4474
    %v4476 = vsel %vm4150, %v4414, 0.0
    %v4477 = vadd.f32 %v4475, %v4476
    %4478 = vadd.xlane.f32.xlu0 %v4477
    %v4479 = vpop.xlane.xlu0 %4478
    %v4480 = vrot.slane %v4479, 4
    %v4481 = vadd.f32 %v4479, %v4480
    %v4482 = vrot.slane %v4481, 2
    %v4483 = vadd.f32 %v4481, %v4482
    %v4484 = vrot.slane %v4483, 1
    %v4485 = vadd.f32 %v4483, %v4484
    %s4486 = vtos %v4485
    %v4487 = vlaneseq
    %v4488 = vand.u32 %v4487, 127
    %vm4489 = vcmp.eq.s32.totalorder %v4488, 0
    %vm4490 = vcmp.eq.s32.totalorder %v4488, 1
    %v4491 = vstv %s4486
    %v4492 = vsel %vm4490, %v4491, 0.0
    %v4493 = vstv %s4222
    %v4494 = vsel %vm4489, %v4493, %v4492
    %4495 = vst [vmem:[%s17] sm:$0x1] %v4494
    // Predicated region
    $region104: #{autoencoder_forward.1} parent=1 // pred_check
      _
    $region105: #{autoencoder_forward.1} parent=1 // pred_check_branch
      %4497 = sbr.rel (0) target = $region107
    $region106: #{autoencoder_forward.1} parent=1 // pred_region
      _
    $region107: #{autoencoder_forward.1} parent=1 // pred_fallthru
      _
    // Predicated region
    $region108: #{autoencoder_forward.1} parent=1 // pred_check
      _
    $region109: #{autoencoder_forward.1} parent=1 // pred_check_branch
      %4499 = sbr.rel (0) target = $region111
    $region110: #{autoencoder_forward.1} parent=1 // pred_region
      _
    $region111: #{autoencoder_forward.1} parent=1 // pred_fallthru
      _
    // Predicated region
    $region112: #{autoencoder_forward.1} parent=1 // pred_check
      _
    $region113: #{autoencoder_forward.1} parent=1 // pred_check_branch
      %4501 = sbr.rel (0) target = $region115
    $region114: #{autoencoder_forward.1} parent=1 // pred_region
      _
    $region115: #{autoencoder_forward.1} parent=1 // pred_fallthru
      _
    // Predicated region
    $region116: #{autoencoder_forward.1} parent=1 // pred_check
      _
    $region117: #{autoencoder_forward.1} parent=1 // pred_check_branch
      %4503 = sbr.rel (0) target = $region119
    $region118: #{autoencoder_forward.1} parent=1 // pred_region
      _
    $region119: #{autoencoder_forward.1} parent=1 // pred_fallthru
      _
    %4504 = vsyncpa [#allocation8], 1
    %4505 = vsyncpa [#allocation10], 1
    %4506 = vsyncpa [#allocation13], 1
    %4507 = vsyncpa [#allocation16], 1
    %4508 = vsyncpa [#allocation19], 1
  %4509 = vsyncmov [#allocation4]
  %s4510 = vpop.sfrf %4509
  %p4511 = scmp.eq.s32.totalorder %s4510, 0
  %p4512 = pneg %p4511
  %4514 = shalt.err (%p4512)
  %s4515 = scalar_lea.sflag [#allocation4], 1
  %4516 = vsyncmov %s4515
  %s4517 = vpop.sfrf %4516
  %p4518 = scmp.eq.s32.totalorder %s4517, 0
  %p4519 = pneg %p4518
  %4521 = shalt.err (%p4519)

</llo_original>
